<compile_context>
chip_gen: v7x
topology: tpu7x:2x2x1
jax: 0.10.0
libtpu: 0.0.40
codegen_flags: <defaults>
</compile_context>

<pallas_src>
import functools

import jax
import jax.numpy as jnp
from jax.experimental import pallas as pl
from jax.experimental.pallas import tpu as pltpu


# ----------------------------------------------------------------------------
# Tile-size helper: largest candidate that evenly divides `dim`, else full dim
# (full dims always satisfy the (8,128) BlockSpec rule).
# ----------------------------------------------------------------------------
def _pick_tile(dim, candidates):
    for c in candidates:
        if dim >= c and dim % c == 0:
            return c
    return dim


# ----------------------------------------------------------------------------
# Generic batched tiled GEMM:  (P,M,K) @ (P,K,N) + bias [+ add]  -> (P,M,N)
#   - bf16 operands, f32 accumulation in a VMEM scratch
#   - optional SiLU on the input (time MLP), computed in f32
#   - optional fused elementwise add (residual / skip epilogues)
# ----------------------------------------------------------------------------
def _gemm_kernel(x_ref, w_ref, b_ref, *rest, input_silu, has_add):
    if has_add:
        add_ref, o_ref, acc_ref = rest
    else:
        o_ref, acc_ref = rest
        add_ref = None

    @pl.when(pl.program_id(3) == 0)
    def _init():
        acc_ref[...] = jnp.zeros_like(acc_ref)

    x = x_ref[0]
    if input_silu:                       # SiLU in f32 (v5e has no bf16 VPU/EUP)
        xf = x.astype(jnp.float32)
        xf = xf * jax.nn.sigmoid(xf)
        x = xf.astype(jnp.bfloat16)
    acc_ref[...] += jnp.dot(x, w_ref[0], preferred_element_type=jnp.float32)

    @pl.when(pl.program_id(3) == pl.num_programs(3) - 1)
    def _finalize():
        r = acc_ref[...] + b_ref[0]
        if has_add:
            r = r + add_ref[0]
        o_ref[0] = r.astype(o_ref.dtype)


def matmul_bias(x, w, b, add=None, input_silu=False, out_dtype=jnp.float32):
    """Tiled (optionally batched) GEMM with fused bias / add / input-SiLU."""
    squeeze = x.ndim == 2
    if squeeze:
        x, w = x[None], w[None]
        if add is not None:
            add = add[None]
    P, M, K = x.shape
    N = w.shape[-1]

    b = jnp.asarray(b, jnp.float32)
    if b.ndim == 1:
        b = jnp.broadcast_to(b.reshape(1, 1, N), (P, 1, N))
    else:
        b = b.reshape(P, 1, N).astype(jnp.float32)

    if not input_silu:
        x = x.astype(jnp.bfloat16)       # bf16 operands, f32 accumulation
    w = w.astype(jnp.bfloat16)
    if add is not None:
        add = add.astype(jnp.float32)

    tm = _pick_tile(M, (256, 128, 8))
    tn = _pick_tile(N, (256, 128))
    tk = _pick_tile(K, (512, 256, 128))
    grid = (P, M // tm, N // tn, K // tk)

    in_specs = [
        pl.BlockSpec((1, tm, tk), lambda p, i, j, k: (p, i, k)),
        pl.BlockSpec((1, tk, tn), lambda p, i, j, k: (p, k, j)),
        pl.BlockSpec((1, 1, tn), lambda p, i, j, k: (p, 0, j)),
    ]
    args = [x, w, b]
    if add is not None:
        in_specs.append(pl.BlockSpec((1, tm, tn), lambda p, i, j, k: (p, i, j)))
        args.append(add)

    out = pl.pallas_call(
        functools.partial(_gemm_kernel, input_silu=input_silu,
                          has_add=add is not None),
        out_shape=jax.ShapeDtypeStruct((P, M, N), out_dtype),
        grid=grid,
        in_specs=in_specs,
        out_specs=pl.BlockSpec((1, tm, tn), lambda p, i, j, k: (p, i, j)),
        scratch_shapes=[pltpu.VMEM((tm, tn), jnp.float32)],
        compiler_params=pltpu.CompilerParams(
            dimension_semantics=("parallel", "parallel", "parallel", "arbitrary")),
    )(*args)
    return out[0] if squeeze else out


# ----------------------------------------------------------------------------
# Channels-last GroupNorm (+ optional fused time-embedding add, + optional
# fused SiLU).  x: (B, L, C); stats over (L, channels-in-group) per batch.
# gamma/beta are passed as (1, C) (no per-element HBM materialization).
# ----------------------------------------------------------------------------
def _groupnorm_kernel(x_ref, g_ref, b_ref, m_ref, mt_ref, *rest,
                      eps, apply_silu, has_temb, inv_count):
    if has_temb:
        temb_ref, o_ref = rest
    else:
        (o_ref,) = rest

    x = x_ref[0].astype(jnp.float32)                          # (L, C)
    if has_temb:
        x = x + temb_ref[0]                                   # (1, C) broadcast

    # Group statistics via tiny matmuls with the 0/1 group-assignment matrix.
    sum_c = jnp.sum(x, axis=0, keepdims=True)                 # (1, C)
    mean_g = jnp.dot(sum_c, m_ref[...],
                     preferred_element_type=jnp.float32) * inv_count   # (1, G)
    mean_c = jnp.dot(mean_g, mt_ref[...],
                     preferred_element_type=jnp.float32)      # (1, C)
    d = x - mean_c
    ss_c = jnp.sum(d * d, axis=0, keepdims=True)              # (1, C)
    var_g = jnp.dot(ss_c, m_ref[...],
                    preferred_element_type=jnp.float32) * inv_count    # (1, G)
    inv_g = jax.lax.rsqrt(var_g + eps)
    inv_c = jnp.dot(inv_g, mt_ref[...],
                    preferred_element_type=jnp.float32)       # (1, C)

    y = d * inv_c * g_ref[...] + b_ref[...]
    if apply_silu:
        y = y * jax.nn.sigmoid(y)
    o_ref[0] = y


def group_norm_cl(x_blc, gamma, beta, num_groups, temb=None,
                  apply_silu=False, eps=1e-5):
    """GroupNorm matching nn.GroupNorm(eps=1e-5, affine) on a (B, L, C) view."""
    B, L, C = x_blc.shape
    Cg = C // num_groups
    m = (jnp.arange(C)[:, None] // Cg ==
         jnp.arange(num_groups)[None, :]).astype(jnp.float32)          # (C, G)
    mt = m.T                                                           # (G, C)

    args = [x_blc.astype(jnp.float32),
            gamma.reshape(1, C).astype(jnp.float32),
            beta.reshape(1, C).astype(jnp.float32), m, mt]
    in_specs = [
        pl.BlockSpec((1, L, C), lambda bi: (bi, 0, 0)),
        pl.BlockSpec((1, C), lambda bi: (0, 0)),
        pl.BlockSpec((1, C), lambda bi: (0, 0)),
        pl.BlockSpec((C, num_groups), lambda bi: (0, 0)),
        pl.BlockSpec((num_groups, C), lambda bi: (0, 0)),
    ]
    if temb is not None:
        args.append(temb.reshape(B, 1, C).astype(jnp.float32))
        in_specs.append(pl.BlockSpec((1, 1, C), lambda bi: (bi, 0, 0)))

    return pl.pallas_call(
        functools.partial(_groupnorm_kernel, eps=eps, apply_silu=apply_silu,
                          has_temb=temb is not None, inv_count=1.0 / (L * Cg)),
        out_shape=jax.ShapeDtypeStruct((B, L, C), jnp.float32),
        grid=(B,),
        in_specs=in_specs,
        out_specs=pl.BlockSpec((1, L, C), lambda bi: (bi, 0, 0)),
        compiler_params=pltpu.CompilerParams(dimension_semantics=("parallel",)),
    )(*args)


# ----------------------------------------------------------------------------
# Multi-head attention core: per (batch, head) scaled-dot-product attention.
# Grid over B*heads (parallel axis -> megacore on v7x).
# ----------------------------------------------------------------------------
def _mha_kernel(q_ref, k_ref, v_ref, o_ref, *, scale):
    q = (q_ref[0].astype(jnp.float32) * scale).astype(jnp.bfloat16)    # (L, Dh)
    k = k_ref[0]
    v = v_ref[0]
    s = jax.lax.dot_general(q, k, (((1,), (1,)), ((), ())),
                            preferred_element_type=jnp.float32)        # (L, L)
    s = s - jnp.max(s, axis=-1, keepdims=True)
    p = jnp.exp(s)
    denom = jnp.sum(p, axis=-1, keepdims=True)
    p = p * pl.reciprocal(denom, approx=True)
    o_ref[0] = jnp.dot(p.astype(jnp.bfloat16), v,
                       preferred_element_type=jnp.float32)


def mha_core(qh, kh, vh, scale):
    BH, L, Dh = qh.shape
    spec = pl.BlockSpec((1, L, Dh), lambda i: (i, 0, 0))
    return pl.pallas_call(
        functools.partial(_mha_kernel, scale=scale),
        out_shape=jax.ShapeDtypeStruct((BH, L, Dh), jnp.float32),
        grid=(BH,),
        in_specs=[spec, spec, spec],
        out_specs=spec,
        compiler_params=pltpu.CompilerParams(dimension_semantics=("parallel",)),
    )(qh, kh, vh)


# ----------------------------------------------------------------------------
# Convolutions (channels-last glue + Pallas GEMMs).
# ----------------------------------------------------------------------------
def _im2col(x_nhwc, kh, kw, pad):
    """Slice+concat im2col, K ordering (tap, Cin) -- no 5-D stack/transpose."""
    B, H, W, C = x_nhwc.shape
    xp = jnp.pad(x_nhwc, ((0, 0), (pad, pad), (pad, pad), (0, 0)))
    Ho = H + 2 * pad - kh + 1
    Wo = W + 2 * pad - kw + 1
    cols = [xp[:, i:i + Ho, j:j + Wo, :] for i in range(kh) for j in range(kw)]
    patches = jnp.concatenate(cols, axis=-1)              # (B, Ho, Wo, kh*kw*C)
    return patches.reshape(B * Ho * Wo, kh * kw * C), Ho, Wo


def conv2d_cl(x_nhwc, w_oihw, bias, pad):
    """nn.Conv2d equivalent on a channels-last activation."""
    Cout, Cin, kh, kw = w_oihw.shape
    patches, Ho, Wo = _im2col(x_nhwc, kh, kw, pad)
    wmat = w_oihw.transpose(2, 3, 1, 0).reshape(kh * kw * Cin, Cout)
    out = matmul_bias(patches, wmat, bias)                # Pallas tiled GEMM
    return out.reshape(x_nhwc.shape[0], Ho, Wo, Cout)


def conv_transpose2d_cl(x_nhwc, w_t, bias):
    """nn.ConvTranspose2d(k=4, s=2, p=1) via sub-pixel phase decomposition:
    each output-parity phase (ph, pw) is a 2x2 'valid' conv over the 1-padded
    input; the 4 phases run as ONE batched GEMM (4x fewer MACs/bytes than the
    zero-insertion formulation)."""
    B, H, W, Cin = x_nhwc.shape
    Cout = w_t.shape[1]
    xp = jnp.pad(x_nhwc, ((0, 0), (1, 1), (1, 1), (0, 0)))
    tap_rows = {0: jnp.asarray([3, 1]), 1: jnp.asarray([2, 0])}

    patch_list, w_list = [], []
    for ph in (0, 1):
        for pw in (0, 1):
            cols = [xp[:, ph + a:ph + a + H, pw + b:pw + b + W, :]
                    for a in range(2) for b in range(2)]
            patch_list.append(
                jnp.concatenate(cols, axis=-1).reshape(B * H * W, 4 * Cin))
            wsel = w_t[:, :, tap_rows[ph], :][:, :, :, tap_rows[pw]]
            w_list.append(wsel.transpose(2, 3, 0, 1).reshape(4 * Cin, Cout))

    patches = jnp.stack(patch_list)                       # (4, B*H*W, 4*Cin)
    wmats = jnp.stack(w_list)                             # (4, 4*Cin, Cout)
    out = matmul_bias(patches, wmats, bias)               # (4, B*H*W, Cout)
    out = out.reshape(2, 2, B, H, W, Cout).transpose(2, 3, 0, 4, 1, 5)
    return out.reshape(B, 2 * H, 2 * W, Cout)


# ----------------------------------------------------------------------------
# UpBlock forward (mirrors the PyTorch forward statement-by-statement; the
# wrapper keeps activations channels-last between Pallas kernels).
# ----------------------------------------------------------------------------
def upblock_forward(params, x_nchw, skip_nchw, time_embedding,
                    num_groups=8, num_heads=4):
    x = jnp.transpose(x_nchw, (0, 2, 3, 1))               # to NHWC once
    skip = jnp.transpose(skip_nchw, (0, 2, 3, 1))

    # 1) up-sample (ConvTranspose2d) + channel concat
    x = conv_transpose2d_cl(x, params["up_w"], params["up_b"])
    x = jnp.concatenate([x, skip], axis=-1)               # (B, H, W, Cin)
    B, H, W, Cin = x.shape
    L = H * W
    Cout = params["conv1_w"].shape[0]

    # 2) resnet block 1: GroupNorm + SiLU (one kernel) -> Conv3x3 (GEMM)
    h1 = group_norm_cl(x.reshape(B, L, Cin), params["gn1_g"], params["gn1_b"],
                       num_groups, apply_silu=True)
    out = conv2d_cl(h1.reshape(B, H, W, Cin),
                    params["conv1_w"], params["conv1_b"], pad=1)

    # 3) time embedding: SiLU fused into the GEMM; its broadcast add over the
    #    spatial dims is fused into the next GroupNorm kernel.
    temb = matmul_bias(time_embedding, params["time_w"].T, params["time_b"],
                       input_silu=True)                   # (B, Cout)

    # 4) resnet block 2: (out + temb) -> GroupNorm + SiLU -> Conv3x3
    h2 = group_norm_cl(out.reshape(B, L, Cout), params["gn2_g"], params["gn2_b"],
                       num_groups, temb=temb, apply_silu=True)
    out = conv2d_cl(h2.reshape(B, H, W, Cout),
                    params["conv2_w"], params["conv2_b"], pad=1)
    out2d = out.reshape(B * L, Cout)

    # 5) residual 1x1 conv + add fused into one GEMM.  Mirrors the reference's
    #    `out += self.residual_connection(out)` (applied to `out`, not to
    #    resnet_input), which requires in_channels == out_channels.
    assert params["res_w"].shape[1] == Cout
    wres = params["res_w"].reshape(Cout, Cout).T
    out2d = matmul_bias(out2d, wres, params["res_b"], add=out2d)

    # 6) attention: GroupNorm -> fused qkv GEMM -> per-(b,head) SDPA kernel ->
    #    out-proj GEMM with the final residual add fused in.
    gn3 = group_norm_cl(out2d.reshape(B, L, Cout), params["attn_gn_g"],
                        params["attn_gn_b"], num_groups, apply_silu=False)
    qkv = matmul_bias(gn3.reshape(B * L, Cout), params["in_proj_w"].T,
                      params["in_proj_b"], out_dtype=jnp.bfloat16)  # (B*L, 3C)
    Dh = Cout // num_heads
    qkv = qkv.reshape(B, L, 3, num_heads, Dh).transpose(2, 0, 3, 1, 4)
    qh = qkv[0].reshape(B * num_heads, L, Dh)
    kh = qkv[1].reshape(B * num_heads, L, Dh)
    vh = qkv[2].reshape(B * num_heads, L, Dh)
    oh = mha_core(qh, kh, vh, scale=1.0 / float(Dh) ** 0.5)
    o2d = oh.reshape(B, num_heads, L, Dh).transpose(0, 2, 1, 3).reshape(B * L, Cout)
    out2d = matmul_bias(o2d, params["out_proj_w"].T, params["out_proj_b"],
                        add=out2d)

    return out2d.reshape(B, H, W, Cout).transpose(0, 3, 1, 2)   # back to NCHW


# ----------------------------------------------------------------------------
# Pure-XLA f32 reference of the same module (used as a numerical check).
# ----------------------------------------------------------------------------
def _ref_group_norm(x_ncl, g, b, groups, eps=1e-5):
    B, C, L = x_ncl.shape
    xg = x_ncl.reshape(B, groups, (C // groups) * L)
    mean = xg.mean(-1, keepdims=True)
    var = ((xg - mean) ** 2).mean(-1, keepdims=True)
    xn = ((xg - mean) / jnp.sqrt(var + eps)).reshape(B, C, L)
    return xn * g[None, :, None] + b[None, :, None]


def _ref_conv(x, w, b, pad):
    y = jax.lax.conv_general_dilated(
        x, w, (1, 1), ((pad, pad), (pad, pad)),
        dimension_numbers=("NCHW", "OIHW", "NCHW"))
    return y + b[None, :, None, None]


def _ref_conv_transpose(x, w_t, b):
    w_conv = jnp.flip(w_t, axis=(2, 3)).transpose(1, 0, 2, 3)
    y = jax.lax.conv_general_dilated(
        x, w_conv, (1, 1), ((2, 2), (2, 2)), lhs_dilation=(2, 2),
        dimension_numbers=("NCHW", "OIHW", "NCHW"))
    return y + b[None, :, None, None]


def reference_forward(params, x, skip, temb, num_groups=8, num_heads=4):
    silu = lambda v: v * jax.nn.sigmoid(v)
    x = _ref_conv_transpose(x, params["up_w"], params["up_b"])
    x = jnp.concatenate([x, skip], axis=1)
    B, Cin, H, W = x.shape
    h = silu(_ref_group_norm(x.reshape(B, Cin, H * W),
                             params["gn1_g"], params["gn1_b"], num_groups))
    out = _ref_conv(h.reshape(B, Cin, H, W), params["conv1_w"], params["conv1_b"], 1)
    out = out + (silu(temb) @ params["time_w"].T + params["time_b"])[:, :, None, None]
    C = out.shape[1]
    h = silu(_ref_group_norm(out.reshape(B, C, H * W),
                             params["gn2_g"], params["gn2_b"], num_groups))
    out = _ref_conv(h.reshape(B, C, H, W), params["conv2_w"], params["conv2_b"], 1)
    out = out + _ref_conv(out, params["res_w"], params["res_b"], 0)
    inp = _ref_group_norm(out.reshape(B, C, H * W),
                          params["attn_gn_g"], params["attn_gn_b"], num_groups)
    inp = inp.transpose(0, 2, 1)
    qkv = inp @ params["in_proj_w"].T + params["in_proj_b"]
    q, k, v = jnp.split(qkv, 3, axis=-1)
    Dh = C // num_heads
    heads = lambda t: t.reshape(B, H * W, num_heads, Dh).transpose(0, 2, 1, 3)
    q, k, v = heads(q), heads(k), heads(v)
    s = jnp.einsum("bhqd,bhkd->bhqk", q, k) / jnp.sqrt(Dh)
    p = jax.nn.softmax(s, axis=-1)
    o = jnp.einsum("bhqk,bhkd->bhqd", p, v).transpose(0, 2, 1, 3).reshape(B, H * W, C)
    o = o @ params["out_proj_w"].T + params["out_proj_b"]
    return out + o.transpose(0, 2, 1).reshape(B, C, H, W)


# ----------------------------------------------------------------------------
# Deterministic parameter construction + run
# ----------------------------------------------------------------------------
def make_params(key, in_channels, out_channels, embedding_dim):
    ks = jax.random.split(key, 16)
    n = lambda k, s, sc=0.05: sc * jax.random.normal(k, s, dtype=jnp.float32)
    c_half = in_channels // 2
    return {
        "up_w": n(ks[0], (c_half, c_half, 4, 4)),          # (Cin, Cout, 4, 4)
        "up_b": n(ks[1], (c_half,), 0.01),
        "time_w": n(ks[2], (out_channels, embedding_dim)),
        "time_b": n(ks[3], (out_channels,), 0.01),
        "gn1_g": jnp.ones((in_channels,), jnp.float32),
        "gn1_b": jnp.zeros((in_channels,), jnp.float32),
        "conv1_w": n(ks[4], (out_channels, in_channels, 3, 3)),
        "conv1_b": n(ks[5], (out_channels,), 0.01),
        "gn2_g": jnp.ones((out_channels,), jnp.float32),
        "gn2_b": jnp.zeros((out_channels,), jnp.float32),
        "conv2_w": n(ks[6], (out_channels, out_channels, 3, 3)),
        "conv2_b": n(ks[7], (out_channels,), 0.01),
        "attn_gn_g": jnp.ones((out_channels,), jnp.float32),
        "attn_gn_b": jnp.zeros((out_channels,), jnp.float32),
        "in_proj_w": n(ks[8], (3 * out_channels, out_channels)),
        "in_proj_b": n(ks[9], (3 * out_channels,), 0.01),
        "out_proj_w": n(ks[10], (out_channels, out_channels)),
        "out_proj_b": n(ks[11], (out_channels,), 0.01),
        "res_w": n(ks[12], (out_channels, in_channels, 1, 1)),
        "res_b": n(ks[13], (out_channels,), 0.01),
    }


if __name__ == "__main__":
    in_channels = 16       # divisible by 8 (GroupNorm) and by 2 (up-sample)
    out_channels = 16      # == in_channels (required by the reference forward)
    embedding_dim = 32
    num_heads = 4
    num_groups = 8
    B, H, W = 2, 8, 8      # x is pre-upsample; spatial doubles to 16x16

    key = jax.random.PRNGKey(0)
    kp, kx, kd, kt = jax.random.split(key, 4)
    params = make_params(kp, in_channels, out_channels, embedding_dim)

    x = jax.random.normal(kx, (B, in_channels // 2, H, W), dtype=jnp.float32)
    output_downs_block = jax.random.normal(
        kd, (B, in_channels // 2, 2 * H, 2 * W), dtype=jnp.float32)
    time_embedding = jax.random.normal(kt, (B, embedding_dim), dtype=jnp.float32)

    fwd = jax.jit(functools.partial(upblock_forward,
                                    num_groups=num_groups, num_heads=num_heads))
    out = fwd(params, x, output_downs_block, time_embedding)
    jax.block_until_ready(out)

    assert out.shape == (B, out_channels, 2 * H, 2 * W), out.shape
    assert out.dtype == jnp.float32

    ref = jax.jit(functools.partial(reference_forward,
                                    num_groups=num_groups, num_heads=num_heads))(
        params, x, output_downs_block, time_embedding)
    err = float(jnp.max(jnp.abs(out - ref)))
    # bf16 GEMM operands with f32 accumulation -> small deviation vs f32 XLA ref
    assert err < 1e-1, f"max |pallas - reference| too large: {err}"
    print("KERNEL_OK")
</pallas_src>

<mosaic_0001>
module attributes {stable_mosaic.version = 11 : i64} {
  func.func @_gemm_kernel(%arg0: i32, %arg1: i32, %arg2: i32, %arg3: i32, %arg4: memref<1x128x32xbf16, #tpu.memory_space<vmem>>, %arg5: memref<1x32x8xbf16, #tpu.memory_space<vmem>>, %arg6: memref<1x1x8xf32, #tpu.memory_space<vmem>>, %arg7: memref<1x128x8xf32, #tpu.memory_space<vmem>>, %arg8: memref<128x8xf32, #tpu.memory_space<vmem>>) attributes {dimension_semantics = [#tpu.dimension_semantics<parallel>, #tpu.dimension_semantics<parallel>, #tpu.dimension_semantics<parallel>, #tpu.dimension_semantics<arbitrary>], iteration_bounds = array<i64: 4, 1, 1, 1>, scalar_prefetch = 0 : i64, scratch_operands = 1 : i64, tpu.core_type = #tpu.core_type<tc>, window_params = [{transform_indices = @transform_0, window_bounds = array<i64: 1, 128, 32>}, {transform_indices = @transform_1, window_bounds = array<i64: 1, 32, 8>}, {transform_indices = @transform_2, window_bounds = array<i64: 1, 1, 8>}, {transform_indices = @transform_3, window_bounds = array<i64: 1, 128, 8>}]} {
    %c0_i32 = arith.constant 0 : i32
    %0 = arith.cmpi eq, %arg3, %c0_i32 : i32
    %1 = arith.extui %0 : i1 to i32
    %c0_i32_0 = arith.constant 0 : i32
    %2 = arith.cmpi ne, %1, %c0_i32_0 : i32
    scf.if %2 {
      %cst_12 = arith.constant 0.000000e+00 : f32
      %14 = vector.broadcast %cst_12 : f32 to vector<128x8xf32>
      %c0_13 = arith.constant 0 : index
      %c0_14 = arith.constant 0 : index
      %15 = vector.load %arg8[%c0_13, %c0_14] : memref<128x8xf32, #tpu.memory_space<vmem>>, vector<128x8xf32>
      tpu.vector_store %arg8[%c0_13, %c0_14], %14 {strides = array<i32>} : memref<128x8xf32, #tpu.memory_space<vmem>>, vector<128x8xf32>,
    } else {
    }
    %c0 = arith.constant 0 : index
    %c0_1 = arith.constant 0 : index
    %c0_2 = arith.constant 0 : index
    %3 = vector.load %arg4[%c0, %c0_1, %c0_2] : memref<1x128x32xbf16, #tpu.memory_space<vmem>>, vector<1x128x32xbf16>
    %4 = vector.shape_cast %3 : vector<1x128x32xbf16> to vector<128x32xbf16>
    %c0_3 = arith.constant 0 : index
    %c0_4 = arith.constant 0 : index
    %5 = vector.load %arg8[%c0_3, %c0_4] : memref<128x8xf32, #tpu.memory_space<vmem>>, vector<128x8xf32>
    %c0_5 = arith.constant 0 : index
    %c0_6 = arith.constant 0 : index
    %c0_7 = arith.constant 0 : index
    %6 = vector.load %arg5[%c0_5, %c0_6, %c0_7] : memref<1x32x8xbf16, #tpu.memory_space<vmem>>, vector<1x32x8xbf16>
    %7 = vector.shape_cast %6 : vector<1x32x8xbf16> to vector<32x8xbf16>
    %cst = arith.constant dense<0.000000e+00> : vector<128x8xf32>
    %8 = tpu.matmul %4, %7, %cst {dimension_numbers = #tpu.dot_dimension_numbers<[1], [0], [0], [1], [0, 0, 1, 1], [], []>} : vector<128x32xbf16>, vector<32x8xbf16>, vector<128x8xf32> -> vector<128x8xf32>
    %9 = arith.addf %5, %8 : vector<128x8xf32>
    %c0_8 = arith.constant 0 : index
    %c0_9 = arith.constant 0 : index
    %10 = vector.load %arg8[%c0_8, %c0_9] : memref<128x8xf32, #tpu.memory_space<vmem>>, vector<128x8xf32>
    tpu.vector_store %arg8[%c0_8, %c0_9], %9 {strides = array<i32>} : memref<128x8xf32, #tpu.memory_space<vmem>>, vector<128x8xf32>,
    %c0_i32_10 = arith.constant 0 : i32
    %11 = arith.cmpi eq, %arg3, %c0_i32_10 : i32
    %12 = arith.extui %11 : i1 to i32
    %c0_i32_11 = arith.constant 0 : i32
    %13 = arith.cmpi ne, %12, %c0_i32_11 : i32
    scf.if %13 {
      %c0_12 = arith.constant 0 : index
      %c0_13 = arith.constant 0 : index
      %14 = vector.load %arg8[%c0_12, %c0_13] : memref<128x8xf32, #tpu.memory_space<vmem>>, vector<128x8xf32>
      %c0_14 = arith.constant 0 : index
      %c0_15 = arith.constant 0 : index
      %c0_16 = arith.constant 0 : index
      %15 = vector.load %arg6[%c0_14, %c0_15, %c0_16] : memref<1x1x8xf32, #tpu.memory_space<vmem>>, vector<1x1x8xf32>
      %16 = vector.shape_cast %15 : vector<1x1x8xf32> to vector<1x8xf32>
      %17 = vector.broadcast %16 : vector<1x8xf32> to vector<128x8xf32>
      %18 = arith.addf %14, %17 : vector<128x8xf32>
      %c0_17 = arith.constant 0 : index
      %c0_18 = arith.constant 0 : index
      %c0_19 = arith.constant 0 : index
      %19 = vector.load %arg7[%c0_17, %c0_18, %c0_19] : memref<1x128x8xf32, #tpu.memory_space<vmem>>, vector<1x128x8xf32>
      %20 = vector.shape_cast %19 : vector<1x128x8xf32> to vector<128x8xf32>
      %21 = vector.shape_cast %18 : vector<128x8xf32> to vector<1x128x8xf32>
      tpu.vector_store %arg7[%c0_17, %c0_18, %c0_19], %21 {strides = array<i32>} : memref<1x128x8xf32, #tpu.memory_space<vmem>>, vector<1x128x8xf32>,
    } else {
    }
    return
  }
  func.func @transform_0(%arg0: i32, %arg1: i32, %arg2: i32, %arg3: i32) -> (i32, i32, i32) {
    %c0_i32 = arith.constant 0 : i32
    return %arg0, %arg1, %arg3 : i32, i32, i32
  }
  func.func @transform_1(%arg0: i32, %arg1: i32, %arg2: i32, %arg3: i32) -> (i32, i32, i32) {
    %c0_i32 = arith.constant 0 : i32
    return %arg0, %arg3, %arg2 : i32, i32, i32
  }
  func.func @transform_2(%arg0: i32, %arg1: i32, %arg2: i32, %arg3: i32) -> (i32, i32, i32) {
    %c0_i32 = arith.constant 0 : i32
    %c0_i32_0 = arith.constant 0 : i32
    return %arg0, %c0_i32, %arg2 : i32, i32, i32
  }
  func.func @transform_3(%arg0: i32, %arg1: i32, %arg2: i32, %arg3: i32) -> (i32, i32, i32) {
    %c0_i32 = arith.constant 0 : i32
    return %arg0, %arg1, %arg2 : i32, i32, i32
  }
}

module attributes {stable_mosaic.version = 11 : i64} {
  func.func @_groupnorm_kernel(%arg0: i32, %arg1: memref<1x256x16xf32, #tpu.memory_space<vmem>>, %arg2: memref<1x16xf32, #tpu.memory_space<vmem>>, %arg3: memref<1x16xf32, #tpu.memory_space<vmem>>, %arg4: memref<16x8xf32, #tpu.memory_space<vmem>>, %arg5: memref<8x16xf32, #tpu.memory_space<vmem>>, %arg6: memref<1x256x16xf32, #tpu.memory_space<vmem>>) attributes {dimension_semantics = [#tpu.dimension_semantics<parallel>], iteration_bounds = array<i64: 2>, scalar_prefetch = 0 : i64, scratch_operands = 0 : i64, tpu.core_type = #tpu.core_type<tc>, window_params = [{transform_indices = @transform_0, window_bounds = array<i64: 1, 256, 16>}, {pipeline_mode = #tpu.pipeline_mode<synchronous>, transform_indices = @transform_1, window_bounds = array<i64: 1, 16>}, {pipeline_mode = #tpu.pipeline_mode<synchronous>, transform_indices = @transform_2, window_bounds = array<i64: 1, 16>}, {pipeline_mode = #tpu.pipeline_mode<synchronous>, transform_indices = @transform_3, window_bounds = array<i64: 16, 8>}, {pipeline_mode = #tpu.pipeline_mode<synchronous>, transform_indices = @transform_4, window_bounds = array<i64: 8, 16>}, {transform_indices = @transform_5, window_bounds = array<i64: 1, 256, 16>}]} {
    %c0 = arith.constant 0 : index
    %c0_0 = arith.constant 0 : index
    %c0_1 = arith.constant 0 : index
    %0 = vector.load %arg1[%c0, %c0_0, %c0_1] : memref<1x256x16xf32, #tpu.memory_space<vmem>>, vector<1x256x16xf32>
    %1 = vector.shape_cast %0 : vector<1x256x16xf32> to vector<256x16xf32>
    %cst = arith.constant dense<0.000000e+00> : vector<16xf32>
    %2 = vector.multi_reduction <add>, %1, %cst [0] : vector<256x16xf32> to vector<16xf32>
    %3 = vector.shape_cast %2 : vector<16xf32> to vector<1x16xf32>
    %c0_2 = arith.constant 0 : index
    %c0_3 = arith.constant 0 : index
    %4 = vector.load %arg4[%c0_2, %c0_3] : memref<16x8xf32, #tpu.memory_space<vmem>>, vector<16x8xf32>
    %cst_4 = arith.constant dense<0.000000e+00> : vector<1x8xf32>
    %5 = tpu.matmul %3, %4, %cst_4 {dimension_numbers = #tpu.dot_dimension_numbers<[1], [0], [0], [1], [0, 0, 1, 1], [], []>} : vector<1x16xf32>, vector<16x8xf32>, vector<1x8xf32> -> vector<1x8xf32>
    %cst_5 = arith.constant 0.001953125 : f32
    %6 = vector.broadcast %cst_5 : f32 to vector<1x8xf32>
    %7 = arith.mulf %5, %6 : vector<1x8xf32>
    %c0_6 = arith.constant 0 : index
    %c0_7 = arith.constant 0 : index
    %8 = vector.load %arg5[%c0_6, %c0_7] : memref<8x16xf32, #tpu.memory_space<vmem>>, vector<8x16xf32>
    %cst_8 = arith.constant dense<0.000000e+00> : vector<1x16xf32>
    %9 = tpu.matmul %7, %8, %cst_8 {dimension_numbers = #tpu.dot_dimension_numbers<[1], [0], [0], [1], [0, 0, 1, 1], [], []>} : vector<1x8xf32>, vector<8x16xf32>, vector<1x16xf32> -> vector<1x16xf32>
    %10 = vector.broadcast %9 : vector<1x16xf32> to vector<256x16xf32>
    %11 = arith.subf %1, %10 : vector<256x16xf32>
    %12 = arith.mulf %11, %11 : vector<256x16xf32>
    %cst_9 = arith.constant dense<0.000000e+00> : vector<16xf32>
    %13 = vector.multi_reduction <add>, %12, %cst_9 [0] : vector<256x16xf32> to vector<16xf32>
    %14 = vector.shape_cast %13 : vector<16xf32> to vector<1x16xf32>
    %c0_10 = arith.constant 0 : index
    %c0_11 = arith.constant 0 : index
    %15 = vector.load %arg4[%c0_10, %c0_11] : memref<16x8xf32, #tpu.memory_space<vmem>>, vector<16x8xf32>
    %cst_12 = arith.constant dense<0.000000e+00> : vector<1x8xf32>
    %16 = tpu.matmul %14, %15, %cst_12 {dimension_numbers = #tpu.dot_dimension_numbers<[1], [0], [0], [1], [0, 0, 1, 1], [], []>} : vector<1x16xf32>, vector<16x8xf32>, vector<1x8xf32> -> vector<1x8xf32>
    %cst_13 = arith.constant 0.001953125 : f32
    %17 = vector.broadcast %cst_13 : f32 to vector<1x8xf32>
    %18 = arith.mulf %16, %17 : vector<1x8xf32>
    %cst_14 = arith.constant 9.99999974E-6 : f32
    %19 = vector.broadcast %cst_14 : f32 to vector<1x8xf32>
    %20 = arith.addf %18, %19 : vector<1x8xf32>
    %21 = math.rsqrt %20 : vector<1x8xf32>
    %c0_15 = arith.constant 0 : index
    %c0_16 = arith.constant 0 : index
    %22 = vector.load %arg5[%c0_15, %c0_16] : memref<8x16xf32, #tpu.memory_space<vmem>>, vector<8x16xf32>
    %cst_17 = arith.constant dense<0.000000e+00> : vector<1x16xf32>
    %23 = tpu.matmul %21, %22, %cst_17 {dimension_numbers = #tpu.dot_dimension_numbers<[1], [0], [0], [1], [0, 0, 1, 1], [], []>} : vector<1x8xf32>, vector<8x16xf32>, vector<1x16xf32> -> vector<1x16xf32>
    %24 = vector.broadcast %23 : vector<1x16xf32> to vector<256x16xf32>
    %25 = arith.mulf %11, %24 : vector<256x16xf32>
    %c0_18 = arith.constant 0 : index
    %c0_19 = arith.constant 0 : index
    %26 = vector.load %arg2[%c0_18, %c0_19] : memref<1x16xf32, #tpu.memory_space<vmem>>, vector<1x16xf32>
    %27 = vector.broadcast %26 : vector<1x16xf32> to vector<256x16xf32>
    %28 = arith.mulf %25, %27 : vector<256x16xf32>
    %c0_20 = arith.constant 0 : index
    %c0_21 = arith.constant 0 : index
    %29 = vector.load %arg3[%c0_20, %c0_21] : memref<1x16xf32, #tpu.memory_space<vmem>>, vector<1x16xf32>
    %30 = vector.broadcast %29 : vector<1x16xf32> to vector<256x16xf32>
    %31 = arith.addf %28, %30 : vector<256x16xf32>
    %32 = arith.negf %31 : vector<256x16xf32>
    %33 = math.exp %32 : vector<256x16xf32>
    %cst_22 = arith.constant 1.000000e+00 : f32
    %34 = vector.broadcast %cst_22 : f32 to vector<256x16xf32>
    %35 = arith.addf %34, %33 : vector<256x16xf32>
    %36 = arith.divf %34, %35 : vector<256x16xf32>
    %37 = arith.mulf %31, %36 : vector<256x16xf32>
    %c0_23 = arith.constant 0 : index
    %c0_24 = arith.constant 0 : index
    %c0_25 = arith.constant 0 : index
    %38 = vector.load %arg6[%c0_23, %c0_24, %c0_25] : memref<1x256x16xf32, #tpu.memory_space<vmem>>, vector<1x256x16xf32>
    %39 = vector.shape_cast %38 : vector<1x256x16xf32> to vector<256x16xf32>
    %40 = vector.shape_cast %37 : vector<256x16xf32> to vector<1x256x16xf32>
    tpu.vector_store %arg6[%c0_23, %c0_24, %c0_25], %40 {strides = array<i32>} : memref<1x256x16xf32, #tpu.memory_space<vmem>>, vector<1x256x16xf32>,
    return
  }
  func.func @transform_0(%arg0: i32) -> (i32, i32, i32) {
    %c0_i32 = arith.constant 0 : i32
    %c0_i32_0 = arith.constant 0 : i32
    %c0_i32_1 = arith.constant 0 : i32
    return %arg0, %c0_i32, %c0_i32_0 : i32, i32, i32
  }
  func.func @transform_1(%arg0: i32) -> (i32, i32) {
    %c0_i32 = arith.constant 0 : i32
    %c0_i32_0 = arith.constant 0 : i32
    %c0_i32_1 = arith.constant 0 : i32
    return %c0_i32, %c0_i32_0 : i32, i32
  }
  func.func @transform_2(%arg0: i32) -> (i32, i32) {
    %c0_i32 = arith.constant 0 : i32
    %c0_i32_0 = arith.constant 0 : i32
    %c0_i32_1 = arith.constant 0 : i32
    return %c0_i32, %c0_i32_0 : i32, i32
  }
  func.func @transform_3(%arg0: i32) -> (i32, i32) {
    %c0_i32 = arith.constant 0 : i32
    %c0_i32_0 = arith.constant 0 : i32
    %c0_i32_1 = arith.constant 0 : i32
    return %c0_i32, %c0_i32_0 : i32, i32
  }
  func.func @transform_4(%arg0: i32) -> (i32, i32) {
    %c0_i32 = arith.constant 0 : i32
    %c0_i32_0 = arith.constant 0 : i32
    %c0_i32_1 = arith.constant 0 : i32
    return %c0_i32, %c0_i32_0 : i32, i32
  }
  func.func @transform_5(%arg0: i32) -> (i32, i32, i32) {
    %c0_i32 = arith.constant 0 : i32
    %c0_i32_0 = arith.constant 0 : i32
    %c0_i32_1 = arith.constant 0 : i32
    return %arg0, %c0_i32, %c0_i32_0 : i32, i32, i32
  }
}

module attributes {stable_mosaic.version = 11 : i64} {
  func.func @_gemm_kernel(%arg0: i32, %arg1: i32, %arg2: i32, %arg3: i32, %arg4: memref<1x256x144xbf16, #tpu.memory_space<vmem>>, %arg5: memref<1x144x16xbf16, #tpu.memory_space<vmem>>, %arg6: memref<1x1x16xf32, #tpu.memory_space<vmem>>, %arg7: memref<1x256x16xf32, #tpu.memory_space<vmem>>, %arg8: memref<256x16xf32, #tpu.memory_space<vmem>>) attributes {dimension_semantics = [#tpu.dimension_semantics<parallel>, #tpu.dimension_semantics<parallel>, #tpu.dimension_semantics<parallel>, #tpu.dimension_semantics<arbitrary>], iteration_bounds = array<i64: 1, 2, 1, 1>, scalar_prefetch = 0 : i64, scratch_operands = 1 : i64, tpu.core_type = #tpu.core_type<tc>, window_params = [{transform_indices = @transform_0, window_bounds = array<i64: 1, 256, 144>}, {transform_indices = @transform_1, window_bounds = array<i64: 1, 144, 16>}, {transform_indices = @transform_2, window_bounds = array<i64: 1, 1, 16>}, {transform_indices = @transform_3, window_bounds = array<i64: 1, 256, 16>}]} {
    %c0_i32 = arith.constant 0 : i32
    %0 = arith.cmpi eq, %arg3, %c0_i32 : i32
    %1 = arith.extui %0 : i1 to i32
    %c0_i32_0 = arith.constant 0 : i32
    %2 = arith.cmpi ne, %1, %c0_i32_0 : i32
    scf.if %2 {
      %cst_12 = arith.constant 0.000000e+00 : f32
      %14 = vector.broadcast %cst_12 : f32 to vector<256x16xf32>
      %c0_13 = arith.constant 0 : index
      %c0_14 = arith.constant 0 : index
      %15 = vector.load %arg8[%c0_13, %c0_14] : memref<256x16xf32, #tpu.memory_space<vmem>>, vector<256x16xf32>
      tpu.vector_store %arg8[%c0_13, %c0_14], %14 {strides = array<i32>} : memref<256x16xf32, #tpu.memory_space<vmem>>, vector<256x16xf32>,
    } else {
    }
    %c0 = arith.constant 0 : index
    %c0_1 = arith.constant 0 : index
    %c0_2 = arith.constant 0 : index
    %3 = vector.load %arg4[%c0, %c0_1, %c0_2] : memref<1x256x144xbf16, #tpu.memory_space<vmem>>, vector<1x256x144xbf16>
    %4 = vector.shape_cast %3 : vector<1x256x144xbf16> to vector<256x144xbf16>
    %c0_3 = arith.constant 0 : index
    %c0_4 = arith.constant 0 : index
    %5 = vector.load %arg8[%c0_3, %c0_4] : memref<256x16xf32, #tpu.memory_space<vmem>>, vector<256x16xf32>
    %c0_5 = arith.constant 0 : index
    %c0_6 = arith.constant 0 : index
    %c0_7 = arith.constant 0 : index
    %6 = vector.load %arg5[%c0_5, %c0_6, %c0_7] : memref<1x144x16xbf16, #tpu.memory_space<vmem>>, vector<1x144x16xbf16>
    %7 = vector.shape_cast %6 : vector<1x144x16xbf16> to vector<144x16xbf16>
    %cst = arith.constant dense<0.000000e+00> : vector<256x16xf32>
    %8 = tpu.matmul %4, %7, %cst {dimension_numbers = #tpu.dot_dimension_numbers<[1], [0], [0], [1], [0, 0, 1, 1], [], []>} : vector<256x144xbf16>, vector<144x16xbf16>, vector<256x16xf32> -> vector<256x16xf32>
    %9 = arith.addf %5, %8 : vector<256x16xf32>
    %c0_8 = arith.constant 0 : index
    %c0_9 = arith.constant 0 : index
    %10 = vector.load %arg8[%c0_8, %c0_9] : memref<256x16xf32, #tpu.memory_space<vmem>>, vector<256x16xf32>
    tpu.vector_store %arg8[%c0_8, %c0_9], %9 {strides = array<i32>} : memref<256x16xf32, #tpu.memory_space<vmem>>, vector<256x16xf32>,
    %c0_i32_10 = arith.constant 0 : i32
    %11 = arith.cmpi eq, %arg3, %c0_i32_10 : i32
    %12 = arith.extui %11 : i1 to i32
    %c0_i32_11 = arith.constant 0 : i32
    %13 = arith.cmpi ne, %12, %c0_i32_11 : i32
    scf.if %13 {
      %c0_12 = arith.constant 0 : index
      %c0_13 = arith.constant 0 : index
      %14 = vector.load %arg8[%c0_12, %c0_13] : memref<256x16xf32, #tpu.memory_space<vmem>>, vector<256x16xf32>
      %c0_14 = arith.constant 0 : index
      %c0_15 = arith.constant 0 : index
      %c0_16 = arith.constant 0 : index
      %15 = vector.load %arg6[%c0_14, %c0_15, %c0_16] : memref<1x1x16xf32, #tpu.memory_space<vmem>>, vector<1x1x16xf32>
      %16 = vector.shape_cast %15 : vector<1x1x16xf32> to vector<1x16xf32>
      %17 = vector.broadcast %16 : vector<1x16xf32> to vector<256x16xf32>
      %18 = arith.addf %14, %17 : vector<256x16xf32>
      %c0_17 = arith.constant 0 : index
      %c0_18 = arith.constant 0 : index
      %c0_19 = arith.constant 0 : index
      %19 = vector.load %arg7[%c0_17, %c0_18, %c0_19] : memref<1x256x16xf32, #tpu.memory_space<vmem>>, vector<1x256x16xf32>
      %20 = vector.shape_cast %19 : vector<1x256x16xf32> to vector<256x16xf32>
      %21 = vector.shape_cast %18 : vector<256x16xf32> to vector<1x256x16xf32>
      tpu.vector_store %arg7[%c0_17, %c0_18, %c0_19], %21 {strides = array<i32>} : memref<1x256x16xf32, #tpu.memory_space<vmem>>, vector<1x256x16xf32>,
    } else {
    }
    return
  }
  func.func @transform_0(%arg0: i32, %arg1: i32, %arg2: i32, %arg3: i32) -> (i32, i32, i32) {
    %c0_i32 = arith.constant 0 : i32
    return %arg0, %arg1, %arg3 : i32, i32, i32
  }
  func.func @transform_1(%arg0: i32, %arg1: i32, %arg2: i32, %arg3: i32) -> (i32, i32, i32) {
    %c0_i32 = arith.constant 0 : i32
    return %arg0, %arg3, %arg2 : i32, i32, i32
  }
  func.func @transform_2(%arg0: i32, %arg1: i32, %arg2: i32, %arg3: i32) -> (i32, i32, i32) {
    %c0_i32 = arith.constant 0 : i32
    %c0_i32_0 = arith.constant 0 : i32
    return %arg0, %c0_i32, %arg2 : i32, i32, i32
  }
  func.func @transform_3(%arg0: i32, %arg1: i32, %arg2: i32, %arg3: i32) -> (i32, i32, i32) {
    %c0_i32 = arith.constant 0 : i32
    return %arg0, %arg1, %arg2 : i32, i32, i32
  }
}

module attributes {stable_mosaic.version = 11 : i64} {
  func.func @_gemm_kernel(%arg0: i32, %arg1: i32, %arg2: i32, %arg3: i32, %arg4: memref<1x2x32xf32, #tpu.memory_space<vmem>>, %arg5: memref<1x32x16xbf16, #tpu.memory_space<vmem>>, %arg6: memref<1x1x16xf32, #tpu.memory_space<vmem>>, %arg7: memref<1x2x16xf32, #tpu.memory_space<vmem>>, %arg8: memref<2x16xf32, #tpu.memory_space<vmem>>) attributes {dimension_semantics = [#tpu.dimension_semantics<parallel>, #tpu.dimension_semantics<parallel>, #tpu.dimension_semantics<parallel>, #tpu.dimension_semantics<arbitrary>], iteration_bounds = array<i64: 1, 1, 1, 1>, scalar_prefetch = 0 : i64, scratch_operands = 1 : i64, tpu.core_type = #tpu.core_type<tc>, window_params = [{transform_indices = @transform_0, window_bounds = array<i64: 1, 2, 32>}, {transform_indices = @transform_1, window_bounds = array<i64: 1, 32, 16>}, {transform_indices = @transform_2, window_bounds = array<i64: 1, 1, 16>}, {transform_indices = @transform_3, window_bounds = array<i64: 1, 2, 16>}]} {
    %c0_i32 = arith.constant 0 : i32
    %0 = arith.cmpi eq, %arg3, %c0_i32 : i32
    %1 = arith.extui %0 : i1 to i32
    %c0_i32_0 = arith.constant 0 : i32
    %2 = arith.cmpi ne, %1, %c0_i32_0 : i32
    scf.if %2 {
      %cst_13 = arith.constant 0.000000e+00 : f32
      %21 = vector.broadcast %cst_13 : f32 to vector<2x16xf32>
      %c0_14 = arith.constant 0 : index
      %c0_15 = arith.constant 0 : index
      %22 = vector.load %arg8[%c0_14, %c0_15] : memref<2x16xf32, #tpu.memory_space<vmem>>, vector<2x16xf32>
      tpu.vector_store %arg8[%c0_14, %c0_15], %21 {strides = array<i32>} : memref<2x16xf32, #tpu.memory_space<vmem>>, vector<2x16xf32>,
    } else {
    }
    %c0 = arith.constant 0 : index
    %c0_1 = arith.constant 0 : index
    %c0_2 = arith.constant 0 : index
    %3 = vector.load %arg4[%c0, %c0_1, %c0_2] : memref<1x2x32xf32, #tpu.memory_space<vmem>>, vector<1x2x32xf32>
    %4 = vector.shape_cast %3 : vector<1x2x32xf32> to vector<2x32xf32>
    %5 = arith.negf %4 : vector<2x32xf32>
    %6 = math.exp %5 : vector<2x32xf32>
    %cst = arith.constant 1.000000e+00 : f32
    %7 = vector.broadcast %cst : f32 to vector<2x32xf32>
    %8 = arith.addf %7, %6 : vector<2x32xf32>
    %9 = arith.divf %7, %8 : vector<2x32xf32>
    %10 = arith.mulf %4, %9 : vector<2x32xf32>
    %11 = arith.truncf %10 : vector<2x32xf32> to vector<2x32xbf16>
    %c0_3 = arith.constant 0 : index
    %c0_4 = arith.constant 0 : index
    %12 = vector.load %arg8[%c0_3, %c0_4] : memref<2x16xf32, #tpu.memory_space<vmem>>, vector<2x16xf32>
    %c0_5 = arith.constant 0 : index
    %c0_6 = arith.constant 0 : index
    %c0_7 = arith.constant 0 : index
    %13 = vector.load %arg5[%c0_5, %c0_6, %c0_7] : memref<1x32x16xbf16, #tpu.memory_space<vmem>>, vector<1x32x16xbf16>
    %14 = vector.shape_cast %13 : vector<1x32x16xbf16> to vector<32x16xbf16>
    %cst_8 = arith.constant dense<0.000000e+00> : vector<2x16xf32>
    %15 = tpu.matmul %11, %14, %cst_8 {dimension_numbers = #tpu.dot_dimension_numbers<[1], [0], [0], [1], [0, 0, 1, 1], [], []>} : vector<2x32xbf16>, vector<32x16xbf16>, vector<2x16xf32> -> vector<2x16xf32>
    %16 = arith.addf %12, %15 : vector<2x16xf32>
    %c0_9 = arith.constant 0 : index
    %c0_10 = arith.constant 0 : index
    %17 = vector.load %arg8[%c0_9, %c0_10] : memref<2x16xf32, #tpu.memory_space<vmem>>, vector<2x16xf32>
    tpu.vector_store %arg8[%c0_9, %c0_10], %16 {strides = array<i32>} : memref<2x16xf32, #tpu.memory_space<vmem>>, vector<2x16xf32>,
    %c0_i32_11 = arith.constant 0 : i32
    %18 = arith.cmpi eq, %arg3, %c0_i32_11 : i32
    %19 = arith.extui %18 : i1 to i32
    %c0_i32_12 = arith.constant 0 : i32
    %20 = arith.cmpi ne, %19, %c0_i32_12 : i32
    scf.if %20 {
      %c0_13 = arith.constant 0 : index
      %c0_14 = arith.constant 0 : index
      %21 = vector.load %arg8[%c0_13, %c0_14] : memref<2x16xf32, #tpu.memory_space<vmem>>, vector<2x16xf32>
      %c0_15 = arith.constant 0 : index
      %c0_16 = arith.constant 0 : index
      %c0_17 = arith.constant 0 : index
      %22 = vector.load %arg6[%c0_15, %c0_16, %c0_17] : memref<1x1x16xf32, #tpu.memory_space<vmem>>, vector<1x1x16xf32>
      %23 = vector.shape_cast %22 : vector<1x1x16xf32> to vector<1x16xf32>
      %24 = vector.broadcast %23 : vector<1x16xf32> to vector<2x16xf32>
      %25 = arith.addf %21, %24 : vector<2x16xf32>
      %c0_18 = arith.constant 0 : index
      %c0_19 = arith.constant 0 : index
      %c0_20 = arith.constant 0 : index
      %26 = vector.load %arg7[%c0_18, %c0_19, %c0_20] : memref<1x2x16xf32, #tpu.memory_space<vmem>>, vector<1x2x16xf32>
      %27 = vector.shape_cast %26 : vector<1x2x16xf32> to vector<2x16xf32>
      %28 = vector.shape_cast %25 : vector<2x16xf32> to vector<1x2x16xf32>
      tpu.vector_store %arg7[%c0_18, %c0_19, %c0_20], %28 {strides = array<i32>} : memref<1x2x16xf32, #tpu.memory_space<vmem>>, vector<1x2x16xf32>,
    } else {
    }
    return
  }
  func.func @transform_0(%arg0: i32, %arg1: i32, %arg2: i32, %arg3: i32) -> (i32, i32, i32) {
    %c0_i32 = arith.constant 0 : i32
    return %arg0, %arg1, %arg3 : i32, i32, i32
  }
  func.func @transform_1(%arg0: i32, %arg1: i32, %arg2: i32, %arg3: i32) -> (i32, i32, i32) {
    %c0_i32 = arith.constant 0 : i32
    return %arg0, %arg3, %arg2 : i32, i32, i32
  }
  func.func @transform_2(%arg0: i32, %arg1: i32, %arg2: i32, %arg3: i32) -> (i32, i32, i32) {
    %c0_i32 = arith.constant 0 : i32
    %c0_i32_0 = arith.constant 0 : i32
    return %arg0, %c0_i32, %arg2 : i32, i32, i32
  }
  func.func @transform_3(%arg0: i32, %arg1: i32, %arg2: i32, %arg3: i32) -> (i32, i32, i32) {
    %c0_i32 = arith.constant 0 : i32
    return %arg0, %arg1, %arg2 : i32, i32, i32
  }
}

module attributes {stable_mosaic.version = 11 : i64} {
  func.func @_groupnorm_kernel(%arg0: i32, %arg1: memref<1x256x16xf32, #tpu.memory_space<vmem>>, %arg2: memref<1x16xf32, #tpu.memory_space<vmem>>, %arg3: memref<1x16xf32, #tpu.memory_space<vmem>>, %arg4: memref<16x8xf32, #tpu.memory_space<vmem>>, %arg5: memref<8x16xf32, #tpu.memory_space<vmem>>, %arg6: memref<1x1x16xf32, #tpu.memory_space<vmem>>, %arg7: memref<1x256x16xf32, #tpu.memory_space<vmem>>) attributes {dimension_semantics = [#tpu.dimension_semantics<parallel>], iteration_bounds = array<i64: 2>, scalar_prefetch = 0 : i64, scratch_operands = 0 : i64, tpu.core_type = #tpu.core_type<tc>, window_params = [{transform_indices = @transform_0, window_bounds = array<i64: 1, 256, 16>}, {pipeline_mode = #tpu.pipeline_mode<synchronous>, transform_indices = @transform_1, window_bounds = array<i64: 1, 16>}, {pipeline_mode = #tpu.pipeline_mode<synchronous>, transform_indices = @transform_2, window_bounds = array<i64: 1, 16>}, {pipeline_mode = #tpu.pipeline_mode<synchronous>, transform_indices = @transform_3, window_bounds = array<i64: 16, 8>}, {pipeline_mode = #tpu.pipeline_mode<synchronous>, transform_indices = @transform_4, window_bounds = array<i64: 8, 16>}, {transform_indices = @transform_5, window_bounds = array<i64: 1, 1, 16>}, {transform_indices = @transform_6, window_bounds = array<i64: 1, 256, 16>}]} {
    %c0 = arith.constant 0 : index
    %c0_0 = arith.constant 0 : index
    %c0_1 = arith.constant 0 : index
    %0 = vector.load %arg1[%c0, %c0_0, %c0_1] : memref<1x256x16xf32, #tpu.memory_space<vmem>>, vector<1x256x16xf32>
    %1 = vector.shape_cast %0 : vector<1x256x16xf32> to vector<256x16xf32>
    %c0_2 = arith.constant 0 : index
    %c0_3 = arith.constant 0 : index
    %c0_4 = arith.constant 0 : index
    %2 = vector.load %arg6[%c0_2, %c0_3, %c0_4] : memref<1x1x16xf32, #tpu.memory_space<vmem>>, vector<1x1x16xf32>
    %3 = vector.shape_cast %2 : vector<1x1x16xf32> to vector<1x16xf32>
    %4 = vector.broadcast %3 : vector<1x16xf32> to vector<256x16xf32>
    %5 = arith.addf %1, %4 : vector<256x16xf32>
    %cst = arith.constant dense<0.000000e+00> : vector<16xf32>
    %6 = vector.multi_reduction <add>, %5, %cst [0] : vector<256x16xf32> to vector<16xf32>
    %7 = vector.shape_cast %6 : vector<16xf32> to vector<1x16xf32>
    %c0_5 = arith.constant 0 : index
    %c0_6 = arith.constant 0 : index
    %8 = vector.load %arg4[%c0_5, %c0_6] : memref<16x8xf32, #tpu.memory_space<vmem>>, vector<16x8xf32>
    %cst_7 = arith.constant dense<0.000000e+00> : vector<1x8xf32>
    %9 = tpu.matmul %7, %8, %cst_7 {dimension_numbers = #tpu.dot_dimension_numbers<[1], [0], [0], [1], [0, 0, 1, 1], [], []>} : vector<1x16xf32>, vector<16x8xf32>, vector<1x8xf32> -> vector<1x8xf32>
    %cst_8 = arith.constant 0.001953125 : f32
    %10 = vector.broadcast %cst_8 : f32 to vector<1x8xf32>
    %11 = arith.mulf %9, %10 : vector<1x8xf32>
    %c0_9 = arith.constant 0 : index
    %c0_10 = arith.constant 0 : index
    %12 = vector.load %arg5[%c0_9, %c0_10] : memref<8x16xf32, #tpu.memory_space<vmem>>, vector<8x16xf32>
    %cst_11 = arith.constant dense<0.000000e+00> : vector<1x16xf32>
    %13 = tpu.matmul %11, %12, %cst_11 {dimension_numbers = #tpu.dot_dimension_numbers<[1], [0], [0], [1], [0, 0, 1, 1], [], []>} : vector<1x8xf32>, vector<8x16xf32>, vector<1x16xf32> -> vector<1x16xf32>
    %14 = vector.broadcast %13 : vector<1x16xf32> to vector<256x16xf32>
    %15 = arith.subf %5, %14 : vector<256x16xf32>
    %16 = arith.mulf %15, %15 : vector<256x16xf32>
    %cst_12 = arith.constant dense<0.000000e+00> : vector<16xf32>
    %17 = vector.multi_reduction <add>, %16, %cst_12 [0] : vector<256x16xf32> to vector<16xf32>
    %18 = vector.shape_cast %17 : vector<16xf32> to vector<1x16xf32>
    %c0_13 = arith.constant 0 : index
    %c0_14 = arith.constant 0 : index
    %19 = vector.load %arg4[%c0_13, %c0_14] : memref<16x8xf32, #tpu.memory_space<vmem>>, vector<16x8xf32>
    %cst_15 = arith.constant dense<0.000000e+00> : vector<1x8xf32>
    %20 = tpu.matmul %18, %19, %cst_15 {dimension_numbers = #tpu.dot_dimension_numbers<[1], [0], [0], [1], [0, 0, 1, 1], [], []>} : vector<1x16xf32>, vector<16x8xf32>, vector<1x8xf32> -> vector<1x8xf32>
    %cst_16 = arith.constant 0.001953125 : f32
    %21 = vector.broadcast %cst_16 : f32 to vector<1x8xf32>
    %22 = arith.mulf %20, %21 : vector<1x8xf32>
    %cst_17 = arith.constant 9.99999974E-6 : f32
    %23 = vector.broadcast %cst_17 : f32 to vector<1x8xf32>
    %24 = arith.addf %22, %23 : vector<1x8xf32>
    %25 = math.rsqrt %24 : vector<1x8xf32>
    %c0_18 = arith.constant 0 : index
    %c0_19 = arith.constant 0 : index
    %26 = vector.load %arg5[%c0_18, %c0_19] : memref<8x16xf32, #tpu.memory_space<vmem>>, vector<8x16xf32>
    %cst_20 = arith.constant dense<0.000000e+00> : vector<1x16xf32>
    %27 = tpu.matmul %25, %26, %cst_20 {dimension_numbers = #tpu.dot_dimension_numbers<[1], [0], [0], [1], [0, 0, 1, 1], [], []>} : vector<1x8xf32>, vector<8x16xf32>, vector<1x16xf32> -> vector<1x16xf32>
    %28 = vector.broadcast %27 : vector<1x16xf32> to vector<256x16xf32>
    %29 = arith.mulf %15, %28 : vector<256x16xf32>
    %c0_21 = arith.constant 0 : index
    %c0_22 = arith.constant 0 : index
    %30 = vector.load %arg2[%c0_21, %c0_22] : memref<1x16xf32, #tpu.memory_space<vmem>>, vector<1x16xf32>
    %31 = vector.broadcast %30 : vector<1x16xf32> to vector<256x16xf32>
    %32 = arith.mulf %29, %31 : vector<256x16xf32>
    %c0_23 = arith.constant 0 : index
    %c0_24 = arith.constant 0 : index
    %33 = vector.load %arg3[%c0_23, %c0_24] : memref<1x16xf32, #tpu.memory_space<vmem>>, vector<1x16xf32>
    %34 = vector.broadcast %33 : vector<1x16xf32> to vector<256x16xf32>
    %35 = arith.addf %32, %34 : vector<256x16xf32>
    %36 = arith.negf %35 : vector<256x16xf32>
    %37 = math.exp %36 : vector<256x16xf32>
    %cst_25 = arith.constant 1.000000e+00 : f32
    %38 = vector.broadcast %cst_25 : f32 to vector<256x16xf32>
    %39 = arith.addf %38, %37 : vector<256x16xf32>
    %40 = arith.divf %38, %39 : vector<256x16xf32>
    %41 = arith.mulf %35, %40 : vector<256x16xf32>
    %c0_26 = arith.constant 0 : index
    %c0_27 = arith.constant 0 : index
    %c0_28 = arith.constant 0 : index
    %42 = vector.load %arg7[%c0_26, %c0_27, %c0_28] : memref<1x256x16xf32, #tpu.memory_space<vmem>>, vector<1x256x16xf32>
    %43 = vector.shape_cast %42 : vector<1x256x16xf32> to vector<256x16xf32>
    %44 = vector.shape_cast %41 : vector<256x16xf32> to vector<1x256x16xf32>
    tpu.vector_store %arg7[%c0_26, %c0_27, %c0_28], %44 {strides = array<i32>} : memref<1x256x16xf32, #tpu.memory_space<vmem>>, vector<1x256x16xf32>,
    return
  }
  func.func @transform_0(%arg0: i32) -> (i32, i32, i32) {
    %c0_i32 = arith.constant 0 : i32
    %c0_i32_0 = arith.constant 0 : i32
    %c0_i32_1 = arith.constant 0 : i32
    return %arg0, %c0_i32, %c0_i32_0 : i32, i32, i32
  }
  func.func @transform_1(%arg0: i32) -> (i32, i32) {
    %c0_i32 = arith.constant 0 : i32
    %c0_i32_0 = arith.constant 0 : i32
    %c0_i32_1 = arith.constant 0 : i32
    return %c0_i32, %c0_i32_0 : i32, i32
  }
  func.func @transform_2(%arg0: i32) -> (i32, i32) {
    %c0_i32 = arith.constant 0 : i32
    %c0_i32_0 = arith.constant 0 : i32
    %c0_i32_1 = arith.constant 0 : i32
    return %c0_i32, %c0_i32_0 : i32, i32
  }
  func.func @transform_3(%arg0: i32) -> (i32, i32) {
    %c0_i32 = arith.constant 0 : i32
    %c0_i32_0 = arith.constant 0 : i32
    %c0_i32_1 = arith.constant 0 : i32
    return %c0_i32, %c0_i32_0 : i32, i32
  }
  func.func @transform_4(%arg0: i32) -> (i32, i32) {
    %c0_i32 = arith.constant 0 : i32
    %c0_i32_0 = arith.constant 0 : i32
    %c0_i32_1 = arith.constant 0 : i32
    return %c0_i32, %c0_i32_0 : i32, i32
  }
  func.func @transform_5(%arg0: i32) -> (i32, i32, i32) {
    %c0_i32 = arith.constant 0 : i32
    %c0_i32_0 = arith.constant 0 : i32
    %c0_i32_1 = arith.constant 0 : i32
    return %arg0, %c0_i32, %c0_i32_0 : i32, i32, i32
  }
  func.func @transform_6(%arg0: i32) -> (i32, i32, i32) {
    %c0_i32 = arith.constant 0 : i32
    %c0_i32_0 = arith.constant 0 : i32
    %c0_i32_1 = arith.constant 0 : i32
    return %arg0, %c0_i32, %c0_i32_0 : i32, i32, i32
  }
}

module attributes {stable_mosaic.version = 11 : i64} {
  func.func @_gemm_kernel(%arg0: i32, %arg1: i32, %arg2: i32, %arg3: i32, %arg4: memref<1x256x16xbf16, #tpu.memory_space<vmem>>, %arg5: memref<1x16x16xbf16, #tpu.memory_space<vmem>>, %arg6: memref<1x1x16xf32, #tpu.memory_space<vmem>>, %arg7: memref<1x256x16xf32, #tpu.memory_space<vmem>>, %arg8: memref<1x256x16xf32, #tpu.memory_space<vmem>>, %arg9: memref<256x16xf32, #tpu.memory_space<vmem>>) attributes {dimension_semantics = [#tpu.dimension_semantics<parallel>, #tpu.dimension_semantics<parallel>, #tpu.dimension_semantics<parallel>, #tpu.dimension_semantics<arbitrary>], iteration_bounds = array<i64: 1, 2, 1, 1>, scalar_prefetch = 0 : i64, scratch_operands = 1 : i64, tpu.core_type = #tpu.core_type<tc>, window_params = [{transform_indices = @transform_0, window_bounds = array<i64: 1, 256, 16>}, {transform_indices = @transform_1, window_bounds = array<i64: 1, 16, 16>}, {transform_indices = @transform_2, window_bounds = array<i64: 1, 1, 16>}, {transform_indices = @transform_3, window_bounds = array<i64: 1, 256, 16>}, {transform_indices = @transform_4, window_bounds = array<i64: 1, 256, 16>}]} {
    %c0_i32 = arith.constant 0 : i32
    %0 = arith.cmpi eq, %arg3, %c0_i32 : i32
    %1 = arith.extui %0 : i1 to i32
    %c0_i32_0 = arith.constant 0 : i32
    %2 = arith.cmpi ne, %1, %c0_i32_0 : i32
    scf.if %2 {
      %cst_12 = arith.constant 0.000000e+00 : f32
      %14 = vector.broadcast %cst_12 : f32 to vector<256x16xf32>
      %c0_13 = arith.constant 0 : index
      %c0_14 = arith.constant 0 : index
      %15 = vector.load %arg9[%c0_13, %c0_14] : memref<256x16xf32, #tpu.memory_space<vmem>>, vector<256x16xf32>
      tpu.vector_store %arg9[%c0_13, %c0_14], %14 {strides = array<i32>} : memref<256x16xf32, #tpu.memory_space<vmem>>, vector<256x16xf32>,
    } else {
    }
    %c0 = arith.constant 0 : index
    %c0_1 = arith.constant 0 : index
    %c0_2 = arith.constant 0 : index
    %3 = vector.load %arg4[%c0, %c0_1, %c0_2] : memref<1x256x16xbf16, #tpu.memory_space<vmem>>, vector<1x256x16xbf16>
    %4 = vector.shape_cast %3 : vector<1x256x16xbf16> to vector<256x16xbf16>
    %c0_3 = arith.constant 0 : index
    %c0_4 = arith.constant 0 : index
    %5 = vector.load %arg9[%c0_3, %c0_4] : memref<256x16xf32, #tpu.memory_space<vmem>>, vector<256x16xf32>
    %c0_5 = arith.constant 0 : index
    %c0_6 = arith.constant 0 : index
    %c0_7 = arith.constant 0 : index
    %6 = vector.load %arg5[%c0_5, %c0_6, %c0_7] : memref<1x16x16xbf16, #tpu.memory_space<vmem>>, vector<1x16x16xbf16>
    %7 = vector.shape_cast %6 : vector<1x16x16xbf16> to vector<16x16xbf16>
    %cst = arith.constant dense<0.000000e+00> : vector<256x16xf32>
    %8 = tpu.matmul %4, %7, %cst {dimension_numbers = #tpu.dot_dimension_numbers<[1], [0], [0], [1], [0, 0, 1, 1], [], []>} : vector<256x16xbf16>, vector<16x16xbf16>, vector<256x16xf32> -> vector<256x16xf32>
    %9 = arith.addf %5, %8 : vector<256x16xf32>
    %c0_8 = arith.constant 0 : index
    %c0_9 = arith.constant 0 : index
    %10 = vector.load %arg9[%c0_8, %c0_9] : memref<256x16xf32, #tpu.memory_space<vmem>>, vector<256x16xf32>
    tpu.vector_store %arg9[%c0_8, %c0_9], %9 {strides = array<i32>} : memref<256x16xf32, #tpu.memory_space<vmem>>, vector<256x16xf32>,
    %c0_i32_10 = arith.constant 0 : i32
    %11 = arith.cmpi eq, %arg3, %c0_i32_10 : i32
    %12 = arith.extui %11 : i1 to i32
    %c0_i32_11 = arith.constant 0 : i32
    %13 = arith.cmpi ne, %12, %c0_i32_11 : i32
    scf.if %13 {
      %c0_12 = arith.constant 0 : index
      %c0_13 = arith.constant 0 : index
      %14 = vector.load %arg9[%c0_12, %c0_13] : memref<256x16xf32, #tpu.memory_space<vmem>>, vector<256x16xf32>
      %c0_14 = arith.constant 0 : index
      %c0_15 = arith.constant 0 : index
      %c0_16 = arith.constant 0 : index
      %15 = vector.load %arg6[%c0_14, %c0_15, %c0_16] : memref<1x1x16xf32, #tpu.memory_space<vmem>>, vector<1x1x16xf32>
      %16 = vector.shape_cast %15 : vector<1x1x16xf32> to vector<1x16xf32>
      %17 = vector.broadcast %16 : vector<1x16xf32> to vector<256x16xf32>
      %18 = arith.addf %14, %17 : vector<256x16xf32>
      %c0_17 = arith.constant 0 : index
      %c0_18 = arith.constant 0 : index
      %c0_19 = arith.constant 0 : index
      %19 = vector.load %arg7[%c0_17, %c0_18, %c0_19] : memref<1x256x16xf32, #tpu.memory_space<vmem>>, vector<1x256x16xf32>
      %20 = vector.shape_cast %19 : vector<1x256x16xf32> to vector<256x16xf32>
      %21 = arith.addf %18, %20 : vector<256x16xf32>
      %c0_20 = arith.constant 0 : index
      %c0_21 = arith.constant 0 : index
      %c0_22 = arith.constant 0 : index
      %22 = vector.load %arg8[%c0_20, %c0_21, %c0_22] : memref<1x256x16xf32, #tpu.memory_space<vmem>>, vector<1x256x16xf32>
      %23 = vector.shape_cast %22 : vector<1x256x16xf32> to vector<256x16xf32>
      %24 = vector.shape_cast %21 : vector<256x16xf32> to vector<1x256x16xf32>
      tpu.vector_store %arg8[%c0_20, %c0_21, %c0_22], %24 {strides = array<i32>} : memref<1x256x16xf32, #tpu.memory_space<vmem>>, vector<1x256x16xf32>,
    } else {
    }
    return
  }
  func.func @transform_0(%arg0: i32, %arg1: i32, %arg2: i32, %arg3: i32) -> (i32, i32, i32) {
    %c0_i32 = arith.constant 0 : i32
    return %arg0, %arg1, %arg3 : i32, i32, i32
  }
  func.func @transform_1(%arg0: i32, %arg1: i32, %arg2: i32, %arg3: i32) -> (i32, i32, i32) {
    %c0_i32 = arith.constant 0 : i32
    return %arg0, %arg3, %arg2 : i32, i32, i32
  }
  func.func @transform_2(%arg0: i32, %arg1: i32, %arg2: i32, %arg3: i32) -> (i32, i32, i32) {
    %c0_i32 = arith.constant 0 : i32
    %c0_i32_0 = arith.constant 0 : i32
    return %arg0, %c0_i32, %arg2 : i32, i32, i32
  }
  func.func @transform_3(%arg0: i32, %arg1: i32, %arg2: i32, %arg3: i32) -> (i32, i32, i32) {
    %c0_i32 = arith.constant 0 : i32
    return %arg0, %arg1, %arg2 : i32, i32, i32
  }
  func.func @transform_4(%arg0: i32, %arg1: i32, %arg2: i32, %arg3: i32) -> (i32, i32, i32) {
    %c0_i32 = arith.constant 0 : i32
    return %arg0, %arg1, %arg2 : i32, i32, i32
  }
}

module attributes {stable_mosaic.version = 11 : i64} {
  func.func @_groupnorm_kernel(%arg0: i32, %arg1: memref<1x256x16xf32, #tpu.memory_space<vmem>>, %arg2: memref<1x16xf32, #tpu.memory_space<vmem>>, %arg3: memref<1x16xf32, #tpu.memory_space<vmem>>, %arg4: memref<16x8xf32, #tpu.memory_space<vmem>>, %arg5: memref<8x16xf32, #tpu.memory_space<vmem>>, %arg6: memref<1x256x16xf32, #tpu.memory_space<vmem>>) attributes {dimension_semantics = [#tpu.dimension_semantics<parallel>], iteration_bounds = array<i64: 2>, scalar_prefetch = 0 : i64, scratch_operands = 0 : i64, tpu.core_type = #tpu.core_type<tc>, window_params = [{transform_indices = @transform_0, window_bounds = array<i64: 1, 256, 16>}, {pipeline_mode = #tpu.pipeline_mode<synchronous>, transform_indices = @transform_1, window_bounds = array<i64: 1, 16>}, {pipeline_mode = #tpu.pipeline_mode<synchronous>, transform_indices = @transform_2, window_bounds = array<i64: 1, 16>}, {pipeline_mode = #tpu.pipeline_mode<synchronous>, transform_indices = @transform_3, window_bounds = array<i64: 16, 8>}, {pipeline_mode = #tpu.pipeline_mode<synchronous>, transform_indices = @transform_4, window_bounds = array<i64: 8, 16>}, {transform_indices = @transform_5, window_bounds = array<i64: 1, 256, 16>}]} {
    %c0 = arith.constant 0 : index
    %c0_0 = arith.constant 0 : index
    %c0_1 = arith.constant 0 : index
    %0 = vector.load %arg1[%c0, %c0_0, %c0_1] : memref<1x256x16xf32, #tpu.memory_space<vmem>>, vector<1x256x16xf32>
    %1 = vector.shape_cast %0 : vector<1x256x16xf32> to vector<256x16xf32>
    %cst = arith.constant dense<0.000000e+00> : vector<16xf32>
    %2 = vector.multi_reduction <add>, %1, %cst [0] : vector<256x16xf32> to vector<16xf32>
    %3 = vector.shape_cast %2 : vector<16xf32> to vector<1x16xf32>
    %c0_2 = arith.constant 0 : index
    %c0_3 = arith.constant 0 : index
    %4 = vector.load %arg4[%c0_2, %c0_3] : memref<16x8xf32, #tpu.memory_space<vmem>>, vector<16x8xf32>
    %cst_4 = arith.constant dense<0.000000e+00> : vector<1x8xf32>
    %5 = tpu.matmul %3, %4, %cst_4 {dimension_numbers = #tpu.dot_dimension_numbers<[1], [0], [0], [1], [0, 0, 1, 1], [], []>} : vector<1x16xf32>, vector<16x8xf32>, vector<1x8xf32> -> vector<1x8xf32>
    %cst_5 = arith.constant 0.001953125 : f32
    %6 = vector.broadcast %cst_5 : f32 to vector<1x8xf32>
    %7 = arith.mulf %5, %6 : vector<1x8xf32>
    %c0_6 = arith.constant 0 : index
    %c0_7 = arith.constant 0 : index
    %8 = vector.load %arg5[%c0_6, %c0_7] : memref<8x16xf32, #tpu.memory_space<vmem>>, vector<8x16xf32>
    %cst_8 = arith.constant dense<0.000000e+00> : vector<1x16xf32>
    %9 = tpu.matmul %7, %8, %cst_8 {dimension_numbers = #tpu.dot_dimension_numbers<[1], [0], [0], [1], [0, 0, 1, 1], [], []>} : vector<1x8xf32>, vector<8x16xf32>, vector<1x16xf32> -> vector<1x16xf32>
    %10 = vector.broadcast %9 : vector<1x16xf32> to vector<256x16xf32>
    %11 = arith.subf %1, %10 : vector<256x16xf32>
    %12 = arith.mulf %11, %11 : vector<256x16xf32>
    %cst_9 = arith.constant dense<0.000000e+00> : vector<16xf32>
    %13 = vector.multi_reduction <add>, %12, %cst_9 [0] : vector<256x16xf32> to vector<16xf32>
    %14 = vector.shape_cast %13 : vector<16xf32> to vector<1x16xf32>
    %c0_10 = arith.constant 0 : index
    %c0_11 = arith.constant 0 : index
    %15 = vector.load %arg4[%c0_10, %c0_11] : memref<16x8xf32, #tpu.memory_space<vmem>>, vector<16x8xf32>
    %cst_12 = arith.constant dense<0.000000e+00> : vector<1x8xf32>
    %16 = tpu.matmul %14, %15, %cst_12 {dimension_numbers = #tpu.dot_dimension_numbers<[1], [0], [0], [1], [0, 0, 1, 1], [], []>} : vector<1x16xf32>, vector<16x8xf32>, vector<1x8xf32> -> vector<1x8xf32>
    %cst_13 = arith.constant 0.001953125 : f32
    %17 = vector.broadcast %cst_13 : f32 to vector<1x8xf32>
    %18 = arith.mulf %16, %17 : vector<1x8xf32>
    %cst_14 = arith.constant 9.99999974E-6 : f32
    %19 = vector.broadcast %cst_14 : f32 to vector<1x8xf32>
    %20 = arith.addf %18, %19 : vector<1x8xf32>
    %21 = math.rsqrt %20 : vector<1x8xf32>
    %c0_15 = arith.constant 0 : index
    %c0_16 = arith.constant 0 : index
    %22 = vector.load %arg5[%c0_15, %c0_16] : memref<8x16xf32, #tpu.memory_space<vmem>>, vector<8x16xf32>
    %cst_17 = arith.constant dense<0.000000e+00> : vector<1x16xf32>
    %23 = tpu.matmul %21, %22, %cst_17 {dimension_numbers = #tpu.dot_dimension_numbers<[1], [0], [0], [1], [0, 0, 1, 1], [], []>} : vector<1x8xf32>, vector<8x16xf32>, vector<1x16xf32> -> vector<1x16xf32>
    %24 = vector.broadcast %23 : vector<1x16xf32> to vector<256x16xf32>
    %25 = arith.mulf %11, %24 : vector<256x16xf32>
    %c0_18 = arith.constant 0 : index
    %c0_19 = arith.constant 0 : index
    %26 = vector.load %arg2[%c0_18, %c0_19] : memref<1x16xf32, #tpu.memory_space<vmem>>, vector<1x16xf32>
    %27 = vector.broadcast %26 : vector<1x16xf32> to vector<256x16xf32>
    %28 = arith.mulf %25, %27 : vector<256x16xf32>
    %c0_20 = arith.constant 0 : index
    %c0_21 = arith.constant 0 : index
    %29 = vector.load %arg3[%c0_20, %c0_21] : memref<1x16xf32, #tpu.memory_space<vmem>>, vector<1x16xf32>
    %30 = vector.broadcast %29 : vector<1x16xf32> to vector<256x16xf32>
    %31 = arith.addf %28, %30 : vector<256x16xf32>
    %c0_22 = arith.constant 0 : index
    %c0_23 = arith.constant 0 : index
    %c0_24 = arith.constant 0 : index
    %32 = vector.load %arg6[%c0_22, %c0_23, %c0_24] : memref<1x256x16xf32, #tpu.memory_space<vmem>>, vector<1x256x16xf32>
    %33 = vector.shape_cast %32 : vector<1x256x16xf32> to vector<256x16xf32>
    %34 = vector.shape_cast %31 : vector<256x16xf32> to vector<1x256x16xf32>
    tpu.vector_store %arg6[%c0_22, %c0_23, %c0_24], %34 {strides = array<i32>} : memref<1x256x16xf32, #tpu.memory_space<vmem>>, vector<1x256x16xf32>,
    return
  }
  func.func @transform_0(%arg0: i32) -> (i32, i32, i32) {
    %c0_i32 = arith.constant 0 : i32
    %c0_i32_0 = arith.constant 0 : i32
    %c0_i32_1 = arith.constant 0 : i32
    return %arg0, %c0_i32, %c0_i32_0 : i32, i32, i32
  }
  func.func @transform_1(%arg0: i32) -> (i32, i32) {
    %c0_i32 = arith.constant 0 : i32
    %c0_i32_0 = arith.constant 0 : i32
    %c0_i32_1 = arith.constant 0 : i32
    return %c0_i32, %c0_i32_0 : i32, i32
  }
  func.func @transform_2(%arg0: i32) -> (i32, i32) {
    %c0_i32 = arith.constant 0 : i32
    %c0_i32_0 = arith.constant 0 : i32
    %c0_i32_1 = arith.constant 0 : i32
    return %c0_i32, %c0_i32_0 : i32, i32
  }
  func.func @transform_3(%arg0: i32) -> (i32, i32) {
    %c0_i32 = arith.constant 0 : i32
    %c0_i32_0 = arith.constant 0 : i32
    %c0_i32_1 = arith.constant 0 : i32
    return %c0_i32, %c0_i32_0 : i32, i32
  }
  func.func @transform_4(%arg0: i32) -> (i32, i32) {
    %c0_i32 = arith.constant 0 : i32
    %c0_i32_0 = arith.constant 0 : i32
    %c0_i32_1 = arith.constant 0 : i32
    return %c0_i32, %c0_i32_0 : i32, i32
  }
  func.func @transform_5(%arg0: i32) -> (i32, i32, i32) {
    %c0_i32 = arith.constant 0 : i32
    %c0_i32_0 = arith.constant 0 : i32
    %c0_i32_1 = arith.constant 0 : i32
    return %arg0, %c0_i32, %c0_i32_0 : i32, i32, i32
  }
}

module attributes {stable_mosaic.version = 11 : i64} {
  func.func @_gemm_kernel(%arg0: i32, %arg1: i32, %arg2: i32, %arg3: i32, %arg4: memref<1x256x16xbf16, #tpu.memory_space<vmem>>, %arg5: memref<1x16x48xbf16, #tpu.memory_space<vmem>>, %arg6: memref<1x1x48xf32, #tpu.memory_space<vmem>>, %arg7: memref<1x256x48xbf16, #tpu.memory_space<vmem>>, %arg8: memref<256x48xf32, #tpu.memory_space<vmem>>) attributes {dimension_semantics = [#tpu.dimension_semantics<parallel>, #tpu.dimension_semantics<parallel>, #tpu.dimension_semantics<parallel>, #tpu.dimension_semantics<arbitrary>], iteration_bounds = array<i64: 1, 2, 1, 1>, scalar_prefetch = 0 : i64, scratch_operands = 1 : i64, tpu.core_type = #tpu.core_type<tc>, window_params = [{transform_indices = @transform_0, window_bounds = array<i64: 1, 256, 16>}, {transform_indices = @transform_1, window_bounds = array<i64: 1, 16, 48>}, {transform_indices = @transform_2, window_bounds = array<i64: 1, 1, 48>}, {transform_indices = @transform_3, window_bounds = array<i64: 1, 256, 48>}]} {
    %c0_i32 = arith.constant 0 : i32
    %0 = arith.cmpi eq, %arg3, %c0_i32 : i32
    %1 = arith.extui %0 : i1 to i32
    %c0_i32_0 = arith.constant 0 : i32
    %2 = arith.cmpi ne, %1, %c0_i32_0 : i32
    scf.if %2 {
      %cst_12 = arith.constant 0.000000e+00 : f32
      %14 = vector.broadcast %cst_12 : f32 to vector<256x48xf32>
      %c0_13 = arith.constant 0 : index
      %c0_14 = arith.constant 0 : index
      %15 = vector.load %arg8[%c0_13, %c0_14] : memref<256x48xf32, #tpu.memory_space<vmem>>, vector<256x48xf32>
      tpu.vector_store %arg8[%c0_13, %c0_14], %14 {strides = array<i32>} : memref<256x48xf32, #tpu.memory_space<vmem>>, vector<256x48xf32>,
    } else {
    }
    %c0 = arith.constant 0 : index
    %c0_1 = arith.constant 0 : index
    %c0_2 = arith.constant 0 : index
    %3 = vector.load %arg4[%c0, %c0_1, %c0_2] : memref<1x256x16xbf16, #tpu.memory_space<vmem>>, vector<1x256x16xbf16>
    %4 = vector.shape_cast %3 : vector<1x256x16xbf16> to vector<256x16xbf16>
    %c0_3 = arith.constant 0 : index
    %c0_4 = arith.constant 0 : index
    %5 = vector.load %arg8[%c0_3, %c0_4] : memref<256x48xf32, #tpu.memory_space<vmem>>, vector<256x48xf32>
    %c0_5 = arith.constant 0 : index
    %c0_6 = arith.constant 0 : index
    %c0_7 = arith.constant 0 : index
    %6 = vector.load %arg5[%c0_5, %c0_6, %c0_7] : memref<1x16x48xbf16, #tpu.memory_space<vmem>>, vector<1x16x48xbf16>
    %7 = vector.shape_cast %6 : vector<1x16x48xbf16> to vector<16x48xbf16>
    %cst = arith.constant dense<0.000000e+00> : vector<256x48xf32>
    %8 = tpu.matmul %4, %7, %cst {dimension_numbers = #tpu.dot_dimension_numbers<[1], [0], [0], [1], [0, 0, 1, 1], [], []>} : vector<256x16xbf16>, vector<16x48xbf16>, vector<256x48xf32> -> vector<256x48xf32>
    %9 = arith.addf %5, %8 : vector<256x48xf32>
    %c0_8 = arith.constant 0 : index
    %c0_9 = arith.constant 0 : index
    %10 = vector.load %arg8[%c0_8, %c0_9] : memref<256x48xf32, #tpu.memory_space<vmem>>, vector<256x48xf32>
    tpu.vector_store %arg8[%c0_8, %c0_9], %9 {strides = array<i32>} : memref<256x48xf32, #tpu.memory_space<vmem>>, vector<256x48xf32>,
    %c0_i32_10 = arith.constant 0 : i32
    %11 = arith.cmpi eq, %arg3, %c0_i32_10 : i32
    %12 = arith.extui %11 : i1 to i32
    %c0_i32_11 = arith.constant 0 : i32
    %13 = arith.cmpi ne, %12, %c0_i32_11 : i32
    scf.if %13 {
      %c0_12 = arith.constant 0 : index
      %c0_13 = arith.constant 0 : index
      %14 = vector.load %arg8[%c0_12, %c0_13] : memref<256x48xf32, #tpu.memory_space<vmem>>, vector<256x48xf32>
      %c0_14 = arith.constant 0 : index
      %c0_15 = arith.constant 0 : index
      %c0_16 = arith.constant 0 : index
      %15 = vector.load %arg6[%c0_14, %c0_15, %c0_16] : memref<1x1x48xf32, #tpu.memory_space<vmem>>, vector<1x1x48xf32>
      %16 = vector.shape_cast %15 : vector<1x1x48xf32> to vector<1x48xf32>
      %17 = vector.broadcast %16 : vector<1x48xf32> to vector<256x48xf32>
      %18 = arith.addf %14, %17 : vector<256x48xf32>
      %19 = arith.truncf %18 : vector<256x48xf32> to vector<256x48xbf16>
      %c0_17 = arith.constant 0 : index
      %c0_18 = arith.constant 0 : index
      %c0_19 = arith.constant 0 : index
      %20 = vector.load %arg7[%c0_17, %c0_18, %c0_19] : memref<1x256x48xbf16, #tpu.memory_space<vmem>>, vector<1x256x48xbf16>
      %21 = vector.shape_cast %20 : vector<1x256x48xbf16> to vector<256x48xbf16>
      %22 = vector.shape_cast %19 : vector<256x48xbf16> to vector<1x256x48xbf16>
      tpu.vector_store %arg7[%c0_17, %c0_18, %c0_19], %22 {strides = array<i32>} : memref<1x256x48xbf16, #tpu.memory_space<vmem>>, vector<1x256x48xbf16>,
    } else {
    }
    return
  }
  func.func @transform_0(%arg0: i32, %arg1: i32, %arg2: i32, %arg3: i32) -> (i32, i32, i32) {
    %c0_i32 = arith.constant 0 : i32
    return %arg0, %arg1, %arg3 : i32, i32, i32
  }
  func.func @transform_1(%arg0: i32, %arg1: i32, %arg2: i32, %arg3: i32) -> (i32, i32, i32) {
    %c0_i32 = arith.constant 0 : i32
    return %arg0, %arg3, %arg2 : i32, i32, i32
  }
  func.func @transform_2(%arg0: i32, %arg1: i32, %arg2: i32, %arg3: i32) -> (i32, i32, i32) {
    %c0_i32 = arith.constant 0 : i32
    %c0_i32_0 = arith.constant 0 : i32
    return %arg0, %c0_i32, %arg2 : i32, i32, i32
  }
  func.func @transform_3(%arg0: i32, %arg1: i32, %arg2: i32, %arg3: i32) -> (i32, i32, i32) {
    %c0_i32 = arith.constant 0 : i32
    return %arg0, %arg1, %arg2 : i32, i32, i32
  }
}

module attributes {stable_mosaic.version = 11 : i64} {
  func.func @_mha_kernel(%arg0: i32, %arg1: memref<1x256x4xbf16, #tpu.memory_space<vmem>>, %arg2: memref<1x256x4xbf16, #tpu.memory_space<vmem>>, %arg3: memref<1x256x4xbf16, #tpu.memory_space<vmem>>, %arg4: memref<1x256x4xf32, #tpu.memory_space<vmem>>) attributes {dimension_semantics = [#tpu.dimension_semantics<parallel>], iteration_bounds = array<i64: 8>, scalar_prefetch = 0 : i64, scratch_operands = 0 : i64, tpu.core_type = #tpu.core_type<tc>, window_params = [{transform_indices = @transform_0, window_bounds = array<i64: 1, 256, 4>}, {transform_indices = @transform_1, window_bounds = array<i64: 1, 256, 4>}, {transform_indices = @transform_2, window_bounds = array<i64: 1, 256, 4>}, {transform_indices = @transform_3, window_bounds = array<i64: 1, 256, 4>}]} {
    %c0 = arith.constant 0 : index
    %c0_0 = arith.constant 0 : index
    %c0_1 = arith.constant 0 : index
    %0 = vector.load %arg1[%c0, %c0_0, %c0_1] : memref<1x256x4xbf16, #tpu.memory_space<vmem>>, vector<1x256x4xbf16>
    %1 = vector.shape_cast %0 : vector<1x256x4xbf16> to vector<256x4xbf16>
    %2 = arith.extf %1 : vector<256x4xbf16> to vector<256x4xf32>
    %cst = arith.constant 5.000000e-01 : f32
    %3 = vector.broadcast %cst : f32 to vector<256x4xf32>
    %4 = arith.mulf %2, %3 : vector<256x4xf32>
    %5 = arith.truncf %4 : vector<256x4xf32> to vector<256x4xbf16>
    %c0_2 = arith.constant 0 : index
    %c0_3 = arith.constant 0 : index
    %c0_4 = arith.constant 0 : index
    %6 = vector.load %arg2[%c0_2, %c0_3, %c0_4] : memref<1x256x4xbf16, #tpu.memory_space<vmem>>, vector<1x256x4xbf16>
    %7 = vector.shape_cast %6 : vector<1x256x4xbf16> to vector<256x4xbf16>
    %c0_5 = arith.constant 0 : index
    %c0_6 = arith.constant 0 : index
    %c0_7 = arith.constant 0 : index
    %8 = vector.load %arg3[%c0_5, %c0_6, %c0_7] : memref<1x256x4xbf16, #tpu.memory_space<vmem>>, vector<1x256x4xbf16>
    %9 = vector.shape_cast %8 : vector<1x256x4xbf16> to vector<256x4xbf16>
    %cst_8 = arith.constant dense<0.000000e+00> : vector<256x256xf32>
    %10 = tpu.matmul %5, %7, %cst_8 {dimension_numbers = #tpu.dot_dimension_numbers<[1], [1], [0], [0], [0, 0, 1, 0], [], []>} : vector<256x4xbf16>, vector<256x4xbf16>, vector<256x256xf32> -> vector<256x256xf32>
    %cst_9 = arith.constant dense<0xFF800000> : vector<256xf32>
    %11 = vector.multi_reduction <maximumf>, %10, %cst_9 [1] : vector<256x256xf32> to vector<256xf32>
    %12 = vector.shape_cast %11 : vector<256xf32> to vector<256x1xf32>
    %13 = vector.broadcast %12 : vector<256x1xf32> to vector<256x256xf32>
    %14 = arith.subf %10, %13 : vector<256x256xf32>
    %15 = math.exp %14 : vector<256x256xf32>
    %cst_10 = arith.constant dense<0.000000e+00> : vector<256xf32>
    %16 = vector.multi_reduction <add>, %15, %cst_10 [1] : vector<256x256xf32> to vector<256xf32>
    %17 = vector.shape_cast %16 : vector<256xf32> to vector<256x1xf32>
    %18 = tpu.reciprocal %17 {approx = true} : vector<256x1xf32> -> vector<256x1xf32>
    %19 = vector.broadcast %18 : vector<256x1xf32> to vector<256x256xf32>
    %20 = arith.mulf %15, %19 : vector<256x256xf32>
    %21 = arith.truncf %20 : vector<256x256xf32> to vector<256x256xbf16>
    %cst_11 = arith.constant dense<0.000000e+00> : vector<256x4xf32>
    %22 = tpu.matmul %21, %9, %cst_11 {dimension_numbers = #tpu.dot_dimension_numbers<[1], [0], [0], [1], [0, 0, 1, 1], [], []>} : vector<256x256xbf16>, vector<256x4xbf16>, vector<256x4xf32> -> vector<256x4xf32>
    %c0_12 = arith.constant 0 : index
    %c0_13 = arith.constant 0 : index
    %c0_14 = arith.constant 0 : index
    %23 = vector.load %arg4[%c0_12, %c0_13, %c0_14] : memref<1x256x4xf32, #tpu.memory_space<vmem>>, vector<1x256x4xf32>
    %24 = vector.shape_cast %23 : vector<1x256x4xf32> to vector<256x4xf32>
    %25 = vector.shape_cast %22 : vector<256x4xf32> to vector<1x256x4xf32>
    tpu.vector_store %arg4[%c0_12, %c0_13, %c0_14], %25 {strides = array<i32>} : memref<1x256x4xf32, #tpu.memory_space<vmem>>, vector<1x256x4xf32>,
    return
  }
  func.func @transform_0(%arg0: i32) -> (i32, i32, i32) {
    %c0_i32 = arith.constant 0 : i32
    %c0_i32_0 = arith.constant 0 : i32
    %c0_i32_1 = arith.constant 0 : i32
    return %arg0, %c0_i32, %c0_i32_0 : i32, i32, i32
  }
  func.func @transform_1(%arg0: i32) -> (i32, i32, i32) {
    %c0_i32 = arith.constant 0 : i32
    %c0_i32_0 = arith.constant 0 : i32
    %c0_i32_1 = arith.constant 0 : i32
    return %arg0, %c0_i32, %c0_i32_0 : i32, i32, i32
  }
  func.func @transform_2(%arg0: i32) -> (i32, i32, i32) {
    %c0_i32 = arith.constant 0 : i32
    %c0_i32_0 = arith.constant 0 : i32
    %c0_i32_1 = arith.constant 0 : i32
    return %arg0, %c0_i32, %c0_i32_0 : i32, i32, i32
  }
  func.func @transform_3(%arg0: i32) -> (i32, i32, i32) {
    %c0_i32 = arith.constant 0 : i32
    %c0_i32_0 = arith.constant 0 : i32
    %c0_i32_1 = arith.constant 0 : i32
    return %arg0, %c0_i32, %c0_i32_0 : i32, i32, i32
  }
}

</mosaic_0001>

<llo_original>
// kernel: upblock_forward.11
$region0: #{upblock_forward.11}
  #allocation0 [shape = 'u32[]', space=smem, size = 0x4, offset = 0x4, fixed_abs, tag = 'smem constant byte address 0x4 - core index']
  #allocation1 [shape = 'u32[144,128]{1,0:T(1,128)}', space=vmem, size = 0x12000, scoped, tag = 'internal scratch']
  #allocation2 [shape = 'f32[128,8]{1,0:T(8,128)}', space=vmem, size = 0x10000, scoped, tag = 'scratch operand']
  %s0 = inlined_call_operand.vmem [shape: bf16[4,128,32], index: 0, kind: input, shape index: {}]
  %s1 = inlined_call_operand.vmem [shape: bf16[4,32,8], index: 1, kind: input, shape index: {}]
  %s2 = inlined_call_operand.vmem [shape: f32[4,1,8], index: 2, kind: input, shape index: {}]
  %s3 = inlined_call_operand.vmem [shape: f32[4,128,8], index: 3, kind: output, shape index: {}]
  %s4 = sld [smem:[#allocation0]]
  $region53: #{upblock_forward.11} parent=0
    _
  %s6 = ssub.s32 1, %s4
  %s7 = scalar_select 0, %s6, %s4
  loop: start=0, step=1, limit=6
  $region2: #{upblock_forward.11} parent=0 // loop_pre_header
    _
  $region3: #{upblock_forward.11} parent=0 // loop_header
    %s9 = sphi 0, %s13
    %p10 = scmp.ge.s32.totalorder %s9, 6
    %s16 = sphi 0, %s42
    %s17 = sphi 0, %s38
    %s18 = sphi 0, %s34
    %s19 = sphi 0, %s30
    %s20 = sphi 0, %s16
    %s21 = sphi 0, %s17
    %s22 = sphi 0, %s18
    %s23 = sphi 0, %s19
    %s24 = sphi 0, %s20
    %s25 = sphi 0, %s21
    %s26 = sphi 0, %s22
    %s27 = sphi 0, %s23
    %s49 = sphi 0, %s51
    %s52 = sphi 0, %s49
    %s53 = sphi 0, %s52
    %s69 = sphi 0, %s53
    %s79 = sphi 0, %s81
    %s82 = sphi 0, %s79
    %s83 = sphi 0, %s82
    %s99 = sphi 0, %s83
    %s107 = sphi 0, %s109
    %s110 = sphi 0, %s107
    %s111 = sphi 0, %s110
    %s127 = sphi 0, %s111
    %s137 = sphi 0, %s139
    %s140 = sphi 0, %s137
    %s141 = sphi 0, %s140
    %s157 = sphi 0, %s141
  $region4: #{upblock_forward.11} parent=0 // loop_header_branch
    %12 = sbr.rel (%p10) target = $region8
  $region5: #{upblock_forward.11} parent=0 // loop_body
    %s14 = ssub.s32 %s9, 1
    %s15 = ssub.s32 %s9, 2
    %s28 = sadd.s32 1, %s19
    %p29 = scmp.ge.s32.totalorder %s28, 1
    %s30 = scalar_select %p29, 0, %s28
    %s31 = sadd.s32 1, %s18
    %s32 = scalar_select %p29, %s31, %s18
    %p33 = scmp.ge.s32.totalorder %s32, 1
    %s34 = scalar_select %p33, 0, %s32
    %s35 = sadd.s32 1, %s17
    %s36 = scalar_select %p33, %s35, %s17
    %p37 = scmp.ge.s32.totalorder %s36, 1
    %s38 = scalar_select %p37, 0, %s36
    %s39 = sadd.s32 1, %s16
    %s40 = scalar_select %p37, %s39, %s16
    %p41 = scmp.ge.s32.totalorder %s40, 4
    %s42 = scalar_select %p41, 0, %s40
    %s43 = ssub.s32 %s16, %s42
    %s44 = ssub.s32 %s17, %s38
    %s45 = sor.u32 %s43, %s44
    %s46 = ssub.s32 %s19, %s30
    %s47 = sor.u32 %s45, %s46
    %p48 = scmp.eq.s32.totalorder %s47, 0
    %s50 = sadd.s32 %s49, 1
    %s51 = scalar_select %p48, %s49, %s50
    %p54 = pneg %p48
    %p55 = scmp.eq.s32.totalorder %s9, 3
    %p56 = por %p54, %p55
    %p57 = scmp.ne.s32.totalorder %s49, %s52
    %p58 = scmp.eq.s32.totalorder %s9, 0
    %p59 = por %p57, %p58
    %p60 = scmp.ne.s32.totalorder %s49, %s52
    %p61 = scmp.eq.s32.totalorder %s14, 3
    %p62 = por %p60, %p61
    %p63 = scmp.ne.s32.totalorder %s52, %s53
    %p64 = scmp.eq.s32.totalorder %s14, 0
    %p65 = por %p63, %p64
    %p66 = scmp.ne.s32.totalorder %s52, %s53
    %p67 = scmp.eq.s32.totalorder %s15, 3
    %p68 = por %p66, %p67
    %p70 = scmp.ne.s32.totalorder %s53, %s69
    %p71 = scmp.eq.s32.totalorder %s15, 0
    %p72 = por %p70, %p71
    %s73 = ssub.s32 %s16, %s42
    %s74 = ssub.s32 %s19, %s30
    %s75 = sor.u32 %s73, %s74
    %s76 = ssub.s32 %s18, %s34
    %s77 = sor.u32 %s75, %s76
    %p78 = scmp.eq.s32.totalorder %s77, 0
    %s80 = sadd.s32 %s79, 1
    %s81 = scalar_select %p78, %s79, %s80
    %p84 = pneg %p78
    %p85 = scmp.eq.s32.totalorder %s9, 3
    %p86 = por %p84, %p85
    %p87 = scmp.ne.s32.totalorder %s79, %s82
    %p88 = scmp.eq.s32.totalorder %s9, 0
    %p89 = por %p87, %p88
    %p90 = scmp.ne.s32.totalorder %s79, %s82
    %p91 = scmp.eq.s32.totalorder %s14, 3
    %p92 = por %p90, %p91
    %p93 = scmp.ne.s32.totalorder %s82, %s83
    %p94 = scmp.eq.s32.totalorder %s14, 0
    %p95 = por %p93, %p94
    %p96 = scmp.ne.s32.totalorder %s82, %s83
    %p97 = scmp.eq.s32.totalorder %s15, 3
    %p98 = por %p96, %p97
    %p100 = scmp.ne.s32.totalorder %s83, %s99
    %p101 = scmp.eq.s32.totalorder %s15, 0
    %p102 = por %p100, %p101
    %s103 = ssub.s32 %s16, %s42
    %s104 = ssub.s32 %s18, %s34
    %s105 = sor.u32 %s103, %s104
    %p106 = scmp.eq.s32.totalorder %s105, 0
    %s108 = sadd.s32 %s107, 1
    %s109 = scalar_select %p106, %s107, %s108
    %p112 = pneg %p106
    %p113 = scmp.eq.s32.totalorder %s9, 3
    %p114 = por %p112, %p113
    %p115 = scmp.ne.s32.totalorder %s107, %s110
    %p116 = scmp.eq.s32.totalorder %s9, 0
    %p117 = por %p115, %p116
    %p118 = scmp.ne.s32.totalorder %s107, %s110
    %p119 = scmp.eq.s32.totalorder %s14, 3
    %p120 = por %p118, %p119
    %p121 = scmp.ne.s32.totalorder %s110, %s111
    %p122 = scmp.eq.s32.totalorder %s14, 0
    %p123 = por %p121, %p122
    %p124 = scmp.ne.s32.totalorder %s110, %s111
    %p125 = scmp.eq.s32.totalorder %s15, 3
    %p126 = por %p124, %p125
    %p128 = scmp.ne.s32.totalorder %s111, %s127
    %p129 = scmp.eq.s32.totalorder %s15, 0
    %p130 = por %p128, %p129
    %s131 = ssub.s32 %s16, %s42
    %s132 = ssub.s32 %s17, %s38
    %s133 = sor.u32 %s131, %s132
    %s134 = ssub.s32 %s18, %s34
    %s135 = sor.u32 %s133, %s134
    %p136 = scmp.eq.s32.totalorder %s135, 0
    %s138 = sadd.s32 %s137, 1
    %s139 = scalar_select %p136, %s137, %s138
    %p142 = pneg %p136
    %p143 = scmp.eq.s32.totalorder %s9, 3
    %p144 = por %p142, %p143
    %p145 = scmp.ne.s32.totalorder %s137, %s140
    %p146 = scmp.eq.s32.totalorder %s9, 0
    %p147 = por %p145, %p146
    %p148 = scmp.ne.s32.totalorder %s137, %s140
    %p149 = scmp.eq.s32.totalorder %s14, 3
    %p150 = por %p148, %p149
    %p151 = scmp.ne.s32.totalorder %s140, %s141
    %p152 = scmp.eq.s32.totalorder %s14, 0
    %p153 = por %p151, %p152
    %p154 = scmp.ne.s32.totalorder %s140, %s141
    %p155 = scmp.eq.s32.totalorder %s15, 3
    %p156 = por %p154, %p155
    %p158 = scmp.ne.s32.totalorder %s141, %s157
    %p159 = scmp.eq.s32.totalorder %s15, 0
    %p160 = por %p158, %p159
    %p161 = scmp.le.s32.totalorder 1, %s9
    %p162 = scmp.lt.s32.totalorder %s9, 5
    %p163 = pnand %p161, %p162
    %p164 = pneg %p163
    // Predicated region
    $region9: #{upblock_forward.11} parent=5 // pred_check
      _
    $region10: #{upblock_forward.11} parent=5 // pred_check_branch
      %166 = sbr.rel (%p163) target = $region12
    $region11: #{upblock_forward.11} parent=5 // pred_region
      %s167 = ssub.s32 %s9, 1
    $region12: #{upblock_forward.11} parent=5 // pred_fallthru
      _
    %p168 = scmp.lt.s32.totalorder %s9, 4
    // Predicated region
    $region13: #{upblock_forward.11} parent=5 // pred_check
      %p169 = pneg %p168
    $region14: #{upblock_forward.11} parent=5 // pred_check_branch
      %171 = sbr.rel (%p169) target = $region16
    $region15: #{upblock_forward.11} parent=5 // pred_region
      // Predicated region
      $region17: #{upblock_forward.11} parent=15 // pred_check
        %p172 = pneg %p59
      $region18: #{upblock_forward.11} parent=15 // pred_check_branch
        %174 = sbr.rel (%p172) target = $region20
      $region19: #{upblock_forward.11} parent=15 // pred_region
        %s175 = smul.u32 16, %s17
        %p176 = scmp.lt.s32.totalorder %s16, 3
        %s177 = scalar_select %p176, %s16, 3
        %p178 = scmp.lt.s32.totalorder %s175, 15
        %s179 = scalar_select %p178, %s175, 15
        %p180 = scmp.lt.s32.totalorder %s19, 0
        %s181 = scalar_select %p180, %s19, 0
        %s182 = sadd.s32 %s181, %s179
        %s183 = smul.addr %s177, 16
        %s184 = sadd.s32 %s182, %s183
        %s185 = smul.addr %s184, 4
        %s186 = scalar_lea.vmem %s0, %s185
        %s187 = smul.u32 16, %s17
      $region20: #{upblock_forward.11} parent=15 // pred_fallthru
        _
      // Predicated region
      $region21: #{upblock_forward.11} parent=15 // pred_check
        %p188 = pneg %p89
      $region22: #{upblock_forward.11} parent=15 // pred_check_branch
        %190 = sbr.rel (%p188) target = $region24
      $region23: #{upblock_forward.11} parent=15 // pred_region
        %s191 = smul.u32 4, %s19
        %p192 = scmp.lt.s32.totalorder %s16, 3
        %s193 = scalar_select %p192, %s16, 3
        %p194 = scmp.lt.s32.totalorder %s191, 3
        %s195 = scalar_select %p194, %s191, 3
        %p196 = scmp.lt.s32.totalorder %s18, 0
        %s197 = scalar_select %p196, %s18, 0
        %s198 = sadd.s32 %s197, %s195
        %s199 = smul.addr %s193, 4
        %s200 = sadd.s32 %s198, %s199
        %s201 = smul.addr %s200, 4
        %s202 = scalar_lea.vmem %s1, %s201
        %s203 = smul.u32 4, %s19
      $region24: #{upblock_forward.11} parent=15 // pred_fallthru
        _
      // Predicated region
      $region25: #{upblock_forward.11} parent=15 // pred_check
        %p204 = pneg %p117
      $region26: #{upblock_forward.11} parent=15 // pred_check_branch
        %206 = sbr.rel (%p204) target = $region28
      $region27: #{upblock_forward.11} parent=15 // pred_region
        %p207 = scmp.lt.s32.totalorder %s16, 3
        %s208 = scalar_select %p207, %s16, 3
        %p209 = scmp.lt.s32.totalorder %s18, 0
        %s210 = scalar_select %p209, %s18, 0
        %s211 = sadd.s32 %s210, %s208
        %s212 = scalar_lea.vmem %s2, %s211
      $region28: #{upblock_forward.11} parent=15 // pred_fallthru
        _
    $region16: #{upblock_forward.11} parent=5 // pred_fallthru
      _
    %p213 = scmp.le.s32.totalorder 1, %s9
    %p214 = scmp.lt.s32.totalorder %s9, 5
    %p215 = pnand %p213, %p214
    %p216 = pneg %p215
    // Predicated region
    $region29: #{upblock_forward.11} parent=5 // pred_check
      _
    $region30: #{upblock_forward.11} parent=5 // pred_check_branch
      %218 = sbr.rel (%p215) target = $region32
    $region31: #{upblock_forward.11} parent=5 // pred_region
      %s219 = ssub.s32 %s9, 1
      %s220 = smul.u32 16, %s21
      %p221 = scmp.lt.s32.totalorder %s20, 3
      %s222 = scalar_select %p221, %s20, 3
      %p223 = scmp.lt.s32.totalorder %s220, 15
      %s224 = scalar_select %p223, %s220, 15
      %p225 = scmp.lt.s32.totalorder %s23, 0
      %s226 = scalar_select %p225, %s23, 0
      %s227 = sadd.s32 %s226, %s224
      %s228 = smul.addr %s222, 16
      %s229 = sadd.s32 %s227, %s228
      %s230 = smul.addr %s229, 4
      %s231 = scalar_lea.vmem %s0, %s230
      %p232 = pneg %p65
      %p233 = pneg %p62
      %s234 = smul.u32 4, %s23
      %p235 = scmp.lt.s32.totalorder %s20, 3
      %s236 = scalar_select %p235, %s20, 3
      %p237 = scmp.lt.s32.totalorder %s234, 3
      %s238 = scalar_select %p237, %s234, 3
      %p239 = scmp.lt.s32.totalorder %s22, 0
      %s240 = scalar_select %p239, %s22, 0
      %s241 = sadd.s32 %s240, %s238
      %s242 = smul.addr %s236, 4
      %s243 = sadd.s32 %s241, %s242
      %s244 = smul.addr %s243, 4
      %s245 = scalar_lea.vmem %s1, %s244
      %p246 = pneg %p95
      %p247 = pneg %p92
      %p248 = scmp.lt.s32.totalorder %s20, 3
      %s249 = scalar_select %p248, %s20, 3
      %p250 = scmp.lt.s32.totalorder %s22, 0
      %s251 = scalar_select %p250, %s22, 0
      %s252 = sadd.s32 %s251, %s249
      %s253 = scalar_lea.vmem %s2, %s252
      %p254 = pneg %p123
      %p255 = pneg %p120
      %p256 = pneg %p153
      %p257 = pneg %p150
      %s258 = smul.u32 16, %s21
      %p259 = scmp.lt.s32.totalorder %s20, 3
      %s260 = scalar_select %p259, %s20, 3
      %p261 = scmp.lt.s32.totalorder %s258, 15
      %s262 = scalar_select %p261, %s258, 15
      %p263 = scmp.lt.s32.totalorder %s22, 0
      %s264 = scalar_select %p263, %s22, 0
      %s265 = sadd.s32 %s264, %s262
      %s266 = smul.addr %s260, 16
      %s267 = sadd.s32 %s265, %s266
      %s268 = smul.addr %s267, 8
      %s269 = scalar_lea.vmem %s3, %s268
      %s270 = smul.u32 16, %s21
      %p271 = scmp.lt.s32.totalorder %s20, 3
      %s272 = scalar_select %p271, %s20, 3
      %p273 = scmp.lt.s32.totalorder %s270, 15
      %s274 = scalar_select %p273, %s270, 15
      %p275 = scmp.lt.s32.totalorder %s23, 0
      %s276 = scalar_select %p275, %s23, 0
      %s277 = sadd.s32 %s276, %s274
      %s278 = smul.addr %s272, 16
      %s279 = sadd.s32 %s277, %s278
      %s280 = smul.addr %s279, 4
      %s281 = scalar_lea.vmem %s0, %s280
      %s282 = smul.u32 16, %s21
      %s283 = smul.u32 4, %s23
      %p284 = scmp.lt.s32.totalorder %s20, 3
      %s285 = scalar_select %p284, %s20, 3
      %p286 = scmp.lt.s32.totalorder %s283, 3
      %s287 = scalar_select %p286, %s283, 3
      %p288 = scmp.lt.s32.totalorder %s22, 0
      %s289 = scalar_select %p288, %s22, 0
      %s290 = sadd.s32 %s289, %s287
      %s291 = smul.addr %s285, 4
      %s292 = sadd.s32 %s290, %s291
      %s293 = smul.addr %s292, 4
      %s294 = scalar_lea.vmem %s1, %s293
      %s295 = smul.u32 4, %s23
      %p296 = scmp.lt.s32.totalorder %s20, 3
      %s297 = scalar_select %p296, %s20, 3
      %p298 = scmp.lt.s32.totalorder %s22, 0
      %s299 = scalar_select %p298, %s22, 0
      %s300 = sadd.s32 %s299, %s297
      %s301 = scalar_lea.vmem %s2, %s300
      %s302 = smul.u32 16, %s21
      %p303 = scmp.lt.s32.totalorder %s20, 3
      %s304 = scalar_select %p303, %s20, 3
      %p305 = scmp.lt.s32.totalorder %s302, 15
      %s306 = scalar_select %p305, %s302, 15
      %p307 = scmp.lt.s32.totalorder %s22, 0
      %s308 = scalar_select %p307, %s22, 0
      %s309 = sadd.s32 %s308, %s306
      %s310 = smul.addr %s304, 16
      %s311 = sadd.s32 %s309, %s310
      %s312 = smul.addr %s311, 8
      %s313 = scalar_lea.vmem %s3, %s312
      %s314 = smul.u32 16, %s21
      %p316 = scmp.eq.s32.totalorder %s23, 0
      // Predicated region
      $region33: #{upblock_forward.11} parent=31 // pred_check
        %p317 = pneg %p316
      $region34: #{upblock_forward.11} parent=31 // pred_check_branch
        %319 = sbr.rel (%p317) target = $region36
      $region35: #{upblock_forward.11} parent=31 // pred_region
        %vm320 = vcmask 64512
        %321 = vst.msk [vmem:[#allocation2] sm:$0xff] %vm320, 0.0
        %322 = vst.msk [vmem:[#allocation2 + $0x8] sm:$0xff] %vm320, 0.0
        %323 = vst.msk [vmem:[#allocation2 + $0x10] sm:$0xff] %vm320, 0.0
        %324 = vst.msk [vmem:[#allocation2 + $0x18] sm:$0xff] %vm320, 0.0
        %325 = vst.msk [vmem:[#allocation2 + $0x20] sm:$0xff] %vm320, 0.0
        %326 = vst.msk [vmem:[#allocation2 + $0x28] sm:$0xff] %vm320, 0.0
        %327 = vst.msk [vmem:[#allocation2 + $0x30] sm:$0xff] %vm320, 0.0
        %328 = vst.msk [vmem:[#allocation2 + $0x38] sm:$0xff] %vm320, 0.0
        %329 = vst.msk [vmem:[#allocation2 + $0x40] sm:$0xff] %vm320, 0.0
        %330 = vst.msk [vmem:[#allocation2 + $0x48] sm:$0xff] %vm320, 0.0
        %331 = vst.msk [vmem:[#allocation2 + $0x50] sm:$0xff] %vm320, 0.0
        %332 = vst.msk [vmem:[#allocation2 + $0x58] sm:$0xff] %vm320, 0.0
        %333 = vst.msk [vmem:[#allocation2 + $0x60] sm:$0xff] %vm320, 0.0
        %334 = vst.msk [vmem:[#allocation2 + $0x68] sm:$0xff] %vm320, 0.0
        %335 = vst.msk [vmem:[#allocation2 + $0x70] sm:$0xff] %vm320, 0.0
        %336 = vst.msk [vmem:[#allocation2 + $0x78] sm:$0xff] %vm320, 0.0
      $region36: #{upblock_forward.11} parent=31 // pred_fallthru
        _
      %v337 = vld [vmem:[%s281] sm:$0xf]
      %v338 = vld [vmem:[%s281 + $0x4] sm:$0xf]
      %v339 = vld [vmem:[%s281 + $0x8] sm:$0xf]
      %v340 = vld [vmem:[%s281 + $0xc] sm:$0xf]
      %v341 = vld [vmem:[%s281 + $0x10] sm:$0xf]
      %v342 = vld [vmem:[%s281 + $0x14] sm:$0xf]
      %v343 = vld [vmem:[%s281 + $0x18] sm:$0xf]
      %v344 = vld [vmem:[%s281 + $0x1c] sm:$0xf]
      %v345 = vld [vmem:[%s281 + $0x20] sm:$0xf]
      %v346 = vld [vmem:[%s281 + $0x24] sm:$0xf]
      %v347 = vld [vmem:[%s281 + $0x28] sm:$0xf]
      %v348 = vld [vmem:[%s281 + $0x2c] sm:$0xf]
      %v349 = vld [vmem:[%s281 + $0x30] sm:$0xf]
      %v350 = vld [vmem:[%s281 + $0x34] sm:$0xf]
      %v351 = vld [vmem:[%s281 + $0x38] sm:$0xf]
      %v352 = vld [vmem:[%s281 + $0x3c] sm:$0xf]
      %v353 = vld [vmem:[#allocation2] sm:$0xff]
      %v354 = vld [vmem:[#allocation2 + $0x8] sm:$0xff]
      %v355 = vld [vmem:[#allocation2 + $0x10] sm:$0xff]
      %v356 = vld [vmem:[#allocation2 + $0x18] sm:$0xff]
      %v357 = vld [vmem:[#allocation2 + $0x20] sm:$0xff]
      %v358 = vld [vmem:[#allocation2 + $0x28] sm:$0xff]
      %v359 = vld [vmem:[#allocation2 + $0x30] sm:$0xff]
      %v360 = vld [vmem:[#allocation2 + $0x38] sm:$0xff]
      %v361 = vld [vmem:[#allocation2 + $0x40] sm:$0xff]
      %v362 = vld [vmem:[#allocation2 + $0x48] sm:$0xff]
      %v363 = vld [vmem:[#allocation2 + $0x50] sm:$0xff]
      %v364 = vld [vmem:[#allocation2 + $0x58] sm:$0xff]
      %v365 = vld [vmem:[#allocation2 + $0x60] sm:$0xff]
      %v366 = vld [vmem:[#allocation2 + $0x68] sm:$0xff]
      %v367 = vld [vmem:[#allocation2 + $0x70] sm:$0xff]
      %v368 = vld [vmem:[#allocation2 + $0x78] sm:$0xff]
      %v369 = vld [vmem:[%s294] sm:$0xf]
      %v370 = vld [vmem:[%s294 + $0x4] sm:$0xf]
      %v371 = vld [vmem:[%s294 + $0x8] sm:$0xf]
      %v372 = vld [vmem:[%s294 + $0xc] sm:$0xf]
      %v389 = vunpack.c.l.b16 %v337
      %v390 = vunpack.c.l.b16 %v338
      %v391 = vunpack.c.l.b16 %v339
      %v392 = vunpack.c.l.b16 %v340
      %v393 = vunpack.c.l.b16 %v341
      %v394 = vunpack.c.l.b16 %v342
      %v395 = vunpack.c.l.b16 %v343
      %v396 = vunpack.c.l.b16 %v344
      %v397 = vunpack.c.l.b16 %v345
      %v398 = vunpack.c.l.b16 %v346
      %v399 = vunpack.c.l.b16 %v347
      %v400 = vunpack.c.l.b16 %v348
      %v401 = vunpack.c.l.b16 %v349
      %v402 = vunpack.c.l.b16 %v350
      %v403 = vunpack.c.l.b16 %v351
      %v404 = vunpack.c.l.b16 %v352
      %v405 = vpack.c.b16 %v390, %v389
      %v406 = vpack.c.b16 %v392, %v391
      %v407 = vpack.c.b16 %v394, %v393
      %v408 = vpack.c.b16 %v396, %v395
      %v409 = vpack.c.b16 %v398, %v397
      %v410 = vpack.c.b16 %v400, %v399
      %v411 = vpack.c.b16 %v402, %v401
      %v412 = vpack.c.b16 %v404, %v403
      %v417 = vunpack.c.l.b16 %v369
      %v418 = vunpack.c.l.b16 %v370
      %v419 = vunpack.c.l.b16 %v371
      %v420 = vunpack.c.l.b16 %v372
      %v421 = vpack.c.b16 %v418, %v417
      %v422 = vpack.c.b16 %v420, %v419
      %vm425 = vcmask 261120
      %v427 = vsel %vm425, %v405, 0
      %v430 = vsel %vm425, %v406, 0
      %v433 = vsel %vm425, %v407, 0
      %v436 = vsel %vm425, %v408, 0
      %v439 = vsel %vm425, %v409, 0
      %v442 = vsel %vm425, %v410, 0
      %v445 = vsel %vm425, %v411, 0
      %v448 = vsel %vm425, %v412, 0
      %450 = vmatprep.subr.bf16.mxu0 0
      %451 = vmatpush1.bf16.msra.mxu0 %v421
      %452 = vmatprep.subr.bf16.mxu0 0
      %453 = vmatpush1.bf16.msra.mxu0 %v422
      %454 = vmatprep.subr.bf16.mxu0 0
      %455 = vmatpush1.bf16.msra.mxu0 0
      %456 = vmatprep.subr.bf16.mxu0 0
      %457 = vmatpush1.bf16.msra.mxu0 0
      %458 = vmatprep.subr.bf16.mxu0 0
      %459 = vmatpush1.bf16.msra.mxu0 0
      %460 = vmatprep.subr.bf16.mxu0 0
      %461 = vmatpush1.bf16.msra.mxu0 0
      %462 = vmatprep.subr.bf16.mxu0 0
      %463 = vmatpush1.bf16.msra.mxu0 0
      %464 = vmatprep.subr.bf16.mxu0 0
      %465 = vmatpush1.bf16.msra.mxu0 0
      %466 = vmatprep.subr.bf16.mxu0 0
      %467 = vmatpush1.bf16.msra.mxu0 0
      %468 = vmatprep.subr.bf16.mxu0 0
      %469 = vmatpush1.bf16.msra.mxu0 0
      %470 = vmatprep.subr.bf16.mxu0 0
      %471 = vmatpush1.bf16.msra.mxu0 0
      %472 = vmatprep.subr.bf16.mxu0 0
      %473 = vmatpush1.bf16.msra.mxu0 0
      %474 = vmatprep.subr.bf16.mxu0 0
      %475 = vmatpush1.bf16.msra.mxu0 0
      %476 = vmatprep.subr.bf16.mxu0 0
      %477 = vmatpush1.bf16.msra.mxu0 0
      %478 = vmatprep.subr.bf16.mxu0 0
      %479 = vmatpush1.bf16.msra.mxu0 0
      %480 = vmatprep.subr.bf16.mxu0 0
      %481 = vmatpush1.bf16.msra.mxu0 0
      %482 = vmatprep.mubr.bf16.mxu0 0
      %483 = vmatmul.mubr.bf16.gmra.mrb[0].mxu0 %v427
      %v484 = vpop.f32.mrb[0].mxu0
      %v485 = vadd.f32 0.0, %v484
      %v486 = vpop.f32.mrb[0].mxu0
      %v487 = vpop.f32.mrb[0].mxu0
      %v488 = vadd.f32 0.0, %v487
      %v489 = vpop.f32.mrb[0].mxu0
      %490 = vmatprep.mubr.bf16.mxu0 0
      %491 = vmatmul.mubr.bf16.gmra.mrb[0].mxu0 %v430
      %v492 = vpop.f32.mrb[0].mxu0
      %v493 = vadd.f32 0.0, %v492
      %v494 = vpop.f32.mrb[0].mxu0
      %v495 = vpop.f32.mrb[0].mxu0
      %v496 = vadd.f32 0.0, %v495
      %v497 = vpop.f32.mrb[0].mxu0
      %498 = vmatprep.mubr.bf16.mxu0 0
      %499 = vmatmul.mubr.bf16.gmra.mrb[0].mxu0 %v433
      %v500 = vpop.f32.mrb[0].mxu0
      %v501 = vadd.f32 0.0, %v500
      %v502 = vpop.f32.mrb[0].mxu0
      %v503 = vpop.f32.mrb[0].mxu0
      %v504 = vadd.f32 0.0, %v503
      %v505 = vpop.f32.mrb[0].mxu0
      %506 = vmatprep.mubr.bf16.mxu0 0
      %507 = vmatmul.mubr.bf16.gmra.mrb[0].mxu0 %v436
      %v508 = vpop.f32.mrb[0].mxu0
      %v509 = vadd.f32 0.0, %v508
      %v510 = vpop.f32.mrb[0].mxu0
      %v511 = vpop.f32.mrb[0].mxu0
      %v512 = vadd.f32 0.0, %v511
      %v513 = vpop.f32.mrb[0].mxu0
      %514 = vmatprep.mubr.bf16.mxu0 0
      %515 = vmatmul.mubr.bf16.gmra.mrb[0].mxu0 %v439
      %v516 = vpop.f32.mrb[0].mxu0
      %v517 = vadd.f32 0.0, %v516
      %v518 = vpop.f32.mrb[0].mxu0
      %v519 = vpop.f32.mrb[0].mxu0
      %v520 = vadd.f32 0.0, %v519
      %v521 = vpop.f32.mrb[0].mxu0
      %522 = vmatprep.mubr.bf16.mxu0 0
      %523 = vmatmul.mubr.bf16.gmra.mrb[0].mxu0 %v442
      %v524 = vpop.f32.mrb[0].mxu0
      %v525 = vadd.f32 0.0, %v524
      %v526 = vpop.f32.mrb[0].mxu0
      %v527 = vpop.f32.mrb[0].mxu0
      %v528 = vadd.f32 0.0, %v527
      %v529 = vpop.f32.mrb[0].mxu0
      %530 = vmatprep.mubr.bf16.mxu0 0
      %531 = vmatmul.mubr.bf16.gmra.mrb[0].mxu0 %v445
      %v532 = vpop.f32.mrb[0].mxu0
      %v533 = vadd.f32 0.0, %v532
      %v534 = vpop.f32.mrb[0].mxu0
      %v535 = vpop.f32.mrb[0].mxu0
      %v536 = vadd.f32 0.0, %v535
      %v537 = vpop.f32.mrb[0].mxu0
      %538 = vmatprep.mubr.bf16.mxu0 0
      %539 = vmatmul.mubr.bf16.gmra.mrb[0].mxu0 %v448
      %v540 = vpop.f32.mrb[0].mxu0
      %v541 = vadd.f32 0.0, %v540
      %v542 = vpop.f32.mrb[0].mxu0
      %v543 = vpop.f32.mrb[0].mxu0
      %v544 = vadd.f32 0.0, %v543
      %v545 = vpop.f32.mrb[0].mxu0
      %546 = vdwg.mxu0
      %v547 = vadd.f32 %v353, %v485
      %v548 = vadd.f32 %v354, %v488
      %v549 = vadd.f32 %v355, %v493
      %v550 = vadd.f32 %v356, %v496
      %v551 = vadd.f32 %v357, %v501
      %v552 = vadd.f32 %v358, %v504
      %v553 = vadd.f32 %v359, %v509
      %v554 = vadd.f32 %v360, %v512
      %v555 = vadd.f32 %v361, %v517
      %v556 = vadd.f32 %v362, %v520
      %v557 = vadd.f32 %v363, %v525
      %v558 = vadd.f32 %v364, %v528
      %v559 = vadd.f32 %v365, %v533
      %v560 = vadd.f32 %v366, %v536
      %v561 = vadd.f32 %v367, %v541
      %v562 = vadd.f32 %v368, %v544
      %vm563 = vcmask 64512
      %564 = vst.msk [vmem:[#allocation2] sm:$0xff] %vm563, %v547
      %565 = vst.msk [vmem:[#allocation2 + $0x8] sm:$0xff] %vm563, %v548
      %566 = vst.msk [vmem:[#allocation2 + $0x10] sm:$0xff] %vm563, %v549
      %567 = vst.msk [vmem:[#allocation2 + $0x18] sm:$0xff] %vm563, %v550
      %568 = vst.msk [vmem:[#allocation2 + $0x20] sm:$0xff] %vm563, %v551
      %569 = vst.msk [vmem:[#allocation2 + $0x28] sm:$0xff] %vm563, %v552
      %570 = vst.msk [vmem:[#allocation2 + $0x30] sm:$0xff] %vm563, %v553
      %571 = vst.msk [vmem:[#allocation2 + $0x38] sm:$0xff] %vm563, %v554
      %572 = vst.msk [vmem:[#allocation2 + $0x40] sm:$0xff] %vm563, %v555
      %573 = vst.msk [vmem:[#allocation2 + $0x48] sm:$0xff] %vm563, %v556
      %574 = vst.msk [vmem:[#allocation2 + $0x50] sm:$0xff] %vm563, %v557
      %575 = vst.msk [vmem:[#allocation2 + $0x58] sm:$0xff] %vm563, %v558
      %576 = vst.msk [vmem:[#allocation2 + $0x60] sm:$0xff] %vm563, %v559
      %577 = vst.msk [vmem:[#allocation2 + $0x68] sm:$0xff] %vm563, %v560
      %578 = vst.msk [vmem:[#allocation2 + $0x70] sm:$0xff] %vm563, %v561
      %579 = vst.msk [vmem:[#allocation2 + $0x78] sm:$0xff] %vm563, %v562
      // Predicated region
      $region37: #{upblock_forward.11} parent=31 // pred_check
        %p580 = pneg %p316
      $region38: #{upblock_forward.11} parent=31 // pred_check_branch
        %582 = sbr.rel (%p580) target = $region40
      $region39: #{upblock_forward.11} parent=31 // pred_region
        %v583 = vld [vmem:[#allocation2] sm:$0xff]
        %v584 = vld [vmem:[#allocation2 + $0x8] sm:$0xff]
        %v585 = vld [vmem:[#allocation2 + $0x10] sm:$0xff]
        %v586 = vld [vmem:[#allocation2 + $0x18] sm:$0xff]
        %v587 = vld [vmem:[#allocation2 + $0x20] sm:$0xff]
        %v588 = vld [vmem:[#allocation2 + $0x28] sm:$0xff]
        %v589 = vld [vmem:[#allocation2 + $0x30] sm:$0xff]
        %v590 = vld [vmem:[#allocation2 + $0x38] sm:$0xff]
        %v591 = vld [vmem:[#allocation2 + $0x40] sm:$0xff]
        %v592 = vld [vmem:[#allocation2 + $0x48] sm:$0xff]
        %v593 = vld [vmem:[#allocation2 + $0x50] sm:$0xff]
        %v594 = vld [vmem:[#allocation2 + $0x58] sm:$0xff]
        %v595 = vld [vmem:[#allocation2 + $0x60] sm:$0xff]
        %v596 = vld [vmem:[#allocation2 + $0x68] sm:$0xff]
        %v597 = vld [vmem:[#allocation2 + $0x70] sm:$0xff]
        %v598 = vld [vmem:[#allocation2 + $0x78] sm:$0xff]
        %v599 = vld [vmem:[%s301] sm:$0x1]
        %v601 = vlaneseq
        %v602 = vshrl.u32 %v601, 7
        %v603 = vsub.s32 0, %v602
        %v604 = vrot.slane %v599, %v603
        %v606 = vadd.f32 %v583, %v604
        %v607 = vadd.f32 %v584, %v604
        %v608 = vadd.f32 %v585, %v604
        %v609 = vadd.f32 %v586, %v604
        %v610 = vadd.f32 %v587, %v604
        %v611 = vadd.f32 %v588, %v604
        %v612 = vadd.f32 %v589, %v604
        %v613 = vadd.f32 %v590, %v604
        %v614 = vadd.f32 %v591, %v604
        %v615 = vadd.f32 %v592, %v604
        %v616 = vadd.f32 %v593, %v604
        %v617 = vadd.f32 %v594, %v604
        %v618 = vadd.f32 %v595, %v604
        %v619 = vadd.f32 %v596, %v604
        %v620 = vadd.f32 %v597, %v604
        %v621 = vadd.f32 %v598, %v604
        %622 = vst.msk [vmem:[%s313] sm:$0xff] %vm563, %v606
        %623 = vst.msk [vmem:[%s313 + $0x8] sm:$0xff] %vm563, %v607
        %624 = vst.msk [vmem:[%s313 + $0x10] sm:$0xff] %vm563, %v608
        %625 = vst.msk [vmem:[%s313 + $0x18] sm:$0xff] %vm563, %v609
        %626 = vst.msk [vmem:[%s313 + $0x20] sm:$0xff] %vm563, %v610
        %627 = vst.msk [vmem:[%s313 + $0x28] sm:$0xff] %vm563, %v611
        %628 = vst.msk [vmem:[%s313 + $0x30] sm:$0xff] %vm563, %v612
        %629 = vst.msk [vmem:[%s313 + $0x38] sm:$0xff] %vm563, %v613
        %630 = vst.msk [vmem:[%s313 + $0x40] sm:$0xff] %vm563, %v614
        %631 = vst.msk [vmem:[%s313 + $0x48] sm:$0xff] %vm563, %v615
        %632 = vst.msk [vmem:[%s313 + $0x50] sm:$0xff] %vm563, %v616
        %633 = vst.msk [vmem:[%s313 + $0x58] sm:$0xff] %vm563, %v617
        %634 = vst.msk [vmem:[%s313 + $0x60] sm:$0xff] %vm563, %v618
        %635 = vst.msk [vmem:[%s313 + $0x68] sm:$0xff] %vm563, %v619
        %636 = vst.msk [vmem:[%s313 + $0x70] sm:$0xff] %vm563, %v620
        %637 = vst.msk [vmem:[%s313 + $0x78] sm:$0xff] %vm563, %v621
      $region40: #{upblock_forward.11} parent=31 // pred_fallthru
        _
      %s638 = smul.u32 16, %s21
      %p639 = scmp.lt.s32.totalorder %s20, 3
      %s640 = scalar_select %p639, %s20, 3
      %p641 = scmp.lt.s32.totalorder %s638, 15
      %s642 = scalar_select %p641, %s638, 15
      %p643 = scmp.lt.s32.totalorder %s22, 0
      %s644 = scalar_select %p643, %s22, 0
      %s645 = sadd.s32 %s644, %s642
      %s646 = smul.addr %s640, 16
      %s647 = sadd.s32 %s645, %s646
      %s648 = smul.addr %s647, 8
      %s649 = scalar_lea.vmem %s3, %s648
      // Predicated region
      $region41: #{upblock_forward.11} parent=31 // pred_check
        %p650 = pneg %p150
      $region42: #{upblock_forward.11} parent=31 // pred_check_branch
        %652 = sbr.rel (%p650) target = $region44
      $region43: #{upblock_forward.11} parent=31 // pred_region
        %s653 = smul.u32 16, %s21
      $region44: #{upblock_forward.11} parent=31 // pred_fallthru
        _
    $region32: #{upblock_forward.11} parent=5 // pred_fallthru
      _
    %p654 = scmp.le.s32.totalorder 2, %s9
    // Predicated region
    $region45: #{upblock_forward.11} parent=5 // pred_check
      %p655 = pneg %p654
    $region46: #{upblock_forward.11} parent=5 // pred_check_branch
      %657 = sbr.rel (%p655) target = $region48
    $region47: #{upblock_forward.11} parent=5 // pred_region
      %s658 = ssub.s32 %s9, 2
      // Predicated region
      $region49: #{upblock_forward.11} parent=47 // pred_check
        %p659 = pneg %p156
      $region50: #{upblock_forward.11} parent=47 // pred_check_branch
        %661 = sbr.rel (%p659) target = $region52
      $region51: #{upblock_forward.11} parent=47 // pred_region
        %s662 = smul.u32 16, %s25
        %p663 = scmp.lt.s32.totalorder %s24, 3
        %s664 = scalar_select %p663, %s24, 3
        %p665 = scmp.lt.s32.totalorder %s662, 15
        %s666 = scalar_select %p665, %s662, 15
        %p667 = scmp.lt.s32.totalorder %s26, 0
        %s668 = scalar_select %p667, %s26, 0
        %s669 = sadd.s32 %s668, %s666
        %s670 = smul.addr %s664, 16
        %s671 = sadd.s32 %s669, %s670
        %s672 = smul.addr %s671, 8
        %s673 = scalar_lea.vmem %s3, %s672
      $region52: #{upblock_forward.11} parent=47 // pred_fallthru
        _
    $region48: #{upblock_forward.11} parent=5 // pred_fallthru
      _
  $region6: #{upblock_forward.11} parent=0 // loop_footer
    %s13 = sadd.s32 1, %s9
  $region7: #{upblock_forward.11} parent=0 // loop_footer_branch
    %8 = sbr.rel target = $region3
  $region8: #{upblock_forward.11} parent=0 // loop_exit
    _

// kernel: upblock_forward.12
$region0: #{upblock_forward.12}
  #allocation0 [shape = 'u32[]', space=smem, size = 0x4, offset = 0x4, fixed_abs, tag = 'smem constant byte address 0x4 - core index']
  #allocation1 [shape = 'u32[144,128]{1,0:T(1,128)}', space=vmem, size = 0x12000, scoped, tag = 'internal scratch']
  %s0 = inlined_call_operand.vmem [shape: f32[2,256,16], index: 0, kind: input, shape index: {}]
  %s1 = inlined_call_operand.vmem [shape: f32[1,16], index: 1, kind: input, shape index: {}]
  %s2 = inlined_call_operand.vmem [shape: f32[1,16], index: 2, kind: input, shape index: {}]
  %s3 = inlined_call_operand.vmem [shape: f32[16,8], index: 3, kind: input, shape index: {}]
  %s4 = inlined_call_operand.vmem [shape: f32[8,16], index: 4, kind: input, shape index: {}]
  %s5 = inlined_call_operand.vmem [shape: f32[2,256,16], index: 5, kind: output, shape index: {}]
  %s6 = sld [smem:[#allocation0]]
  $region53: #{upblock_forward.12} parent=0
    _
  %s8 = ssub.s32 1, %s6
  %s9 = scalar_select 0, %s8, %s6
  loop: start=0, step=1, limit=4
  $region2: #{upblock_forward.12} parent=0 // loop_pre_header
    _
  $region3: #{upblock_forward.12} parent=0 // loop_header
    %s11 = sphi 0, %s15
    %p12 = scmp.ge.s32.totalorder %s11, 4
    %s21 = sphi 0, %s23
    %s24 = sphi 0, %s21
    %s25 = sphi 0, %s24
    %s41 = sphi 0, %s25
    %s45 = sphi 0, %s45
    %s47 = sphi 0, %s45
    %s48 = sphi 0, %s47
    %s62 = sphi 0, %s48
    %s66 = sphi 0, %s66
    %s68 = sphi 0, %s66
    %s69 = sphi 0, %s68
    %s83 = sphi 0, %s69
    %s87 = sphi 0, %s87
    %s89 = sphi 0, %s87
    %s90 = sphi 0, %s89
    %s104 = sphi 0, %s90
    %s108 = sphi 0, %s108
    %s110 = sphi 0, %s108
    %s111 = sphi 0, %s110
    %s125 = sphi 0, %s111
    %s131 = sphi 0, %s133
    %s134 = sphi 0, %s131
    %s135 = sphi 0, %s134
    %s151 = sphi 0, %s135
  $region4: #{upblock_forward.12} parent=0 // loop_header_branch
    %14 = sbr.rel (%p12) target = $region8
  $region5: #{upblock_forward.12} parent=0 // loop_body
    %s16 = ssub.s32 %s11, 1
    %s17 = ssub.s32 %s11, 2
    %s18 = sadd.s32 %s11, 1
    %s19 = ssub.s32 %s11, %s18
    %p20 = scmp.eq.s32.totalorder %s19, 0
    %s22 = sadd.s32 %s21, 1
    %s23 = scalar_select %p20, %s21, %s22
    %p26 = pneg %p20
    %p27 = scmp.eq.s32.totalorder %s11, 1
    %p28 = por %p26, %p27
    %p29 = scmp.ne.s32.totalorder %s21, %s24
    %p30 = scmp.eq.s32.totalorder %s11, 0
    %p31 = por %p29, %p30
    %p32 = scmp.ne.s32.totalorder %s21, %s24
    %p33 = scmp.eq.s32.totalorder %s16, 1
    %p34 = por %p32, %p33
    %p35 = scmp.ne.s32.totalorder %s24, %s25
    %p36 = scmp.eq.s32.totalorder %s16, 0
    %p37 = por %p35, %p36
    %p38 = scmp.ne.s32.totalorder %s24, %s25
    %p39 = scmp.eq.s32.totalorder %s17, 1
    %p40 = por %p38, %p39
    %p42 = scmp.ne.s32.totalorder %s25, %s41
    %p43 = scmp.eq.s32.totalorder %s17, 0
    %p44 = por %p42, %p43
    %s46 = sadd.s32 %s45, 1
    %p49 = scmp.eq.s32.totalorder %s11, 1
    %p50 = scmp.ne.s32.totalorder %s45, %s47
    %p51 = scmp.eq.s32.totalorder %s11, 0
    %p52 = por %p50, %p51
    %p53 = scmp.ne.s32.totalorder %s45, %s47
    %p54 = scmp.eq.s32.totalorder %s16, 1
    %p55 = por %p53, %p54
    %p56 = scmp.ne.s32.totalorder %s47, %s48
    %p57 = scmp.eq.s32.totalorder %s16, 0
    %p58 = por %p56, %p57
    %p59 = scmp.ne.s32.totalorder %s47, %s48
    %p60 = scmp.eq.s32.totalorder %s17, 1
    %p61 = por %p59, %p60
    %p63 = scmp.ne.s32.totalorder %s48, %s62
    %p64 = scmp.eq.s32.totalorder %s17, 0
    %p65 = por %p63, %p64
    %s67 = sadd.s32 %s66, 1
    %p70 = scmp.eq.s32.totalorder %s11, 1
    %p71 = scmp.ne.s32.totalorder %s66, %s68
    %p72 = scmp.eq.s32.totalorder %s11, 0
    %p73 = por %p71, %p72
    %p74 = scmp.ne.s32.totalorder %s66, %s68
    %p75 = scmp.eq.s32.totalorder %s16, 1
    %p76 = por %p74, %p75
    %p77 = scmp.ne.s32.totalorder %s68, %s69
    %p78 = scmp.eq.s32.totalorder %s16, 0
    %p79 = por %p77, %p78
    %p80 = scmp.ne.s32.totalorder %s68, %s69
    %p81 = scmp.eq.s32.totalorder %s17, 1
    %p82 = por %p80, %p81
    %p84 = scmp.ne.s32.totalorder %s69, %s83
    %p85 = scmp.eq.s32.totalorder %s17, 0
    %p86 = por %p84, %p85
    %s88 = sadd.s32 %s87, 1
    %p91 = scmp.eq.s32.totalorder %s11, 1
    %p92 = scmp.ne.s32.totalorder %s87, %s89
    %p93 = scmp.eq.s32.totalorder %s11, 0
    %p94 = por %p92, %p93
    %p95 = scmp.ne.s32.totalorder %s87, %s89
    %p96 = scmp.eq.s32.totalorder %s16, 1
    %p97 = por %p95, %p96
    %p98 = scmp.ne.s32.totalorder %s89, %s90
    %p99 = scmp.eq.s32.totalorder %s16, 0
    %p100 = por %p98, %p99
    %p101 = scmp.ne.s32.totalorder %s89, %s90
    %p102 = scmp.eq.s32.totalorder %s17, 1
    %p103 = por %p101, %p102
    %p105 = scmp.ne.s32.totalorder %s90, %s104
    %p106 = scmp.eq.s32.totalorder %s17, 0
    %p107 = por %p105, %p106
    %s109 = sadd.s32 %s108, 1
    %p112 = scmp.eq.s32.totalorder %s11, 1
    %p113 = scmp.ne.s32.totalorder %s108, %s110
    %p114 = scmp.eq.s32.totalorder %s11, 0
    %p115 = por %p113, %p114
    %p116 = scmp.ne.s32.totalorder %s108, %s110
    %p117 = scmp.eq.s32.totalorder %s16, 1
    %p118 = por %p116, %p117
    %p119 = scmp.ne.s32.totalorder %s110, %s111
    %p120 = scmp.eq.s32.totalorder %s16, 0
    %p121 = por %p119, %p120
    %p122 = scmp.ne.s32.totalorder %s110, %s111
    %p123 = scmp.eq.s32.totalorder %s17, 1
    %p124 = por %p122, %p123
    %p126 = scmp.ne.s32.totalorder %s111, %s125
    %p127 = scmp.eq.s32.totalorder %s17, 0
    %p128 = por %p126, %p127
    %s129 = ssub.s32 %s11, %s18
    %p130 = scmp.eq.s32.totalorder %s129, 0
    %s132 = sadd.s32 %s131, 1
    %s133 = scalar_select %p130, %s131, %s132
    %p136 = pneg %p130
    %p137 = scmp.eq.s32.totalorder %s11, 1
    %p138 = por %p136, %p137
    %p139 = scmp.ne.s32.totalorder %s131, %s134
    %p140 = scmp.eq.s32.totalorder %s11, 0
    %p141 = por %p139, %p140
    %p142 = scmp.ne.s32.totalorder %s131, %s134
    %p143 = scmp.eq.s32.totalorder %s16, 1
    %p144 = por %p142, %p143
    %p145 = scmp.ne.s32.totalorder %s134, %s135
    %p146 = scmp.eq.s32.totalorder %s16, 0
    %p147 = por %p145, %p146
    %p148 = scmp.ne.s32.totalorder %s134, %s135
    %p149 = scmp.eq.s32.totalorder %s17, 1
    %p150 = por %p148, %p149
    %p152 = scmp.ne.s32.totalorder %s135, %s151
    %p153 = scmp.eq.s32.totalorder %s17, 0
    %p154 = por %p152, %p153
    %p155 = scmp.le.s32.totalorder 1, %s11
    %p156 = scmp.lt.s32.totalorder %s11, 3
    %p157 = pnand %p155, %p156
    %p158 = pneg %p157
    // Predicated region
    $region9: #{upblock_forward.12} parent=5 // pred_check
      _
    $region10: #{upblock_forward.12} parent=5 // pred_check_branch
      %160 = sbr.rel (%p157) target = $region12
    $region11: #{upblock_forward.12} parent=5 // pred_region
      %s161 = ssub.s32 %s11, 1
      // Predicated region
      $region13: #{upblock_forward.12} parent=11 // pred_check
        %p162 = pneg %p58
      $region14: #{upblock_forward.12} parent=11 // pred_check_branch
        %164 = sbr.rel (%p162) target = $region16
      $region15: #{upblock_forward.12} parent=11 // pred_region
        _
      $region16: #{upblock_forward.12} parent=11 // pred_fallthru
        _
      // Predicated region
      $region17: #{upblock_forward.12} parent=11 // pred_check
        %p165 = pneg %p79
      $region18: #{upblock_forward.12} parent=11 // pred_check_branch
        %167 = sbr.rel (%p165) target = $region20
      $region19: #{upblock_forward.12} parent=11 // pred_region
        _
      $region20: #{upblock_forward.12} parent=11 // pred_fallthru
        _
      // Predicated region
      $region21: #{upblock_forward.12} parent=11 // pred_check
        %p168 = pneg %p100
      $region22: #{upblock_forward.12} parent=11 // pred_check_branch
        %170 = sbr.rel (%p168) target = $region24
      $region23: #{upblock_forward.12} parent=11 // pred_region
        _
      $region24: #{upblock_forward.12} parent=11 // pred_fallthru
        _
      // Predicated region
      $region25: #{upblock_forward.12} parent=11 // pred_check
        %p171 = pneg %p121
      $region26: #{upblock_forward.12} parent=11 // pred_check_branch
        %173 = sbr.rel (%p171) target = $region28
      $region27: #{upblock_forward.12} parent=11 // pred_region
        _
      $region28: #{upblock_forward.12} parent=11 // pred_fallthru
        _
    $region12: #{upblock_forward.12} parent=5 // pred_fallthru
      _
    %p174 = scmp.lt.s32.totalorder %s11, 2
    // Predicated region
    $region29: #{upblock_forward.12} parent=5 // pred_check
      %p175 = pneg %p174
    $region30: #{upblock_forward.12} parent=5 // pred_check_branch
      %177 = sbr.rel (%p175) target = $region32
    $region31: #{upblock_forward.12} parent=5 // pred_region
      // Predicated region
      $region33: #{upblock_forward.12} parent=31 // pred_check
        %p178 = pneg %p31
      $region34: #{upblock_forward.12} parent=31 // pred_check_branch
        %180 = sbr.rel (%p178) target = $region36
      $region35: #{upblock_forward.12} parent=31 // pred_region
        %p181 = scmp.lt.s32.totalorder %s11, 1
        %s182 = scalar_select %p181, %s11, 1
        %s183 = smul.addr %s182, 32
        %s184 = smul.addr %s183, 8
        %s185 = scalar_lea.vmem %s0, %s184
      $region36: #{upblock_forward.12} parent=31 // pred_fallthru
        _
    $region32: #{upblock_forward.12} parent=5 // pred_fallthru
      _
    %p186 = scmp.le.s32.totalorder 1, %s11
    %p187 = scmp.lt.s32.totalorder %s11, 3
    %p188 = pnand %p186, %p187
    %p189 = pneg %p188
    // Predicated region
    $region37: #{upblock_forward.12} parent=5 // pred_check
      _
    $region38: #{upblock_forward.12} parent=5 // pred_check_branch
      %191 = sbr.rel (%p188) target = $region40
    $region39: #{upblock_forward.12} parent=5 // pred_region
      %s192 = ssub.s32 %s11, 1
      %p193 = scmp.lt.s32.totalorder %s16, 1
      %s194 = scalar_select %p193, %s16, 1
      %s195 = smul.addr %s194, 32
      %s196 = smul.addr %s195, 8
      %s197 = scalar_lea.vmem %s0, %s196
      %p198 = pneg %p37
      %p199 = pneg %p34
      %p200 = pneg %p58
      %p201 = pneg %p55
      %p202 = pneg %p79
      %p203 = pneg %p76
      %p204 = pneg %p100
      %p205 = pneg %p97
      %p206 = pneg %p121
      %p207 = pneg %p118
      %p208 = pneg %p147
      %p209 = pneg %p144
      %p210 = scmp.lt.s32.totalorder %s16, 1
      %s211 = scalar_select %p210, %s16, 1
      %s212 = smul.addr %s211, 32
      %s213 = smul.addr %s212, 8
      %s214 = scalar_lea.vmem %s5, %s213
      %p215 = scmp.lt.s32.totalorder %s16, 1
      %s216 = scalar_select %p215, %s16, 1
      %s217 = smul.addr %s216, 32
      %s218 = smul.addr %s217, 8
      %s219 = scalar_lea.vmem %s0, %s218
      %p220 = scmp.lt.s32.totalorder %s16, 1
      %s221 = scalar_select %p220, %s16, 1
      %s222 = smul.addr %s221, 32
      %s223 = smul.addr %s222, 8
      %s224 = scalar_lea.vmem %s5, %s223
      %v225 = vld [vmem:[%s219] sm:$0xff]
      %v226 = vld [vmem:[%s219 + $0x8] sm:$0xff]
      %v227 = vld [vmem:[%s219 + $0x10] sm:$0xff]
      %v228 = vld [vmem:[%s219 + $0x18] sm:$0xff]
      %v229 = vld [vmem:[%s219 + $0x20] sm:$0xff]
      %v230 = vld [vmem:[%s219 + $0x28] sm:$0xff]
      %v231 = vld [vmem:[%s219 + $0x30] sm:$0xff]
      %v232 = vld [vmem:[%s219 + $0x38] sm:$0xff]
      %v233 = vld [vmem:[%s219 + $0x40] sm:$0xff]
      %v234 = vld [vmem:[%s219 + $0x48] sm:$0xff]
      %v235 = vld [vmem:[%s219 + $0x50] sm:$0xff]
      %v236 = vld [vmem:[%s219 + $0x58] sm:$0xff]
      %v237 = vld [vmem:[%s219 + $0x60] sm:$0xff]
      %v238 = vld [vmem:[%s219 + $0x68] sm:$0xff]
      %v239 = vld [vmem:[%s219 + $0x70] sm:$0xff]
      %v240 = vld [vmem:[%s219 + $0x78] sm:$0xff]
      %v241 = vld [vmem:[%s219 + $0x80] sm:$0xff]
      %v242 = vld [vmem:[%s219 + $0x88] sm:$0xff]
      %v243 = vld [vmem:[%s219 + $0x90] sm:$0xff]
      %v244 = vld [vmem:[%s219 + $0x98] sm:$0xff]
      %v245 = vld [vmem:[%s219 + $0xa0] sm:$0xff]
      %v246 = vld [vmem:[%s219 + $0xa8] sm:$0xff]
      %v247 = vld [vmem:[%s219 + $0xb0] sm:$0xff]
      %v248 = vld [vmem:[%s219 + $0xb8] sm:$0xff]
      %v249 = vld [vmem:[%s219 + $0xc0] sm:$0xff]
      %v250 = vld [vmem:[%s219 + $0xc8] sm:$0xff]
      %v251 = vld [vmem:[%s219 + $0xd0] sm:$0xff]
      %v252 = vld [vmem:[%s219 + $0xd8] sm:$0xff]
      %v253 = vld [vmem:[%s219 + $0xe0] sm:$0xff]
      %v254 = vld [vmem:[%s219 + $0xe8] sm:$0xff]
      %v255 = vld [vmem:[%s219 + $0xf0] sm:$0xff]
      %v256 = vld [vmem:[%s219 + $0xf8] sm:$0xff]
      %vm257 = vcmask 130048
      %v258 = vsel %vm257, %v225, 0.0
      %v259 = vsel %vm257, %v226, 0.0
      %v260 = vadd.f32 %v258, %v259
      %v261 = vsel %vm257, %v227, 0.0
      %v262 = vadd.f32 %v260, %v261
      %v263 = vsel %vm257, %v228, 0.0
      %v264 = vadd.f32 %v262, %v263
      %v265 = vsel %vm257, %v229, 0.0
      %v266 = vadd.f32 %v264, %v265
      %v267 = vsel %vm257, %v230, 0.0
      %v268 = vadd.f32 %v266, %v267
      %v269 = vsel %vm257, %v231, 0.0
      %v270 = vadd.f32 %v268, %v269
      %v271 = vsel %vm257, %v232, 0.0
      %v272 = vadd.f32 %v270, %v271
      %v273 = vsel %vm257, %v233, 0.0
      %v274 = vadd.f32 %v272, %v273
      %v275 = vsel %vm257, %v234, 0.0
      %v276 = vadd.f32 %v274, %v275
      %v277 = vsel %vm257, %v235, 0.0
      %v278 = vadd.f32 %v276, %v277
      %v279 = vsel %vm257, %v236, 0.0
      %v280 = vadd.f32 %v278, %v279
      %v281 = vsel %vm257, %v237, 0.0
      %v282 = vadd.f32 %v280, %v281
      %v283 = vsel %vm257, %v238, 0.0
      %v284 = vadd.f32 %v282, %v283
      %v285 = vsel %vm257, %v239, 0.0
      %v286 = vadd.f32 %v284, %v285
      %v287 = vsel %vm257, %v240, 0.0
      %v288 = vadd.f32 %v286, %v287
      %v289 = vsel %vm257, %v241, 0.0
      %v290 = vadd.f32 %v288, %v289
      %v291 = vsel %vm257, %v242, 0.0
      %v292 = vadd.f32 %v290, %v291
      %v293 = vsel %vm257, %v243, 0.0
      %v294 = vadd.f32 %v292, %v293
      %v295 = vsel %vm257, %v244, 0.0
      %v296 = vadd.f32 %v294, %v295
      %v297 = vsel %vm257, %v245, 0.0
      %v298 = vadd.f32 %v296, %v297
      %v299 = vsel %vm257, %v246, 0.0
      %v300 = vadd.f32 %v298, %v299
      %v301 = vsel %vm257, %v247, 0.0
      %v302 = vadd.f32 %v300, %v301
      %v303 = vsel %vm257, %v248, 0.0
      %v304 = vadd.f32 %v302, %v303
      %v305 = vsel %vm257, %v249, 0.0
      %v306 = vadd.f32 %v304, %v305
      %v307 = vsel %vm257, %v250, 0.0
      %v308 = vadd.f32 %v306, %v307
      %v309 = vsel %vm257, %v251, 0.0
      %v310 = vadd.f32 %v308, %v309
      %v311 = vsel %vm257, %v252, 0.0
      %v312 = vadd.f32 %v310, %v311
      %v313 = vsel %vm257, %v253, 0.0
      %v314 = vadd.f32 %v312, %v313
      %v315 = vsel %vm257, %v254, 0.0
      %v316 = vadd.f32 %v314, %v315
      %v317 = vsel %vm257, %v255, 0.0
      %v318 = vadd.f32 %v316, %v317
      %v319 = vsel %vm257, %v256, 0.0
      %v320 = vadd.f32 %v318, %v319
      %v321 = vrot.slane %v320, 4
      %v322 = vadd.f32 %v320, %v321
      %v323 = vrot.slane %v322, 2
      %v324 = vadd.f32 %v322, %v323
      %v325 = vrot.slane %v324, 1
      %v326 = vadd.f32 %v324, %v325
      %v327 = vld [vmem:[%s3] sm:$0xff]
      %v328 = vld [vmem:[%s3 + $0x8] sm:$0xff]
      %v330 = vsel %vm257, %v326, 0
      %332 = vmatprep.subr.mxu0 0.0
      %333 = vmatpush1.msra.mxu0 %v327
      %334 = vmatprep.subr.mxu0 0.0
      %335 = vmatpush1.msra.mxu0 %v328
      %336 = vmatprep.subr.mxu0 0.0
      %337 = vmatpush1.msra.mxu0 0.0
      %338 = vmatprep.subr.mxu0 0.0
      %339 = vmatpush1.msra.mxu0 0.0
      %340 = vmatprep.subr.mxu0 0.0
      %341 = vmatpush1.msra.mxu0 0.0
      %342 = vmatprep.subr.mxu0 0.0
      %343 = vmatpush1.msra.mxu0 0.0
      %344 = vmatprep.subr.mxu0 0.0
      %345 = vmatpush1.msra.mxu0 0.0
      %346 = vmatprep.subr.mxu0 0.0
      %347 = vmatpush1.msra.mxu0 0.0
      %348 = vmatprep.subr.mxu0 0.0
      %349 = vmatpush1.msra.mxu0 0.0
      %350 = vmatprep.subr.mxu0 0.0
      %351 = vmatpush1.msra.mxu0 0.0
      %352 = vmatprep.subr.mxu0 0.0
      %353 = vmatpush1.msra.mxu0 0.0
      %354 = vmatprep.subr.mxu0 0.0
      %355 = vmatpush1.msra.mxu0 0.0
      %356 = vmatprep.subr.mxu0 0.0
      %357 = vmatpush1.msra.mxu0 0.0
      %358 = vmatprep.subr.mxu0 0.0
      %359 = vmatpush1.msra.mxu0 0.0
      %360 = vmatprep.subr.mxu0 0.0
      %361 = vmatpush1.msra.mxu0 0.0
      %362 = vmatprep.subr.mxu0 0.0
      %363 = vmatpush1.msra.mxu0 0.0
      %364 = vmatprep.subr.mxu0 0.0
      %365 = vmatpush1.msra.mxu0 0.0
      %366 = vmatprep.subr.mxu0 0.0
      %367 = vmatpush1.msra.mxu0 0.0
      %368 = vmatprep.subr.mxu0 0.0
      %369 = vmatpush1.msra.mxu0 0.0
      %370 = vmatprep.subr.mxu0 0.0
      %371 = vmatpush1.msra.mxu0 0.0
      %372 = vmatprep.subr.mxu0 0.0
      %373 = vmatpush1.msra.mxu0 0.0
      %374 = vmatprep.subr.mxu0 0.0
      %375 = vmatpush1.msra.mxu0 0.0
      %376 = vmatprep.subr.mxu0 0.0
      %377 = vmatpush1.msra.mxu0 0.0
      %378 = vmatprep.subr.mxu0 0.0
      %379 = vmatpush1.msra.mxu0 0.0
      %380 = vmatprep.subr.mxu0 0.0
      %381 = vmatpush1.msra.mxu0 0.0
      %382 = vmatprep.subr.mxu0 0.0
      %383 = vmatpush1.msra.mxu0 0.0
      %384 = vmatprep.subr.mxu0 0.0
      %385 = vmatpush1.msra.mxu0 0.0
      %386 = vmatprep.subr.mxu0 0.0
      %387 = vmatpush1.msra.mxu0 0.0
      %388 = vmatprep.subr.mxu0 0.0
      %389 = vmatpush1.msra.mxu0 0.0
      %390 = vmatprep.subr.mxu0 0.0
      %391 = vmatpush1.msra.mxu0 0.0
      %392 = vmatprep.subr.mxu0 0.0
      %393 = vmatpush1.msra.mxu0 0.0
      %394 = vmatprep.subr.mxu0 0.0
      %395 = vmatpush1.msra.mxu0 0.0
      %396 = vmatprep.mubr.f32.mxu0 0.0
      %397 = vmatmul.mubr.f32.gmra.mrb[0].mxu0 %v330
      %v398 = vpop.f32.mrb[0].mxu0
      %v399 = vadd.f32 0.0, %v398
      %v400 = vpop.f32.mrb[0].mxu0
      %401 = vdwg.mxu0
      %v402 = vmul.f32 %v399, 0.001953125
      %v403 = vld [vmem:[%s4] sm:$0xff]
      %vm404 = vcmask 64512
      %v406 = vsel %vm404, %v402, 0
      %408 = vmatprep.subr.mxu0 0.0
      %409 = vmatpush1.msra.mxu0 %v403
      %410 = vmatprep.subr.mxu0 0.0
      %411 = vmatpush1.msra.mxu0 0.0
      %412 = vmatprep.subr.mxu0 0.0
      %413 = vmatpush1.msra.mxu0 0.0
      %414 = vmatprep.subr.mxu0 0.0
      %415 = vmatpush1.msra.mxu0 0.0
      %416 = vmatprep.subr.mxu0 0.0
      %417 = vmatpush1.msra.mxu0 0.0
      %418 = vmatprep.subr.mxu0 0.0
      %419 = vmatpush1.msra.mxu0 0.0
      %420 = vmatprep.subr.mxu0 0.0
      %421 = vmatpush1.msra.mxu0 0.0
      %422 = vmatprep.subr.mxu0 0.0
      %423 = vmatpush1.msra.mxu0 0.0
      %424 = vmatprep.subr.mxu0 0.0
      %425 = vmatpush1.msra.mxu0 0.0
      %426 = vmatprep.subr.mxu0 0.0
      %427 = vmatpush1.msra.mxu0 0.0
      %428 = vmatprep.subr.mxu0 0.0
      %429 = vmatpush1.msra.mxu0 0.0
      %430 = vmatprep.subr.mxu0 0.0
      %431 = vmatpush1.msra.mxu0 0.0
      %432 = vmatprep.subr.mxu0 0.0
      %433 = vmatpush1.msra.mxu0 0.0
      %434 = vmatprep.subr.mxu0 0.0
      %435 = vmatpush1.msra.mxu0 0.0
      %436 = vmatprep.subr.mxu0 0.0
      %437 = vmatpush1.msra.mxu0 0.0
      %438 = vmatprep.subr.mxu0 0.0
      %439 = vmatpush1.msra.mxu0 0.0
      %440 = vmatprep.subr.mxu0 0.0
      %441 = vmatpush1.msra.mxu0 0.0
      %442 = vmatprep.subr.mxu0 0.0
      %443 = vmatpush1.msra.mxu0 0.0
      %444 = vmatprep.subr.mxu0 0.0
      %445 = vmatpush1.msra.mxu0 0.0
      %446 = vmatprep.subr.mxu0 0.0
      %447 = vmatpush1.msra.mxu0 0.0
      %448 = vmatprep.subr.mxu0 0.0
      %449 = vmatpush1.msra.mxu0 0.0
      %450 = vmatprep.subr.mxu0 0.0
      %451 = vmatpush1.msra.mxu0 0.0
      %452 = vmatprep.subr.mxu0 0.0
      %453 = vmatpush1.msra.mxu0 0.0
      %454 = vmatprep.subr.mxu0 0.0
      %455 = vmatpush1.msra.mxu0 0.0
      %456 = vmatprep.subr.mxu0 0.0
      %457 = vmatpush1.msra.mxu0 0.0
      %458 = vmatprep.subr.mxu0 0.0
      %459 = vmatpush1.msra.mxu0 0.0
      %460 = vmatprep.subr.mxu0 0.0
      %461 = vmatpush1.msra.mxu0 0.0
      %462 = vmatprep.subr.mxu0 0.0
      %463 = vmatpush1.msra.mxu0 0.0
      %464 = vmatprep.subr.mxu0 0.0
      %465 = vmatpush1.msra.mxu0 0.0
      %466 = vmatprep.subr.mxu0 0.0
      %467 = vmatpush1.msra.mxu0 0.0
      %468 = vmatprep.subr.mxu0 0.0
      %469 = vmatpush1.msra.mxu0 0.0
      %470 = vmatprep.subr.mxu0 0.0
      %471 = vmatpush1.msra.mxu0 0.0
      %472 = vmatprep.mubr.f32.mxu0 0.0
      %473 = vmatmul.mubr.f32.gmra.mrb[0].mxu0 %v406
      %v474 = vpop.f32.mrb[0].mxu0
      %v475 = vadd.f32 0.0, %v474
      %v476 = vpop.f32.mrb[0].mxu0
      %477 = vdwg.mxu0
      %v478 = vlaneseq
      %v479 = vshrl.u32 %v478, 7
      %v480 = vsub.s32 0, %v479
      %v481 = vrot.slane %v475, %v480
      %v482 = vsub.f32 %v225, %v481
      %v483 = vsub.f32 %v226, %v481
      %v484 = vsub.f32 %v227, %v481
      %v485 = vsub.f32 %v228, %v481
      %v486 = vsub.f32 %v229, %v481
      %v487 = vsub.f32 %v230, %v481
      %v488 = vsub.f32 %v231, %v481
      %v489 = vsub.f32 %v232, %v481
      %v490 = vsub.f32 %v233, %v481
      %v491 = vsub.f32 %v234, %v481
      %v492 = vsub.f32 %v235, %v481
      %v493 = vsub.f32 %v236, %v481
      %v494 = vsub.f32 %v237, %v481
      %v495 = vsub.f32 %v238, %v481
      %v496 = vsub.f32 %v239, %v481
      %v497 = vsub.f32 %v240, %v481
      %v498 = vsub.f32 %v241, %v481
      %v499 = vsub.f32 %v242, %v481
      %v500 = vsub.f32 %v243, %v481
      %v501 = vsub.f32 %v244, %v481
      %v502 = vsub.f32 %v245, %v481
      %v503 = vsub.f32 %v246, %v481
      %v504 = vsub.f32 %v247, %v481
      %v505 = vsub.f32 %v248, %v481
      %v506 = vsub.f32 %v249, %v481
      %v507 = vsub.f32 %v250, %v481
      %v508 = vsub.f32 %v251, %v481
      %v509 = vsub.f32 %v252, %v481
      %v510 = vsub.f32 %v253, %v481
      %v511 = vsub.f32 %v254, %v481
      %v512 = vsub.f32 %v255, %v481
      %v513 = vsub.f32 %v256, %v481
      %v514 = vmul.f32 %v482, %v482
      %v515 = vmul.f32 %v483, %v483
      %v516 = vmul.f32 %v484, %v484
      %v517 = vmul.f32 %v485, %v485
      %v518 = vmul.f32 %v486, %v486
      %v519 = vmul.f32 %v487, %v487
      %v520 = vmul.f32 %v488, %v488
      %v521 = vmul.f32 %v489, %v489
      %v522 = vmul.f32 %v490, %v490
      %v523 = vmul.f32 %v491, %v491
      %v524 = vmul.f32 %v492, %v492
      %v525 = vmul.f32 %v493, %v493
      %v526 = vmul.f32 %v494, %v494
      %v527 = vmul.f32 %v495, %v495
      %v528 = vmul.f32 %v496, %v496
      %v529 = vmul.f32 %v497, %v497
      %v530 = vmul.f32 %v498, %v498
      %v531 = vmul.f32 %v499, %v499
      %v532 = vmul.f32 %v500, %v500
      %v533 = vmul.f32 %v501, %v501
      %v534 = vmul.f32 %v502, %v502
      %v535 = vmul.f32 %v503, %v503
      %v536 = vmul.f32 %v504, %v504
      %v537 = vmul.f32 %v505, %v505
      %v538 = vmul.f32 %v506, %v506
      %v539 = vmul.f32 %v507, %v507
      %v540 = vmul.f32 %v508, %v508
      %v541 = vmul.f32 %v509, %v509
      %v542 = vmul.f32 %v510, %v510
      %v543 = vmul.f32 %v511, %v511
      %v544 = vmul.f32 %v512, %v512
      %v545 = vmul.f32 %v513, %v513
      %v546 = vsel %vm257, %v514, 0.0
      %v547 = vsel %vm257, %v515, 0.0
      %v548 = vadd.f32 %v546, %v547
      %v549 = vsel %vm257, %v516, 0.0
      %v550 = vadd.f32 %v548, %v549
      %v551 = vsel %vm257, %v517, 0.0
      %v552 = vadd.f32 %v550, %v551
      %v553 = vsel %vm257, %v518, 0.0
      %v554 = vadd.f32 %v552, %v553
      %v555 = vsel %vm257, %v519, 0.0
      %v556 = vadd.f32 %v554, %v555
      %v557 = vsel %vm257, %v520, 0.0
      %v558 = vadd.f32 %v556, %v557
      %v559 = vsel %vm257, %v521, 0.0
      %v560 = vadd.f32 %v558, %v559
      %v561 = vsel %vm257, %v522, 0.0
      %v562 = vadd.f32 %v560, %v561
      %v563 = vsel %vm257, %v523, 0.0
      %v564 = vadd.f32 %v562, %v563
      %v565 = vsel %vm257, %v524, 0.0
      %v566 = vadd.f32 %v564, %v565
      %v567 = vsel %vm257, %v525, 0.0
      %v568 = vadd.f32 %v566, %v567
      %v569 = vsel %vm257, %v526, 0.0
      %v570 = vadd.f32 %v568, %v569
      %v571 = vsel %vm257, %v527, 0.0
      %v572 = vadd.f32 %v570, %v571
      %v573 = vsel %vm257, %v528, 0.0
      %v574 = vadd.f32 %v572, %v573
      %v575 = vsel %vm257, %v529, 0.0
      %v576 = vadd.f32 %v574, %v575
      %v577 = vsel %vm257, %v530, 0.0
      %v578 = vadd.f32 %v576, %v577
      %v579 = vsel %vm257, %v531, 0.0
      %v580 = vadd.f32 %v578, %v579
      %v581 = vsel %vm257, %v532, 0.0
      %v582 = vadd.f32 %v580, %v581
      %v583 = vsel %vm257, %v533, 0.0
      %v584 = vadd.f32 %v582, %v583
      %v585 = vsel %vm257, %v534, 0.0
      %v586 = vadd.f32 %v584, %v585
      %v587 = vsel %vm257, %v535, 0.0
      %v588 = vadd.f32 %v586, %v587
      %v589 = vsel %vm257, %v536, 0.0
      %v590 = vadd.f32 %v588, %v589
      %v591 = vsel %vm257, %v537, 0.0
      %v592 = vadd.f32 %v590, %v591
      %v593 = vsel %vm257, %v538, 0.0
      %v594 = vadd.f32 %v592, %v593
      %v595 = vsel %vm257, %v539, 0.0
      %v596 = vadd.f32 %v594, %v595
      %v597 = vsel %vm257, %v540, 0.0
      %v598 = vadd.f32 %v596, %v597
      %v599 = vsel %vm257, %v541, 0.0
      %v600 = vadd.f32 %v598, %v599
      %v601 = vsel %vm257, %v542, 0.0
      %v602 = vadd.f32 %v600, %v601
      %v603 = vsel %vm257, %v543, 0.0
      %v604 = vadd.f32 %v602, %v603
      %v605 = vsel %vm257, %v544, 0.0
      %v606 = vadd.f32 %v604, %v605
      %v607 = vsel %vm257, %v545, 0.0
      %v608 = vadd.f32 %v606, %v607
      %v609 = vrot.slane %v608, 4
      %v610 = vadd.f32 %v608, %v609
      %v611 = vrot.slane %v610, 2
      %v612 = vadd.f32 %v610, %v611
      %v613 = vrot.slane %v612, 1
      %v614 = vadd.f32 %v612, %v613
      %v616 = vsel %vm257, %v614, 0
      %618 = vmatprep.subr.mxu0 0.0
      %619 = vmatpush1.msra.mxu0 %v327
      %620 = vmatprep.subr.mxu0 0.0
      %621 = vmatpush1.msra.mxu0 %v328
      %622 = vmatprep.subr.mxu0 0.0
      %623 = vmatpush1.msra.mxu0 0.0
      %624 = vmatprep.subr.mxu0 0.0
      %625 = vmatpush1.msra.mxu0 0.0
      %626 = vmatprep.subr.mxu0 0.0
      %627 = vmatpush1.msra.mxu0 0.0
      %628 = vmatprep.subr.mxu0 0.0
      %629 = vmatpush1.msra.mxu0 0.0
      %630 = vmatprep.subr.mxu0 0.0
      %631 = vmatpush1.msra.mxu0 0.0
      %632 = vmatprep.subr.mxu0 0.0
      %633 = vmatpush1.msra.mxu0 0.0
      %634 = vmatprep.subr.mxu0 0.0
      %635 = vmatpush1.msra.mxu0 0.0
      %636 = vmatprep.subr.mxu0 0.0
      %637 = vmatpush1.msra.mxu0 0.0
      %638 = vmatprep.subr.mxu0 0.0
      %639 = vmatpush1.msra.mxu0 0.0
      %640 = vmatprep.subr.mxu0 0.0
      %641 = vmatpush1.msra.mxu0 0.0
      %642 = vmatprep.subr.mxu0 0.0
      %643 = vmatpush1.msra.mxu0 0.0
      %644 = vmatprep.subr.mxu0 0.0
      %645 = vmatpush1.msra.mxu0 0.0
      %646 = vmatprep.subr.mxu0 0.0
      %647 = vmatpush1.msra.mxu0 0.0
      %648 = vmatprep.subr.mxu0 0.0
      %649 = vmatpush1.msra.mxu0 0.0
      %650 = vmatprep.subr.mxu0 0.0
      %651 = vmatpush1.msra.mxu0 0.0
      %652 = vmatprep.subr.mxu0 0.0
      %653 = vmatpush1.msra.mxu0 0.0
      %654 = vmatprep.subr.mxu0 0.0
      %655 = vmatpush1.msra.mxu0 0.0
      %656 = vmatprep.subr.mxu0 0.0
      %657 = vmatpush1.msra.mxu0 0.0
      %658 = vmatprep.subr.mxu0 0.0
      %659 = vmatpush1.msra.mxu0 0.0
      %660 = vmatprep.subr.mxu0 0.0
      %661 = vmatpush1.msra.mxu0 0.0
      %662 = vmatprep.subr.mxu0 0.0
      %663 = vmatpush1.msra.mxu0 0.0
      %664 = vmatprep.subr.mxu0 0.0
      %665 = vmatpush1.msra.mxu0 0.0
      %666 = vmatprep.subr.mxu0 0.0
      %667 = vmatpush1.msra.mxu0 0.0
      %668 = vmatprep.subr.mxu0 0.0
      %669 = vmatpush1.msra.mxu0 0.0
      %670 = vmatprep.subr.mxu0 0.0
      %671 = vmatpush1.msra.mxu0 0.0
      %672 = vmatprep.subr.mxu0 0.0
      %673 = vmatpush1.msra.mxu0 0.0
      %674 = vmatprep.subr.mxu0 0.0
      %675 = vmatpush1.msra.mxu0 0.0
      %676 = vmatprep.subr.mxu0 0.0
      %677 = vmatpush1.msra.mxu0 0.0
      %678 = vmatprep.subr.mxu0 0.0
      %679 = vmatpush1.msra.mxu0 0.0
      %680 = vmatprep.subr.mxu0 0.0
      %681 = vmatpush1.msra.mxu0 0.0
      %682 = vmatprep.mubr.f32.mxu0 0.0
      %683 = vmatmul.mubr.f32.gmra.mrb[0].mxu0 %v616
      %v684 = vpop.f32.mrb[0].mxu0
      %v685 = vadd.f32 0.0, %v684
      %v686 = vpop.f32.mrb[0].mxu0
      %687 = vdwg.mxu0
      %v688 = vmul.f32 %v685, 0.001953125
      %v689 = vadd.f32 %v688, 1e-05
      %v690 = vrsqrt.pop %v689
      %v692 = vsel %vm404, %v690, 0
      %694 = vmatprep.subr.mxu0 0.0
      %695 = vmatpush1.msra.mxu0 %v403
      %696 = vmatprep.subr.mxu0 0.0
      %697 = vmatpush1.msra.mxu0 0.0
      %698 = vmatprep.subr.mxu0 0.0
      %699 = vmatpush1.msra.mxu0 0.0
      %700 = vmatprep.subr.mxu0 0.0
      %701 = vmatpush1.msra.mxu0 0.0
      %702 = vmatprep.subr.mxu0 0.0
      %703 = vmatpush1.msra.mxu0 0.0
      %704 = vmatprep.subr.mxu0 0.0
      %705 = vmatpush1.msra.mxu0 0.0
      %706 = vmatprep.subr.mxu0 0.0
      %707 = vmatpush1.msra.mxu0 0.0
      %708 = vmatprep.subr.mxu0 0.0
      %709 = vmatpush1.msra.mxu0 0.0
      %710 = vmatprep.subr.mxu0 0.0
      %711 = vmatpush1.msra.mxu0 0.0
      %712 = vmatprep.subr.mxu0 0.0
      %713 = vmatpush1.msra.mxu0 0.0
      %714 = vmatprep.subr.mxu0 0.0
      %715 = vmatpush1.msra.mxu0 0.0
      %716 = vmatprep.subr.mxu0 0.0
      %717 = vmatpush1.msra.mxu0 0.0
      %718 = vmatprep.subr.mxu0 0.0
      %719 = vmatpush1.msra.mxu0 0.0
      %720 = vmatprep.subr.mxu0 0.0
      %721 = vmatpush1.msra.mxu0 0.0
      %722 = vmatprep.subr.mxu0 0.0
      %723 = vmatpush1.msra.mxu0 0.0
      %724 = vmatprep.subr.mxu0 0.0
      %725 = vmatpush1.msra.mxu0 0.0
      %726 = vmatprep.subr.mxu0 0.0
      %727 = vmatpush1.msra.mxu0 0.0
      %728 = vmatprep.subr.mxu0 0.0
      %729 = vmatpush1.msra.mxu0 0.0
      %730 = vmatprep.subr.mxu0 0.0
      %731 = vmatpush1.msra.mxu0 0.0
      %732 = vmatprep.subr.mxu0 0.0
      %733 = vmatpush1.msra.mxu0 0.0
      %734 = vmatprep.subr.mxu0 0.0
      %735 = vmatpush1.msra.mxu0 0.0
      %736 = vmatprep.subr.mxu0 0.0
      %737 = vmatpush1.msra.mxu0 0.0
      %738 = vmatprep.subr.mxu0 0.0
      %739 = vmatpush1.msra.mxu0 0.0
      %740 = vmatprep.subr.mxu0 0.0
      %741 = vmatpush1.msra.mxu0 0.0
      %742 = vmatprep.subr.mxu0 0.0
      %743 = vmatpush1.msra.mxu0 0.0
      %744 = vmatprep.subr.mxu0 0.0
      %745 = vmatpush1.msra.mxu0 0.0
      %746 = vmatprep.subr.mxu0 0.0
      %747 = vmatpush1.msra.mxu0 0.0
      %748 = vmatprep.subr.mxu0 0.0
      %749 = vmatpush1.msra.mxu0 0.0
      %750 = vmatprep.subr.mxu0 0.0
      %751 = vmatpush1.msra.mxu0 0.0
      %752 = vmatprep.subr.mxu0 0.0
      %753 = vmatpush1.msra.mxu0 0.0
      %754 = vmatprep.subr.mxu0 0.0
      %755 = vmatpush1.msra.mxu0 0.0
      %756 = vmatprep.subr.mxu0 0.0
      %757 = vmatpush1.msra.mxu0 0.0
      %758 = vmatprep.mubr.f32.mxu0 0.0
      %759 = vmatmul.mubr.f32.gmra.mrb[0].mxu0 %v692
      %v760 = vpop.f32.mrb[0].mxu0
      %v761 = vadd.f32 0.0, %v760
      %v762 = vpop.f32.mrb[0].mxu0
      %763 = vdwg.mxu0
      %v764 = vlaneseq
      %v765 = vshrl.u32 %v764, 7
      %v766 = vsub.s32 0, %v765
      %v767 = vrot.slane %v761, %v766
      %v768 = vmul.f32 %v482, %v767
      %v769 = vmul.f32 %v483, %v767
      %v770 = vmul.f32 %v484, %v767
      %v771 = vmul.f32 %v485, %v767
      %v772 = vmul.f32 %v486, %v767
      %v773 = vmul.f32 %v487, %v767
      %v774 = vmul.f32 %v488, %v767
      %v775 = vmul.f32 %v489, %v767
      %v776 = vmul.f32 %v490, %v767
      %v777 = vmul.f32 %v491, %v767
      %v778 = vmul.f32 %v492, %v767
      %v779 = vmul.f32 %v493, %v767
      %v780 = vmul.f32 %v494, %v767
      %v781 = vmul.f32 %v495, %v767
      %v782 = vmul.f32 %v496, %v767
      %v783 = vmul.f32 %v497, %v767
      %v784 = vmul.f32 %v498, %v767
      %v785 = vmul.f32 %v499, %v767
      %v786 = vmul.f32 %v500, %v767
      %v787 = vmul.f32 %v501, %v767
      %v788 = vmul.f32 %v502, %v767
      %v789 = vmul.f32 %v503, %v767
      %v790 = vmul.f32 %v504, %v767
      %v791 = vmul.f32 %v505, %v767
      %v792 = vmul.f32 %v506, %v767
      %v793 = vmul.f32 %v507, %v767
      %v794 = vmul.f32 %v508, %v767
      %v795 = vmul.f32 %v509, %v767
      %v796 = vmul.f32 %v510, %v767
      %v797 = vmul.f32 %v511, %v767
      %v798 = vmul.f32 %v512, %v767
      %v799 = vmul.f32 %v513, %v767
      %v800 = vld [vmem:[%s1] sm:$0x1]
      %v802 = vlaneseq
      %v803 = vshrl.u32 %v802, 7
      %v804 = vsub.s32 0, %v803
      %v805 = vrot.slane %v800, %v804
      %v807 = vmul.f32 %v768, %v805
      %v808 = vmul.f32 %v769, %v805
      %v809 = vmul.f32 %v770, %v805
      %v810 = vmul.f32 %v771, %v805
      %v811 = vmul.f32 %v772, %v805
      %v812 = vmul.f32 %v773, %v805
      %v813 = vmul.f32 %v774, %v805
      %v814 = vmul.f32 %v775, %v805
      %v815 = vmul.f32 %v776, %v805
      %v816 = vmul.f32 %v777, %v805
      %v817 = vmul.f32 %v778, %v805
      %v818 = vmul.f32 %v779, %v805
      %v819 = vmul.f32 %v780, %v805
      %v820 = vmul.f32 %v781, %v805
      %v821 = vmul.f32 %v782, %v805
      %v822 = vmul.f32 %v783, %v805
      %v823 = vmul.f32 %v784, %v805
      %v824 = vmul.f32 %v785, %v805
      %v825 = vmul.f32 %v786, %v805
      %v826 = vmul.f32 %v787, %v805
      %v827 = vmul.f32 %v788, %v805
      %v828 = vmul.f32 %v789, %v805
      %v829 = vmul.f32 %v790, %v805
      %v830 = vmul.f32 %v791, %v805
      %v831 = vmul.f32 %v792, %v805
      %v832 = vmul.f32 %v793, %v805
      %v833 = vmul.f32 %v794, %v805
      %v834 = vmul.f32 %v795, %v805
      %v835 = vmul.f32 %v796, %v805
      %v836 = vmul.f32 %v797, %v805
      %v837 = vmul.f32 %v798, %v805
      %v838 = vmul.f32 %v799, %v805
      %v839 = vld [vmem:[%s2] sm:$0x1]
      %v841 = vlaneseq
      %v842 = vshrl.u32 %v841, 7
      %v843 = vsub.s32 0, %v842
      %v844 = vrot.slane %v839, %v843
      %v846 = vadd.f32 %v807, %v844
      %v847 = vadd.f32 %v808, %v844
      %v848 = vadd.f32 %v809, %v844
      %v849 = vadd.f32 %v810, %v844
      %v850 = vadd.f32 %v811, %v844
      %v851 = vadd.f32 %v812, %v844
      %v852 = vadd.f32 %v813, %v844
      %v853 = vadd.f32 %v814, %v844
      %v854 = vadd.f32 %v815, %v844
      %v855 = vadd.f32 %v816, %v844
      %v856 = vadd.f32 %v817, %v844
      %v857 = vadd.f32 %v818, %v844
      %v858 = vadd.f32 %v819, %v844
      %v859 = vadd.f32 %v820, %v844
      %v860 = vadd.f32 %v821, %v844
      %v861 = vadd.f32 %v822, %v844
      %v862 = vadd.f32 %v823, %v844
      %v863 = vadd.f32 %v824, %v844
      %v864 = vadd.f32 %v825, %v844
      %v865 = vadd.f32 %v826, %v844
      %v866 = vadd.f32 %v827, %v844
      %v867 = vadd.f32 %v828, %v844
      %v868 = vadd.f32 %v829, %v844
      %v869 = vadd.f32 %v830, %v844
      %v870 = vadd.f32 %v831, %v844
      %v871 = vadd.f32 %v832, %v844
      %v872 = vadd.f32 %v833, %v844
      %v873 = vadd.f32 %v834, %v844
      %v874 = vadd.f32 %v835, %v844
      %v875 = vadd.f32 %v836, %v844
      %v876 = vadd.f32 %v837, %v844
      %v877 = vadd.f32 %v838, %v844
      %v878 = vxor.u32 %v846, 2147483648
      %v879 = vxor.u32 %v847, 2147483648
      %v880 = vxor.u32 %v848, 2147483648
      %v881 = vxor.u32 %v849, 2147483648
      %v882 = vxor.u32 %v850, 2147483648
      %v883 = vxor.u32 %v851, 2147483648
      %v884 = vxor.u32 %v852, 2147483648
      %v885 = vxor.u32 %v853, 2147483648
      %v886 = vxor.u32 %v854, 2147483648
      %v887 = vxor.u32 %v855, 2147483648
      %v888 = vxor.u32 %v856, 2147483648
      %v889 = vxor.u32 %v857, 2147483648
      %v890 = vxor.u32 %v858, 2147483648
      %v891 = vxor.u32 %v859, 2147483648
      %v892 = vxor.u32 %v860, 2147483648
      %v893 = vxor.u32 %v861, 2147483648
      %v894 = vxor.u32 %v862, 2147483648
      %v895 = vxor.u32 %v863, 2147483648
      %v896 = vxor.u32 %v864, 2147483648
      %v897 = vxor.u32 %v865, 2147483648
      %v898 = vxor.u32 %v866, 2147483648
      %v899 = vxor.u32 %v867, 2147483648
      %v900 = vxor.u32 %v868, 2147483648
      %v901 = vxor.u32 %v869, 2147483648
      %v902 = vxor.u32 %v870, 2147483648
      %v903 = vxor.u32 %v871, 2147483648
      %v904 = vxor.u32 %v872, 2147483648
      %v905 = vxor.u32 %v873, 2147483648
      %v906 = vxor.u32 %v874, 2147483648
      %v907 = vxor.u32 %v875, 2147483648
      %v908 = vxor.u32 %v876, 2147483648
      %v909 = vxor.u32 %v877, 2147483648
      %v910 = vmul.f32 %v878, 1.442695
      %v911 = vpow.pop %v910
      %v912 = vmul.f32 %v879, 1.442695
      %v913 = vpow.pop %v912
      %v914 = vmul.f32 %v880, 1.442695
      %v915 = vpow.pop %v914
      %v916 = vmul.f32 %v881, 1.442695
      %v917 = vpow.pop %v916
      %v918 = vmul.f32 %v882, 1.442695
      %v919 = vpow.pop %v918
      %v920 = vmul.f32 %v883, 1.442695
      %v921 = vpow.pop %v920
      %v922 = vmul.f32 %v884, 1.442695
      %v923 = vpow.pop %v922
      %v924 = vmul.f32 %v885, 1.442695
      %v925 = vpow.pop %v924
      %v926 = vmul.f32 %v886, 1.442695
      %v927 = vpow.pop %v926
      %v928 = vmul.f32 %v887, 1.442695
      %v929 = vpow.pop %v928
      %v930 = vmul.f32 %v888, 1.442695
      %v931 = vpow.pop %v930
      %v932 = vmul.f32 %v889, 1.442695
      %v933 = vpow.pop %v932
      %v934 = vmul.f32 %v890, 1.442695
      %v935 = vpow.pop %v934
      %v936 = vmul.f32 %v891, 1.442695
      %v937 = vpow.pop %v936
      %v938 = vmul.f32 %v892, 1.442695
      %v939 = vpow.pop %v938
      %v940 = vmul.f32 %v893, 1.442695
      %v941 = vpow.pop %v940
      %v942 = vmul.f32 %v894, 1.442695
      %v943 = vpow.pop %v942
      %v944 = vmul.f32 %v895, 1.442695
      %v945 = vpow.pop %v944
      %v946 = vmul.f32 %v896, 1.442695
      %v947 = vpow.pop %v946
      %v948 = vmul.f32 %v897, 1.442695
      %v949 = vpow.pop %v948
      %v950 = vmul.f32 %v898, 1.442695
      %v951 = vpow.pop %v950
      %v952 = vmul.f32 %v899, 1.442695
      %v953 = vpow.pop %v952
      %v954 = vmul.f32 %v900, 1.442695
      %v955 = vpow.pop %v954
      %v956 = vmul.f32 %v901, 1.442695
      %v957 = vpow.pop %v956
      %v958 = vmul.f32 %v902, 1.442695
      %v959 = vpow.pop %v958
      %v960 = vmul.f32 %v903, 1.442695
      %v961 = vpow.pop %v960
      %v962 = vmul.f32 %v904, 1.442695
      %v963 = vpow.pop %v962
      %v964 = vmul.f32 %v905, 1.442695
      %v965 = vpow.pop %v964
      %v966 = vmul.f32 %v906, 1.442695
      %v967 = vpow.pop %v966
      %v968 = vmul.f32 %v907, 1.442695
      %v969 = vpow.pop %v968
      %v970 = vmul.f32 %v908, 1.442695
      %v971 = vpow.pop %v970
      %v972 = vmul.f32 %v909, 1.442695
      %v973 = vpow.pop %v972
      %v974 = vadd.f32 %v911, 1.0
      %v975 = vadd.f32 %v913, 1.0
      %v976 = vadd.f32 %v915, 1.0
      %v977 = vadd.f32 %v917, 1.0
      %v978 = vadd.f32 %v919, 1.0
      %v979 = vadd.f32 %v921, 1.0
      %v980 = vadd.f32 %v923, 1.0
      %v981 = vadd.f32 %v925, 1.0
      %v982 = vadd.f32 %v927, 1.0
      %v983 = vadd.f32 %v929, 1.0
      %v984 = vadd.f32 %v931, 1.0
      %v985 = vadd.f32 %v933, 1.0
      %v986 = vadd.f32 %v935, 1.0
      %v987 = vadd.f32 %v937, 1.0
      %v988 = vadd.f32 %v939, 1.0
      %v989 = vadd.f32 %v941, 1.0
      %v990 = vadd.f32 %v943, 1.0
      %v991 = vadd.f32 %v945, 1.0
      %v992 = vadd.f32 %v947, 1.0
      %v993 = vadd.f32 %v949, 1.0
      %v994 = vadd.f32 %v951, 1.0
      %v995 = vadd.f32 %v953, 1.0
      %v996 = vadd.f32 %v955, 1.0
      %v997 = vadd.f32 %v957, 1.0
      %v998 = vadd.f32 %v959, 1.0
      %v999 = vadd.f32 %v961, 1.0
      %v1000 = vadd.f32 %v963, 1.0
      %v1001 = vadd.f32 %v965, 1.0
      %v1002 = vadd.f32 %v967, 1.0
      %v1003 = vadd.f32 %v969, 1.0
      %v1004 = vadd.f32 %v971, 1.0
      %v1005 = vadd.f32 %v973, 1.0
      %v1006 = vrcp.pop %v974
      %v1007 = vmul.f32 1.0, %v1006
      %v1008 = vrcp.pop %v975
      %v1009 = vmul.f32 1.0, %v1008
      %v1010 = vrcp.pop %v976
      %v1011 = vmul.f32 1.0, %v1010
      %v1012 = vrcp.pop %v977
      %v1013 = vmul.f32 1.0, %v1012
      %v1014 = vrcp.pop %v978
      %v1015 = vmul.f32 1.0, %v1014
      %v1016 = vrcp.pop %v979
      %v1017 = vmul.f32 1.0, %v1016
      %v1018 = vrcp.pop %v980
      %v1019 = vmul.f32 1.0, %v1018
      %v1020 = vrcp.pop %v981
      %v1021 = vmul.f32 1.0, %v1020
      %v1022 = vrcp.pop %v982
      %v1023 = vmul.f32 1.0, %v1022
      %v1024 = vrcp.pop %v983
      %v1025 = vmul.f32 1.0, %v1024
      %v1026 = vrcp.pop %v984
      %v1027 = vmul.f32 1.0, %v1026
      %v1028 = vrcp.pop %v985
      %v1029 = vmul.f32 1.0, %v1028
      %v1030 = vrcp.pop %v986
      %v1031 = vmul.f32 1.0, %v1030
      %v1032 = vrcp.pop %v987
      %v1033 = vmul.f32 1.0, %v1032
      %v1034 = vrcp.pop %v988
      %v1035 = vmul.f32 1.0, %v1034
      %v1036 = vrcp.pop %v989
      %v1037 = vmul.f32 1.0, %v1036
      %v1038 = vrcp.pop %v990
      %v1039 = vmul.f32 1.0, %v1038
      %v1040 = vrcp.pop %v991
      %v1041 = vmul.f32 1.0, %v1040
      %v1042 = vrcp.pop %v992
      %v1043 = vmul.f32 1.0, %v1042
      %v1044 = vrcp.pop %v993
      %v1045 = vmul.f32 1.0, %v1044
      %v1046 = vrcp.pop %v994
      %v1047 = vmul.f32 1.0, %v1046
      %v1048 = vrcp.pop %v995
      %v1049 = vmul.f32 1.0, %v1048
      %v1050 = vrcp.pop %v996
      %v1051 = vmul.f32 1.0, %v1050
      %v1052 = vrcp.pop %v997
      %v1053 = vmul.f32 1.0, %v1052
      %v1054 = vrcp.pop %v998
      %v1055 = vmul.f32 1.0, %v1054
      %v1056 = vrcp.pop %v999
      %v1057 = vmul.f32 1.0, %v1056
      %v1058 = vrcp.pop %v1000
      %v1059 = vmul.f32 1.0, %v1058
      %v1060 = vrcp.pop %v1001
      %v1061 = vmul.f32 1.0, %v1060
      %v1062 = vrcp.pop %v1002
      %v1063 = vmul.f32 1.0, %v1062
      %v1064 = vrcp.pop %v1003
      %v1065 = vmul.f32 1.0, %v1064
      %v1066 = vrcp.pop %v1004
      %v1067 = vmul.f32 1.0, %v1066
      %v1068 = vrcp.pop %v1005
      %v1069 = vmul.f32 1.0, %v1068
      %v1070 = vmul.f32 %v846, %v1007
      %v1071 = vmul.f32 %v847, %v1009
      %v1072 = vmul.f32 %v848, %v1011
      %v1073 = vmul.f32 %v849, %v1013
      %v1074 = vmul.f32 %v850, %v1015
      %v1075 = vmul.f32 %v851, %v1017
      %v1076 = vmul.f32 %v852, %v1019
      %v1077 = vmul.f32 %v853, %v1021
      %v1078 = vmul.f32 %v854, %v1023
      %v1079 = vmul.f32 %v855, %v1025
      %v1080 = vmul.f32 %v856, %v1027
      %v1081 = vmul.f32 %v857, %v1029
      %v1082 = vmul.f32 %v858, %v1031
      %v1083 = vmul.f32 %v859, %v1033
      %v1084 = vmul.f32 %v860, %v1035
      %v1085 = vmul.f32 %v861, %v1037
      %v1086 = vmul.f32 %v862, %v1039
      %v1087 = vmul.f32 %v863, %v1041
      %v1088 = vmul.f32 %v864, %v1043
      %v1089 = vmul.f32 %v865, %v1045
      %v1090 = vmul.f32 %v866, %v1047
      %v1091 = vmul.f32 %v867, %v1049
      %v1092 = vmul.f32 %v868, %v1051
      %v1093 = vmul.f32 %v869, %v1053
      %v1094 = vmul.f32 %v870, %v1055
      %v1095 = vmul.f32 %v871, %v1057
      %v1096 = vmul.f32 %v872, %v1059
      %v1097 = vmul.f32 %v873, %v1061
      %v1098 = vmul.f32 %v874, %v1063
      %v1099 = vmul.f32 %v875, %v1065
      %v1100 = vmul.f32 %v876, %v1067
      %v1101 = vmul.f32 %v877, %v1069
      %1102 = vst.msk [vmem:[%s224] sm:$0xff] %vm257, %v1070
      %1103 = vst.msk [vmem:[%s224 + $0x8] sm:$0xff] %vm257, %v1071
      %1104 = vst.msk [vmem:[%s224 + $0x10] sm:$0xff] %vm257, %v1072
      %1105 = vst.msk [vmem:[%s224 + $0x18] sm:$0xff] %vm257, %v1073
      %1106 = vst.msk [vmem:[%s224 + $0x20] sm:$0xff] %vm257, %v1074
      %1107 = vst.msk [vmem:[%s224 + $0x28] sm:$0xff] %vm257, %v1075
      %1108 = vst.msk [vmem:[%s224 + $0x30] sm:$0xff] %vm257, %v1076
      %1109 = vst.msk [vmem:[%s224 + $0x38] sm:$0xff] %vm257, %v1077
      %1110 = vst.msk [vmem:[%s224 + $0x40] sm:$0xff] %vm257, %v1078
      %1111 = vst.msk [vmem:[%s224 + $0x48] sm:$0xff] %vm257, %v1079
      %1112 = vst.msk [vmem:[%s224 + $0x50] sm:$0xff] %vm257, %v1080
      %1113 = vst.msk [vmem:[%s224 + $0x58] sm:$0xff] %vm257, %v1081
      %1114 = vst.msk [vmem:[%s224 + $0x60] sm:$0xff] %vm257, %v1082
      %1115 = vst.msk [vmem:[%s224 + $0x68] sm:$0xff] %vm257, %v1083
      %1116 = vst.msk [vmem:[%s224 + $0x70] sm:$0xff] %vm257, %v1084
      %1117 = vst.msk [vmem:[%s224 + $0x78] sm:$0xff] %vm257, %v1085
      %1118 = vst.msk [vmem:[%s224 + $0x80] sm:$0xff] %vm257, %v1086
      %1119 = vst.msk [vmem:[%s224 + $0x88] sm:$0xff] %vm257, %v1087
      %1120 = vst.msk [vmem:[%s224 + $0x90] sm:$0xff] %vm257, %v1088
      %1121 = vst.msk [vmem:[%s224 + $0x98] sm:$0xff] %vm257, %v1089
      %1122 = vst.msk [vmem:[%s224 + $0xa0] sm:$0xff] %vm257, %v1090
      %1123 = vst.msk [vmem:[%s224 + $0xa8] sm:$0xff] %vm257, %v1091
      %1124 = vst.msk [vmem:[%s224 + $0xb0] sm:$0xff] %vm257, %v1092
      %1125 = vst.msk [vmem:[%s224 + $0xb8] sm:$0xff] %vm257, %v1093
      %1126 = vst.msk [vmem:[%s224 + $0xc0] sm:$0xff] %vm257, %v1094
      %1127 = vst.msk [vmem:[%s224 + $0xc8] sm:$0xff] %vm257, %v1095
      %1128 = vst.msk [vmem:[%s224 + $0xd0] sm:$0xff] %vm257, %v1096
      %1129 = vst.msk [vmem:[%s224 + $0xd8] sm:$0xff] %vm257, %v1097
      %1130 = vst.msk [vmem:[%s224 + $0xe0] sm:$0xff] %vm257, %v1098
      %1131 = vst.msk [vmem:[%s224 + $0xe8] sm:$0xff] %vm257, %v1099
      %1132 = vst.msk [vmem:[%s224 + $0xf0] sm:$0xff] %vm257, %v1100
      %1133 = vst.msk [vmem:[%s224 + $0xf8] sm:$0xff] %vm257, %v1101
      %p1134 = scmp.lt.s32.totalorder %s16, 1
      %s1135 = scalar_select %p1134, %s16, 1
      %s1136 = smul.addr %s1135, 32
      %s1137 = smul.addr %s1136, 8
      %s1138 = scalar_lea.vmem %s5, %s1137
      // Predicated region
      $region41: #{upblock_forward.12} parent=39 // pred_check
        %p1139 = pneg %p144
      $region42: #{upblock_forward.12} parent=39 // pred_check_branch
        %1141 = sbr.rel (%p1139) target = $region44
      $region43: #{upblock_forward.12} parent=39 // pred_region
        _
      $region44: #{upblock_forward.12} parent=39 // pred_fallthru
        _
    $region40: #{upblock_forward.12} parent=5 // pred_fallthru
      _
    %p1142 = scmp.le.s32.totalorder 2, %s11
    // Predicated region
    $region45: #{upblock_forward.12} parent=5 // pred_check
      %p1143 = pneg %p1142
    $region46: #{upblock_forward.12} parent=5 // pred_check_branch
      %1145 = sbr.rel (%p1143) target = $region48
    $region47: #{upblock_forward.12} parent=5 // pred_region
      %s1146 = ssub.s32 %s11, 2
      // Predicated region
      $region49: #{upblock_forward.12} parent=47 // pred_check
        %p1147 = pneg %p150
      $region50: #{upblock_forward.12} parent=47 // pred_check_branch
        %1149 = sbr.rel (%p1147) target = $region52
      $region51: #{upblock_forward.12} parent=47 // pred_region
        %p1150 = scmp.lt.s32.totalorder %s17, 1
        %s1151 = scalar_select %p1150, %s17, 1
        %s1152 = smul.addr %s1151, 32
        %s1153 = smul.addr %s1152, 8
        %s1154 = scalar_lea.vmem %s5, %s1153
      $region52: #{upblock_forward.12} parent=47 // pred_fallthru
        _
    $region48: #{upblock_forward.12} parent=5 // pred_fallthru
      _
  $region6: #{upblock_forward.12} parent=0 // loop_footer
    %s15 = sadd.s32 1, %s11
  $region7: #{upblock_forward.12} parent=0 // loop_footer_branch
    %10 = sbr.rel target = $region3
  $region8: #{upblock_forward.12} parent=0 // loop_exit
    _

// kernel: upblock_forward.13
$region0: #{upblock_forward.13}
  #allocation0 [shape = 'u32[]', space=smem, size = 0x4, offset = 0x4, fixed_abs, tag = 'smem constant byte address 0x4 - core index']
  #allocation1 [shape = 'u32[144,128]{1,0:T(1,128)}', space=vmem, size = 0x12000, scoped, tag = 'internal scratch']
  #allocation2 [shape = 'f32[256,16]{1,0:T(8,128)}', space=vmem, size = 0x20000, scoped, tag = 'scratch operand']
  %s0 = inlined_call_operand.vmem [shape: bf16[1,512,144], index: 0, kind: input, shape index: {}]
  %s1 = inlined_call_operand.vmem [shape: bf16[1,144,16], index: 1, kind: input, shape index: {}]
  %s2 = inlined_call_operand.vmem [shape: f32[1,1,16], index: 2, kind: input, shape index: {}]
  %s3 = inlined_call_operand.vmem [shape: f32[1,512,16], index: 3, kind: output, shape index: {}]
  %s4 = sld [smem:[#allocation0]]
  $region53: #{upblock_forward.13} parent=0
    _
  %s6 = ssub.s32 1, %s4
  %s7 = scalar_select 0, %s6, %s4
  loop: start=0, step=1, limit=4
  $region2: #{upblock_forward.13} parent=0 // loop_pre_header
    _
  $region3: #{upblock_forward.13} parent=0 // loop_header
    %s9 = sphi 0, %s13
    %p10 = scmp.ge.s32.totalorder %s9, 4
    %s16 = sphi 0, %s42
    %s17 = sphi 0, %s38
    %s18 = sphi 0, %s34
    %s19 = sphi 0, %s30
    %s20 = sphi 0, %s16
    %s21 = sphi 0, %s17
    %s22 = sphi 0, %s18
    %s23 = sphi 0, %s19
    %s24 = sphi 0, %s20
    %s25 = sphi 0, %s21
    %s26 = sphi 0, %s22
    %s27 = sphi 0, %s23
    %s49 = sphi 0, %s51
    %s52 = sphi 0, %s49
    %s53 = sphi 0, %s52
    %s69 = sphi 0, %s53
    %s79 = sphi 0, %s81
    %s82 = sphi 0, %s79
    %s83 = sphi 0, %s82
    %s99 = sphi 0, %s83
    %s107 = sphi 0, %s109
    %s110 = sphi 0, %s107
    %s111 = sphi 0, %s110
    %s127 = sphi 0, %s111
    %s137 = sphi 0, %s139
    %s140 = sphi 0, %s137
    %s141 = sphi 0, %s140
    %s157 = sphi 0, %s141
  $region4: #{upblock_forward.13} parent=0 // loop_header_branch
    %12 = sbr.rel (%p10) target = $region8
  $region5: #{upblock_forward.13} parent=0 // loop_body
    %s14 = ssub.s32 %s9, 1
    %s15 = ssub.s32 %s9, 2
    %s28 = sadd.s32 1, %s19
    %p29 = scmp.ge.s32.totalorder %s28, 1
    %s30 = scalar_select %p29, 0, %s28
    %s31 = sadd.s32 1, %s18
    %s32 = scalar_select %p29, %s31, %s18
    %p33 = scmp.ge.s32.totalorder %s32, 1
    %s34 = scalar_select %p33, 0, %s32
    %s35 = sadd.s32 1, %s17
    %s36 = scalar_select %p33, %s35, %s17
    %p37 = scmp.ge.s32.totalorder %s36, 2
    %s38 = scalar_select %p37, 0, %s36
    %s39 = sadd.s32 1, %s16
    %s40 = scalar_select %p37, %s39, %s16
    %p41 = scmp.ge.s32.totalorder %s40, 1
    %s42 = scalar_select %p41, 0, %s40
    %s43 = ssub.s32 %s16, %s42
    %s44 = ssub.s32 %s17, %s38
    %s45 = sor.u32 %s43, %s44
    %s46 = ssub.s32 %s19, %s30
    %s47 = sor.u32 %s45, %s46
    %p48 = scmp.eq.s32.totalorder %s47, 0
    %s50 = sadd.s32 %s49, 1
    %s51 = scalar_select %p48, %s49, %s50
    %p54 = pneg %p48
    %p55 = scmp.eq.s32.totalorder %s9, 1
    %p56 = por %p54, %p55
    %p57 = scmp.ne.s32.totalorder %s49, %s52
    %p58 = scmp.eq.s32.totalorder %s9, 0
    %p59 = por %p57, %p58
    %p60 = scmp.ne.s32.totalorder %s49, %s52
    %p61 = scmp.eq.s32.totalorder %s14, 1
    %p62 = por %p60, %p61
    %p63 = scmp.ne.s32.totalorder %s52, %s53
    %p64 = scmp.eq.s32.totalorder %s14, 0
    %p65 = por %p63, %p64
    %p66 = scmp.ne.s32.totalorder %s52, %s53
    %p67 = scmp.eq.s32.totalorder %s15, 1
    %p68 = por %p66, %p67
    %p70 = scmp.ne.s32.totalorder %s53, %s69
    %p71 = scmp.eq.s32.totalorder %s15, 0
    %p72 = por %p70, %p71
    %s73 = ssub.s32 %s16, %s42
    %s74 = ssub.s32 %s19, %s30
    %s75 = sor.u32 %s73, %s74
    %s76 = ssub.s32 %s18, %s34
    %s77 = sor.u32 %s75, %s76
    %p78 = scmp.eq.s32.totalorder %s77, 0
    %s80 = sadd.s32 %s79, 1
    %s81 = scalar_select %p78, %s79, %s80
    %p84 = pneg %p78
    %p85 = scmp.eq.s32.totalorder %s9, 1
    %p86 = por %p84, %p85
    %p87 = scmp.ne.s32.totalorder %s79, %s82
    %p88 = scmp.eq.s32.totalorder %s9, 0
    %p89 = por %p87, %p88
    %p90 = scmp.ne.s32.totalorder %s79, %s82
    %p91 = scmp.eq.s32.totalorder %s14, 1
    %p92 = por %p90, %p91
    %p93 = scmp.ne.s32.totalorder %s82, %s83
    %p94 = scmp.eq.s32.totalorder %s14, 0
    %p95 = por %p93, %p94
    %p96 = scmp.ne.s32.totalorder %s82, %s83
    %p97 = scmp.eq.s32.totalorder %s15, 1
    %p98 = por %p96, %p97
    %p100 = scmp.ne.s32.totalorder %s83, %s99
    %p101 = scmp.eq.s32.totalorder %s15, 0
    %p102 = por %p100, %p101
    %s103 = ssub.s32 %s16, %s42
    %s104 = ssub.s32 %s18, %s34
    %s105 = sor.u32 %s103, %s104
    %p106 = scmp.eq.s32.totalorder %s105, 0
    %s108 = sadd.s32 %s107, 1
    %s109 = scalar_select %p106, %s107, %s108
    %p112 = pneg %p106
    %p113 = scmp.eq.s32.totalorder %s9, 1
    %p114 = por %p112, %p113
    %p115 = scmp.ne.s32.totalorder %s107, %s110
    %p116 = scmp.eq.s32.totalorder %s9, 0
    %p117 = por %p115, %p116
    %p118 = scmp.ne.s32.totalorder %s107, %s110
    %p119 = scmp.eq.s32.totalorder %s14, 1
    %p120 = por %p118, %p119
    %p121 = scmp.ne.s32.totalorder %s110, %s111
    %p122 = scmp.eq.s32.totalorder %s14, 0
    %p123 = por %p121, %p122
    %p124 = scmp.ne.s32.totalorder %s110, %s111
    %p125 = scmp.eq.s32.totalorder %s15, 1
    %p126 = por %p124, %p125
    %p128 = scmp.ne.s32.totalorder %s111, %s127
    %p129 = scmp.eq.s32.totalorder %s15, 0
    %p130 = por %p128, %p129
    %s131 = ssub.s32 %s16, %s42
    %s132 = ssub.s32 %s17, %s38
    %s133 = sor.u32 %s131, %s132
    %s134 = ssub.s32 %s18, %s34
    %s135 = sor.u32 %s133, %s134
    %p136 = scmp.eq.s32.totalorder %s135, 0
    %s138 = sadd.s32 %s137, 1
    %s139 = scalar_select %p136, %s137, %s138
    %p142 = pneg %p136
    %p143 = scmp.eq.s32.totalorder %s9, 1
    %p144 = por %p142, %p143
    %p145 = scmp.ne.s32.totalorder %s137, %s140
    %p146 = scmp.eq.s32.totalorder %s9, 0
    %p147 = por %p145, %p146
    %p148 = scmp.ne.s32.totalorder %s137, %s140
    %p149 = scmp.eq.s32.totalorder %s14, 1
    %p150 = por %p148, %p149
    %p151 = scmp.ne.s32.totalorder %s140, %s141
    %p152 = scmp.eq.s32.totalorder %s14, 0
    %p153 = por %p151, %p152
    %p154 = scmp.ne.s32.totalorder %s140, %s141
    %p155 = scmp.eq.s32.totalorder %s15, 1
    %p156 = por %p154, %p155
    %p158 = scmp.ne.s32.totalorder %s141, %s157
    %p159 = scmp.eq.s32.totalorder %s15, 0
    %p160 = por %p158, %p159
    %p161 = scmp.le.s32.totalorder 1, %s9
    %p162 = scmp.lt.s32.totalorder %s9, 3
    %p163 = pnand %p161, %p162
    %p164 = pneg %p163
    // Predicated region
    $region9: #{upblock_forward.13} parent=5 // pred_check
      _
    $region10: #{upblock_forward.13} parent=5 // pred_check_branch
      %166 = sbr.rel (%p163) target = $region12
    $region11: #{upblock_forward.13} parent=5 // pred_region
      %s167 = ssub.s32 %s9, 1
      // Predicated region
      $region13: #{upblock_forward.13} parent=11 // pred_check
        %p168 = pneg %p95
      $region14: #{upblock_forward.13} parent=11 // pred_check_branch
        %170 = sbr.rel (%p168) target = $region16
      $region15: #{upblock_forward.13} parent=11 // pred_region
        %s171 = smul.u32 18, %s23
        %p172 = scmp.lt.s32.totalorder %s20, 0
        %s173 = scalar_select %p172, %s20, 0
        %p174 = scmp.lt.s32.totalorder %s171, 17
        %s175 = scalar_select %p174, %s171, 17
        %p176 = scmp.lt.s32.totalorder %s22, 0
        %s177 = scalar_select %p176, %s22, 0
        %s178 = sadd.s32 %s177, %s175
        %s179 = smul.addr %s173, 18
        %s180 = sadd.s32 %s178, %s179
        %s181 = smul.addr %s180, 4
        %s182 = scalar_lea.vmem %s1, %s181
        %s183 = smul.u32 18, %s23
      $region16: #{upblock_forward.13} parent=11 // pred_fallthru
        _
      // Predicated region
      $region17: #{upblock_forward.13} parent=11 // pred_check
        %p184 = pneg %p123
      $region18: #{upblock_forward.13} parent=11 // pred_check_branch
        %186 = sbr.rel (%p184) target = $region20
      $region19: #{upblock_forward.13} parent=11 // pred_region
        %p187 = scmp.lt.s32.totalorder %s20, 0
        %s188 = scalar_select %p187, %s20, 0
        %p189 = scmp.lt.s32.totalorder %s22, 0
        %s190 = scalar_select %p189, %s22, 0
        %s191 = sadd.s32 %s190, %s188
        %s192 = scalar_lea.vmem %s2, %s191
      $region20: #{upblock_forward.13} parent=11 // pred_fallthru
        _
    $region12: #{upblock_forward.13} parent=5 // pred_fallthru
      _
    %p193 = scmp.lt.s32.totalorder %s9, 2
    // Predicated region
    $region21: #{upblock_forward.13} parent=5 // pred_check
      %p194 = pneg %p193
    $region22: #{upblock_forward.13} parent=5 // pred_check_branch
      %196 = sbr.rel (%p194) target = $region24
    $region23: #{upblock_forward.13} parent=5 // pred_region
      // Predicated region
      $region25: #{upblock_forward.13} parent=23 // pred_check
        %p197 = pneg %p59
      $region26: #{upblock_forward.13} parent=23 // pred_check_branch
        %199 = sbr.rel (%p197) target = $region28
      $region27: #{upblock_forward.13} parent=23 // pred_region
        %s200 = smul.u32 32, %s17
        %s201 = smul.u32 2, %s19
        %p202 = scmp.lt.s32.totalorder %s16, 0
        %s203 = scalar_select %p202, %s16, 0
        %p204 = scmp.lt.s32.totalorder %s200, 63
        %s205 = scalar_select %p204, %s200, 63
        %p206 = scmp.lt.s32.totalorder %s201, 1
        %s207 = scalar_select %p206, %s201, 1
        %s208 = smul.addr %s205, 2
        %s209 = sadd.s32 %s207, %s208
        %s210 = smul.addr %s203, 128
        %s211 = sadd.s32 %s209, %s210
        %s212 = smul.addr %s211, 4
        %s213 = scalar_lea.vmem %s0, %s212
        %s214 = smul.u32 32, %s17
        %s215 = smul.u32 2, %s19
      $region28: #{upblock_forward.13} parent=23 // pred_fallthru
        _
    $region24: #{upblock_forward.13} parent=5 // pred_fallthru
      _
    %p216 = scmp.le.s32.totalorder 1, %s9
    %p217 = scmp.lt.s32.totalorder %s9, 3
    %p218 = pnand %p216, %p217
    %p219 = pneg %p218
    // Predicated region
    $region29: #{upblock_forward.13} parent=5 // pred_check
      _
    $region30: #{upblock_forward.13} parent=5 // pred_check_branch
      %221 = sbr.rel (%p218) target = $region32
    $region31: #{upblock_forward.13} parent=5 // pred_region
      %s222 = ssub.s32 %s9, 1
      %s223 = smul.u32 32, %s21
      %s224 = smul.u32 2, %s23
      %p225 = scmp.lt.s32.totalorder %s20, 0
      %s226 = scalar_select %p225, %s20, 0
      %p227 = scmp.lt.s32.totalorder %s223, 63
      %s228 = scalar_select %p227, %s223, 63
      %p229 = scmp.lt.s32.totalorder %s224, 1
      %s230 = scalar_select %p229, %s224, 1
      %s231 = smul.addr %s228, 2
      %s232 = sadd.s32 %s230, %s231
      %s233 = smul.addr %s226, 128
      %s234 = sadd.s32 %s232, %s233
      %s235 = smul.addr %s234, 4
      %s236 = scalar_lea.vmem %s0, %s235
      %p237 = pneg %p65
      %p238 = pneg %p62
      %s239 = smul.u32 18, %s23
      %p240 = scmp.lt.s32.totalorder %s20, 0
      %s241 = scalar_select %p240, %s20, 0
      %p242 = scmp.lt.s32.totalorder %s239, 17
      %s243 = scalar_select %p242, %s239, 17
      %p244 = scmp.lt.s32.totalorder %s22, 0
      %s245 = scalar_select %p244, %s22, 0
      %s246 = sadd.s32 %s245, %s243
      %s247 = smul.addr %s241, 18
      %s248 = sadd.s32 %s246, %s247
      %s249 = smul.addr %s248, 4
      %s250 = scalar_lea.vmem %s1, %s249
      %p251 = pneg %p95
      %p252 = pneg %p92
      %p253 = scmp.lt.s32.totalorder %s20, 0
      %s254 = scalar_select %p253, %s20, 0
      %p255 = scmp.lt.s32.totalorder %s22, 0
      %s256 = scalar_select %p255, %s22, 0
      %s257 = sadd.s32 %s256, %s254
      %s258 = scalar_lea.vmem %s2, %s257
      %p259 = pneg %p123
      %p260 = pneg %p120
      %p261 = pneg %p153
      %p262 = pneg %p150
      %s263 = smul.u32 32, %s21
      %p264 = scmp.lt.s32.totalorder %s20, 0
      %s265 = scalar_select %p264, %s20, 0
      %p266 = scmp.lt.s32.totalorder %s263, 63
      %s267 = scalar_select %p266, %s263, 63
      %p268 = scmp.lt.s32.totalorder %s22, 0
      %s269 = scalar_select %p268, %s22, 0
      %s270 = sadd.s32 %s269, %s267
      %s271 = smul.addr %s265, 64
      %s272 = sadd.s32 %s270, %s271
      %s273 = smul.addr %s272, 8
      %s274 = scalar_lea.vmem %s3, %s273
      %s275 = smul.u32 32, %s21
      %s276 = smul.u32 2, %s23
      %p277 = scmp.lt.s32.totalorder %s20, 0
      %s278 = scalar_select %p277, %s20, 0
      %p279 = scmp.lt.s32.totalorder %s275, 63
      %s280 = scalar_select %p279, %s275, 63
      %p281 = scmp.lt.s32.totalorder %s276, 1
      %s282 = scalar_select %p281, %s276, 1
      %s283 = smul.addr %s280, 2
      %s284 = sadd.s32 %s282, %s283
      %s285 = smul.addr %s278, 128
      %s286 = sadd.s32 %s284, %s285
      %s287 = smul.addr %s286, 4
      %s288 = scalar_lea.vmem %s0, %s287
      %s289 = smul.u32 32, %s21
      %s290 = smul.u32 2, %s23
      %s291 = smul.u32 18, %s23
      %p292 = scmp.lt.s32.totalorder %s20, 0
      %s293 = scalar_select %p292, %s20, 0
      %p294 = scmp.lt.s32.totalorder %s291, 17
      %s295 = scalar_select %p294, %s291, 17
      %p296 = scmp.lt.s32.totalorder %s22, 0
      %s297 = scalar_select %p296, %s22, 0
      %s298 = sadd.s32 %s297, %s295
      %s299 = smul.addr %s293, 18
      %s300 = sadd.s32 %s298, %s299
      %s301 = smul.addr %s300, 4
      %s302 = scalar_lea.vmem %s1, %s301
      %s303 = smul.u32 18, %s23
      %p304 = scmp.lt.s32.totalorder %s20, 0
      %s305 = scalar_select %p304, %s20, 0
      %p306 = scmp.lt.s32.totalorder %s22, 0
      %s307 = scalar_select %p306, %s22, 0
      %s308 = sadd.s32 %s307, %s305
      %s309 = scalar_lea.vmem %s2, %s308
      %s310 = smul.u32 32, %s21
      %p311 = scmp.lt.s32.totalorder %s20, 0
      %s312 = scalar_select %p311, %s20, 0
      %p313 = scmp.lt.s32.totalorder %s310, 63
      %s314 = scalar_select %p313, %s310, 63
      %p315 = scmp.lt.s32.totalorder %s22, 0
      %s316 = scalar_select %p315, %s22, 0
      %s317 = sadd.s32 %s316, %s314
      %s318 = smul.addr %s312, 64
      %s319 = sadd.s32 %s317, %s318
      %s320 = smul.addr %s319, 8
      %s321 = scalar_lea.vmem %s3, %s320
      %s322 = smul.u32 32, %s21
      %p324 = scmp.eq.s32.totalorder %s23, 0
      // Predicated region
      $region33: #{upblock_forward.13} parent=31 // pred_check
        %p325 = pneg %p324
      $region34: #{upblock_forward.13} parent=31 // pred_check_branch
        %327 = sbr.rel (%p325) target = $region36
      $region35: #{upblock_forward.13} parent=31 // pred_region
        %vm328 = vcmask 130048
        %329 = vst.msk [vmem:[#allocation2] sm:$0xff] %vm328, 0.0
        %330 = vst.msk [vmem:[#allocation2 + $0x8] sm:$0xff] %vm328, 0.0
        %331 = vst.msk [vmem:[#allocation2 + $0x10] sm:$0xff] %vm328, 0.0
        %332 = vst.msk [vmem:[#allocation2 + $0x18] sm:$0xff] %vm328, 0.0
        %333 = vst.msk [vmem:[#allocation2 + $0x20] sm:$0xff] %vm328, 0.0
        %334 = vst.msk [vmem:[#allocation2 + $0x28] sm:$0xff] %vm328, 0.0
        %335 = vst.msk [vmem:[#allocation2 + $0x30] sm:$0xff] %vm328, 0.0
        %336 = vst.msk [vmem:[#allocation2 + $0x38] sm:$0xff] %vm328, 0.0
        %337 = vst.msk [vmem:[#allocation2 + $0x40] sm:$0xff] %vm328, 0.0
        %338 = vst.msk [vmem:[#allocation2 + $0x48] sm:$0xff] %vm328, 0.0
        %339 = vst.msk [vmem:[#allocation2 + $0x50] sm:$0xff] %vm328, 0.0
        %340 = vst.msk [vmem:[#allocation2 + $0x58] sm:$0xff] %vm328, 0.0
        %341 = vst.msk [vmem:[#allocation2 + $0x60] sm:$0xff] %vm328, 0.0
        %342 = vst.msk [vmem:[#allocation2 + $0x68] sm:$0xff] %vm328, 0.0
        %343 = vst.msk [vmem:[#allocation2 + $0x70] sm:$0xff] %vm328, 0.0
        %344 = vst.msk [vmem:[#allocation2 + $0x78] sm:$0xff] %vm328, 0.0
        %345 = vst.msk [vmem:[#allocation2 + $0x80] sm:$0xff] %vm328, 0.0
        %346 = vst.msk [vmem:[#allocation2 + $0x88] sm:$0xff] %vm328, 0.0
        %347 = vst.msk [vmem:[#allocation2 + $0x90] sm:$0xff] %vm328, 0.0
        %348 = vst.msk [vmem:[#allocation2 + $0x98] sm:$0xff] %vm328, 0.0
        %349 = vst.msk [vmem:[#allocation2 + $0xa0] sm:$0xff] %vm328, 0.0
        %350 = vst.msk [vmem:[#allocation2 + $0xa8] sm:$0xff] %vm328, 0.0
        %351 = vst.msk [vmem:[#allocation2 + $0xb0] sm:$0xff] %vm328, 0.0
        %352 = vst.msk [vmem:[#allocation2 + $0xb8] sm:$0xff] %vm328, 0.0
        %353 = vst.msk [vmem:[#allocation2 + $0xc0] sm:$0xff] %vm328, 0.0
        %354 = vst.msk [vmem:[#allocation2 + $0xc8] sm:$0xff] %vm328, 0.0
        %355 = vst.msk [vmem:[#allocation2 + $0xd0] sm:$0xff] %vm328, 0.0
        %356 = vst.msk [vmem:[#allocation2 + $0xd8] sm:$0xff] %vm328, 0.0
        %357 = vst.msk [vmem:[#allocation2 + $0xe0] sm:$0xff] %vm328, 0.0
        %358 = vst.msk [vmem:[#allocation2 + $0xe8] sm:$0xff] %vm328, 0.0
        %359 = vst.msk [vmem:[#allocation2 + $0xf0] sm:$0xff] %vm328, 0.0
        %360 = vst.msk [vmem:[#allocation2 + $0xf8] sm:$0xff] %vm328, 0.0
      $region36: #{upblock_forward.13} parent=31 // pred_fallthru
        _
      %v361 = vld [vmem:[%s288] sm:$0xff]
      %v362 = vld [vmem:[%s288 + $0x8] sm:$0xff]
      %v363 = vld [vmem:[%s288 + $0x10] sm:$0xff]
      %v364 = vld [vmem:[%s288 + $0x18] sm:$0xff]
      %v365 = vld [vmem:[%s288 + $0x20] sm:$0xff]
      %v366 = vld [vmem:[%s288 + $0x28] sm:$0xff]
      %v367 = vld [vmem:[%s288 + $0x30] sm:$0xff]
      %v368 = vld [vmem:[%s288 + $0x38] sm:$0xff]
      %v369 = vld [vmem:[%s288 + $0x40] sm:$0xff]
      %v370 = vld [vmem:[%s288 + $0x48] sm:$0xff]
      %v371 = vld [vmem:[%s288 + $0x50] sm:$0xff]
      %v372 = vld [vmem:[%s288 + $0x58] sm:$0xff]
      %v373 = vld [vmem:[%s288 + $0x60] sm:$0xff]
      %v374 = vld [vmem:[%s288 + $0x68] sm:$0xff]
      %v375 = vld [vmem:[%s288 + $0x70] sm:$0xff]
      %v376 = vld [vmem:[%s288 + $0x78] sm:$0xff]
      %v377 = vld [vmem:[%s288 + $0x80] sm:$0xff]
      %v378 = vld [vmem:[%s288 + $0x88] sm:$0xff]
      %v379 = vld [vmem:[%s288 + $0x90] sm:$0xff]
      %v380 = vld [vmem:[%s288 + $0x98] sm:$0xff]
      %v381 = vld [vmem:[%s288 + $0xa0] sm:$0xff]
      %v382 = vld [vmem:[%s288 + $0xa8] sm:$0xff]
      %v383 = vld [vmem:[%s288 + $0xb0] sm:$0xff]
      %v384 = vld [vmem:[%s288 + $0xb8] sm:$0xff]
      %v385 = vld [vmem:[%s288 + $0xc0] sm:$0xff]
      %v386 = vld [vmem:[%s288 + $0xc8] sm:$0xff]
      %v387 = vld [vmem:[%s288 + $0xd0] sm:$0xff]
      %v388 = vld [vmem:[%s288 + $0xd8] sm:$0xff]
      %v389 = vld [vmem:[%s288 + $0xe0] sm:$0xff]
      %v390 = vld [vmem:[%s288 + $0xe8] sm:$0xff]
      %v391 = vld [vmem:[%s288 + $0xf0] sm:$0xff]
      %v392 = vld [vmem:[%s288 + $0xf8] sm:$0xff]
      %v393 = vld [vmem:[#allocation2] sm:$0xff]
      %v394 = vld [vmem:[#allocation2 + $0x8] sm:$0xff]
      %v395 = vld [vmem:[#allocation2 + $0x10] sm:$0xff]
      %v396 = vld [vmem:[#allocation2 + $0x18] sm:$0xff]
      %v397 = vld [vmem:[#allocation2 + $0x20] sm:$0xff]
      %v398 = vld [vmem:[#allocation2 + $0x28] sm:$0xff]
      %v399 = vld [vmem:[#allocation2 + $0x30] sm:$0xff]
      %v400 = vld [vmem:[#allocation2 + $0x38] sm:$0xff]
      %v401 = vld [vmem:[#allocation2 + $0x40] sm:$0xff]
      %v402 = vld [vmem:[#allocation2 + $0x48] sm:$0xff]
      %v403 = vld [vmem:[#allocation2 + $0x50] sm:$0xff]
      %v404 = vld [vmem:[#allocation2 + $0x58] sm:$0xff]
      %v405 = vld [vmem:[#allocation2 + $0x60] sm:$0xff]
      %v406 = vld [vmem:[#allocation2 + $0x68] sm:$0xff]
      %v407 = vld [vmem:[#allocation2 + $0x70] sm:$0xff]
      %v408 = vld [vmem:[#allocation2 + $0x78] sm:$0xff]
      %v409 = vld [vmem:[#allocation2 + $0x80] sm:$0xff]
      %v410 = vld [vmem:[#allocation2 + $0x88] sm:$0xff]
      %v411 = vld [vmem:[#allocation2 + $0x90] sm:$0xff]
      %v412 = vld [vmem:[#allocation2 + $0x98] sm:$0xff]
      %v413 = vld [vmem:[#allocation2 + $0xa0] sm:$0xff]
      %v414 = vld [vmem:[#allocation2 + $0xa8] sm:$0xff]
      %v415 = vld [vmem:[#allocation2 + $0xb0] sm:$0xff]
      %v416 = vld [vmem:[#allocation2 + $0xb8] sm:$0xff]
      %v417 = vld [vmem:[#allocation2 + $0xc0] sm:$0xff]
      %v418 = vld [vmem:[#allocation2 + $0xc8] sm:$0xff]
      %v419 = vld [vmem:[#allocation2 + $0xd0] sm:$0xff]
      %v420 = vld [vmem:[#allocation2 + $0xd8] sm:$0xff]
      %v421 = vld [vmem:[#allocation2 + $0xe0] sm:$0xff]
      %v422 = vld [vmem:[#allocation2 + $0xe8] sm:$0xff]
      %v423 = vld [vmem:[#allocation2 + $0xf0] sm:$0xff]
      %v424 = vld [vmem:[#allocation2 + $0xf8] sm:$0xff]
      %v425 = vld [vmem:[%s302] sm:$0xf]
      %v426 = vld [vmem:[%s302 + $0x4] sm:$0xf]
      %v427 = vld [vmem:[%s302 + $0x8] sm:$0xf]
      %v428 = vld [vmem:[%s302 + $0xc] sm:$0xf]
      %v429 = vld [vmem:[%s302 + $0x10] sm:$0xf]
      %v430 = vld [vmem:[%s302 + $0x14] sm:$0xf]
      %v431 = vld [vmem:[%s302 + $0x18] sm:$0xf]
      %v432 = vld [vmem:[%s302 + $0x1c] sm:$0xf]
      %v433 = vld [vmem:[%s302 + $0x20] sm:$0xf]
      %v434 = vld [vmem:[%s302 + $0x24] sm:$0xf]
      %v435 = vld [vmem:[%s302 + $0x28] sm:$0xf]
      %v436 = vld [vmem:[%s302 + $0x2c] sm:$0xf]
      %v437 = vld [vmem:[%s302 + $0x30] sm:$0xf]
      %v438 = vld [vmem:[%s302 + $0x34] sm:$0xf]
      %v439 = vld [vmem:[%s302 + $0x38] sm:$0xf]
      %v440 = vld [vmem:[%s302 + $0x3c] sm:$0xf]
      %v441 = vld [vmem:[%s302 + $0x40] sm:$0xf]
      %v442 = vld [vmem:[%s302 + $0x44] sm:$0xf]
      %v475 = vunpack.c.l.b16 %v361
      %v476 = vunpack.c.h.b16 %v361
      %v477 = vunpack.c.l.b16 %v362
      %v478 = vunpack.c.h.b16 %v362
      %v479 = vunpack.c.l.b16 %v363
      %v480 = vunpack.c.h.b16 %v363
      %v481 = vunpack.c.l.b16 %v364
      %v482 = vunpack.c.h.b16 %v364
      %v483 = vunpack.c.l.b16 %v365
      %v484 = vunpack.c.h.b16 %v365
      %v485 = vunpack.c.l.b16 %v366
      %v486 = vunpack.c.h.b16 %v366
      %v487 = vunpack.c.l.b16 %v367
      %v488 = vunpack.c.h.b16 %v367
      %v489 = vunpack.c.l.b16 %v368
      %v490 = vunpack.c.h.b16 %v368
      %v491 = vunpack.c.l.b16 %v369
      %v492 = vunpack.c.h.b16 %v369
      %v493 = vunpack.c.l.b16 %v370
      %v494 = vunpack.c.h.b16 %v370
      %v495 = vunpack.c.l.b16 %v371
      %v496 = vunpack.c.h.b16 %v371
      %v497 = vunpack.c.l.b16 %v372
      %v498 = vunpack.c.h.b16 %v372
      %v499 = vunpack.c.l.b16 %v373
      %v500 = vunpack.c.h.b16 %v373
      %v501 = vunpack.c.l.b16 %v374
      %v502 = vunpack.c.h.b16 %v374
      %v503 = vunpack.c.l.b16 %v375
      %v504 = vunpack.c.h.b16 %v375
      %v505 = vunpack.c.l.b16 %v376
      %v506 = vunpack.c.h.b16 %v376
      %v507 = vunpack.c.l.b16 %v377
      %v508 = vunpack.c.h.b16 %v377
      %v509 = vunpack.c.l.b16 %v378
      %v510 = vunpack.c.h.b16 %v378
      %v511 = vunpack.c.l.b16 %v379
      %v512 = vunpack.c.h.b16 %v379
      %v513 = vunpack.c.l.b16 %v380
      %v514 = vunpack.c.h.b16 %v380
      %v515 = vunpack.c.l.b16 %v381
      %v516 = vunpack.c.h.b16 %v381
      %v517 = vunpack.c.l.b16 %v382
      %v518 = vunpack.c.h.b16 %v382
      %v519 = vunpack.c.l.b16 %v383
      %v520 = vunpack.c.h.b16 %v383
      %v521 = vunpack.c.l.b16 %v384
      %v522 = vunpack.c.h.b16 %v384
      %v523 = vunpack.c.l.b16 %v385
      %v524 = vunpack.c.h.b16 %v385
      %v525 = vunpack.c.l.b16 %v386
      %v526 = vunpack.c.h.b16 %v386
      %v527 = vunpack.c.l.b16 %v387
      %v528 = vunpack.c.h.b16 %v387
      %v529 = vunpack.c.l.b16 %v388
      %v530 = vunpack.c.h.b16 %v388
      %v531 = vunpack.c.l.b16 %v389
      %v532 = vunpack.c.h.b16 %v389
      %v533 = vunpack.c.l.b16 %v390
      %v534 = vunpack.c.h.b16 %v390
      %v535 = vunpack.c.l.b16 %v391
      %v536 = vunpack.c.h.b16 %v391
      %v537 = vunpack.c.l.b16 %v392
      %v538 = vunpack.c.h.b16 %v392
      %v539 = vpack.c.b16 %v477, %v475
      %v540 = vpack.c.b16 %v478, %v476
      %v541 = vpack.c.b16 %v481, %v479
      %v542 = vpack.c.b16 %v482, %v480
      %v543 = vpack.c.b16 %v485, %v483
      %v544 = vpack.c.b16 %v486, %v484
      %v545 = vpack.c.b16 %v489, %v487
      %v546 = vpack.c.b16 %v490, %v488
      %v547 = vpack.c.b16 %v493, %v491
      %v548 = vpack.c.b16 %v494, %v492
      %v549 = vpack.c.b16 %v497, %v495
      %v550 = vpack.c.b16 %v498, %v496
      %v551 = vpack.c.b16 %v501, %v499
      %v552 = vpack.c.b16 %v502, %v500
      %v553 = vpack.c.b16 %v505, %v503
      %v554 = vpack.c.b16 %v506, %v504
      %v555 = vpack.c.b16 %v509, %v507
      %v556 = vpack.c.b16 %v510, %v508
      %v557 = vpack.c.b16 %v513, %v511
      %v558 = vpack.c.b16 %v514, %v512
      %v559 = vpack.c.b16 %v517, %v515
      %v560 = vpack.c.b16 %v518, %v516
      %v561 = vpack.c.b16 %v521, %v519
      %v562 = vpack.c.b16 %v522, %v520
      %v563 = vpack.c.b16 %v525, %v523
      %v564 = vpack.c.b16 %v526, %v524
      %v565 = vpack.c.b16 %v529, %v527
      %v566 = vpack.c.b16 %v530, %v528
      %v567 = vpack.c.b16 %v533, %v531
      %v568 = vpack.c.b16 %v534, %v532
      %v569 = vpack.c.b16 %v537, %v535
      %v570 = vpack.c.b16 %v538, %v536
      %v605 = vunpack.c.l.b16 %v425
      %v606 = vunpack.c.l.b16 %v426
      %v607 = vunpack.c.l.b16 %v427
      %v608 = vunpack.c.l.b16 %v428
      %v609 = vunpack.c.l.b16 %v429
      %v610 = vunpack.c.l.b16 %v430
      %v611 = vunpack.c.l.b16 %v431
      %v612 = vunpack.c.l.b16 %v432
      %v613 = vunpack.c.l.b16 %v433
      %v614 = vunpack.c.l.b16 %v434
      %v615 = vunpack.c.l.b16 %v435
      %v616 = vunpack.c.l.b16 %v436
      %v617 = vunpack.c.l.b16 %v437
      %v618 = vunpack.c.l.b16 %v438
      %v619 = vunpack.c.l.b16 %v439
      %v620 = vunpack.c.l.b16 %v440
      %v621 = vunpack.c.l.b16 %v441
      %v622 = vunpack.c.l.b16 %v442
      %v623 = vpack.c.b16 %v606, %v605
      %v624 = vpack.c.b16 %v608, %v607
      %v625 = vpack.c.b16 %v610, %v609
      %v626 = vpack.c.b16 %v612, %v611
      %v627 = vpack.c.b16 %v614, %v613
      %v628 = vpack.c.b16 %v616, %v615
      %v629 = vpack.c.b16 %v618, %v617
      %v630 = vpack.c.b16 %v620, %v619
      %v631 = vpack.c.b16 %v622, %v621
      %vm641 = vcmask 130048
      %v643 = vsel %vm641, %v540, 0
      %v646 = vsel %vm641, %v542, 0
      %v649 = vsel %vm641, %v544, 0
      %v652 = vsel %vm641, %v546, 0
      %v655 = vsel %vm641, %v548, 0
      %v658 = vsel %vm641, %v550, 0
      %v661 = vsel %vm641, %v552, 0
      %v664 = vsel %vm641, %v554, 0
      %v667 = vsel %vm641, %v556, 0
      %v670 = vsel %vm641, %v558, 0
      %v673 = vsel %vm641, %v560, 0
      %v676 = vsel %vm641, %v562, 0
      %v679 = vsel %vm641, %v564, 0
      %v682 = vsel %vm641, %v566, 0
      %v685 = vsel %vm641, %v568, 0
      %v688 = vsel %vm641, %v570, 0
      %690 = vmatprep.subr.bf16.mxu0 0
      %691 = vmatpush1.bf16.msra.mxu0 %v623
      %692 = vmatprep.subr.bf16.mxu0 0
      %693 = vmatpush1.bf16.msra.mxu0 %v624
      %694 = vmatprep.subr.bf16.mxu0 0
      %695 = vmatpush1.bf16.msra.mxu0 %v625
      %696 = vmatprep.subr.bf16.mxu0 0
      %697 = vmatpush1.bf16.msra.mxu0 %v626
      %698 = vmatprep.subr.bf16.mxu0 0
      %699 = vmatpush1.bf16.msra.mxu0 %v627
      %700 = vmatprep.subr.bf16.mxu0 0
      %701 = vmatpush1.bf16.msra.mxu0 %v628
      %702 = vmatprep.subr.bf16.mxu0 0
      %703 = vmatpush1.bf16.msra.mxu0 %v629
      %704 = vmatprep.subr.bf16.mxu0 0
      %705 = vmatpush1.bf16.msra.mxu0 %v630
      %706 = vmatprep.subr.bf16.mxu0 0
      %707 = vmatpush1.bf16.msra.mxu0 %v631
      %708 = vmatprep.subr.bf16.mxu0 0
      %709 = vmatpush1.bf16.msra.mxu0 0
      %710 = vmatprep.subr.bf16.mxu0 0
      %711 = vmatpush1.bf16.msra.mxu0 0
      %712 = vmatprep.subr.bf16.mxu0 0
      %713 = vmatpush1.bf16.msra.mxu0 0
      %714 = vmatprep.subr.bf16.mxu0 0
      %715 = vmatpush1.bf16.msra.mxu0 0
      %716 = vmatprep.subr.bf16.mxu0 0
      %717 = vmatpush1.bf16.msra.mxu0 0
      %718 = vmatprep.subr.bf16.mxu0 0
      %719 = vmatpush1.bf16.msra.mxu0 0
      %720 = vmatprep.subr.bf16.mxu0 0
      %721 = vmatpush1.bf16.msra.mxu0 0
      %722 = vmatprep.mubr.bf16.mxu0 %v643
      %723 = vmatmul.mubr.bf16.gmra.mrb[0].mxu0 %v539
      %v724 = vpop.f32.mrb[0].mxu0
      %v725 = vadd.f32 0.0, %v724
      %v726 = vpop.f32.mrb[0].mxu0
      %v727 = vpop.f32.mrb[0].mxu0
      %v728 = vadd.f32 0.0, %v727
      %v729 = vpop.f32.mrb[0].mxu0
      %730 = vmatprep.mubr.bf16.mxu0 %v646
      %731 = vmatmul.mubr.bf16.gmra.mrb[0].mxu0 %v541
      %v732 = vpop.f32.mrb[0].mxu0
      %v733 = vadd.f32 0.0, %v732
      %v734 = vpop.f32.mrb[0].mxu0
      %v735 = vpop.f32.mrb[0].mxu0
      %v736 = vadd.f32 0.0, %v735
      %v737 = vpop.f32.mrb[0].mxu0
      %738 = vmatprep.mubr.bf16.mxu0 %v649
      %739 = vmatmul.mubr.bf16.gmra.mrb[0].mxu0 %v543
      %v740 = vpop.f32.mrb[0].mxu0
      %v741 = vadd.f32 0.0, %v740
      %v742 = vpop.f32.mrb[0].mxu0
      %v743 = vpop.f32.mrb[0].mxu0
      %v744 = vadd.f32 0.0, %v743
      %v745 = vpop.f32.mrb[0].mxu0
      %746 = vmatprep.mubr.bf16.mxu0 %v652
      %747 = vmatmul.mubr.bf16.gmra.mrb[0].mxu0 %v545
      %v748 = vpop.f32.mrb[0].mxu0
      %v749 = vadd.f32 0.0, %v748
      %v750 = vpop.f32.mrb[0].mxu0
      %v751 = vpop.f32.mrb[0].mxu0
      %v752 = vadd.f32 0.0, %v751
      %v753 = vpop.f32.mrb[0].mxu0
      %754 = vmatprep.mubr.bf16.mxu0 %v655
      %755 = vmatmul.mubr.bf16.gmra.mrb[0].mxu0 %v547
      %v756 = vpop.f32.mrb[0].mxu0
      %v757 = vadd.f32 0.0, %v756
      %v758 = vpop.f32.mrb[0].mxu0
      %v759 = vpop.f32.mrb[0].mxu0
      %v760 = vadd.f32 0.0, %v759
      %v761 = vpop.f32.mrb[0].mxu0
      %762 = vmatprep.mubr.bf16.mxu0 %v658
      %763 = vmatmul.mubr.bf16.gmra.mrb[0].mxu0 %v549
      %v764 = vpop.f32.mrb[0].mxu0
      %v765 = vadd.f32 0.0, %v764
      %v766 = vpop.f32.mrb[0].mxu0
      %v767 = vpop.f32.mrb[0].mxu0
      %v768 = vadd.f32 0.0, %v767
      %v769 = vpop.f32.mrb[0].mxu0
      %770 = vmatprep.mubr.bf16.mxu0 %v661
      %771 = vmatmul.mubr.bf16.gmra.mrb[0].mxu0 %v551
      %v772 = vpop.f32.mrb[0].mxu0
      %v773 = vadd.f32 0.0, %v772
      %v774 = vpop.f32.mrb[0].mxu0
      %v775 = vpop.f32.mrb[0].mxu0
      %v776 = vadd.f32 0.0, %v775
      %v777 = vpop.f32.mrb[0].mxu0
      %778 = vmatprep.mubr.bf16.mxu0 %v664
      %779 = vmatmul.mubr.bf16.gmra.mrb[0].mxu0 %v553
      %v780 = vpop.f32.mrb[0].mxu0
      %v781 = vadd.f32 0.0, %v780
      %v782 = vpop.f32.mrb[0].mxu0
      %v783 = vpop.f32.mrb[0].mxu0
      %v784 = vadd.f32 0.0, %v783
      %v785 = vpop.f32.mrb[0].mxu0
      %786 = vmatprep.mubr.bf16.mxu0 %v667
      %787 = vmatmul.mubr.bf16.gmra.mrb[0].mxu0 %v555
      %v788 = vpop.f32.mrb[0].mxu0
      %v789 = vadd.f32 0.0, %v788
      %v790 = vpop.f32.mrb[0].mxu0
      %v791 = vpop.f32.mrb[0].mxu0
      %v792 = vadd.f32 0.0, %v791
      %v793 = vpop.f32.mrb[0].mxu0
      %794 = vmatprep.mubr.bf16.mxu0 %v670
      %795 = vmatmul.mubr.bf16.gmra.mrb[0].mxu0 %v557
      %v796 = vpop.f32.mrb[0].mxu0
      %v797 = vadd.f32 0.0, %v796
      %v798 = vpop.f32.mrb[0].mxu0
      %v799 = vpop.f32.mrb[0].mxu0
      %v800 = vadd.f32 0.0, %v799
      %v801 = vpop.f32.mrb[0].mxu0
      %802 = vmatprep.mubr.bf16.mxu0 %v673
      %803 = vmatmul.mubr.bf16.gmra.mrb[0].mxu0 %v559
      %v804 = vpop.f32.mrb[0].mxu0
      %v805 = vadd.f32 0.0, %v804
      %v806 = vpop.f32.mrb[0].mxu0
      %v807 = vpop.f32.mrb[0].mxu0
      %v808 = vadd.f32 0.0, %v807
      %v809 = vpop.f32.mrb[0].mxu0
      %810 = vmatprep.mubr.bf16.mxu0 %v676
      %811 = vmatmul.mubr.bf16.gmra.mrb[0].mxu0 %v561
      %v812 = vpop.f32.mrb[0].mxu0
      %v813 = vadd.f32 0.0, %v812
      %v814 = vpop.f32.mrb[0].mxu0
      %v815 = vpop.f32.mrb[0].mxu0
      %v816 = vadd.f32 0.0, %v815
      %v817 = vpop.f32.mrb[0].mxu0
      %818 = vmatprep.mubr.bf16.mxu0 %v679
      %819 = vmatmul.mubr.bf16.gmra.mrb[0].mxu0 %v563
      %v820 = vpop.f32.mrb[0].mxu0
      %v821 = vadd.f32 0.0, %v820
      %v822 = vpop.f32.mrb[0].mxu0
      %v823 = vpop.f32.mrb[0].mxu0
      %v824 = vadd.f32 0.0, %v823
      %v825 = vpop.f32.mrb[0].mxu0
      %826 = vmatprep.mubr.bf16.mxu0 %v682
      %827 = vmatmul.mubr.bf16.gmra.mrb[0].mxu0 %v565
      %v828 = vpop.f32.mrb[0].mxu0
      %v829 = vadd.f32 0.0, %v828
      %v830 = vpop.f32.mrb[0].mxu0
      %v831 = vpop.f32.mrb[0].mxu0
      %v832 = vadd.f32 0.0, %v831
      %v833 = vpop.f32.mrb[0].mxu0
      %834 = vmatprep.mubr.bf16.mxu0 %v685
      %835 = vmatmul.mubr.bf16.gmra.mrb[0].mxu0 %v567
      %v836 = vpop.f32.mrb[0].mxu0
      %v837 = vadd.f32 0.0, %v836
      %v838 = vpop.f32.mrb[0].mxu0
      %v839 = vpop.f32.mrb[0].mxu0
      %v840 = vadd.f32 0.0, %v839
      %v841 = vpop.f32.mrb[0].mxu0
      %842 = vmatprep.mubr.bf16.mxu0 %v688
      %843 = vmatmul.mubr.bf16.gmra.mrb[0].mxu0 %v569
      %v844 = vpop.f32.mrb[0].mxu0
      %v845 = vadd.f32 0.0, %v844
      %v846 = vpop.f32.mrb[0].mxu0
      %v847 = vpop.f32.mrb[0].mxu0
      %v848 = vadd.f32 0.0, %v847
      %v849 = vpop.f32.mrb[0].mxu0
      %850 = vdwg.mxu0
      %v851 = vadd.f32 %v393, %v725
      %v852 = vadd.f32 %v394, %v728
      %v853 = vadd.f32 %v395, %v733
      %v854 = vadd.f32 %v396, %v736
      %v855 = vadd.f32 %v397, %v741
      %v856 = vadd.f32 %v398, %v744
      %v857 = vadd.f32 %v399, %v749
      %v858 = vadd.f32 %v400, %v752
      %v859 = vadd.f32 %v401, %v757
      %v860 = vadd.f32 %v402, %v760
      %v861 = vadd.f32 %v403, %v765
      %v862 = vadd.f32 %v404, %v768
      %v863 = vadd.f32 %v405, %v773
      %v864 = vadd.f32 %v406, %v776
      %v865 = vadd.f32 %v407, %v781
      %v866 = vadd.f32 %v408, %v784
      %v867 = vadd.f32 %v409, %v789
      %v868 = vadd.f32 %v410, %v792
      %v869 = vadd.f32 %v411, %v797
      %v870 = vadd.f32 %v412, %v800
      %v871 = vadd.f32 %v413, %v805
      %v872 = vadd.f32 %v414, %v808
      %v873 = vadd.f32 %v415, %v813
      %v874 = vadd.f32 %v416, %v816
      %v875 = vadd.f32 %v417, %v821
      %v876 = vadd.f32 %v418, %v824
      %v877 = vadd.f32 %v419, %v829
      %v878 = vadd.f32 %v420, %v832
      %v879 = vadd.f32 %v421, %v837
      %v880 = vadd.f32 %v422, %v840
      %v881 = vadd.f32 %v423, %v845
      %v882 = vadd.f32 %v424, %v848
      %883 = vst.msk [vmem:[#allocation2] sm:$0xff] %vm641, %v851
      %884 = vst.msk [vmem:[#allocation2 + $0x8] sm:$0xff] %vm641, %v852
      %885 = vst.msk [vmem:[#allocation2 + $0x10] sm:$0xff] %vm641, %v853
      %886 = vst.msk [vmem:[#allocation2 + $0x18] sm:$0xff] %vm641, %v854
      %887 = vst.msk [vmem:[#allocation2 + $0x20] sm:$0xff] %vm641, %v855
      %888 = vst.msk [vmem:[#allocation2 + $0x28] sm:$0xff] %vm641, %v856
      %889 = vst.msk [vmem:[#allocation2 + $0x30] sm:$0xff] %vm641, %v857
      %890 = vst.msk [vmem:[#allocation2 + $0x38] sm:$0xff] %vm641, %v858
      %891 = vst.msk [vmem:[#allocation2 + $0x40] sm:$0xff] %vm641, %v859
      %892 = vst.msk [vmem:[#allocation2 + $0x48] sm:$0xff] %vm641, %v860
      %893 = vst.msk [vmem:[#allocation2 + $0x50] sm:$0xff] %vm641, %v861
      %894 = vst.msk [vmem:[#allocation2 + $0x58] sm:$0xff] %vm641, %v862
      %895 = vst.msk [vmem:[#allocation2 + $0x60] sm:$0xff] %vm641, %v863
      %896 = vst.msk [vmem:[#allocation2 + $0x68] sm:$0xff] %vm641, %v864
      %897 = vst.msk [vmem:[#allocation2 + $0x70] sm:$0xff] %vm641, %v865
      %898 = vst.msk [vmem:[#allocation2 + $0x78] sm:$0xff] %vm641, %v866
      %899 = vst.msk [vmem:[#allocation2 + $0x80] sm:$0xff] %vm641, %v867
      %900 = vst.msk [vmem:[#allocation2 + $0x88] sm:$0xff] %vm641, %v868
      %901 = vst.msk [vmem:[#allocation2 + $0x90] sm:$0xff] %vm641, %v869
      %902 = vst.msk [vmem:[#allocation2 + $0x98] sm:$0xff] %vm641, %v870
      %903 = vst.msk [vmem:[#allocation2 + $0xa0] sm:$0xff] %vm641, %v871
      %904 = vst.msk [vmem:[#allocation2 + $0xa8] sm:$0xff] %vm641, %v872
      %905 = vst.msk [vmem:[#allocation2 + $0xb0] sm:$0xff] %vm641, %v873
      %906 = vst.msk [vmem:[#allocation2 + $0xb8] sm:$0xff] %vm641, %v874
      %907 = vst.msk [vmem:[#allocation2 + $0xc0] sm:$0xff] %vm641, %v875
      %908 = vst.msk [vmem:[#allocation2 + $0xc8] sm:$0xff] %vm641, %v876
      %909 = vst.msk [vmem:[#allocation2 + $0xd0] sm:$0xff] %vm641, %v877
      %910 = vst.msk [vmem:[#allocation2 + $0xd8] sm:$0xff] %vm641, %v878
      %911 = vst.msk [vmem:[#allocation2 + $0xe0] sm:$0xff] %vm641, %v879
      %912 = vst.msk [vmem:[#allocation2 + $0xe8] sm:$0xff] %vm641, %v880
      %913 = vst.msk [vmem:[#allocation2 + $0xf0] sm:$0xff] %vm641, %v881
      %914 = vst.msk [vmem:[#allocation2 + $0xf8] sm:$0xff] %vm641, %v882
      // Predicated region
      $region37: #{upblock_forward.13} parent=31 // pred_check
        %p915 = pneg %p324
      $region38: #{upblock_forward.13} parent=31 // pred_check_branch
        %917 = sbr.rel (%p915) target = $region40
      $region39: #{upblock_forward.13} parent=31 // pred_region
        %v918 = vld [vmem:[#allocation2] sm:$0xff]
        %v919 = vld [vmem:[#allocation2 + $0x8] sm:$0xff]
        %v920 = vld [vmem:[#allocation2 + $0x10] sm:$0xff]
        %v921 = vld [vmem:[#allocation2 + $0x18] sm:$0xff]
        %v922 = vld [vmem:[#allocation2 + $0x20] sm:$0xff]
        %v923 = vld [vmem:[#allocation2 + $0x28] sm:$0xff]
        %v924 = vld [vmem:[#allocation2 + $0x30] sm:$0xff]
        %v925 = vld [vmem:[#allocation2 + $0x38] sm:$0xff]
        %v926 = vld [vmem:[#allocation2 + $0x40] sm:$0xff]
        %v927 = vld [vmem:[#allocation2 + $0x48] sm:$0xff]
        %v928 = vld [vmem:[#allocation2 + $0x50] sm:$0xff]
        %v929 = vld [vmem:[#allocation2 + $0x58] sm:$0xff]
        %v930 = vld [vmem:[#allocation2 + $0x60] sm:$0xff]
        %v931 = vld [vmem:[#allocation2 + $0x68] sm:$0xff]
        %v932 = vld [vmem:[#allocation2 + $0x70] sm:$0xff]
        %v933 = vld [vmem:[#allocation2 + $0x78] sm:$0xff]
        %v934 = vld [vmem:[#allocation2 + $0x80] sm:$0xff]
        %v935 = vld [vmem:[#allocation2 + $0x88] sm:$0xff]
        %v936 = vld [vmem:[#allocation2 + $0x90] sm:$0xff]
        %v937 = vld [vmem:[#allocation2 + $0x98] sm:$0xff]
        %v938 = vld [vmem:[#allocation2 + $0xa0] sm:$0xff]
        %v939 = vld [vmem:[#allocation2 + $0xa8] sm:$0xff]
        %v940 = vld [vmem:[#allocation2 + $0xb0] sm:$0xff]
        %v941 = vld [vmem:[#allocation2 + $0xb8] sm:$0xff]
        %v942 = vld [vmem:[#allocation2 + $0xc0] sm:$0xff]
        %v943 = vld [vmem:[#allocation2 + $0xc8] sm:$0xff]
        %v944 = vld [vmem:[#allocation2 + $0xd0] sm:$0xff]
        %v945 = vld [vmem:[#allocation2 + $0xd8] sm:$0xff]
        %v946 = vld [vmem:[#allocation2 + $0xe0] sm:$0xff]
        %v947 = vld [vmem:[#allocation2 + $0xe8] sm:$0xff]
        %v948 = vld [vmem:[#allocation2 + $0xf0] sm:$0xff]
        %v949 = vld [vmem:[#allocation2 + $0xf8] sm:$0xff]
        %v950 = vld [vmem:[%s309] sm:$0x1]
        %v952 = vlaneseq
        %v953 = vshrl.u32 %v952, 7
        %v954 = vsub.s32 0, %v953
        %v955 = vrot.slane %v950, %v954
        %v957 = vadd.f32 %v918, %v955
        %v958 = vadd.f32 %v919, %v955
        %v959 = vadd.f32 %v920, %v955
        %v960 = vadd.f32 %v921, %v955
        %v961 = vadd.f32 %v922, %v955
        %v962 = vadd.f32 %v923, %v955
        %v963 = vadd.f32 %v924, %v955
        %v964 = vadd.f32 %v925, %v955
        %v965 = vadd.f32 %v926, %v955
        %v966 = vadd.f32 %v927, %v955
        %v967 = vadd.f32 %v928, %v955
        %v968 = vadd.f32 %v929, %v955
        %v969 = vadd.f32 %v930, %v955
        %v970 = vadd.f32 %v931, %v955
        %v971 = vadd.f32 %v932, %v955
        %v972 = vadd.f32 %v933, %v955
        %v973 = vadd.f32 %v934, %v955
        %v974 = vadd.f32 %v935, %v955
        %v975 = vadd.f32 %v936, %v955
        %v976 = vadd.f32 %v937, %v955
        %v977 = vadd.f32 %v938, %v955
        %v978 = vadd.f32 %v939, %v955
        %v979 = vadd.f32 %v940, %v955
        %v980 = vadd.f32 %v941, %v955
        %v981 = vadd.f32 %v942, %v955
        %v982 = vadd.f32 %v943, %v955
        %v983 = vadd.f32 %v944, %v955
        %v984 = vadd.f32 %v945, %v955
        %v985 = vadd.f32 %v946, %v955
        %v986 = vadd.f32 %v947, %v955
        %v987 = vadd.f32 %v948, %v955
        %v988 = vadd.f32 %v949, %v955
        %989 = vst.msk [vmem:[%s321] sm:$0xff] %vm641, %v957
        %990 = vst.msk [vmem:[%s321 + $0x8] sm:$0xff] %vm641, %v958
        %991 = vst.msk [vmem:[%s321 + $0x10] sm:$0xff] %vm641, %v959
        %992 = vst.msk [vmem:[%s321 + $0x18] sm:$0xff] %vm641, %v960
        %993 = vst.msk [vmem:[%s321 + $0x20] sm:$0xff] %vm641, %v961
        %994 = vst.msk [vmem:[%s321 + $0x28] sm:$0xff] %vm641, %v962
        %995 = vst.msk [vmem:[%s321 + $0x30] sm:$0xff] %vm641, %v963
        %996 = vst.msk [vmem:[%s321 + $0x38] sm:$0xff] %vm641, %v964
        %997 = vst.msk [vmem:[%s321 + $0x40] sm:$0xff] %vm641, %v965
        %998 = vst.msk [vmem:[%s321 + $0x48] sm:$0xff] %vm641, %v966
        %999 = vst.msk [vmem:[%s321 + $0x50] sm:$0xff] %vm641, %v967
        %1000 = vst.msk [vmem:[%s321 + $0x58] sm:$0xff] %vm641, %v968
        %1001 = vst.msk [vmem:[%s321 + $0x60] sm:$0xff] %vm641, %v969
        %1002 = vst.msk [vmem:[%s321 + $0x68] sm:$0xff] %vm641, %v970
        %1003 = vst.msk [vmem:[%s321 + $0x70] sm:$0xff] %vm641, %v971
        %1004 = vst.msk [vmem:[%s321 + $0x78] sm:$0xff] %vm641, %v972
        %1005 = vst.msk [vmem:[%s321 + $0x80] sm:$0xff] %vm641, %v973
        %1006 = vst.msk [vmem:[%s321 + $0x88] sm:$0xff] %vm641, %v974
        %1007 = vst.msk [vmem:[%s321 + $0x90] sm:$0xff] %vm641, %v975
        %1008 = vst.msk [vmem:[%s321 + $0x98] sm:$0xff] %vm641, %v976
        %1009 = vst.msk [vmem:[%s321 + $0xa0] sm:$0xff] %vm641, %v977
        %1010 = vst.msk [vmem:[%s321 + $0xa8] sm:$0xff] %vm641, %v978
        %1011 = vst.msk [vmem:[%s321 + $0xb0] sm:$0xff] %vm641, %v979
        %1012 = vst.msk [vmem:[%s321 + $0xb8] sm:$0xff] %vm641, %v980
        %1013 = vst.msk [vmem:[%s321 + $0xc0] sm:$0xff] %vm641, %v981
        %1014 = vst.msk [vmem:[%s321 + $0xc8] sm:$0xff] %vm641, %v982
        %1015 = vst.msk [vmem:[%s321 + $0xd0] sm:$0xff] %vm641, %v983
        %1016 = vst.msk [vmem:[%s321 + $0xd8] sm:$0xff] %vm641, %v984
        %1017 = vst.msk [vmem:[%s321 + $0xe0] sm:$0xff] %vm641, %v985
        %1018 = vst.msk [vmem:[%s321 + $0xe8] sm:$0xff] %vm641, %v986
        %1019 = vst.msk [vmem:[%s321 + $0xf0] sm:$0xff] %vm641, %v987
        %1020 = vst.msk [vmem:[%s321 + $0xf8] sm:$0xff] %vm641, %v988
      $region40: #{upblock_forward.13} parent=31 // pred_fallthru
        _
      %s1021 = smul.u32 32, %s21
      %p1022 = scmp.lt.s32.totalorder %s20, 0
      %s1023 = scalar_select %p1022, %s20, 0
      %p1024 = scmp.lt.s32.totalorder %s1021, 63
      %s1025 = scalar_select %p1024, %s1021, 63
      %p1026 = scmp.lt.s32.totalorder %s22, 0
      %s1027 = scalar_select %p1026, %s22, 0
      %s1028 = sadd.s32 %s1027, %s1025
      %s1029 = smul.addr %s1023, 64
      %s1030 = sadd.s32 %s1028, %s1029
      %s1031 = smul.addr %s1030, 8
      %s1032 = scalar_lea.vmem %s3, %s1031
      // Predicated region
      $region41: #{upblock_forward.13} parent=31 // pred_check
        %p1033 = pneg %p150
      $region42: #{upblock_forward.13} parent=31 // pred_check_branch
        %1035 = sbr.rel (%p1033) target = $region44
      $region43: #{upblock_forward.13} parent=31 // pred_region
        %s1036 = smul.u32 32, %s21
      $region44: #{upblock_forward.13} parent=31 // pred_fallthru
        _
    $region32: #{upblock_forward.13} parent=5 // pred_fallthru
      _
    %p1037 = scmp.le.s32.totalorder 2, %s9
    // Predicated region
    $region45: #{upblock_forward.13} parent=5 // pred_check
      %p1038 = pneg %p1037
    $region46: #{upblock_forward.13} parent=5 // pred_check_branch
      %1040 = sbr.rel (%p1038) target = $region48
    $region47: #{upblock_forward.13} parent=5 // pred_region
      %s1041 = ssub.s32 %s9, 2
      // Predicated region
      $region49: #{upblock_forward.13} parent=47 // pred_check
        %p1042 = pneg %p156
      $region50: #{upblock_forward.13} parent=47 // pred_check_branch
        %1044 = sbr.rel (%p1042) target = $region52
      $region51: #{upblock_forward.13} parent=47 // pred_region
        %s1045 = smul.u32 32, %s25
        %p1046 = scmp.lt.s32.totalorder %s24, 0
        %s1047 = scalar_select %p1046, %s24, 0
        %p1048 = scmp.lt.s32.totalorder %s1045, 63
        %s1049 = scalar_select %p1048, %s1045, 63
        %p1050 = scmp.lt.s32.totalorder %s26, 0
        %s1051 = scalar_select %p1050, %s26, 0
        %s1052 = sadd.s32 %s1051, %s1049
        %s1053 = smul.addr %s1047, 64
        %s1054 = sadd.s32 %s1052, %s1053
        %s1055 = smul.addr %s1054, 8
        %s1056 = scalar_lea.vmem %s3, %s1055
      $region52: #{upblock_forward.13} parent=47 // pred_fallthru
        _
    $region48: #{upblock_forward.13} parent=5 // pred_fallthru
      _
  $region6: #{upblock_forward.13} parent=0 // loop_footer
    %s13 = sadd.s32 1, %s9
  $region7: #{upblock_forward.13} parent=0 // loop_footer_branch
    %8 = sbr.rel target = $region3
  $region8: #{upblock_forward.13} parent=0 // loop_exit
    _

// kernel: upblock_forward.14
$region0: #{upblock_forward.14}
  #allocation0 [shape = 'u32[]', space=smem, size = 0x4, offset = 0x4, fixed_abs, tag = 'smem constant byte address 0x4 - core index']
  #allocation1 [shape = 'u32[144,128]{1,0:T(1,128)}', space=vmem, size = 0x12000, scoped, tag = 'internal scratch']
  #allocation2 [shape = 'f32[2,16]{1,0:T(2,128)}', space=vmem, size = 0x400, scoped, tag = 'scratch operand']
  %s0 = inlined_call_operand.vmem [shape: f32[1,2,32], index: 0, kind: input, shape index: {}]
  %s1 = inlined_call_operand.vmem [shape: bf16[1,32,16], index: 1, kind: input, shape index: {}]
  %s2 = inlined_call_operand.vmem [shape: f32[1,1,16], index: 2, kind: input, shape index: {}]
  %s3 = inlined_call_operand.vmem [shape: f32[1,2,16], index: 3, kind: output, shape index: {}]
  %s4 = sld [smem:[#allocation0]]
  $region30: #{upblock_forward.14} parent=0
    _
  %s6 = ssub.s32 1, %s4
  %s7 = scalar_select 0, %s6, %s4
  // Predicated region
  $region2: #{upblock_forward.14} parent=0 // pred_check
    _
  $region3: #{upblock_forward.14} parent=0 // pred_check_branch
    %9 = sbr.rel (0) target = $region5
  $region4: #{upblock_forward.14} parent=0 // pred_region
    _
  $region5: #{upblock_forward.14} parent=0 // pred_fallthru
    _
  // Predicated region
  $region6: #{upblock_forward.14} parent=0 // pred_check
    _
  $region7: #{upblock_forward.14} parent=0 // pred_check_branch
    %11 = sbr.rel (0) target = $region9
  $region8: #{upblock_forward.14} parent=0 // pred_region
    _
  $region9: #{upblock_forward.14} parent=0 // pred_fallthru
    _
  // Predicated region
  $region10: #{upblock_forward.14} parent=0 // pred_check
    _
  $region11: #{upblock_forward.14} parent=0 // pred_check_branch
    %13 = sbr.rel (0) target = $region13
  $region12: #{upblock_forward.14} parent=0 // pred_region
    _
  $region13: #{upblock_forward.14} parent=0 // pred_fallthru
    _
  %p15 = scmp.eq.s32.totalorder 0, 0
  // Predicated region
  $region14: #{upblock_forward.14} parent=0 // pred_check
    %p16 = pneg %p15
  $region15: #{upblock_forward.14} parent=0 // pred_check_branch
    %18 = sbr.rel (%p16) target = $region17
  $region16: #{upblock_forward.14} parent=0 // pred_region
    %vm19 = vcmask 123904
    %20 = vst.msk [vmem:[#allocation2] sm:$0x3] %vm19, 0.0
  $region17: #{upblock_forward.14} parent=0 // pred_fallthru
    _
  %v21 = vld [vmem:[%s0] sm:$0x3]
  %v22 = vxor.u32 %v21, 2147483648
  %v23 = vmul.f32 %v22, 1.442695
  %v24 = vpow.pop %v23
  %v25 = vadd.f32 %v24, 1.0
  %v26 = vrcp.pop %v25
  %v27 = vmul.f32 1.0, %v26
  %v28 = vmul.f32 %v21, %v27
  %v29 = vpack.c.bf16 %v28, %v28
  %v30 = vld [vmem:[#allocation2] sm:$0x3]
  %v31 = vld [vmem:[%s1] sm:$0xf]
  %v32 = vld [vmem:[%s1 + $0x4] sm:$0xf]
  %v33 = vld [vmem:[%s1 + $0x8] sm:$0xf]
  %v34 = vld [vmem:[%s1 + $0xc] sm:$0xf]
  %v39 = vunpack.c.l.b16 %v31
  %v40 = vunpack.c.l.b16 %v32
  %v41 = vunpack.c.l.b16 %v33
  %v42 = vunpack.c.l.b16 %v34
  %v43 = vpack.c.b16 %v40, %v39
  %v44 = vpack.c.b16 %v42, %v41
  %vm47 = vcmask 261120
  %v49 = vsel %vm47, %v29, 0
  %51 = vmatprep.subr.bf16.mxu0 0
  %52 = vmatpush1.bf16.msra.mxu0 %v43
  %53 = vmatprep.subr.bf16.mxu0 0
  %54 = vmatpush1.bf16.msra.mxu0 %v44
  %55 = vmatprep.subr.bf16.mxu0 0
  %56 = vmatpush1.bf16.msra.mxu0 0
  %57 = vmatprep.subr.bf16.mxu0 0
  %58 = vmatpush1.bf16.msra.mxu0 0
  %59 = vmatprep.subr.bf16.mxu0 0
  %60 = vmatpush1.bf16.msra.mxu0 0
  %61 = vmatprep.subr.bf16.mxu0 0
  %62 = vmatpush1.bf16.msra.mxu0 0
  %63 = vmatprep.subr.bf16.mxu0 0
  %64 = vmatpush1.bf16.msra.mxu0 0
  %65 = vmatprep.subr.bf16.mxu0 0
  %66 = vmatpush1.bf16.msra.mxu0 0
  %67 = vmatprep.subr.bf16.mxu0 0
  %68 = vmatpush1.bf16.msra.mxu0 0
  %69 = vmatprep.subr.bf16.mxu0 0
  %70 = vmatpush1.bf16.msra.mxu0 0
  %71 = vmatprep.subr.bf16.mxu0 0
  %72 = vmatpush1.bf16.msra.mxu0 0
  %73 = vmatprep.subr.bf16.mxu0 0
  %74 = vmatpush1.bf16.msra.mxu0 0
  %75 = vmatprep.subr.bf16.mxu0 0
  %76 = vmatpush1.bf16.msra.mxu0 0
  %77 = vmatprep.subr.bf16.mxu0 0
  %78 = vmatpush1.bf16.msra.mxu0 0
  %79 = vmatprep.subr.bf16.mxu0 0
  %80 = vmatpush1.bf16.msra.mxu0 0
  %81 = vmatprep.subr.bf16.mxu0 0
  %82 = vmatpush1.bf16.msra.mxu0 0
  %83 = vmatprep.mubr.bf16.mxu0 0
  %84 = vmatmul.mubr.bf16.gmra.mrb[0].mxu0 %v49
  %v85 = vpop.f32.mrb[0].mxu0
  %v86 = vadd.f32 0.0, %v85
  %v87 = vpop.f32.mrb[0].mxu0
  %v88 = vpop.f32.mrb[0].mxu0
  %v89 = vpop.f32.mrb[0].mxu0
  %90 = vdwg.mxu0
  %v91 = vadd.f32 %v30, %v86
  %vm92 = vcmask 123904
  %93 = vst.msk [vmem:[#allocation2] sm:$0x3] %vm92, %v91
  // Predicated region
  $region18: #{upblock_forward.14} parent=0 // pred_check
    %p94 = pneg %p15
  $region19: #{upblock_forward.14} parent=0 // pred_check_branch
    %96 = sbr.rel (%p94) target = $region21
  $region20: #{upblock_forward.14} parent=0 // pred_region
    %v97 = vld [vmem:[#allocation2] sm:$0x3]
    %v98 = vld [vmem:[%s2] sm:$0x1]
    %v100 = vlaneseq
    %v101 = vshrl.u32 %v100, 7
    %v102 = vsub.s32 0, %v101
    %v103 = vrot.slane %v98, %v102
    %v105 = vadd.f32 %v97, %v103
    %106 = vst.msk [vmem:[%s3] sm:$0x3] %vm92, %v105
  $region21: #{upblock_forward.14} parent=0 // pred_fallthru
    _
  // Predicated region
  $region22: #{upblock_forward.14} parent=0 // pred_check
    _
  $region23: #{upblock_forward.14} parent=0 // pred_check_branch
    %108 = sbr.rel (0) target = $region25
  $region24: #{upblock_forward.14} parent=0 // pred_region
    _
  $region25: #{upblock_forward.14} parent=0 // pred_fallthru
    _
  // Predicated region
  $region26: #{upblock_forward.14} parent=0 // pred_check
    _
  $region27: #{upblock_forward.14} parent=0 // pred_check_branch
    %110 = sbr.rel (0) target = $region29
  $region28: #{upblock_forward.14} parent=0 // pred_region
    _
  $region29: #{upblock_forward.14} parent=0 // pred_fallthru
    _

// kernel: upblock_forward.15
$region0: #{upblock_forward.15}
  #allocation0 [shape = 'u32[]', space=smem, size = 0x4, offset = 0x4, fixed_abs, tag = 'smem constant byte address 0x4 - core index']
  #allocation1 [shape = 'u32[144,128]{1,0:T(1,128)}', space=vmem, size = 0x12000, scoped, tag = 'internal scratch']
  %s0 = inlined_call_operand.vmem [shape: f32[2,256,16], index: 0, kind: input, shape index: {}]
  %s1 = inlined_call_operand.vmem [shape: f32[1,16], index: 1, kind: input, shape index: {}]
  %s2 = inlined_call_operand.vmem [shape: f32[1,16], index: 2, kind: input, shape index: {}]
  %s3 = inlined_call_operand.vmem [shape: f32[16,8], index: 3, kind: input, shape index: {}]
  %s4 = inlined_call_operand.vmem [shape: f32[8,16], index: 4, kind: input, shape index: {}]
  %s5 = inlined_call_operand.vmem [shape: f32[2,1,16], index: 5, kind: input, shape index: {}]
  %s6 = inlined_call_operand.vmem [shape: f32[2,256,16], index: 6, kind: output, shape index: {}]
  %s7 = sld [smem:[#allocation0]]
  $region57: #{upblock_forward.15} parent=0
    _
  %s9 = ssub.s32 1, %s7
  %s10 = scalar_select 0, %s9, %s7
  loop: start=0, step=1, limit=4
  $region2: #{upblock_forward.15} parent=0 // loop_pre_header
    _
  $region3: #{upblock_forward.15} parent=0 // loop_header
    %s12 = sphi 0, %s16
    %p13 = scmp.ge.s32.totalorder %s12, 4
    %s22 = sphi 0, %s24
    %s25 = sphi 0, %s22
    %s26 = sphi 0, %s25
    %s42 = sphi 0, %s26
    %s46 = sphi 0, %s46
    %s48 = sphi 0, %s46
    %s49 = sphi 0, %s48
    %s63 = sphi 0, %s49
    %s67 = sphi 0, %s67
    %s69 = sphi 0, %s67
    %s70 = sphi 0, %s69
    %s84 = sphi 0, %s70
    %s88 = sphi 0, %s88
    %s90 = sphi 0, %s88
    %s91 = sphi 0, %s90
    %s105 = sphi 0, %s91
    %s109 = sphi 0, %s109
    %s111 = sphi 0, %s109
    %s112 = sphi 0, %s111
    %s126 = sphi 0, %s112
    %s132 = sphi 0, %s134
    %s135 = sphi 0, %s132
    %s136 = sphi 0, %s135
    %s152 = sphi 0, %s136
    %s158 = sphi 0, %s160
    %s161 = sphi 0, %s158
    %s162 = sphi 0, %s161
    %s178 = sphi 0, %s162
  $region4: #{upblock_forward.15} parent=0 // loop_header_branch
    %15 = sbr.rel (%p13) target = $region8
  $region5: #{upblock_forward.15} parent=0 // loop_body
    %s17 = ssub.s32 %s12, 1
    %s18 = ssub.s32 %s12, 2
    %s19 = sadd.s32 %s12, 1
    %s20 = ssub.s32 %s12, %s19
    %p21 = scmp.eq.s32.totalorder %s20, 0
    %s23 = sadd.s32 %s22, 1
    %s24 = scalar_select %p21, %s22, %s23
    %p27 = pneg %p21
    %p28 = scmp.eq.s32.totalorder %s12, 1
    %p29 = por %p27, %p28
    %p30 = scmp.ne.s32.totalorder %s22, %s25
    %p31 = scmp.eq.s32.totalorder %s12, 0
    %p32 = por %p30, %p31
    %p33 = scmp.ne.s32.totalorder %s22, %s25
    %p34 = scmp.eq.s32.totalorder %s17, 1
    %p35 = por %p33, %p34
    %p36 = scmp.ne.s32.totalorder %s25, %s26
    %p37 = scmp.eq.s32.totalorder %s17, 0
    %p38 = por %p36, %p37
    %p39 = scmp.ne.s32.totalorder %s25, %s26
    %p40 = scmp.eq.s32.totalorder %s18, 1
    %p41 = por %p39, %p40
    %p43 = scmp.ne.s32.totalorder %s26, %s42
    %p44 = scmp.eq.s32.totalorder %s18, 0
    %p45 = por %p43, %p44
    %s47 = sadd.s32 %s46, 1
    %p50 = scmp.eq.s32.totalorder %s12, 1
    %p51 = scmp.ne.s32.totalorder %s46, %s48
    %p52 = scmp.eq.s32.totalorder %s12, 0
    %p53 = por %p51, %p52
    %p54 = scmp.ne.s32.totalorder %s46, %s48
    %p55 = scmp.eq.s32.totalorder %s17, 1
    %p56 = por %p54, %p55
    %p57 = scmp.ne.s32.totalorder %s48, %s49
    %p58 = scmp.eq.s32.totalorder %s17, 0
    %p59 = por %p57, %p58
    %p60 = scmp.ne.s32.totalorder %s48, %s49
    %p61 = scmp.eq.s32.totalorder %s18, 1
    %p62 = por %p60, %p61
    %p64 = scmp.ne.s32.totalorder %s49, %s63
    %p65 = scmp.eq.s32.totalorder %s18, 0
    %p66 = por %p64, %p65
    %s68 = sadd.s32 %s67, 1
    %p71 = scmp.eq.s32.totalorder %s12, 1
    %p72 = scmp.ne.s32.totalorder %s67, %s69
    %p73 = scmp.eq.s32.totalorder %s12, 0
    %p74 = por %p72, %p73
    %p75 = scmp.ne.s32.totalorder %s67, %s69
    %p76 = scmp.eq.s32.totalorder %s17, 1
    %p77 = por %p75, %p76
    %p78 = scmp.ne.s32.totalorder %s69, %s70
    %p79 = scmp.eq.s32.totalorder %s17, 0
    %p80 = por %p78, %p79
    %p81 = scmp.ne.s32.totalorder %s69, %s70
    %p82 = scmp.eq.s32.totalorder %s18, 1
    %p83 = por %p81, %p82
    %p85 = scmp.ne.s32.totalorder %s70, %s84
    %p86 = scmp.eq.s32.totalorder %s18, 0
    %p87 = por %p85, %p86
    %s89 = sadd.s32 %s88, 1
    %p92 = scmp.eq.s32.totalorder %s12, 1
    %p93 = scmp.ne.s32.totalorder %s88, %s90
    %p94 = scmp.eq.s32.totalorder %s12, 0
    %p95 = por %p93, %p94
    %p96 = scmp.ne.s32.totalorder %s88, %s90
    %p97 = scmp.eq.s32.totalorder %s17, 1
    %p98 = por %p96, %p97
    %p99 = scmp.ne.s32.totalorder %s90, %s91
    %p100 = scmp.eq.s32.totalorder %s17, 0
    %p101 = por %p99, %p100
    %p102 = scmp.ne.s32.totalorder %s90, %s91
    %p103 = scmp.eq.s32.totalorder %s18, 1
    %p104 = por %p102, %p103
    %p106 = scmp.ne.s32.totalorder %s91, %s105
    %p107 = scmp.eq.s32.totalorder %s18, 0
    %p108 = por %p106, %p107
    %s110 = sadd.s32 %s109, 1
    %p113 = scmp.eq.s32.totalorder %s12, 1
    %p114 = scmp.ne.s32.totalorder %s109, %s111
    %p115 = scmp.eq.s32.totalorder %s12, 0
    %p116 = por %p114, %p115
    %p117 = scmp.ne.s32.totalorder %s109, %s111
    %p118 = scmp.eq.s32.totalorder %s17, 1
    %p119 = por %p117, %p118
    %p120 = scmp.ne.s32.totalorder %s111, %s112
    %p121 = scmp.eq.s32.totalorder %s17, 0
    %p122 = por %p120, %p121
    %p123 = scmp.ne.s32.totalorder %s111, %s112
    %p124 = scmp.eq.s32.totalorder %s18, 1
    %p125 = por %p123, %p124
    %p127 = scmp.ne.s32.totalorder %s112, %s126
    %p128 = scmp.eq.s32.totalorder %s18, 0
    %p129 = por %p127, %p128
    %s130 = ssub.s32 %s12, %s19
    %p131 = scmp.eq.s32.totalorder %s130, 0
    %s133 = sadd.s32 %s132, 1
    %s134 = scalar_select %p131, %s132, %s133
    %p137 = pneg %p131
    %p138 = scmp.eq.s32.totalorder %s12, 1
    %p139 = por %p137, %p138
    %p140 = scmp.ne.s32.totalorder %s132, %s135
    %p141 = scmp.eq.s32.totalorder %s12, 0
    %p142 = por %p140, %p141
    %p143 = scmp.ne.s32.totalorder %s132, %s135
    %p144 = scmp.eq.s32.totalorder %s17, 1
    %p145 = por %p143, %p144
    %p146 = scmp.ne.s32.totalorder %s135, %s136
    %p147 = scmp.eq.s32.totalorder %s17, 0
    %p148 = por %p146, %p147
    %p149 = scmp.ne.s32.totalorder %s135, %s136
    %p150 = scmp.eq.s32.totalorder %s18, 1
    %p151 = por %p149, %p150
    %p153 = scmp.ne.s32.totalorder %s136, %s152
    %p154 = scmp.eq.s32.totalorder %s18, 0
    %p155 = por %p153, %p154
    %s156 = ssub.s32 %s12, %s19
    %p157 = scmp.eq.s32.totalorder %s156, 0
    %s159 = sadd.s32 %s158, 1
    %s160 = scalar_select %p157, %s158, %s159
    %p163 = pneg %p157
    %p164 = scmp.eq.s32.totalorder %s12, 1
    %p165 = por %p163, %p164
    %p166 = scmp.ne.s32.totalorder %s158, %s161
    %p167 = scmp.eq.s32.totalorder %s12, 0
    %p168 = por %p166, %p167
    %p169 = scmp.ne.s32.totalorder %s158, %s161
    %p170 = scmp.eq.s32.totalorder %s17, 1
    %p171 = por %p169, %p170
    %p172 = scmp.ne.s32.totalorder %s161, %s162
    %p173 = scmp.eq.s32.totalorder %s17, 0
    %p174 = por %p172, %p173
    %p175 = scmp.ne.s32.totalorder %s161, %s162
    %p176 = scmp.eq.s32.totalorder %s18, 1
    %p177 = por %p175, %p176
    %p179 = scmp.ne.s32.totalorder %s162, %s178
    %p180 = scmp.eq.s32.totalorder %s18, 0
    %p181 = por %p179, %p180
    %p182 = scmp.le.s32.totalorder 1, %s12
    %p183 = scmp.lt.s32.totalorder %s12, 3
    %p184 = pnand %p182, %p183
    %p185 = pneg %p184
    // Predicated region
    $region9: #{upblock_forward.15} parent=5 // pred_check
      _
    $region10: #{upblock_forward.15} parent=5 // pred_check_branch
      %187 = sbr.rel (%p184) target = $region12
    $region11: #{upblock_forward.15} parent=5 // pred_region
      %s188 = ssub.s32 %s12, 1
      // Predicated region
      $region13: #{upblock_forward.15} parent=11 // pred_check
        %p189 = pneg %p59
      $region14: #{upblock_forward.15} parent=11 // pred_check_branch
        %191 = sbr.rel (%p189) target = $region16
      $region15: #{upblock_forward.15} parent=11 // pred_region
        _
      $region16: #{upblock_forward.15} parent=11 // pred_fallthru
        _
      // Predicated region
      $region17: #{upblock_forward.15} parent=11 // pred_check
        %p192 = pneg %p80
      $region18: #{upblock_forward.15} parent=11 // pred_check_branch
        %194 = sbr.rel (%p192) target = $region20
      $region19: #{upblock_forward.15} parent=11 // pred_region
        _
      $region20: #{upblock_forward.15} parent=11 // pred_fallthru
        _
      // Predicated region
      $region21: #{upblock_forward.15} parent=11 // pred_check
        %p195 = pneg %p101
      $region22: #{upblock_forward.15} parent=11 // pred_check_branch
        %197 = sbr.rel (%p195) target = $region24
      $region23: #{upblock_forward.15} parent=11 // pred_region
        _
      $region24: #{upblock_forward.15} parent=11 // pred_fallthru
        _
      // Predicated region
      $region25: #{upblock_forward.15} parent=11 // pred_check
        %p198 = pneg %p122
      $region26: #{upblock_forward.15} parent=11 // pred_check_branch
        %200 = sbr.rel (%p198) target = $region28
      $region27: #{upblock_forward.15} parent=11 // pred_region
        _
      $region28: #{upblock_forward.15} parent=11 // pred_fallthru
        _
    $region12: #{upblock_forward.15} parent=5 // pred_fallthru
      _
    %p201 = scmp.lt.s32.totalorder %s12, 2
    // Predicated region
    $region29: #{upblock_forward.15} parent=5 // pred_check
      %p202 = pneg %p201
    $region30: #{upblock_forward.15} parent=5 // pred_check_branch
      %204 = sbr.rel (%p202) target = $region32
    $region31: #{upblock_forward.15} parent=5 // pred_region
      // Predicated region
      $region33: #{upblock_forward.15} parent=31 // pred_check
        %p205 = pneg %p32
      $region34: #{upblock_forward.15} parent=31 // pred_check_branch
        %207 = sbr.rel (%p205) target = $region36
      $region35: #{upblock_forward.15} parent=31 // pred_region
        %p208 = scmp.lt.s32.totalorder %s12, 1
        %s209 = scalar_select %p208, %s12, 1
        %s210 = smul.addr %s209, 32
        %s211 = smul.addr %s210, 8
        %s212 = scalar_lea.vmem %s0, %s211
      $region36: #{upblock_forward.15} parent=31 // pred_fallthru
        _
      // Predicated region
      $region37: #{upblock_forward.15} parent=31 // pred_check
        %p213 = pneg %p142
      $region38: #{upblock_forward.15} parent=31 // pred_check_branch
        %215 = sbr.rel (%p213) target = $region40
      $region39: #{upblock_forward.15} parent=31 // pred_region
        %p216 = scmp.lt.s32.totalorder %s12, 1
        %s217 = scalar_select %p216, %s12, 1
        %s218 = scalar_lea.vmem %s5, %s217
      $region40: #{upblock_forward.15} parent=31 // pred_fallthru
        _
    $region32: #{upblock_forward.15} parent=5 // pred_fallthru
      _
    %p219 = scmp.le.s32.totalorder 1, %s12
    %p220 = scmp.lt.s32.totalorder %s12, 3
    %p221 = pnand %p219, %p220
    %p222 = pneg %p221
    // Predicated region
    $region41: #{upblock_forward.15} parent=5 // pred_check
      _
    $region42: #{upblock_forward.15} parent=5 // pred_check_branch
      %224 = sbr.rel (%p221) target = $region44
    $region43: #{upblock_forward.15} parent=5 // pred_region
      %s225 = ssub.s32 %s12, 1
      %p226 = scmp.lt.s32.totalorder %s17, 1
      %s227 = scalar_select %p226, %s17, 1
      %s228 = smul.addr %s227, 32
      %s229 = smul.addr %s228, 8
      %s230 = scalar_lea.vmem %s0, %s229
      %p231 = pneg %p38
      %p232 = pneg %p35
      %p233 = pneg %p59
      %p234 = pneg %p56
      %p235 = pneg %p80
      %p236 = pneg %p77
      %p237 = pneg %p101
      %p238 = pneg %p98
      %p239 = pneg %p122
      %p240 = pneg %p119
      %p241 = scmp.lt.s32.totalorder %s17, 1
      %s242 = scalar_select %p241, %s17, 1
      %s243 = scalar_lea.vmem %s5, %s242
      %p244 = pneg %p148
      %p245 = pneg %p145
      %p246 = pneg %p174
      %p247 = pneg %p171
      %p248 = scmp.lt.s32.totalorder %s17, 1
      %s249 = scalar_select %p248, %s17, 1
      %s250 = smul.addr %s249, 32
      %s251 = smul.addr %s250, 8
      %s252 = scalar_lea.vmem %s6, %s251
      %p253 = scmp.lt.s32.totalorder %s17, 1
      %s254 = scalar_select %p253, %s17, 1
      %s255 = smul.addr %s254, 32
      %s256 = smul.addr %s255, 8
      %s257 = scalar_lea.vmem %s0, %s256
      %p258 = scmp.lt.s32.totalorder %s17, 1
      %s259 = scalar_select %p258, %s17, 1
      %s260 = scalar_lea.vmem %s5, %s259
      %p261 = scmp.lt.s32.totalorder %s17, 1
      %s262 = scalar_select %p261, %s17, 1
      %s263 = smul.addr %s262, 32
      %s264 = smul.addr %s263, 8
      %s265 = scalar_lea.vmem %s6, %s264
      %v266 = vld [vmem:[%s257] sm:$0xff]
      %v267 = vld [vmem:[%s257 + $0x8] sm:$0xff]
      %v268 = vld [vmem:[%s257 + $0x10] sm:$0xff]
      %v269 = vld [vmem:[%s257 + $0x18] sm:$0xff]
      %v270 = vld [vmem:[%s257 + $0x20] sm:$0xff]
      %v271 = vld [vmem:[%s257 + $0x28] sm:$0xff]
      %v272 = vld [vmem:[%s257 + $0x30] sm:$0xff]
      %v273 = vld [vmem:[%s257 + $0x38] sm:$0xff]
      %v274 = vld [vmem:[%s257 + $0x40] sm:$0xff]
      %v275 = vld [vmem:[%s257 + $0x48] sm:$0xff]
      %v276 = vld [vmem:[%s257 + $0x50] sm:$0xff]
      %v277 = vld [vmem:[%s257 + $0x58] sm:$0xff]
      %v278 = vld [vmem:[%s257 + $0x60] sm:$0xff]
      %v279 = vld [vmem:[%s257 + $0x68] sm:$0xff]
      %v280 = vld [vmem:[%s257 + $0x70] sm:$0xff]
      %v281 = vld [vmem:[%s257 + $0x78] sm:$0xff]
      %v282 = vld [vmem:[%s257 + $0x80] sm:$0xff]
      %v283 = vld [vmem:[%s257 + $0x88] sm:$0xff]
      %v284 = vld [vmem:[%s257 + $0x90] sm:$0xff]
      %v285 = vld [vmem:[%s257 + $0x98] sm:$0xff]
      %v286 = vld [vmem:[%s257 + $0xa0] sm:$0xff]
      %v287 = vld [vmem:[%s257 + $0xa8] sm:$0xff]
      %v288 = vld [vmem:[%s257 + $0xb0] sm:$0xff]
      %v289 = vld [vmem:[%s257 + $0xb8] sm:$0xff]
      %v290 = vld [vmem:[%s257 + $0xc0] sm:$0xff]
      %v291 = vld [vmem:[%s257 + $0xc8] sm:$0xff]
      %v292 = vld [vmem:[%s257 + $0xd0] sm:$0xff]
      %v293 = vld [vmem:[%s257 + $0xd8] sm:$0xff]
      %v294 = vld [vmem:[%s257 + $0xe0] sm:$0xff]
      %v295 = vld [vmem:[%s257 + $0xe8] sm:$0xff]
      %v296 = vld [vmem:[%s257 + $0xf0] sm:$0xff]
      %v297 = vld [vmem:[%s257 + $0xf8] sm:$0xff]
      %v298 = vld [vmem:[%s260] sm:$0x1]
      %v300 = vlaneseq
      %v301 = vshrl.u32 %v300, 7
      %v302 = vsub.s32 0, %v301
      %v303 = vrot.slane %v298, %v302
      %v305 = vadd.f32 %v266, %v303
      %v306 = vadd.f32 %v267, %v303
      %v307 = vadd.f32 %v268, %v303
      %v308 = vadd.f32 %v269, %v303
      %v309 = vadd.f32 %v270, %v303
      %v310 = vadd.f32 %v271, %v303
      %v311 = vadd.f32 %v272, %v303
      %v312 = vadd.f32 %v273, %v303
      %v313 = vadd.f32 %v274, %v303
      %v314 = vadd.f32 %v275, %v303
      %v315 = vadd.f32 %v276, %v303
      %v316 = vadd.f32 %v277, %v303
      %v317 = vadd.f32 %v278, %v303
      %v318 = vadd.f32 %v279, %v303
      %v319 = vadd.f32 %v280, %v303
      %v320 = vadd.f32 %v281, %v303
      %v321 = vadd.f32 %v282, %v303
      %v322 = vadd.f32 %v283, %v303
      %v323 = vadd.f32 %v284, %v303
      %v324 = vadd.f32 %v285, %v303
      %v325 = vadd.f32 %v286, %v303
      %v326 = vadd.f32 %v287, %v303
      %v327 = vadd.f32 %v288, %v303
      %v328 = vadd.f32 %v289, %v303
      %v329 = vadd.f32 %v290, %v303
      %v330 = vadd.f32 %v291, %v303
      %v331 = vadd.f32 %v292, %v303
      %v332 = vadd.f32 %v293, %v303
      %v333 = vadd.f32 %v294, %v303
      %v334 = vadd.f32 %v295, %v303
      %v335 = vadd.f32 %v296, %v303
      %v336 = vadd.f32 %v297, %v303
      %vm337 = vcmask 130048
      %v338 = vsel %vm337, %v305, 0.0
      %v339 = vsel %vm337, %v306, 0.0
      %v340 = vadd.f32 %v338, %v339
      %v341 = vsel %vm337, %v307, 0.0
      %v342 = vadd.f32 %v340, %v341
      %v343 = vsel %vm337, %v308, 0.0
      %v344 = vadd.f32 %v342, %v343
      %v345 = vsel %vm337, %v309, 0.0
      %v346 = vadd.f32 %v344, %v345
      %v347 = vsel %vm337, %v310, 0.0
      %v348 = vadd.f32 %v346, %v347
      %v349 = vsel %vm337, %v311, 0.0
      %v350 = vadd.f32 %v348, %v349
      %v351 = vsel %vm337, %v312, 0.0
      %v352 = vadd.f32 %v350, %v351
      %v353 = vsel %vm337, %v313, 0.0
      %v354 = vadd.f32 %v352, %v353
      %v355 = vsel %vm337, %v314, 0.0
      %v356 = vadd.f32 %v354, %v355
      %v357 = vsel %vm337, %v315, 0.0
      %v358 = vadd.f32 %v356, %v357
      %v359 = vsel %vm337, %v316, 0.0
      %v360 = vadd.f32 %v358, %v359
      %v361 = vsel %vm337, %v317, 0.0
      %v362 = vadd.f32 %v360, %v361
      %v363 = vsel %vm337, %v318, 0.0
      %v364 = vadd.f32 %v362, %v363
      %v365 = vsel %vm337, %v319, 0.0
      %v366 = vadd.f32 %v364, %v365
      %v367 = vsel %vm337, %v320, 0.0
      %v368 = vadd.f32 %v366, %v367
      %v369 = vsel %vm337, %v321, 0.0
      %v370 = vadd.f32 %v368, %v369
      %v371 = vsel %vm337, %v322, 0.0
      %v372 = vadd.f32 %v370, %v371
      %v373 = vsel %vm337, %v323, 0.0
      %v374 = vadd.f32 %v372, %v373
      %v375 = vsel %vm337, %v324, 0.0
      %v376 = vadd.f32 %v374, %v375
      %v377 = vsel %vm337, %v325, 0.0
      %v378 = vadd.f32 %v376, %v377
      %v379 = vsel %vm337, %v326, 0.0
      %v380 = vadd.f32 %v378, %v379
      %v381 = vsel %vm337, %v327, 0.0
      %v382 = vadd.f32 %v380, %v381
      %v383 = vsel %vm337, %v328, 0.0
      %v384 = vadd.f32 %v382, %v383
      %v385 = vsel %vm337, %v329, 0.0
      %v386 = vadd.f32 %v384, %v385
      %v387 = vsel %vm337, %v330, 0.0
      %v388 = vadd.f32 %v386, %v387
      %v389 = vsel %vm337, %v331, 0.0
      %v390 = vadd.f32 %v388, %v389
      %v391 = vsel %vm337, %v332, 0.0
      %v392 = vadd.f32 %v390, %v391
      %v393 = vsel %vm337, %v333, 0.0
      %v394 = vadd.f32 %v392, %v393
      %v395 = vsel %vm337, %v334, 0.0
      %v396 = vadd.f32 %v394, %v395
      %v397 = vsel %vm337, %v335, 0.0
      %v398 = vadd.f32 %v396, %v397
      %v399 = vsel %vm337, %v336, 0.0
      %v400 = vadd.f32 %v398, %v399
      %v401 = vrot.slane %v400, 4
      %v402 = vadd.f32 %v400, %v401
      %v403 = vrot.slane %v402, 2
      %v404 = vadd.f32 %v402, %v403
      %v405 = vrot.slane %v404, 1
      %v406 = vadd.f32 %v404, %v405
      %v407 = vld [vmem:[%s3] sm:$0xff]
      %v408 = vld [vmem:[%s3 + $0x8] sm:$0xff]
      %v410 = vsel %vm337, %v406, 0
      %412 = vmatprep.subr.mxu0 0.0
      %413 = vmatpush1.msra.mxu0 %v407
      %414 = vmatprep.subr.mxu0 0.0
      %415 = vmatpush1.msra.mxu0 %v408
      %416 = vmatprep.subr.mxu0 0.0
      %417 = vmatpush1.msra.mxu0 0.0
      %418 = vmatprep.subr.mxu0 0.0
      %419 = vmatpush1.msra.mxu0 0.0
      %420 = vmatprep.subr.mxu0 0.0
      %421 = vmatpush1.msra.mxu0 0.0
      %422 = vmatprep.subr.mxu0 0.0
      %423 = vmatpush1.msra.mxu0 0.0
      %424 = vmatprep.subr.mxu0 0.0
      %425 = vmatpush1.msra.mxu0 0.0
      %426 = vmatprep.subr.mxu0 0.0
      %427 = vmatpush1.msra.mxu0 0.0
      %428 = vmatprep.subr.mxu0 0.0
      %429 = vmatpush1.msra.mxu0 0.0
      %430 = vmatprep.subr.mxu0 0.0
      %431 = vmatpush1.msra.mxu0 0.0
      %432 = vmatprep.subr.mxu0 0.0
      %433 = vmatpush1.msra.mxu0 0.0
      %434 = vmatprep.subr.mxu0 0.0
      %435 = vmatpush1.msra.mxu0 0.0
      %436 = vmatprep.subr.mxu0 0.0
      %437 = vmatpush1.msra.mxu0 0.0
      %438 = vmatprep.subr.mxu0 0.0
      %439 = vmatpush1.msra.mxu0 0.0
      %440 = vmatprep.subr.mxu0 0.0
      %441 = vmatpush1.msra.mxu0 0.0
      %442 = vmatprep.subr.mxu0 0.0
      %443 = vmatpush1.msra.mxu0 0.0
      %444 = vmatprep.subr.mxu0 0.0
      %445 = vmatpush1.msra.mxu0 0.0
      %446 = vmatprep.subr.mxu0 0.0
      %447 = vmatpush1.msra.mxu0 0.0
      %448 = vmatprep.subr.mxu0 0.0
      %449 = vmatpush1.msra.mxu0 0.0
      %450 = vmatprep.subr.mxu0 0.0
      %451 = vmatpush1.msra.mxu0 0.0
      %452 = vmatprep.subr.mxu0 0.0
      %453 = vmatpush1.msra.mxu0 0.0
      %454 = vmatprep.subr.mxu0 0.0
      %455 = vmatpush1.msra.mxu0 0.0
      %456 = vmatprep.subr.mxu0 0.0
      %457 = vmatpush1.msra.mxu0 0.0
      %458 = vmatprep.subr.mxu0 0.0
      %459 = vmatpush1.msra.mxu0 0.0
      %460 = vmatprep.subr.mxu0 0.0
      %461 = vmatpush1.msra.mxu0 0.0
      %462 = vmatprep.subr.mxu0 0.0
      %463 = vmatpush1.msra.mxu0 0.0
      %464 = vmatprep.subr.mxu0 0.0
      %465 = vmatpush1.msra.mxu0 0.0
      %466 = vmatprep.subr.mxu0 0.0
      %467 = vmatpush1.msra.mxu0 0.0
      %468 = vmatprep.subr.mxu0 0.0
      %469 = vmatpush1.msra.mxu0 0.0
      %470 = vmatprep.subr.mxu0 0.0
      %471 = vmatpush1.msra.mxu0 0.0
      %472 = vmatprep.subr.mxu0 0.0
      %473 = vmatpush1.msra.mxu0 0.0
      %474 = vmatprep.subr.mxu0 0.0
      %475 = vmatpush1.msra.mxu0 0.0
      %476 = vmatprep.mubr.f32.mxu0 0.0
      %477 = vmatmul.mubr.f32.gmra.mrb[0].mxu0 %v410
      %v478 = vpop.f32.mrb[0].mxu0
      %v479 = vadd.f32 0.0, %v478
      %v480 = vpop.f32.mrb[0].mxu0
      %481 = vdwg.mxu0
      %v482 = vmul.f32 %v479, 0.001953125
      %v483 = vld [vmem:[%s4] sm:$0xff]
      %vm484 = vcmask 64512
      %v486 = vsel %vm484, %v482, 0
      %488 = vmatprep.subr.mxu0 0.0
      %489 = vmatpush1.msra.mxu0 %v483
      %490 = vmatprep.subr.mxu0 0.0
      %491 = vmatpush1.msra.mxu0 0.0
      %492 = vmatprep.subr.mxu0 0.0
      %493 = vmatpush1.msra.mxu0 0.0
      %494 = vmatprep.subr.mxu0 0.0
      %495 = vmatpush1.msra.mxu0 0.0
      %496 = vmatprep.subr.mxu0 0.0
      %497 = vmatpush1.msra.mxu0 0.0
      %498 = vmatprep.subr.mxu0 0.0
      %499 = vmatpush1.msra.mxu0 0.0
      %500 = vmatprep.subr.mxu0 0.0
      %501 = vmatpush1.msra.mxu0 0.0
      %502 = vmatprep.subr.mxu0 0.0
      %503 = vmatpush1.msra.mxu0 0.0
      %504 = vmatprep.subr.mxu0 0.0
      %505 = vmatpush1.msra.mxu0 0.0
      %506 = vmatprep.subr.mxu0 0.0
      %507 = vmatpush1.msra.mxu0 0.0
      %508 = vmatprep.subr.mxu0 0.0
      %509 = vmatpush1.msra.mxu0 0.0
      %510 = vmatprep.subr.mxu0 0.0
      %511 = vmatpush1.msra.mxu0 0.0
      %512 = vmatprep.subr.mxu0 0.0
      %513 = vmatpush1.msra.mxu0 0.0
      %514 = vmatprep.subr.mxu0 0.0
      %515 = vmatpush1.msra.mxu0 0.0
      %516 = vmatprep.subr.mxu0 0.0
      %517 = vmatpush1.msra.mxu0 0.0
      %518 = vmatprep.subr.mxu0 0.0
      %519 = vmatpush1.msra.mxu0 0.0
      %520 = vmatprep.subr.mxu0 0.0
      %521 = vmatpush1.msra.mxu0 0.0
      %522 = vmatprep.subr.mxu0 0.0
      %523 = vmatpush1.msra.mxu0 0.0
      %524 = vmatprep.subr.mxu0 0.0
      %525 = vmatpush1.msra.mxu0 0.0
      %526 = vmatprep.subr.mxu0 0.0
      %527 = vmatpush1.msra.mxu0 0.0
      %528 = vmatprep.subr.mxu0 0.0
      %529 = vmatpush1.msra.mxu0 0.0
      %530 = vmatprep.subr.mxu0 0.0
      %531 = vmatpush1.msra.mxu0 0.0
      %532 = vmatprep.subr.mxu0 0.0
      %533 = vmatpush1.msra.mxu0 0.0
      %534 = vmatprep.subr.mxu0 0.0
      %535 = vmatpush1.msra.mxu0 0.0
      %536 = vmatprep.subr.mxu0 0.0
      %537 = vmatpush1.msra.mxu0 0.0
      %538 = vmatprep.subr.mxu0 0.0
      %539 = vmatpush1.msra.mxu0 0.0
      %540 = vmatprep.subr.mxu0 0.0
      %541 = vmatpush1.msra.mxu0 0.0
      %542 = vmatprep.subr.mxu0 0.0
      %543 = vmatpush1.msra.mxu0 0.0
      %544 = vmatprep.subr.mxu0 0.0
      %545 = vmatpush1.msra.mxu0 0.0
      %546 = vmatprep.subr.mxu0 0.0
      %547 = vmatpush1.msra.mxu0 0.0
      %548 = vmatprep.subr.mxu0 0.0
      %549 = vmatpush1.msra.mxu0 0.0
      %550 = vmatprep.subr.mxu0 0.0
      %551 = vmatpush1.msra.mxu0 0.0
      %552 = vmatprep.mubr.f32.mxu0 0.0
      %553 = vmatmul.mubr.f32.gmra.mrb[0].mxu0 %v486
      %v554 = vpop.f32.mrb[0].mxu0
      %v555 = vadd.f32 0.0, %v554
      %v556 = vpop.f32.mrb[0].mxu0
      %557 = vdwg.mxu0
      %v558 = vlaneseq
      %v559 = vshrl.u32 %v558, 7
      %v560 = vsub.s32 0, %v559
      %v561 = vrot.slane %v555, %v560
      %v562 = vsub.f32 %v305, %v561
      %v563 = vsub.f32 %v306, %v561
      %v564 = vsub.f32 %v307, %v561
      %v565 = vsub.f32 %v308, %v561
      %v566 = vsub.f32 %v309, %v561
      %v567 = vsub.f32 %v310, %v561
      %v568 = vsub.f32 %v311, %v561
      %v569 = vsub.f32 %v312, %v561
      %v570 = vsub.f32 %v313, %v561
      %v571 = vsub.f32 %v314, %v561
      %v572 = vsub.f32 %v315, %v561
      %v573 = vsub.f32 %v316, %v561
      %v574 = vsub.f32 %v317, %v561
      %v575 = vsub.f32 %v318, %v561
      %v576 = vsub.f32 %v319, %v561
      %v577 = vsub.f32 %v320, %v561
      %v578 = vsub.f32 %v321, %v561
      %v579 = vsub.f32 %v322, %v561
      %v580 = vsub.f32 %v323, %v561
      %v581 = vsub.f32 %v324, %v561
      %v582 = vsub.f32 %v325, %v561
      %v583 = vsub.f32 %v326, %v561
      %v584 = vsub.f32 %v327, %v561
      %v585 = vsub.f32 %v328, %v561
      %v586 = vsub.f32 %v329, %v561
      %v587 = vsub.f32 %v330, %v561
      %v588 = vsub.f32 %v331, %v561
      %v589 = vsub.f32 %v332, %v561
      %v590 = vsub.f32 %v333, %v561
      %v591 = vsub.f32 %v334, %v561
      %v592 = vsub.f32 %v335, %v561
      %v593 = vsub.f32 %v336, %v561
      %v594 = vmul.f32 %v562, %v562
      %v595 = vmul.f32 %v563, %v563
      %v596 = vmul.f32 %v564, %v564
      %v597 = vmul.f32 %v565, %v565
      %v598 = vmul.f32 %v566, %v566
      %v599 = vmul.f32 %v567, %v567
      %v600 = vmul.f32 %v568, %v568
      %v601 = vmul.f32 %v569, %v569
      %v602 = vmul.f32 %v570, %v570
      %v603 = vmul.f32 %v571, %v571
      %v604 = vmul.f32 %v572, %v572
      %v605 = vmul.f32 %v573, %v573
      %v606 = vmul.f32 %v574, %v574
      %v607 = vmul.f32 %v575, %v575
      %v608 = vmul.f32 %v576, %v576
      %v609 = vmul.f32 %v577, %v577
      %v610 = vmul.f32 %v578, %v578
      %v611 = vmul.f32 %v579, %v579
      %v612 = vmul.f32 %v580, %v580
      %v613 = vmul.f32 %v581, %v581
      %v614 = vmul.f32 %v582, %v582
      %v615 = vmul.f32 %v583, %v583
      %v616 = vmul.f32 %v584, %v584
      %v617 = vmul.f32 %v585, %v585
      %v618 = vmul.f32 %v586, %v586
      %v619 = vmul.f32 %v587, %v587
      %v620 = vmul.f32 %v588, %v588
      %v621 = vmul.f32 %v589, %v589
      %v622 = vmul.f32 %v590, %v590
      %v623 = vmul.f32 %v591, %v591
      %v624 = vmul.f32 %v592, %v592
      %v625 = vmul.f32 %v593, %v593
      %v626 = vsel %vm337, %v594, 0.0
      %v627 = vsel %vm337, %v595, 0.0
      %v628 = vadd.f32 %v626, %v627
      %v629 = vsel %vm337, %v596, 0.0
      %v630 = vadd.f32 %v628, %v629
      %v631 = vsel %vm337, %v597, 0.0
      %v632 = vadd.f32 %v630, %v631
      %v633 = vsel %vm337, %v598, 0.0
      %v634 = vadd.f32 %v632, %v633
      %v635 = vsel %vm337, %v599, 0.0
      %v636 = vadd.f32 %v634, %v635
      %v637 = vsel %vm337, %v600, 0.0
      %v638 = vadd.f32 %v636, %v637
      %v639 = vsel %vm337, %v601, 0.0
      %v640 = vadd.f32 %v638, %v639
      %v641 = vsel %vm337, %v602, 0.0
      %v642 = vadd.f32 %v640, %v641
      %v643 = vsel %vm337, %v603, 0.0
      %v644 = vadd.f32 %v642, %v643
      %v645 = vsel %vm337, %v604, 0.0
      %v646 = vadd.f32 %v644, %v645
      %v647 = vsel %vm337, %v605, 0.0
      %v648 = vadd.f32 %v646, %v647
      %v649 = vsel %vm337, %v606, 0.0
      %v650 = vadd.f32 %v648, %v649
      %v651 = vsel %vm337, %v607, 0.0
      %v652 = vadd.f32 %v650, %v651
      %v653 = vsel %vm337, %v608, 0.0
      %v654 = vadd.f32 %v652, %v653
      %v655 = vsel %vm337, %v609, 0.0
      %v656 = vadd.f32 %v654, %v655
      %v657 = vsel %vm337, %v610, 0.0
      %v658 = vadd.f32 %v656, %v657
      %v659 = vsel %vm337, %v611, 0.0
      %v660 = vadd.f32 %v658, %v659
      %v661 = vsel %vm337, %v612, 0.0
      %v662 = vadd.f32 %v660, %v661
      %v663 = vsel %vm337, %v613, 0.0
      %v664 = vadd.f32 %v662, %v663
      %v665 = vsel %vm337, %v614, 0.0
      %v666 = vadd.f32 %v664, %v665
      %v667 = vsel %vm337, %v615, 0.0
      %v668 = vadd.f32 %v666, %v667
      %v669 = vsel %vm337, %v616, 0.0
      %v670 = vadd.f32 %v668, %v669
      %v671 = vsel %vm337, %v617, 0.0
      %v672 = vadd.f32 %v670, %v671
      %v673 = vsel %vm337, %v618, 0.0
      %v674 = vadd.f32 %v672, %v673
      %v675 = vsel %vm337, %v619, 0.0
      %v676 = vadd.f32 %v674, %v675
      %v677 = vsel %vm337, %v620, 0.0
      %v678 = vadd.f32 %v676, %v677
      %v679 = vsel %vm337, %v621, 0.0
      %v680 = vadd.f32 %v678, %v679
      %v681 = vsel %vm337, %v622, 0.0
      %v682 = vadd.f32 %v680, %v681
      %v683 = vsel %vm337, %v623, 0.0
      %v684 = vadd.f32 %v682, %v683
      %v685 = vsel %vm337, %v624, 0.0
      %v686 = vadd.f32 %v684, %v685
      %v687 = vsel %vm337, %v625, 0.0
      %v688 = vadd.f32 %v686, %v687
      %v689 = vrot.slane %v688, 4
      %v690 = vadd.f32 %v688, %v689
      %v691 = vrot.slane %v690, 2
      %v692 = vadd.f32 %v690, %v691
      %v693 = vrot.slane %v692, 1
      %v694 = vadd.f32 %v692, %v693
      %v696 = vsel %vm337, %v694, 0
      %698 = vmatprep.subr.mxu0 0.0
      %699 = vmatpush1.msra.mxu0 %v407
      %700 = vmatprep.subr.mxu0 0.0
      %701 = vmatpush1.msra.mxu0 %v408
      %702 = vmatprep.subr.mxu0 0.0
      %703 = vmatpush1.msra.mxu0 0.0
      %704 = vmatprep.subr.mxu0 0.0
      %705 = vmatpush1.msra.mxu0 0.0
      %706 = vmatprep.subr.mxu0 0.0
      %707 = vmatpush1.msra.mxu0 0.0
      %708 = vmatprep.subr.mxu0 0.0
      %709 = vmatpush1.msra.mxu0 0.0
      %710 = vmatprep.subr.mxu0 0.0
      %711 = vmatpush1.msra.mxu0 0.0
      %712 = vmatprep.subr.mxu0 0.0
      %713 = vmatpush1.msra.mxu0 0.0
      %714 = vmatprep.subr.mxu0 0.0
      %715 = vmatpush1.msra.mxu0 0.0
      %716 = vmatprep.subr.mxu0 0.0
      %717 = vmatpush1.msra.mxu0 0.0
      %718 = vmatprep.subr.mxu0 0.0
      %719 = vmatpush1.msra.mxu0 0.0
      %720 = vmatprep.subr.mxu0 0.0
      %721 = vmatpush1.msra.mxu0 0.0
      %722 = vmatprep.subr.mxu0 0.0
      %723 = vmatpush1.msra.mxu0 0.0
      %724 = vmatprep.subr.mxu0 0.0
      %725 = vmatpush1.msra.mxu0 0.0
      %726 = vmatprep.subr.mxu0 0.0
      %727 = vmatpush1.msra.mxu0 0.0
      %728 = vmatprep.subr.mxu0 0.0
      %729 = vmatpush1.msra.mxu0 0.0
      %730 = vmatprep.subr.mxu0 0.0
      %731 = vmatpush1.msra.mxu0 0.0
      %732 = vmatprep.subr.mxu0 0.0
      %733 = vmatpush1.msra.mxu0 0.0
      %734 = vmatprep.subr.mxu0 0.0
      %735 = vmatpush1.msra.mxu0 0.0
      %736 = vmatprep.subr.mxu0 0.0
      %737 = vmatpush1.msra.mxu0 0.0
      %738 = vmatprep.subr.mxu0 0.0
      %739 = vmatpush1.msra.mxu0 0.0
      %740 = vmatprep.subr.mxu0 0.0
      %741 = vmatpush1.msra.mxu0 0.0
      %742 = vmatprep.subr.mxu0 0.0
      %743 = vmatpush1.msra.mxu0 0.0
      %744 = vmatprep.subr.mxu0 0.0
      %745 = vmatpush1.msra.mxu0 0.0
      %746 = vmatprep.subr.mxu0 0.0
      %747 = vmatpush1.msra.mxu0 0.0
      %748 = vmatprep.subr.mxu0 0.0
      %749 = vmatpush1.msra.mxu0 0.0
      %750 = vmatprep.subr.mxu0 0.0
      %751 = vmatpush1.msra.mxu0 0.0
      %752 = vmatprep.subr.mxu0 0.0
      %753 = vmatpush1.msra.mxu0 0.0
      %754 = vmatprep.subr.mxu0 0.0
      %755 = vmatpush1.msra.mxu0 0.0
      %756 = vmatprep.subr.mxu0 0.0
      %757 = vmatpush1.msra.mxu0 0.0
      %758 = vmatprep.subr.mxu0 0.0
      %759 = vmatpush1.msra.mxu0 0.0
      %760 = vmatprep.subr.mxu0 0.0
      %761 = vmatpush1.msra.mxu0 0.0
      %762 = vmatprep.mubr.f32.mxu0 0.0
      %763 = vmatmul.mubr.f32.gmra.mrb[0].mxu0 %v696
      %v764 = vpop.f32.mrb[0].mxu0
      %v765 = vadd.f32 0.0, %v764
      %v766 = vpop.f32.mrb[0].mxu0
      %767 = vdwg.mxu0
      %v768 = vmul.f32 %v765, 0.001953125
      %v769 = vadd.f32 %v768, 1e-05
      %v770 = vrsqrt.pop %v769
      %v772 = vsel %vm484, %v770, 0
      %774 = vmatprep.subr.mxu0 0.0
      %775 = vmatpush1.msra.mxu0 %v483
      %776 = vmatprep.subr.mxu0 0.0
      %777 = vmatpush1.msra.mxu0 0.0
      %778 = vmatprep.subr.mxu0 0.0
      %779 = vmatpush1.msra.mxu0 0.0
      %780 = vmatprep.subr.mxu0 0.0
      %781 = vmatpush1.msra.mxu0 0.0
      %782 = vmatprep.subr.mxu0 0.0
      %783 = vmatpush1.msra.mxu0 0.0
      %784 = vmatprep.subr.mxu0 0.0
      %785 = vmatpush1.msra.mxu0 0.0
      %786 = vmatprep.subr.mxu0 0.0
      %787 = vmatpush1.msra.mxu0 0.0
      %788 = vmatprep.subr.mxu0 0.0
      %789 = vmatpush1.msra.mxu0 0.0
      %790 = vmatprep.subr.mxu0 0.0
      %791 = vmatpush1.msra.mxu0 0.0
      %792 = vmatprep.subr.mxu0 0.0
      %793 = vmatpush1.msra.mxu0 0.0
      %794 = vmatprep.subr.mxu0 0.0
      %795 = vmatpush1.msra.mxu0 0.0
      %796 = vmatprep.subr.mxu0 0.0
      %797 = vmatpush1.msra.mxu0 0.0
      %798 = vmatprep.subr.mxu0 0.0
      %799 = vmatpush1.msra.mxu0 0.0
      %800 = vmatprep.subr.mxu0 0.0
      %801 = vmatpush1.msra.mxu0 0.0
      %802 = vmatprep.subr.mxu0 0.0
      %803 = vmatpush1.msra.mxu0 0.0
      %804 = vmatprep.subr.mxu0 0.0
      %805 = vmatpush1.msra.mxu0 0.0
      %806 = vmatprep.subr.mxu0 0.0
      %807 = vmatpush1.msra.mxu0 0.0
      %808 = vmatprep.subr.mxu0 0.0
      %809 = vmatpush1.msra.mxu0 0.0
      %810 = vmatprep.subr.mxu0 0.0
      %811 = vmatpush1.msra.mxu0 0.0
      %812 = vmatprep.subr.mxu0 0.0
      %813 = vmatpush1.msra.mxu0 0.0
      %814 = vmatprep.subr.mxu0 0.0
      %815 = vmatpush1.msra.mxu0 0.0
      %816 = vmatprep.subr.mxu0 0.0
      %817 = vmatpush1.msra.mxu0 0.0
      %818 = vmatprep.subr.mxu0 0.0
      %819 = vmatpush1.msra.mxu0 0.0
      %820 = vmatprep.subr.mxu0 0.0
      %821 = vmatpush1.msra.mxu0 0.0
      %822 = vmatprep.subr.mxu0 0.0
      %823 = vmatpush1.msra.mxu0 0.0
      %824 = vmatprep.subr.mxu0 0.0
      %825 = vmatpush1.msra.mxu0 0.0
      %826 = vmatprep.subr.mxu0 0.0
      %827 = vmatpush1.msra.mxu0 0.0
      %828 = vmatprep.subr.mxu0 0.0
      %829 = vmatpush1.msra.mxu0 0.0
      %830 = vmatprep.subr.mxu0 0.0
      %831 = vmatpush1.msra.mxu0 0.0
      %832 = vmatprep.subr.mxu0 0.0
      %833 = vmatpush1.msra.mxu0 0.0
      %834 = vmatprep.subr.mxu0 0.0
      %835 = vmatpush1.msra.mxu0 0.0
      %836 = vmatprep.subr.mxu0 0.0
      %837 = vmatpush1.msra.mxu0 0.0
      %838 = vmatprep.mubr.f32.mxu0 0.0
      %839 = vmatmul.mubr.f32.gmra.mrb[0].mxu0 %v772
      %v840 = vpop.f32.mrb[0].mxu0
      %v841 = vadd.f32 0.0, %v840
      %v842 = vpop.f32.mrb[0].mxu0
      %843 = vdwg.mxu0
      %v844 = vlaneseq
      %v845 = vshrl.u32 %v844, 7
      %v846 = vsub.s32 0, %v845
      %v847 = vrot.slane %v841, %v846
      %v848 = vmul.f32 %v562, %v847
      %v849 = vmul.f32 %v563, %v847
      %v850 = vmul.f32 %v564, %v847
      %v851 = vmul.f32 %v565, %v847
      %v852 = vmul.f32 %v566, %v847
      %v853 = vmul.f32 %v567, %v847
      %v854 = vmul.f32 %v568, %v847
      %v855 = vmul.f32 %v569, %v847
      %v856 = vmul.f32 %v570, %v847
      %v857 = vmul.f32 %v571, %v847
      %v858 = vmul.f32 %v572, %v847
      %v859 = vmul.f32 %v573, %v847
      %v860 = vmul.f32 %v574, %v847
      %v861 = vmul.f32 %v575, %v847
      %v862 = vmul.f32 %v576, %v847
      %v863 = vmul.f32 %v577, %v847
      %v864 = vmul.f32 %v578, %v847
      %v865 = vmul.f32 %v579, %v847
      %v866 = vmul.f32 %v580, %v847
      %v867 = vmul.f32 %v581, %v847
      %v868 = vmul.f32 %v582, %v847
      %v869 = vmul.f32 %v583, %v847
      %v870 = vmul.f32 %v584, %v847
      %v871 = vmul.f32 %v585, %v847
      %v872 = vmul.f32 %v586, %v847
      %v873 = vmul.f32 %v587, %v847
      %v874 = vmul.f32 %v588, %v847
      %v875 = vmul.f32 %v589, %v847
      %v876 = vmul.f32 %v590, %v847
      %v877 = vmul.f32 %v591, %v847
      %v878 = vmul.f32 %v592, %v847
      %v879 = vmul.f32 %v593, %v847
      %v880 = vld [vmem:[%s1] sm:$0x1]
      %v882 = vlaneseq
      %v883 = vshrl.u32 %v882, 7
      %v884 = vsub.s32 0, %v883
      %v885 = vrot.slane %v880, %v884
      %v887 = vmul.f32 %v848, %v885
      %v888 = vmul.f32 %v849, %v885
      %v889 = vmul.f32 %v850, %v885
      %v890 = vmul.f32 %v851, %v885
      %v891 = vmul.f32 %v852, %v885
      %v892 = vmul.f32 %v853, %v885
      %v893 = vmul.f32 %v854, %v885
      %v894 = vmul.f32 %v855, %v885
      %v895 = vmul.f32 %v856, %v885
      %v896 = vmul.f32 %v857, %v885
      %v897 = vmul.f32 %v858, %v885
      %v898 = vmul.f32 %v859, %v885
      %v899 = vmul.f32 %v860, %v885
      %v900 = vmul.f32 %v861, %v885
      %v901 = vmul.f32 %v862, %v885
      %v902 = vmul.f32 %v863, %v885
      %v903 = vmul.f32 %v864, %v885
      %v904 = vmul.f32 %v865, %v885
      %v905 = vmul.f32 %v866, %v885
      %v906 = vmul.f32 %v867, %v885
      %v907 = vmul.f32 %v868, %v885
      %v908 = vmul.f32 %v869, %v885
      %v909 = vmul.f32 %v870, %v885
      %v910 = vmul.f32 %v871, %v885
      %v911 = vmul.f32 %v872, %v885
      %v912 = vmul.f32 %v873, %v885
      %v913 = vmul.f32 %v874, %v885
      %v914 = vmul.f32 %v875, %v885
      %v915 = vmul.f32 %v876, %v885
      %v916 = vmul.f32 %v877, %v885
      %v917 = vmul.f32 %v878, %v885
      %v918 = vmul.f32 %v879, %v885
      %v919 = vld [vmem:[%s2] sm:$0x1]
      %v921 = vlaneseq
      %v922 = vshrl.u32 %v921, 7
      %v923 = vsub.s32 0, %v922
      %v924 = vrot.slane %v919, %v923
      %v926 = vadd.f32 %v887, %v924
      %v927 = vadd.f32 %v888, %v924
      %v928 = vadd.f32 %v889, %v924
      %v929 = vadd.f32 %v890, %v924
      %v930 = vadd.f32 %v891, %v924
      %v931 = vadd.f32 %v892, %v924
      %v932 = vadd.f32 %v893, %v924
      %v933 = vadd.f32 %v894, %v924
      %v934 = vadd.f32 %v895, %v924
      %v935 = vadd.f32 %v896, %v924
      %v936 = vadd.f32 %v897, %v924
      %v937 = vadd.f32 %v898, %v924
      %v938 = vadd.f32 %v899, %v924
      %v939 = vadd.f32 %v900, %v924
      %v940 = vadd.f32 %v901, %v924
      %v941 = vadd.f32 %v902, %v924
      %v942 = vadd.f32 %v903, %v924
      %v943 = vadd.f32 %v904, %v924
      %v944 = vadd.f32 %v905, %v924
      %v945 = vadd.f32 %v906, %v924
      %v946 = vadd.f32 %v907, %v924
      %v947 = vadd.f32 %v908, %v924
      %v948 = vadd.f32 %v909, %v924
      %v949 = vadd.f32 %v910, %v924
      %v950 = vadd.f32 %v911, %v924
      %v951 = vadd.f32 %v912, %v924
      %v952 = vadd.f32 %v913, %v924
      %v953 = vadd.f32 %v914, %v924
      %v954 = vadd.f32 %v915, %v924
      %v955 = vadd.f32 %v916, %v924
      %v956 = vadd.f32 %v917, %v924
      %v957 = vadd.f32 %v918, %v924
      %v958 = vxor.u32 %v926, 2147483648
      %v959 = vxor.u32 %v927, 2147483648
      %v960 = vxor.u32 %v928, 2147483648
      %v961 = vxor.u32 %v929, 2147483648
      %v962 = vxor.u32 %v930, 2147483648
      %v963 = vxor.u32 %v931, 2147483648
      %v964 = vxor.u32 %v932, 2147483648
      %v965 = vxor.u32 %v933, 2147483648
      %v966 = vxor.u32 %v934, 2147483648
      %v967 = vxor.u32 %v935, 2147483648
      %v968 = vxor.u32 %v936, 2147483648
      %v969 = vxor.u32 %v937, 2147483648
      %v970 = vxor.u32 %v938, 2147483648
      %v971 = vxor.u32 %v939, 2147483648
      %v972 = vxor.u32 %v940, 2147483648
      %v973 = vxor.u32 %v941, 2147483648
      %v974 = vxor.u32 %v942, 2147483648
      %v975 = vxor.u32 %v943, 2147483648
      %v976 = vxor.u32 %v944, 2147483648
      %v977 = vxor.u32 %v945, 2147483648
      %v978 = vxor.u32 %v946, 2147483648
      %v979 = vxor.u32 %v947, 2147483648
      %v980 = vxor.u32 %v948, 2147483648
      %v981 = vxor.u32 %v949, 2147483648
      %v982 = vxor.u32 %v950, 2147483648
      %v983 = vxor.u32 %v951, 2147483648
      %v984 = vxor.u32 %v952, 2147483648
      %v985 = vxor.u32 %v953, 2147483648
      %v986 = vxor.u32 %v954, 2147483648
      %v987 = vxor.u32 %v955, 2147483648
      %v988 = vxor.u32 %v956, 2147483648
      %v989 = vxor.u32 %v957, 2147483648
      %v990 = vmul.f32 %v958, 1.442695
      %v991 = vpow.pop %v990
      %v992 = vmul.f32 %v959, 1.442695
      %v993 = vpow.pop %v992
      %v994 = vmul.f32 %v960, 1.442695
      %v995 = vpow.pop %v994
      %v996 = vmul.f32 %v961, 1.442695
      %v997 = vpow.pop %v996
      %v998 = vmul.f32 %v962, 1.442695
      %v999 = vpow.pop %v998
      %v1000 = vmul.f32 %v963, 1.442695
      %v1001 = vpow.pop %v1000
      %v1002 = vmul.f32 %v964, 1.442695
      %v1003 = vpow.pop %v1002
      %v1004 = vmul.f32 %v965, 1.442695
      %v1005 = vpow.pop %v1004
      %v1006 = vmul.f32 %v966, 1.442695
      %v1007 = vpow.pop %v1006
      %v1008 = vmul.f32 %v967, 1.442695
      %v1009 = vpow.pop %v1008
      %v1010 = vmul.f32 %v968, 1.442695
      %v1011 = vpow.pop %v1010
      %v1012 = vmul.f32 %v969, 1.442695
      %v1013 = vpow.pop %v1012
      %v1014 = vmul.f32 %v970, 1.442695
      %v1015 = vpow.pop %v1014
      %v1016 = vmul.f32 %v971, 1.442695
      %v1017 = vpow.pop %v1016
      %v1018 = vmul.f32 %v972, 1.442695
      %v1019 = vpow.pop %v1018
      %v1020 = vmul.f32 %v973, 1.442695
      %v1021 = vpow.pop %v1020
      %v1022 = vmul.f32 %v974, 1.442695
      %v1023 = vpow.pop %v1022
      %v1024 = vmul.f32 %v975, 1.442695
      %v1025 = vpow.pop %v1024
      %v1026 = vmul.f32 %v976, 1.442695
      %v1027 = vpow.pop %v1026
      %v1028 = vmul.f32 %v977, 1.442695
      %v1029 = vpow.pop %v1028
      %v1030 = vmul.f32 %v978, 1.442695
      %v1031 = vpow.pop %v1030
      %v1032 = vmul.f32 %v979, 1.442695
      %v1033 = vpow.pop %v1032
      %v1034 = vmul.f32 %v980, 1.442695
      %v1035 = vpow.pop %v1034
      %v1036 = vmul.f32 %v981, 1.442695
      %v1037 = vpow.pop %v1036
      %v1038 = vmul.f32 %v982, 1.442695
      %v1039 = vpow.pop %v1038
      %v1040 = vmul.f32 %v983, 1.442695
      %v1041 = vpow.pop %v1040
      %v1042 = vmul.f32 %v984, 1.442695
      %v1043 = vpow.pop %v1042
      %v1044 = vmul.f32 %v985, 1.442695
      %v1045 = vpow.pop %v1044
      %v1046 = vmul.f32 %v986, 1.442695
      %v1047 = vpow.pop %v1046
      %v1048 = vmul.f32 %v987, 1.442695
      %v1049 = vpow.pop %v1048
      %v1050 = vmul.f32 %v988, 1.442695
      %v1051 = vpow.pop %v1050
      %v1052 = vmul.f32 %v989, 1.442695
      %v1053 = vpow.pop %v1052
      %v1054 = vadd.f32 %v991, 1.0
      %v1055 = vadd.f32 %v993, 1.0
      %v1056 = vadd.f32 %v995, 1.0
      %v1057 = vadd.f32 %v997, 1.0
      %v1058 = vadd.f32 %v999, 1.0
      %v1059 = vadd.f32 %v1001, 1.0
      %v1060 = vadd.f32 %v1003, 1.0
      %v1061 = vadd.f32 %v1005, 1.0
      %v1062 = vadd.f32 %v1007, 1.0
      %v1063 = vadd.f32 %v1009, 1.0
      %v1064 = vadd.f32 %v1011, 1.0
      %v1065 = vadd.f32 %v1013, 1.0
      %v1066 = vadd.f32 %v1015, 1.0
      %v1067 = vadd.f32 %v1017, 1.0
      %v1068 = vadd.f32 %v1019, 1.0
      %v1069 = vadd.f32 %v1021, 1.0
      %v1070 = vadd.f32 %v1023, 1.0
      %v1071 = vadd.f32 %v1025, 1.0
      %v1072 = vadd.f32 %v1027, 1.0
      %v1073 = vadd.f32 %v1029, 1.0
      %v1074 = vadd.f32 %v1031, 1.0
      %v1075 = vadd.f32 %v1033, 1.0
      %v1076 = vadd.f32 %v1035, 1.0
      %v1077 = vadd.f32 %v1037, 1.0
      %v1078 = vadd.f32 %v1039, 1.0
      %v1079 = vadd.f32 %v1041, 1.0
      %v1080 = vadd.f32 %v1043, 1.0
      %v1081 = vadd.f32 %v1045, 1.0
      %v1082 = vadd.f32 %v1047, 1.0
      %v1083 = vadd.f32 %v1049, 1.0
      %v1084 = vadd.f32 %v1051, 1.0
      %v1085 = vadd.f32 %v1053, 1.0
      %v1086 = vrcp.pop %v1054
      %v1087 = vmul.f32 1.0, %v1086
      %v1088 = vrcp.pop %v1055
      %v1089 = vmul.f32 1.0, %v1088
      %v1090 = vrcp.pop %v1056
      %v1091 = vmul.f32 1.0, %v1090
      %v1092 = vrcp.pop %v1057
      %v1093 = vmul.f32 1.0, %v1092
      %v1094 = vrcp.pop %v1058
      %v1095 = vmul.f32 1.0, %v1094
      %v1096 = vrcp.pop %v1059
      %v1097 = vmul.f32 1.0, %v1096
      %v1098 = vrcp.pop %v1060
      %v1099 = vmul.f32 1.0, %v1098
      %v1100 = vrcp.pop %v1061
      %v1101 = vmul.f32 1.0, %v1100
      %v1102 = vrcp.pop %v1062
      %v1103 = vmul.f32 1.0, %v1102
      %v1104 = vrcp.pop %v1063
      %v1105 = vmul.f32 1.0, %v1104
      %v1106 = vrcp.pop %v1064
      %v1107 = vmul.f32 1.0, %v1106
      %v1108 = vrcp.pop %v1065
      %v1109 = vmul.f32 1.0, %v1108
      %v1110 = vrcp.pop %v1066
      %v1111 = vmul.f32 1.0, %v1110
      %v1112 = vrcp.pop %v1067
      %v1113 = vmul.f32 1.0, %v1112
      %v1114 = vrcp.pop %v1068
      %v1115 = vmul.f32 1.0, %v1114
      %v1116 = vrcp.pop %v1069
      %v1117 = vmul.f32 1.0, %v1116
      %v1118 = vrcp.pop %v1070
      %v1119 = vmul.f32 1.0, %v1118
      %v1120 = vrcp.pop %v1071
      %v1121 = vmul.f32 1.0, %v1120
      %v1122 = vrcp.pop %v1072
      %v1123 = vmul.f32 1.0, %v1122
      %v1124 = vrcp.pop %v1073
      %v1125 = vmul.f32 1.0, %v1124
      %v1126 = vrcp.pop %v1074
      %v1127 = vmul.f32 1.0, %v1126
      %v1128 = vrcp.pop %v1075
      %v1129 = vmul.f32 1.0, %v1128
      %v1130 = vrcp.pop %v1076
      %v1131 = vmul.f32 1.0, %v1130
      %v1132 = vrcp.pop %v1077
      %v1133 = vmul.f32 1.0, %v1132
      %v1134 = vrcp.pop %v1078
      %v1135 = vmul.f32 1.0, %v1134
      %v1136 = vrcp.pop %v1079
      %v1137 = vmul.f32 1.0, %v1136
      %v1138 = vrcp.pop %v1080
      %v1139 = vmul.f32 1.0, %v1138
      %v1140 = vrcp.pop %v1081
      %v1141 = vmul.f32 1.0, %v1140
      %v1142 = vrcp.pop %v1082
      %v1143 = vmul.f32 1.0, %v1142
      %v1144 = vrcp.pop %v1083
      %v1145 = vmul.f32 1.0, %v1144
      %v1146 = vrcp.pop %v1084
      %v1147 = vmul.f32 1.0, %v1146
      %v1148 = vrcp.pop %v1085
      %v1149 = vmul.f32 1.0, %v1148
      %v1150 = vmul.f32 %v926, %v1087
      %v1151 = vmul.f32 %v927, %v1089
      %v1152 = vmul.f32 %v928, %v1091
      %v1153 = vmul.f32 %v929, %v1093
      %v1154 = vmul.f32 %v930, %v1095
      %v1155 = vmul.f32 %v931, %v1097
      %v1156 = vmul.f32 %v932, %v1099
      %v1157 = vmul.f32 %v933, %v1101
      %v1158 = vmul.f32 %v934, %v1103
      %v1159 = vmul.f32 %v935, %v1105
      %v1160 = vmul.f32 %v936, %v1107
      %v1161 = vmul.f32 %v937, %v1109
      %v1162 = vmul.f32 %v938, %v1111
      %v1163 = vmul.f32 %v939, %v1113
      %v1164 = vmul.f32 %v940, %v1115
      %v1165 = vmul.f32 %v941, %v1117
      %v1166 = vmul.f32 %v942, %v1119
      %v1167 = vmul.f32 %v943, %v1121
      %v1168 = vmul.f32 %v944, %v1123
      %v1169 = vmul.f32 %v945, %v1125
      %v1170 = vmul.f32 %v946, %v1127
      %v1171 = vmul.f32 %v947, %v1129
      %v1172 = vmul.f32 %v948, %v1131
      %v1173 = vmul.f32 %v949, %v1133
      %v1174 = vmul.f32 %v950, %v1135
      %v1175 = vmul.f32 %v951, %v1137
      %v1176 = vmul.f32 %v952, %v1139
      %v1177 = vmul.f32 %v953, %v1141
      %v1178 = vmul.f32 %v954, %v1143
      %v1179 = vmul.f32 %v955, %v1145
      %v1180 = vmul.f32 %v956, %v1147
      %v1181 = vmul.f32 %v957, %v1149
      %1182 = vst.msk [vmem:[%s265] sm:$0xff] %vm337, %v1150
      %1183 = vst.msk [vmem:[%s265 + $0x8] sm:$0xff] %vm337, %v1151
      %1184 = vst.msk [vmem:[%s265 + $0x10] sm:$0xff] %vm337, %v1152
      %1185 = vst.msk [vmem:[%s265 + $0x18] sm:$0xff] %vm337, %v1153
      %1186 = vst.msk [vmem:[%s265 + $0x20] sm:$0xff] %vm337, %v1154
      %1187 = vst.msk [vmem:[%s265 + $0x28] sm:$0xff] %vm337, %v1155
      %1188 = vst.msk [vmem:[%s265 + $0x30] sm:$0xff] %vm337, %v1156
      %1189 = vst.msk [vmem:[%s265 + $0x38] sm:$0xff] %vm337, %v1157
      %1190 = vst.msk [vmem:[%s265 + $0x40] sm:$0xff] %vm337, %v1158
      %1191 = vst.msk [vmem:[%s265 + $0x48] sm:$0xff] %vm337, %v1159
      %1192 = vst.msk [vmem:[%s265 + $0x50] sm:$0xff] %vm337, %v1160
      %1193 = vst.msk [vmem:[%s265 + $0x58] sm:$0xff] %vm337, %v1161
      %1194 = vst.msk [vmem:[%s265 + $0x60] sm:$0xff] %vm337, %v1162
      %1195 = vst.msk [vmem:[%s265 + $0x68] sm:$0xff] %vm337, %v1163
      %1196 = vst.msk [vmem:[%s265 + $0x70] sm:$0xff] %vm337, %v1164
      %1197 = vst.msk [vmem:[%s265 + $0x78] sm:$0xff] %vm337, %v1165
      %1198 = vst.msk [vmem:[%s265 + $0x80] sm:$0xff] %vm337, %v1166
      %1199 = vst.msk [vmem:[%s265 + $0x88] sm:$0xff] %vm337, %v1167
      %1200 = vst.msk [vmem:[%s265 + $0x90] sm:$0xff] %vm337, %v1168
      %1201 = vst.msk [vmem:[%s265 + $0x98] sm:$0xff] %vm337, %v1169
      %1202 = vst.msk [vmem:[%s265 + $0xa0] sm:$0xff] %vm337, %v1170
      %1203 = vst.msk [vmem:[%s265 + $0xa8] sm:$0xff] %vm337, %v1171
      %1204 = vst.msk [vmem:[%s265 + $0xb0] sm:$0xff] %vm337, %v1172
      %1205 = vst.msk [vmem:[%s265 + $0xb8] sm:$0xff] %vm337, %v1173
      %1206 = vst.msk [vmem:[%s265 + $0xc0] sm:$0xff] %vm337, %v1174
      %1207 = vst.msk [vmem:[%s265 + $0xc8] sm:$0xff] %vm337, %v1175
      %1208 = vst.msk [vmem:[%s265 + $0xd0] sm:$0xff] %vm337, %v1176
      %1209 = vst.msk [vmem:[%s265 + $0xd8] sm:$0xff] %vm337, %v1177
      %1210 = vst.msk [vmem:[%s265 + $0xe0] sm:$0xff] %vm337, %v1178
      %1211 = vst.msk [vmem:[%s265 + $0xe8] sm:$0xff] %vm337, %v1179
      %1212 = vst.msk [vmem:[%s265 + $0xf0] sm:$0xff] %vm337, %v1180
      %1213 = vst.msk [vmem:[%s265 + $0xf8] sm:$0xff] %vm337, %v1181
      %p1214 = scmp.lt.s32.totalorder %s17, 1
      %s1215 = scalar_select %p1214, %s17, 1
      %s1216 = smul.addr %s1215, 32
      %s1217 = smul.addr %s1216, 8
      %s1218 = scalar_lea.vmem %s6, %s1217
      // Predicated region
      $region45: #{upblock_forward.15} parent=43 // pred_check
        %p1219 = pneg %p171
      $region46: #{upblock_forward.15} parent=43 // pred_check_branch
        %1221 = sbr.rel (%p1219) target = $region48
      $region47: #{upblock_forward.15} parent=43 // pred_region
        _
      $region48: #{upblock_forward.15} parent=43 // pred_fallthru
        _
    $region44: #{upblock_forward.15} parent=5 // pred_fallthru
      _
    %p1222 = scmp.le.s32.totalorder 2, %s12
    // Predicated region
    $region49: #{upblock_forward.15} parent=5 // pred_check
      %p1223 = pneg %p1222
    $region50: #{upblock_forward.15} parent=5 // pred_check_branch
      %1225 = sbr.rel (%p1223) target = $region52
    $region51: #{upblock_forward.15} parent=5 // pred_region
      %s1226 = ssub.s32 %s12, 2
      // Predicated region
      $region53: #{upblock_forward.15} parent=51 // pred_check
        %p1227 = pneg %p177
      $region54: #{upblock_forward.15} parent=51 // pred_check_branch
        %1229 = sbr.rel (%p1227) target = $region56
      $region55: #{upblock_forward.15} parent=51 // pred_region
        %p1230 = scmp.lt.s32.totalorder %s18, 1
        %s1231 = scalar_select %p1230, %s18, 1
        %s1232 = smul.addr %s1231, 32
        %s1233 = smul.addr %s1232, 8
        %s1234 = scalar_lea.vmem %s6, %s1233
      $region56: #{upblock_forward.15} parent=51 // pred_fallthru
        _
    $region52: #{upblock_forward.15} parent=5 // pred_fallthru
      _
  $region6: #{upblock_forward.15} parent=0 // loop_footer
    %s16 = sadd.s32 1, %s12
  $region7: #{upblock_forward.15} parent=0 // loop_footer_branch
    %11 = sbr.rel target = $region3
  $region8: #{upblock_forward.15} parent=0 // loop_exit
    _

// kernel: upblock_forward.18
$region0: #{upblock_forward.18}
  #allocation0 [shape = 'u32[]', space=smem, size = 0x4, offset = 0x4, fixed_abs, tag = 'smem constant byte address 0x4 - core index']
  #allocation1 [shape = 'u32[144,128]{1,0:T(1,128)}', space=vmem, size = 0x12000, scoped, tag = 'internal scratch']
  %s0 = inlined_call_operand.vmem [shape: f32[2,256,16], index: 0, kind: input, shape index: {}]
  %s1 = inlined_call_operand.vmem [shape: f32[1,16], index: 1, kind: input, shape index: {}]
  %s2 = inlined_call_operand.vmem [shape: f32[1,16], index: 2, kind: input, shape index: {}]
  %s3 = inlined_call_operand.vmem [shape: f32[16,8], index: 3, kind: input, shape index: {}]
  %s4 = inlined_call_operand.vmem [shape: f32[8,16], index: 4, kind: input, shape index: {}]
  %s5 = inlined_call_operand.vmem [shape: f32[2,256,16], index: 5, kind: output, shape index: {}]
  %s6 = sld [smem:[#allocation0]]
  $region53: #{upblock_forward.18} parent=0
    _
  %s8 = ssub.s32 1, %s6
  %s9 = scalar_select 0, %s8, %s6
  loop: start=0, step=1, limit=4
  $region2: #{upblock_forward.18} parent=0 // loop_pre_header
    _
  $region3: #{upblock_forward.18} parent=0 // loop_header
    %s11 = sphi 0, %s15
    %p12 = scmp.ge.s32.totalorder %s11, 4
    %s21 = sphi 0, %s23
    %s24 = sphi 0, %s21
    %s25 = sphi 0, %s24
    %s41 = sphi 0, %s25
    %s45 = sphi 0, %s45
    %s47 = sphi 0, %s45
    %s48 = sphi 0, %s47
    %s62 = sphi 0, %s48
    %s66 = sphi 0, %s66
    %s68 = sphi 0, %s66
    %s69 = sphi 0, %s68
    %s83 = sphi 0, %s69
    %s87 = sphi 0, %s87
    %s89 = sphi 0, %s87
    %s90 = sphi 0, %s89
    %s104 = sphi 0, %s90
    %s108 = sphi 0, %s108
    %s110 = sphi 0, %s108
    %s111 = sphi 0, %s110
    %s125 = sphi 0, %s111
    %s131 = sphi 0, %s133
    %s134 = sphi 0, %s131
    %s135 = sphi 0, %s134
    %s151 = sphi 0, %s135
  $region4: #{upblock_forward.18} parent=0 // loop_header_branch
    %14 = sbr.rel (%p12) target = $region8
  $region5: #{upblock_forward.18} parent=0 // loop_body
    %s16 = ssub.s32 %s11, 1
    %s17 = ssub.s32 %s11, 2
    %s18 = sadd.s32 %s11, 1
    %s19 = ssub.s32 %s11, %s18
    %p20 = scmp.eq.s32.totalorder %s19, 0
    %s22 = sadd.s32 %s21, 1
    %s23 = scalar_select %p20, %s21, %s22
    %p26 = pneg %p20
    %p27 = scmp.eq.s32.totalorder %s11, 1
    %p28 = por %p26, %p27
    %p29 = scmp.ne.s32.totalorder %s21, %s24
    %p30 = scmp.eq.s32.totalorder %s11, 0
    %p31 = por %p29, %p30
    %p32 = scmp.ne.s32.totalorder %s21, %s24
    %p33 = scmp.eq.s32.totalorder %s16, 1
    %p34 = por %p32, %p33
    %p35 = scmp.ne.s32.totalorder %s24, %s25
    %p36 = scmp.eq.s32.totalorder %s16, 0
    %p37 = por %p35, %p36
    %p38 = scmp.ne.s32.totalorder %s24, %s25
    %p39 = scmp.eq.s32.totalorder %s17, 1
    %p40 = por %p38, %p39
    %p42 = scmp.ne.s32.totalorder %s25, %s41
    %p43 = scmp.eq.s32.totalorder %s17, 0
    %p44 = por %p42, %p43
    %s46 = sadd.s32 %s45, 1
    %p49 = scmp.eq.s32.totalorder %s11, 1
    %p50 = scmp.ne.s32.totalorder %s45, %s47
    %p51 = scmp.eq.s32.totalorder %s11, 0
    %p52 = por %p50, %p51
    %p53 = scmp.ne.s32.totalorder %s45, %s47
    %p54 = scmp.eq.s32.totalorder %s16, 1
    %p55 = por %p53, %p54
    %p56 = scmp.ne.s32.totalorder %s47, %s48
    %p57 = scmp.eq.s32.totalorder %s16, 0
    %p58 = por %p56, %p57
    %p59 = scmp.ne.s32.totalorder %s47, %s48
    %p60 = scmp.eq.s32.totalorder %s17, 1
    %p61 = por %p59, %p60
    %p63 = scmp.ne.s32.totalorder %s48, %s62
    %p64 = scmp.eq.s32.totalorder %s17, 0
    %p65 = por %p63, %p64
    %s67 = sadd.s32 %s66, 1
    %p70 = scmp.eq.s32.totalorder %s11, 1
    %p71 = scmp.ne.s32.totalorder %s66, %s68
    %p72 = scmp.eq.s32.totalorder %s11, 0
    %p73 = por %p71, %p72
    %p74 = scmp.ne.s32.totalorder %s66, %s68
    %p75 = scmp.eq.s32.totalorder %s16, 1
    %p76 = por %p74, %p75
    %p77 = scmp.ne.s32.totalorder %s68, %s69
    %p78 = scmp.eq.s32.totalorder %s16, 0
    %p79 = por %p77, %p78
    %p80 = scmp.ne.s32.totalorder %s68, %s69
    %p81 = scmp.eq.s32.totalorder %s17, 1
    %p82 = por %p80, %p81
    %p84 = scmp.ne.s32.totalorder %s69, %s83
    %p85 = scmp.eq.s32.totalorder %s17, 0
    %p86 = por %p84, %p85
    %s88 = sadd.s32 %s87, 1
    %p91 = scmp.eq.s32.totalorder %s11, 1
    %p92 = scmp.ne.s32.totalorder %s87, %s89
    %p93 = scmp.eq.s32.totalorder %s11, 0
    %p94 = por %p92, %p93
    %p95 = scmp.ne.s32.totalorder %s87, %s89
    %p96 = scmp.eq.s32.totalorder %s16, 1
    %p97 = por %p95, %p96
    %p98 = scmp.ne.s32.totalorder %s89, %s90
    %p99 = scmp.eq.s32.totalorder %s16, 0
    %p100 = por %p98, %p99
    %p101 = scmp.ne.s32.totalorder %s89, %s90
    %p102 = scmp.eq.s32.totalorder %s17, 1
    %p103 = por %p101, %p102
    %p105 = scmp.ne.s32.totalorder %s90, %s104
    %p106 = scmp.eq.s32.totalorder %s17, 0
    %p107 = por %p105, %p106
    %s109 = sadd.s32 %s108, 1
    %p112 = scmp.eq.s32.totalorder %s11, 1
    %p113 = scmp.ne.s32.totalorder %s108, %s110
    %p114 = scmp.eq.s32.totalorder %s11, 0
    %p115 = por %p113, %p114
    %p116 = scmp.ne.s32.totalorder %s108, %s110
    %p117 = scmp.eq.s32.totalorder %s16, 1
    %p118 = por %p116, %p117
    %p119 = scmp.ne.s32.totalorder %s110, %s111
    %p120 = scmp.eq.s32.totalorder %s16, 0
    %p121 = por %p119, %p120
    %p122 = scmp.ne.s32.totalorder %s110, %s111
    %p123 = scmp.eq.s32.totalorder %s17, 1
    %p124 = por %p122, %p123
    %p126 = scmp.ne.s32.totalorder %s111, %s125
    %p127 = scmp.eq.s32.totalorder %s17, 0
    %p128 = por %p126, %p127
    %s129 = ssub.s32 %s11, %s18
    %p130 = scmp.eq.s32.totalorder %s129, 0
    %s132 = sadd.s32 %s131, 1
    %s133 = scalar_select %p130, %s131, %s132
    %p136 = pneg %p130
    %p137 = scmp.eq.s32.totalorder %s11, 1
    %p138 = por %p136, %p137
    %p139 = scmp.ne.s32.totalorder %s131, %s134
    %p140 = scmp.eq.s32.totalorder %s11, 0
    %p141 = por %p139, %p140
    %p142 = scmp.ne.s32.totalorder %s131, %s134
    %p143 = scmp.eq.s32.totalorder %s16, 1
    %p144 = por %p142, %p143
    %p145 = scmp.ne.s32.totalorder %s134, %s135
    %p146 = scmp.eq.s32.totalorder %s16, 0
    %p147 = por %p145, %p146
    %p148 = scmp.ne.s32.totalorder %s134, %s135
    %p149 = scmp.eq.s32.totalorder %s17, 1
    %p150 = por %p148, %p149
    %p152 = scmp.ne.s32.totalorder %s135, %s151
    %p153 = scmp.eq.s32.totalorder %s17, 0
    %p154 = por %p152, %p153
    %p155 = scmp.le.s32.totalorder 1, %s11
    %p156 = scmp.lt.s32.totalorder %s11, 3
    %p157 = pnand %p155, %p156
    %p158 = pneg %p157
    // Predicated region
    $region9: #{upblock_forward.18} parent=5 // pred_check
      _
    $region10: #{upblock_forward.18} parent=5 // pred_check_branch
      %160 = sbr.rel (%p157) target = $region12
    $region11: #{upblock_forward.18} parent=5 // pred_region
      %s161 = ssub.s32 %s11, 1
      // Predicated region
      $region13: #{upblock_forward.18} parent=11 // pred_check
        %p162 = pneg %p58
      $region14: #{upblock_forward.18} parent=11 // pred_check_branch
        %164 = sbr.rel (%p162) target = $region16
      $region15: #{upblock_forward.18} parent=11 // pred_region
        _
      $region16: #{upblock_forward.18} parent=11 // pred_fallthru
        _
      // Predicated region
      $region17: #{upblock_forward.18} parent=11 // pred_check
        %p165 = pneg %p79
      $region18: #{upblock_forward.18} parent=11 // pred_check_branch
        %167 = sbr.rel (%p165) target = $region20
      $region19: #{upblock_forward.18} parent=11 // pred_region
        _
      $region20: #{upblock_forward.18} parent=11 // pred_fallthru
        _
      // Predicated region
      $region21: #{upblock_forward.18} parent=11 // pred_check
        %p168 = pneg %p100
      $region22: #{upblock_forward.18} parent=11 // pred_check_branch
        %170 = sbr.rel (%p168) target = $region24
      $region23: #{upblock_forward.18} parent=11 // pred_region
        _
      $region24: #{upblock_forward.18} parent=11 // pred_fallthru
        _
      // Predicated region
      $region25: #{upblock_forward.18} parent=11 // pred_check
        %p171 = pneg %p121
      $region26: #{upblock_forward.18} parent=11 // pred_check_branch
        %173 = sbr.rel (%p171) target = $region28
      $region27: #{upblock_forward.18} parent=11 // pred_region
        _
      $region28: #{upblock_forward.18} parent=11 // pred_fallthru
        _
    $region12: #{upblock_forward.18} parent=5 // pred_fallthru
      _
    %p174 = scmp.lt.s32.totalorder %s11, 2
    // Predicated region
    $region29: #{upblock_forward.18} parent=5 // pred_check
      %p175 = pneg %p174
    $region30: #{upblock_forward.18} parent=5 // pred_check_branch
      %177 = sbr.rel (%p175) target = $region32
    $region31: #{upblock_forward.18} parent=5 // pred_region
      // Predicated region
      $region33: #{upblock_forward.18} parent=31 // pred_check
        %p178 = pneg %p31
      $region34: #{upblock_forward.18} parent=31 // pred_check_branch
        %180 = sbr.rel (%p178) target = $region36
      $region35: #{upblock_forward.18} parent=31 // pred_region
        %p181 = scmp.lt.s32.totalorder %s11, 1
        %s182 = scalar_select %p181, %s11, 1
        %s183 = smul.addr %s182, 32
        %s184 = smul.addr %s183, 8
        %s185 = scalar_lea.vmem %s0, %s184
      $region36: #{upblock_forward.18} parent=31 // pred_fallthru
        _
    $region32: #{upblock_forward.18} parent=5 // pred_fallthru
      _
    %p186 = scmp.le.s32.totalorder 1, %s11
    %p187 = scmp.lt.s32.totalorder %s11, 3
    %p188 = pnand %p186, %p187
    %p189 = pneg %p188
    // Predicated region
    $region37: #{upblock_forward.18} parent=5 // pred_check
      _
    $region38: #{upblock_forward.18} parent=5 // pred_check_branch
      %191 = sbr.rel (%p188) target = $region40
    $region39: #{upblock_forward.18} parent=5 // pred_region
      %s192 = ssub.s32 %s11, 1
      %p193 = scmp.lt.s32.totalorder %s16, 1
      %s194 = scalar_select %p193, %s16, 1
      %s195 = smul.addr %s194, 32
      %s196 = smul.addr %s195, 8
      %s197 = scalar_lea.vmem %s0, %s196
      %p198 = pneg %p37
      %p199 = pneg %p34
      %p200 = pneg %p58
      %p201 = pneg %p55
      %p202 = pneg %p79
      %p203 = pneg %p76
      %p204 = pneg %p100
      %p205 = pneg %p97
      %p206 = pneg %p121
      %p207 = pneg %p118
      %p208 = pneg %p147
      %p209 = pneg %p144
      %p210 = scmp.lt.s32.totalorder %s16, 1
      %s211 = scalar_select %p210, %s16, 1
      %s212 = smul.addr %s211, 32
      %s213 = smul.addr %s212, 8
      %s214 = scalar_lea.vmem %s5, %s213
      %p215 = scmp.lt.s32.totalorder %s16, 1
      %s216 = scalar_select %p215, %s16, 1
      %s217 = smul.addr %s216, 32
      %s218 = smul.addr %s217, 8
      %s219 = scalar_lea.vmem %s0, %s218
      %p220 = scmp.lt.s32.totalorder %s16, 1
      %s221 = scalar_select %p220, %s16, 1
      %s222 = smul.addr %s221, 32
      %s223 = smul.addr %s222, 8
      %s224 = scalar_lea.vmem %s5, %s223
      %v225 = vld [vmem:[%s219] sm:$0xff]
      %v226 = vld [vmem:[%s219 + $0x8] sm:$0xff]
      %v227 = vld [vmem:[%s219 + $0x10] sm:$0xff]
      %v228 = vld [vmem:[%s219 + $0x18] sm:$0xff]
      %v229 = vld [vmem:[%s219 + $0x20] sm:$0xff]
      %v230 = vld [vmem:[%s219 + $0x28] sm:$0xff]
      %v231 = vld [vmem:[%s219 + $0x30] sm:$0xff]
      %v232 = vld [vmem:[%s219 + $0x38] sm:$0xff]
      %v233 = vld [vmem:[%s219 + $0x40] sm:$0xff]
      %v234 = vld [vmem:[%s219 + $0x48] sm:$0xff]
      %v235 = vld [vmem:[%s219 + $0x50] sm:$0xff]
      %v236 = vld [vmem:[%s219 + $0x58] sm:$0xff]
      %v237 = vld [vmem:[%s219 + $0x60] sm:$0xff]
      %v238 = vld [vmem:[%s219 + $0x68] sm:$0xff]
      %v239 = vld [vmem:[%s219 + $0x70] sm:$0xff]
      %v240 = vld [vmem:[%s219 + $0x78] sm:$0xff]
      %v241 = vld [vmem:[%s219 + $0x80] sm:$0xff]
      %v242 = vld [vmem:[%s219 + $0x88] sm:$0xff]
      %v243 = vld [vmem:[%s219 + $0x90] sm:$0xff]
      %v244 = vld [vmem:[%s219 + $0x98] sm:$0xff]
      %v245 = vld [vmem:[%s219 + $0xa0] sm:$0xff]
      %v246 = vld [vmem:[%s219 + $0xa8] sm:$0xff]
      %v247 = vld [vmem:[%s219 + $0xb0] sm:$0xff]
      %v248 = vld [vmem:[%s219 + $0xb8] sm:$0xff]
      %v249 = vld [vmem:[%s219 + $0xc0] sm:$0xff]
      %v250 = vld [vmem:[%s219 + $0xc8] sm:$0xff]
      %v251 = vld [vmem:[%s219 + $0xd0] sm:$0xff]
      %v252 = vld [vmem:[%s219 + $0xd8] sm:$0xff]
      %v253 = vld [vmem:[%s219 + $0xe0] sm:$0xff]
      %v254 = vld [vmem:[%s219 + $0xe8] sm:$0xff]
      %v255 = vld [vmem:[%s219 + $0xf0] sm:$0xff]
      %v256 = vld [vmem:[%s219 + $0xf8] sm:$0xff]
      %vm257 = vcmask 130048
      %v258 = vsel %vm257, %v225, 0.0
      %v259 = vsel %vm257, %v226, 0.0
      %v260 = vadd.f32 %v258, %v259
      %v261 = vsel %vm257, %v227, 0.0
      %v262 = vadd.f32 %v260, %v261
      %v263 = vsel %vm257, %v228, 0.0
      %v264 = vadd.f32 %v262, %v263
      %v265 = vsel %vm257, %v229, 0.0
      %v266 = vadd.f32 %v264, %v265
      %v267 = vsel %vm257, %v230, 0.0
      %v268 = vadd.f32 %v266, %v267
      %v269 = vsel %vm257, %v231, 0.0
      %v270 = vadd.f32 %v268, %v269
      %v271 = vsel %vm257, %v232, 0.0
      %v272 = vadd.f32 %v270, %v271
      %v273 = vsel %vm257, %v233, 0.0
      %v274 = vadd.f32 %v272, %v273
      %v275 = vsel %vm257, %v234, 0.0
      %v276 = vadd.f32 %v274, %v275
      %v277 = vsel %vm257, %v235, 0.0
      %v278 = vadd.f32 %v276, %v277
      %v279 = vsel %vm257, %v236, 0.0
      %v280 = vadd.f32 %v278, %v279
      %v281 = vsel %vm257, %v237, 0.0
      %v282 = vadd.f32 %v280, %v281
      %v283 = vsel %vm257, %v238, 0.0
      %v284 = vadd.f32 %v282, %v283
      %v285 = vsel %vm257, %v239, 0.0
      %v286 = vadd.f32 %v284, %v285
      %v287 = vsel %vm257, %v240, 0.0
      %v288 = vadd.f32 %v286, %v287
      %v289 = vsel %vm257, %v241, 0.0
      %v290 = vadd.f32 %v288, %v289
      %v291 = vsel %vm257, %v242, 0.0
      %v292 = vadd.f32 %v290, %v291
      %v293 = vsel %vm257, %v243, 0.0
      %v294 = vadd.f32 %v292, %v293
      %v295 = vsel %vm257, %v244, 0.0
      %v296 = vadd.f32 %v294, %v295
      %v297 = vsel %vm257, %v245, 0.0
      %v298 = vadd.f32 %v296, %v297
      %v299 = vsel %vm257, %v246, 0.0
      %v300 = vadd.f32 %v298, %v299
      %v301 = vsel %vm257, %v247, 0.0
      %v302 = vadd.f32 %v300, %v301
      %v303 = vsel %vm257, %v248, 0.0
      %v304 = vadd.f32 %v302, %v303
      %v305 = vsel %vm257, %v249, 0.0
      %v306 = vadd.f32 %v304, %v305
      %v307 = vsel %vm257, %v250, 0.0
      %v308 = vadd.f32 %v306, %v307
      %v309 = vsel %vm257, %v251, 0.0
      %v310 = vadd.f32 %v308, %v309
      %v311 = vsel %vm257, %v252, 0.0
      %v312 = vadd.f32 %v310, %v311
      %v313 = vsel %vm257, %v253, 0.0
      %v314 = vadd.f32 %v312, %v313
      %v315 = vsel %vm257, %v254, 0.0
      %v316 = vadd.f32 %v314, %v315
      %v317 = vsel %vm257, %v255, 0.0
      %v318 = vadd.f32 %v316, %v317
      %v319 = vsel %vm257, %v256, 0.0
      %v320 = vadd.f32 %v318, %v319
      %v321 = vrot.slane %v320, 4
      %v322 = vadd.f32 %v320, %v321
      %v323 = vrot.slane %v322, 2
      %v324 = vadd.f32 %v322, %v323
      %v325 = vrot.slane %v324, 1
      %v326 = vadd.f32 %v324, %v325
      %v327 = vld [vmem:[%s3] sm:$0xff]
      %v328 = vld [vmem:[%s3 + $0x8] sm:$0xff]
      %v330 = vsel %vm257, %v326, 0
      %332 = vmatprep.subr.mxu0 0.0
      %333 = vmatpush1.msra.mxu0 %v327
      %334 = vmatprep.subr.mxu0 0.0
      %335 = vmatpush1.msra.mxu0 %v328
      %336 = vmatprep.subr.mxu0 0.0
      %337 = vmatpush1.msra.mxu0 0.0
      %338 = vmatprep.subr.mxu0 0.0
      %339 = vmatpush1.msra.mxu0 0.0
      %340 = vmatprep.subr.mxu0 0.0
      %341 = vmatpush1.msra.mxu0 0.0
      %342 = vmatprep.subr.mxu0 0.0
      %343 = vmatpush1.msra.mxu0 0.0
      %344 = vmatprep.subr.mxu0 0.0
      %345 = vmatpush1.msra.mxu0 0.0
      %346 = vmatprep.subr.mxu0 0.0
      %347 = vmatpush1.msra.mxu0 0.0
      %348 = vmatprep.subr.mxu0 0.0
      %349 = vmatpush1.msra.mxu0 0.0
      %350 = vmatprep.subr.mxu0 0.0
      %351 = vmatpush1.msra.mxu0 0.0
      %352 = vmatprep.subr.mxu0 0.0
      %353 = vmatpush1.msra.mxu0 0.0
      %354 = vmatprep.subr.mxu0 0.0
      %355 = vmatpush1.msra.mxu0 0.0
      %356 = vmatprep.subr.mxu0 0.0
      %357 = vmatpush1.msra.mxu0 0.0
      %358 = vmatprep.subr.mxu0 0.0
      %359 = vmatpush1.msra.mxu0 0.0
      %360 = vmatprep.subr.mxu0 0.0
      %361 = vmatpush1.msra.mxu0 0.0
      %362 = vmatprep.subr.mxu0 0.0
      %363 = vmatpush1.msra.mxu0 0.0
      %364 = vmatprep.subr.mxu0 0.0
      %365 = vmatpush1.msra.mxu0 0.0
      %366 = vmatprep.subr.mxu0 0.0
      %367 = vmatpush1.msra.mxu0 0.0
      %368 = vmatprep.subr.mxu0 0.0
      %369 = vmatpush1.msra.mxu0 0.0
      %370 = vmatprep.subr.mxu0 0.0
      %371 = vmatpush1.msra.mxu0 0.0
      %372 = vmatprep.subr.mxu0 0.0
      %373 = vmatpush1.msra.mxu0 0.0
      %374 = vmatprep.subr.mxu0 0.0
      %375 = vmatpush1.msra.mxu0 0.0
      %376 = vmatprep.subr.mxu0 0.0
      %377 = vmatpush1.msra.mxu0 0.0
      %378 = vmatprep.subr.mxu0 0.0
      %379 = vmatpush1.msra.mxu0 0.0
      %380 = vmatprep.subr.mxu0 0.0
      %381 = vmatpush1.msra.mxu0 0.0
      %382 = vmatprep.subr.mxu0 0.0
      %383 = vmatpush1.msra.mxu0 0.0
      %384 = vmatprep.subr.mxu0 0.0
      %385 = vmatpush1.msra.mxu0 0.0
      %386 = vmatprep.subr.mxu0 0.0
      %387 = vmatpush1.msra.mxu0 0.0
      %388 = vmatprep.subr.mxu0 0.0
      %389 = vmatpush1.msra.mxu0 0.0
      %390 = vmatprep.subr.mxu0 0.0
      %391 = vmatpush1.msra.mxu0 0.0
      %392 = vmatprep.subr.mxu0 0.0
      %393 = vmatpush1.msra.mxu0 0.0
      %394 = vmatprep.subr.mxu0 0.0
      %395 = vmatpush1.msra.mxu0 0.0
      %396 = vmatprep.mubr.f32.mxu0 0.0
      %397 = vmatmul.mubr.f32.gmra.mrb[0].mxu0 %v330
      %v398 = vpop.f32.mrb[0].mxu0
      %v399 = vadd.f32 0.0, %v398
      %v400 = vpop.f32.mrb[0].mxu0
      %401 = vdwg.mxu0
      %v402 = vmul.f32 %v399, 0.001953125
      %v403 = vld [vmem:[%s4] sm:$0xff]
      %vm404 = vcmask 64512
      %v406 = vsel %vm404, %v402, 0
      %408 = vmatprep.subr.mxu0 0.0
      %409 = vmatpush1.msra.mxu0 %v403
      %410 = vmatprep.subr.mxu0 0.0
      %411 = vmatpush1.msra.mxu0 0.0
      %412 = vmatprep.subr.mxu0 0.0
      %413 = vmatpush1.msra.mxu0 0.0
      %414 = vmatprep.subr.mxu0 0.0
      %415 = vmatpush1.msra.mxu0 0.0
      %416 = vmatprep.subr.mxu0 0.0
      %417 = vmatpush1.msra.mxu0 0.0
      %418 = vmatprep.subr.mxu0 0.0
      %419 = vmatpush1.msra.mxu0 0.0
      %420 = vmatprep.subr.mxu0 0.0
      %421 = vmatpush1.msra.mxu0 0.0
      %422 = vmatprep.subr.mxu0 0.0
      %423 = vmatpush1.msra.mxu0 0.0
      %424 = vmatprep.subr.mxu0 0.0
      %425 = vmatpush1.msra.mxu0 0.0
      %426 = vmatprep.subr.mxu0 0.0
      %427 = vmatpush1.msra.mxu0 0.0
      %428 = vmatprep.subr.mxu0 0.0
      %429 = vmatpush1.msra.mxu0 0.0
      %430 = vmatprep.subr.mxu0 0.0
      %431 = vmatpush1.msra.mxu0 0.0
      %432 = vmatprep.subr.mxu0 0.0
      %433 = vmatpush1.msra.mxu0 0.0
      %434 = vmatprep.subr.mxu0 0.0
      %435 = vmatpush1.msra.mxu0 0.0
      %436 = vmatprep.subr.mxu0 0.0
      %437 = vmatpush1.msra.mxu0 0.0
      %438 = vmatprep.subr.mxu0 0.0
      %439 = vmatpush1.msra.mxu0 0.0
      %440 = vmatprep.subr.mxu0 0.0
      %441 = vmatpush1.msra.mxu0 0.0
      %442 = vmatprep.subr.mxu0 0.0
      %443 = vmatpush1.msra.mxu0 0.0
      %444 = vmatprep.subr.mxu0 0.0
      %445 = vmatpush1.msra.mxu0 0.0
      %446 = vmatprep.subr.mxu0 0.0
      %447 = vmatpush1.msra.mxu0 0.0
      %448 = vmatprep.subr.mxu0 0.0
      %449 = vmatpush1.msra.mxu0 0.0
      %450 = vmatprep.subr.mxu0 0.0
      %451 = vmatpush1.msra.mxu0 0.0
      %452 = vmatprep.subr.mxu0 0.0
      %453 = vmatpush1.msra.mxu0 0.0
      %454 = vmatprep.subr.mxu0 0.0
      %455 = vmatpush1.msra.mxu0 0.0
      %456 = vmatprep.subr.mxu0 0.0
      %457 = vmatpush1.msra.mxu0 0.0
      %458 = vmatprep.subr.mxu0 0.0
      %459 = vmatpush1.msra.mxu0 0.0
      %460 = vmatprep.subr.mxu0 0.0
      %461 = vmatpush1.msra.mxu0 0.0
      %462 = vmatprep.subr.mxu0 0.0
      %463 = vmatpush1.msra.mxu0 0.0
      %464 = vmatprep.subr.mxu0 0.0
      %465 = vmatpush1.msra.mxu0 0.0
      %466 = vmatprep.subr.mxu0 0.0
      %467 = vmatpush1.msra.mxu0 0.0
      %468 = vmatprep.subr.mxu0 0.0
      %469 = vmatpush1.msra.mxu0 0.0
      %470 = vmatprep.subr.mxu0 0.0
      %471 = vmatpush1.msra.mxu0 0.0
      %472 = vmatprep.mubr.f32.mxu0 0.0
      %473 = vmatmul.mubr.f32.gmra.mrb[0].mxu0 %v406
      %v474 = vpop.f32.mrb[0].mxu0
      %v475 = vadd.f32 0.0, %v474
      %v476 = vpop.f32.mrb[0].mxu0
      %477 = vdwg.mxu0
      %v478 = vlaneseq
      %v479 = vshrl.u32 %v478, 7
      %v480 = vsub.s32 0, %v479
      %v481 = vrot.slane %v475, %v480
      %v482 = vsub.f32 %v225, %v481
      %v483 = vsub.f32 %v226, %v481
      %v484 = vsub.f32 %v227, %v481
      %v485 = vsub.f32 %v228, %v481
      %v486 = vsub.f32 %v229, %v481
      %v487 = vsub.f32 %v230, %v481
      %v488 = vsub.f32 %v231, %v481
      %v489 = vsub.f32 %v232, %v481
      %v490 = vsub.f32 %v233, %v481
      %v491 = vsub.f32 %v234, %v481
      %v492 = vsub.f32 %v235, %v481
      %v493 = vsub.f32 %v236, %v481
      %v494 = vsub.f32 %v237, %v481
      %v495 = vsub.f32 %v238, %v481
      %v496 = vsub.f32 %v239, %v481
      %v497 = vsub.f32 %v240, %v481
      %v498 = vsub.f32 %v241, %v481
      %v499 = vsub.f32 %v242, %v481
      %v500 = vsub.f32 %v243, %v481
      %v501 = vsub.f32 %v244, %v481
      %v502 = vsub.f32 %v245, %v481
      %v503 = vsub.f32 %v246, %v481
      %v504 = vsub.f32 %v247, %v481
      %v505 = vsub.f32 %v248, %v481
      %v506 = vsub.f32 %v249, %v481
      %v507 = vsub.f32 %v250, %v481
      %v508 = vsub.f32 %v251, %v481
      %v509 = vsub.f32 %v252, %v481
      %v510 = vsub.f32 %v253, %v481
      %v511 = vsub.f32 %v254, %v481
      %v512 = vsub.f32 %v255, %v481
      %v513 = vsub.f32 %v256, %v481
      %v514 = vmul.f32 %v482, %v482
      %v515 = vmul.f32 %v483, %v483
      %v516 = vmul.f32 %v484, %v484
      %v517 = vmul.f32 %v485, %v485
      %v518 = vmul.f32 %v486, %v486
      %v519 = vmul.f32 %v487, %v487
      %v520 = vmul.f32 %v488, %v488
      %v521 = vmul.f32 %v489, %v489
      %v522 = vmul.f32 %v490, %v490
      %v523 = vmul.f32 %v491, %v491
      %v524 = vmul.f32 %v492, %v492
      %v525 = vmul.f32 %v493, %v493
      %v526 = vmul.f32 %v494, %v494
      %v527 = vmul.f32 %v495, %v495
      %v528 = vmul.f32 %v496, %v496
      %v529 = vmul.f32 %v497, %v497
      %v530 = vmul.f32 %v498, %v498
      %v531 = vmul.f32 %v499, %v499
      %v532 = vmul.f32 %v500, %v500
      %v533 = vmul.f32 %v501, %v501
      %v534 = vmul.f32 %v502, %v502
      %v535 = vmul.f32 %v503, %v503
      %v536 = vmul.f32 %v504, %v504
      %v537 = vmul.f32 %v505, %v505
      %v538 = vmul.f32 %v506, %v506
      %v539 = vmul.f32 %v507, %v507
      %v540 = vmul.f32 %v508, %v508
      %v541 = vmul.f32 %v509, %v509
      %v542 = vmul.f32 %v510, %v510
      %v543 = vmul.f32 %v511, %v511
      %v544 = vmul.f32 %v512, %v512
      %v545 = vmul.f32 %v513, %v513
      %v546 = vsel %vm257, %v514, 0.0
      %v547 = vsel %vm257, %v515, 0.0
      %v548 = vadd.f32 %v546, %v547
      %v549 = vsel %vm257, %v516, 0.0
      %v550 = vadd.f32 %v548, %v549
      %v551 = vsel %vm257, %v517, 0.0
      %v552 = vadd.f32 %v550, %v551
      %v553 = vsel %vm257, %v518, 0.0
      %v554 = vadd.f32 %v552, %v553
      %v555 = vsel %vm257, %v519, 0.0
      %v556 = vadd.f32 %v554, %v555
      %v557 = vsel %vm257, %v520, 0.0
      %v558 = vadd.f32 %v556, %v557
      %v559 = vsel %vm257, %v521, 0.0
      %v560 = vadd.f32 %v558, %v559
      %v561 = vsel %vm257, %v522, 0.0
      %v562 = vadd.f32 %v560, %v561
      %v563 = vsel %vm257, %v523, 0.0
      %v564 = vadd.f32 %v562, %v563
      %v565 = vsel %vm257, %v524, 0.0
      %v566 = vadd.f32 %v564, %v565
      %v567 = vsel %vm257, %v525, 0.0
      %v568 = vadd.f32 %v566, %v567
      %v569 = vsel %vm257, %v526, 0.0
      %v570 = vadd.f32 %v568, %v569
      %v571 = vsel %vm257, %v527, 0.0
      %v572 = vadd.f32 %v570, %v571
      %v573 = vsel %vm257, %v528, 0.0
      %v574 = vadd.f32 %v572, %v573
      %v575 = vsel %vm257, %v529, 0.0
      %v576 = vadd.f32 %v574, %v575
      %v577 = vsel %vm257, %v530, 0.0
      %v578 = vadd.f32 %v576, %v577
      %v579 = vsel %vm257, %v531, 0.0
      %v580 = vadd.f32 %v578, %v579
      %v581 = vsel %vm257, %v532, 0.0
      %v582 = vadd.f32 %v580, %v581
      %v583 = vsel %vm257, %v533, 0.0
      %v584 = vadd.f32 %v582, %v583
      %v585 = vsel %vm257, %v534, 0.0
      %v586 = vadd.f32 %v584, %v585
      %v587 = vsel %vm257, %v535, 0.0
      %v588 = vadd.f32 %v586, %v587
      %v589 = vsel %vm257, %v536, 0.0
      %v590 = vadd.f32 %v588, %v589
      %v591 = vsel %vm257, %v537, 0.0
      %v592 = vadd.f32 %v590, %v591
      %v593 = vsel %vm257, %v538, 0.0
      %v594 = vadd.f32 %v592, %v593
      %v595 = vsel %vm257, %v539, 0.0
      %v596 = vadd.f32 %v594, %v595
      %v597 = vsel %vm257, %v540, 0.0
      %v598 = vadd.f32 %v596, %v597
      %v599 = vsel %vm257, %v541, 0.0
      %v600 = vadd.f32 %v598, %v599
      %v601 = vsel %vm257, %v542, 0.0
      %v602 = vadd.f32 %v600, %v601
      %v603 = vsel %vm257, %v543, 0.0
      %v604 = vadd.f32 %v602, %v603
      %v605 = vsel %vm257, %v544, 0.0
      %v606 = vadd.f32 %v604, %v605
      %v607 = vsel %vm257, %v545, 0.0
      %v608 = vadd.f32 %v606, %v607
      %v609 = vrot.slane %v608, 4
      %v610 = vadd.f32 %v608, %v609
      %v611 = vrot.slane %v610, 2
      %v612 = vadd.f32 %v610, %v611
      %v613 = vrot.slane %v612, 1
      %v614 = vadd.f32 %v612, %v613
      %v616 = vsel %vm257, %v614, 0
      %618 = vmatprep.subr.mxu0 0.0
      %619 = vmatpush1.msra.mxu0 %v327
      %620 = vmatprep.subr.mxu0 0.0
      %621 = vmatpush1.msra.mxu0 %v328
      %622 = vmatprep.subr.mxu0 0.0
      %623 = vmatpush1.msra.mxu0 0.0
      %624 = vmatprep.subr.mxu0 0.0
      %625 = vmatpush1.msra.mxu0 0.0
      %626 = vmatprep.subr.mxu0 0.0
      %627 = vmatpush1.msra.mxu0 0.0
      %628 = vmatprep.subr.mxu0 0.0
      %629 = vmatpush1.msra.mxu0 0.0
      %630 = vmatprep.subr.mxu0 0.0
      %631 = vmatpush1.msra.mxu0 0.0
      %632 = vmatprep.subr.mxu0 0.0
      %633 = vmatpush1.msra.mxu0 0.0
      %634 = vmatprep.subr.mxu0 0.0
      %635 = vmatpush1.msra.mxu0 0.0
      %636 = vmatprep.subr.mxu0 0.0
      %637 = vmatpush1.msra.mxu0 0.0
      %638 = vmatprep.subr.mxu0 0.0
      %639 = vmatpush1.msra.mxu0 0.0
      %640 = vmatprep.subr.mxu0 0.0
      %641 = vmatpush1.msra.mxu0 0.0
      %642 = vmatprep.subr.mxu0 0.0
      %643 = vmatpush1.msra.mxu0 0.0
      %644 = vmatprep.subr.mxu0 0.0
      %645 = vmatpush1.msra.mxu0 0.0
      %646 = vmatprep.subr.mxu0 0.0
      %647 = vmatpush1.msra.mxu0 0.0
      %648 = vmatprep.subr.mxu0 0.0
      %649 = vmatpush1.msra.mxu0 0.0
      %650 = vmatprep.subr.mxu0 0.0
      %651 = vmatpush1.msra.mxu0 0.0
      %652 = vmatprep.subr.mxu0 0.0
      %653 = vmatpush1.msra.mxu0 0.0
      %654 = vmatprep.subr.mxu0 0.0
      %655 = vmatpush1.msra.mxu0 0.0
      %656 = vmatprep.subr.mxu0 0.0
      %657 = vmatpush1.msra.mxu0 0.0
      %658 = vmatprep.subr.mxu0 0.0
      %659 = vmatpush1.msra.mxu0 0.0
      %660 = vmatprep.subr.mxu0 0.0
      %661 = vmatpush1.msra.mxu0 0.0
      %662 = vmatprep.subr.mxu0 0.0
      %663 = vmatpush1.msra.mxu0 0.0
      %664 = vmatprep.subr.mxu0 0.0
      %665 = vmatpush1.msra.mxu0 0.0
      %666 = vmatprep.subr.mxu0 0.0
      %667 = vmatpush1.msra.mxu0 0.0
      %668 = vmatprep.subr.mxu0 0.0
      %669 = vmatpush1.msra.mxu0 0.0
      %670 = vmatprep.subr.mxu0 0.0
      %671 = vmatpush1.msra.mxu0 0.0
      %672 = vmatprep.subr.mxu0 0.0
      %673 = vmatpush1.msra.mxu0 0.0
      %674 = vmatprep.subr.mxu0 0.0
      %675 = vmatpush1.msra.mxu0 0.0
      %676 = vmatprep.subr.mxu0 0.0
      %677 = vmatpush1.msra.mxu0 0.0
      %678 = vmatprep.subr.mxu0 0.0
      %679 = vmatpush1.msra.mxu0 0.0
      %680 = vmatprep.subr.mxu0 0.0
      %681 = vmatpush1.msra.mxu0 0.0
      %682 = vmatprep.mubr.f32.mxu0 0.0
      %683 = vmatmul.mubr.f32.gmra.mrb[0].mxu0 %v616
      %v684 = vpop.f32.mrb[0].mxu0
      %v685 = vadd.f32 0.0, %v684
      %v686 = vpop.f32.mrb[0].mxu0
      %687 = vdwg.mxu0
      %v688 = vmul.f32 %v685, 0.001953125
      %v689 = vadd.f32 %v688, 1e-05
      %v690 = vrsqrt.pop %v689
      %v692 = vsel %vm404, %v690, 0
      %694 = vmatprep.subr.mxu0 0.0
      %695 = vmatpush1.msra.mxu0 %v403
      %696 = vmatprep.subr.mxu0 0.0
      %697 = vmatpush1.msra.mxu0 0.0
      %698 = vmatprep.subr.mxu0 0.0
      %699 = vmatpush1.msra.mxu0 0.0
      %700 = vmatprep.subr.mxu0 0.0
      %701 = vmatpush1.msra.mxu0 0.0
      %702 = vmatprep.subr.mxu0 0.0
      %703 = vmatpush1.msra.mxu0 0.0
      %704 = vmatprep.subr.mxu0 0.0
      %705 = vmatpush1.msra.mxu0 0.0
      %706 = vmatprep.subr.mxu0 0.0
      %707 = vmatpush1.msra.mxu0 0.0
      %708 = vmatprep.subr.mxu0 0.0
      %709 = vmatpush1.msra.mxu0 0.0
      %710 = vmatprep.subr.mxu0 0.0
      %711 = vmatpush1.msra.mxu0 0.0
      %712 = vmatprep.subr.mxu0 0.0
      %713 = vmatpush1.msra.mxu0 0.0
      %714 = vmatprep.subr.mxu0 0.0
      %715 = vmatpush1.msra.mxu0 0.0
      %716 = vmatprep.subr.mxu0 0.0
      %717 = vmatpush1.msra.mxu0 0.0
      %718 = vmatprep.subr.mxu0 0.0
      %719 = vmatpush1.msra.mxu0 0.0
      %720 = vmatprep.subr.mxu0 0.0
      %721 = vmatpush1.msra.mxu0 0.0
      %722 = vmatprep.subr.mxu0 0.0
      %723 = vmatpush1.msra.mxu0 0.0
      %724 = vmatprep.subr.mxu0 0.0
      %725 = vmatpush1.msra.mxu0 0.0
      %726 = vmatprep.subr.mxu0 0.0
      %727 = vmatpush1.msra.mxu0 0.0
      %728 = vmatprep.subr.mxu0 0.0
      %729 = vmatpush1.msra.mxu0 0.0
      %730 = vmatprep.subr.mxu0 0.0
      %731 = vmatpush1.msra.mxu0 0.0
      %732 = vmatprep.subr.mxu0 0.0
      %733 = vmatpush1.msra.mxu0 0.0
      %734 = vmatprep.subr.mxu0 0.0
      %735 = vmatpush1.msra.mxu0 0.0
      %736 = vmatprep.subr.mxu0 0.0
      %737 = vmatpush1.msra.mxu0 0.0
      %738 = vmatprep.subr.mxu0 0.0
      %739 = vmatpush1.msra.mxu0 0.0
      %740 = vmatprep.subr.mxu0 0.0
      %741 = vmatpush1.msra.mxu0 0.0
      %742 = vmatprep.subr.mxu0 0.0
      %743 = vmatpush1.msra.mxu0 0.0
      %744 = vmatprep.subr.mxu0 0.0
      %745 = vmatpush1.msra.mxu0 0.0
      %746 = vmatprep.subr.mxu0 0.0
      %747 = vmatpush1.msra.mxu0 0.0
      %748 = vmatprep.subr.mxu0 0.0
      %749 = vmatpush1.msra.mxu0 0.0
      %750 = vmatprep.subr.mxu0 0.0
      %751 = vmatpush1.msra.mxu0 0.0
      %752 = vmatprep.subr.mxu0 0.0
      %753 = vmatpush1.msra.mxu0 0.0
      %754 = vmatprep.subr.mxu0 0.0
      %755 = vmatpush1.msra.mxu0 0.0
      %756 = vmatprep.subr.mxu0 0.0
      %757 = vmatpush1.msra.mxu0 0.0
      %758 = vmatprep.mubr.f32.mxu0 0.0
      %759 = vmatmul.mubr.f32.gmra.mrb[0].mxu0 %v692
      %v760 = vpop.f32.mrb[0].mxu0
      %v761 = vadd.f32 0.0, %v760
      %v762 = vpop.f32.mrb[0].mxu0
      %763 = vdwg.mxu0
      %v764 = vlaneseq
      %v765 = vshrl.u32 %v764, 7
      %v766 = vsub.s32 0, %v765
      %v767 = vrot.slane %v761, %v766
      %v768 = vmul.f32 %v482, %v767
      %v769 = vmul.f32 %v483, %v767
      %v770 = vmul.f32 %v484, %v767
      %v771 = vmul.f32 %v485, %v767
      %v772 = vmul.f32 %v486, %v767
      %v773 = vmul.f32 %v487, %v767
      %v774 = vmul.f32 %v488, %v767
      %v775 = vmul.f32 %v489, %v767
      %v776 = vmul.f32 %v490, %v767
      %v777 = vmul.f32 %v491, %v767
      %v778 = vmul.f32 %v492, %v767
      %v779 = vmul.f32 %v493, %v767
      %v780 = vmul.f32 %v494, %v767
      %v781 = vmul.f32 %v495, %v767
      %v782 = vmul.f32 %v496, %v767
      %v783 = vmul.f32 %v497, %v767
      %v784 = vmul.f32 %v498, %v767
      %v785 = vmul.f32 %v499, %v767
      %v786 = vmul.f32 %v500, %v767
      %v787 = vmul.f32 %v501, %v767
      %v788 = vmul.f32 %v502, %v767
      %v789 = vmul.f32 %v503, %v767
      %v790 = vmul.f32 %v504, %v767
      %v791 = vmul.f32 %v505, %v767
      %v792 = vmul.f32 %v506, %v767
      %v793 = vmul.f32 %v507, %v767
      %v794 = vmul.f32 %v508, %v767
      %v795 = vmul.f32 %v509, %v767
      %v796 = vmul.f32 %v510, %v767
      %v797 = vmul.f32 %v511, %v767
      %v798 = vmul.f32 %v512, %v767
      %v799 = vmul.f32 %v513, %v767
      %v800 = vld [vmem:[%s1] sm:$0x1]
      %v802 = vlaneseq
      %v803 = vshrl.u32 %v802, 7
      %v804 = vsub.s32 0, %v803
      %v805 = vrot.slane %v800, %v804
      %v807 = vmul.f32 %v768, %v805
      %v808 = vmul.f32 %v769, %v805
      %v809 = vmul.f32 %v770, %v805
      %v810 = vmul.f32 %v771, %v805
      %v811 = vmul.f32 %v772, %v805
      %v812 = vmul.f32 %v773, %v805
      %v813 = vmul.f32 %v774, %v805
      %v814 = vmul.f32 %v775, %v805
      %v815 = vmul.f32 %v776, %v805
      %v816 = vmul.f32 %v777, %v805
      %v817 = vmul.f32 %v778, %v805
      %v818 = vmul.f32 %v779, %v805
      %v819 = vmul.f32 %v780, %v805
      %v820 = vmul.f32 %v781, %v805
      %v821 = vmul.f32 %v782, %v805
      %v822 = vmul.f32 %v783, %v805
      %v823 = vmul.f32 %v784, %v805
      %v824 = vmul.f32 %v785, %v805
      %v825 = vmul.f32 %v786, %v805
      %v826 = vmul.f32 %v787, %v805
      %v827 = vmul.f32 %v788, %v805
      %v828 = vmul.f32 %v789, %v805
      %v829 = vmul.f32 %v790, %v805
      %v830 = vmul.f32 %v791, %v805
      %v831 = vmul.f32 %v792, %v805
      %v832 = vmul.f32 %v793, %v805
      %v833 = vmul.f32 %v794, %v805
      %v834 = vmul.f32 %v795, %v805
      %v835 = vmul.f32 %v796, %v805
      %v836 = vmul.f32 %v797, %v805
      %v837 = vmul.f32 %v798, %v805
      %v838 = vmul.f32 %v799, %v805
      %v839 = vld [vmem:[%s2] sm:$0x1]
      %v841 = vlaneseq
      %v842 = vshrl.u32 %v841, 7
      %v843 = vsub.s32 0, %v842
      %v844 = vrot.slane %v839, %v843
      %v846 = vadd.f32 %v807, %v844
      %v847 = vadd.f32 %v808, %v844
      %v848 = vadd.f32 %v809, %v844
      %v849 = vadd.f32 %v810, %v844
      %v850 = vadd.f32 %v811, %v844
      %v851 = vadd.f32 %v812, %v844
      %v852 = vadd.f32 %v813, %v844
      %v853 = vadd.f32 %v814, %v844
      %v854 = vadd.f32 %v815, %v844
      %v855 = vadd.f32 %v816, %v844
      %v856 = vadd.f32 %v817, %v844
      %v857 = vadd.f32 %v818, %v844
      %v858 = vadd.f32 %v819, %v844
      %v859 = vadd.f32 %v820, %v844
      %v860 = vadd.f32 %v821, %v844
      %v861 = vadd.f32 %v822, %v844
      %v862 = vadd.f32 %v823, %v844
      %v863 = vadd.f32 %v824, %v844
      %v864 = vadd.f32 %v825, %v844
      %v865 = vadd.f32 %v826, %v844
      %v866 = vadd.f32 %v827, %v844
      %v867 = vadd.f32 %v828, %v844
      %v868 = vadd.f32 %v829, %v844
      %v869 = vadd.f32 %v830, %v844
      %v870 = vadd.f32 %v831, %v844
      %v871 = vadd.f32 %v832, %v844
      %v872 = vadd.f32 %v833, %v844
      %v873 = vadd.f32 %v834, %v844
      %v874 = vadd.f32 %v835, %v844
      %v875 = vadd.f32 %v836, %v844
      %v876 = vadd.f32 %v837, %v844
      %v877 = vadd.f32 %v838, %v844
      %878 = vst.msk [vmem:[%s224] sm:$0xff] %vm257, %v846
      %879 = vst.msk [vmem:[%s224 + $0x8] sm:$0xff] %vm257, %v847
      %880 = vst.msk [vmem:[%s224 + $0x10] sm:$0xff] %vm257, %v848
      %881 = vst.msk [vmem:[%s224 + $0x18] sm:$0xff] %vm257, %v849
      %882 = vst.msk [vmem:[%s224 + $0x20] sm:$0xff] %vm257, %v850
      %883 = vst.msk [vmem:[%s224 + $0x28] sm:$0xff] %vm257, %v851
      %884 = vst.msk [vmem:[%s224 + $0x30] sm:$0xff] %vm257, %v852
      %885 = vst.msk [vmem:[%s224 + $0x38] sm:$0xff] %vm257, %v853
      %886 = vst.msk [vmem:[%s224 + $0x40] sm:$0xff] %vm257, %v854
      %887 = vst.msk [vmem:[%s224 + $0x48] sm:$0xff] %vm257, %v855
      %888 = vst.msk [vmem:[%s224 + $0x50] sm:$0xff] %vm257, %v856
      %889 = vst.msk [vmem:[%s224 + $0x58] sm:$0xff] %vm257, %v857
      %890 = vst.msk [vmem:[%s224 + $0x60] sm:$0xff] %vm257, %v858
      %891 = vst.msk [vmem:[%s224 + $0x68] sm:$0xff] %vm257, %v859
      %892 = vst.msk [vmem:[%s224 + $0x70] sm:$0xff] %vm257, %v860
      %893 = vst.msk [vmem:[%s224 + $0x78] sm:$0xff] %vm257, %v861
      %894 = vst.msk [vmem:[%s224 + $0x80] sm:$0xff] %vm257, %v862
      %895 = vst.msk [vmem:[%s224 + $0x88] sm:$0xff] %vm257, %v863
      %896 = vst.msk [vmem:[%s224 + $0x90] sm:$0xff] %vm257, %v864
      %897 = vst.msk [vmem:[%s224 + $0x98] sm:$0xff] %vm257, %v865
      %898 = vst.msk [vmem:[%s224 + $0xa0] sm:$0xff] %vm257, %v866
      %899 = vst.msk [vmem:[%s224 + $0xa8] sm:$0xff] %vm257, %v867
      %900 = vst.msk [vmem:[%s224 + $0xb0] sm:$0xff] %vm257, %v868
      %901 = vst.msk [vmem:[%s224 + $0xb8] sm:$0xff] %vm257, %v869
      %902 = vst.msk [vmem:[%s224 + $0xc0] sm:$0xff] %vm257, %v870
      %903 = vst.msk [vmem:[%s224 + $0xc8] sm:$0xff] %vm257, %v871
      %904 = vst.msk [vmem:[%s224 + $0xd0] sm:$0xff] %vm257, %v872
      %905 = vst.msk [vmem:[%s224 + $0xd8] sm:$0xff] %vm257, %v873
      %906 = vst.msk [vmem:[%s224 + $0xe0] sm:$0xff] %vm257, %v874
      %907 = vst.msk [vmem:[%s224 + $0xe8] sm:$0xff] %vm257, %v875
      %908 = vst.msk [vmem:[%s224 + $0xf0] sm:$0xff] %vm257, %v876
      %909 = vst.msk [vmem:[%s224 + $0xf8] sm:$0xff] %vm257, %v877
      %p910 = scmp.lt.s32.totalorder %s16, 1
      %s911 = scalar_select %p910, %s16, 1
      %s912 = smul.addr %s911, 32
      %s913 = smul.addr %s912, 8
      %s914 = scalar_lea.vmem %s5, %s913
      // Predicated region
      $region41: #{upblock_forward.18} parent=39 // pred_check
        %p915 = pneg %p144
      $region42: #{upblock_forward.18} parent=39 // pred_check_branch
        %917 = sbr.rel (%p915) target = $region44
      $region43: #{upblock_forward.18} parent=39 // pred_region
        _
      $region44: #{upblock_forward.18} parent=39 // pred_fallthru
        _
    $region40: #{upblock_forward.18} parent=5 // pred_fallthru
      _
    %p918 = scmp.le.s32.totalorder 2, %s11
    // Predicated region
    $region45: #{upblock_forward.18} parent=5 // pred_check
      %p919 = pneg %p918
    $region46: #{upblock_forward.18} parent=5 // pred_check_branch
      %921 = sbr.rel (%p919) target = $region48
    $region47: #{upblock_forward.18} parent=5 // pred_region
      %s922 = ssub.s32 %s11, 2
      // Predicated region
      $region49: #{upblock_forward.18} parent=47 // pred_check
        %p923 = pneg %p150
      $region50: #{upblock_forward.18} parent=47 // pred_check_branch
        %925 = sbr.rel (%p923) target = $region52
      $region51: #{upblock_forward.18} parent=47 // pred_region
        %p926 = scmp.lt.s32.totalorder %s17, 1
        %s927 = scalar_select %p926, %s17, 1
        %s928 = smul.addr %s927, 32
        %s929 = smul.addr %s928, 8
        %s930 = scalar_lea.vmem %s5, %s929
      $region52: #{upblock_forward.18} parent=47 // pred_fallthru
        _
    $region48: #{upblock_forward.18} parent=5 // pred_fallthru
      _
  $region6: #{upblock_forward.18} parent=0 // loop_footer
    %s15 = sadd.s32 1, %s11
  $region7: #{upblock_forward.18} parent=0 // loop_footer_branch
    %10 = sbr.rel target = $region3
  $region8: #{upblock_forward.18} parent=0 // loop_exit
    _

// kernel: upblock_forward.17
$region0: #{upblock_forward.17}
  #allocation0 [shape = 'u32[]', space=smem, size = 0x4, offset = 0x4, fixed_abs, tag = 'smem constant byte address 0x4 - core index']
  #allocation1 [shape = 'u32[144,128]{1,0:T(1,128)}', space=vmem, size = 0x12000, scoped, tag = 'internal scratch']
  #allocation2 [shape = 'f32[256,16]{1,0:T(8,128)}', space=vmem, size = 0x20000, scoped, tag = 'scratch operand']
  %s0 = inlined_call_operand.vmem [shape: bf16[1,512,16], index: 0, kind: input, shape index: {}]
  %s1 = inlined_call_operand.vmem [shape: bf16[1,16,16], index: 1, kind: input, shape index: {}]
  %s2 = inlined_call_operand.vmem [shape: f32[1,1,16], index: 2, kind: input, shape index: {}]
  %s3 = inlined_call_operand.vmem [shape: f32[1,512,16], index: 3, kind: input, shape index: {}]
  %s4 = inlined_call_operand.vmem [shape: f32[1,512,16], index: 4, kind: output, shape index: {}]
  %s5 = sld [smem:[#allocation0]]
  $region57: #{upblock_forward.17} parent=0
    _
  %s7 = ssub.s32 1, %s5
  %s8 = scalar_select 0, %s7, %s5
  loop: start=0, step=1, limit=4
  $region2: #{upblock_forward.17} parent=0 // loop_pre_header
    _
  $region3: #{upblock_forward.17} parent=0 // loop_header
    %s10 = sphi 0, %s14
    %p11 = scmp.ge.s32.totalorder %s10, 4
    %s17 = sphi 0, %s43
    %s18 = sphi 0, %s39
    %s19 = sphi 0, %s35
    %s20 = sphi 0, %s31
    %s21 = sphi 0, %s17
    %s22 = sphi 0, %s18
    %s23 = sphi 0, %s19
    %s24 = sphi 0, %s20
    %s25 = sphi 0, %s21
    %s26 = sphi 0, %s22
    %s27 = sphi 0, %s23
    %s28 = sphi 0, %s24
    %s50 = sphi 0, %s52
    %s53 = sphi 0, %s50
    %s54 = sphi 0, %s53
    %s70 = sphi 0, %s54
    %s80 = sphi 0, %s82
    %s83 = sphi 0, %s80
    %s84 = sphi 0, %s83
    %s100 = sphi 0, %s84
    %s108 = sphi 0, %s110
    %s111 = sphi 0, %s108
    %s112 = sphi 0, %s111
    %s128 = sphi 0, %s112
    %s138 = sphi 0, %s140
    %s141 = sphi 0, %s138
    %s142 = sphi 0, %s141
    %s158 = sphi 0, %s142
    %s168 = sphi 0, %s170
    %s171 = sphi 0, %s168
    %s172 = sphi 0, %s171
    %s188 = sphi 0, %s172
  $region4: #{upblock_forward.17} parent=0 // loop_header_branch
    %13 = sbr.rel (%p11) target = $region8
  $region5: #{upblock_forward.17} parent=0 // loop_body
    %s15 = ssub.s32 %s10, 1
    %s16 = ssub.s32 %s10, 2
    %s29 = sadd.s32 1, %s20
    %p30 = scmp.ge.s32.totalorder %s29, 1
    %s31 = scalar_select %p30, 0, %s29
    %s32 = sadd.s32 1, %s19
    %s33 = scalar_select %p30, %s32, %s19
    %p34 = scmp.ge.s32.totalorder %s33, 1
    %s35 = scalar_select %p34, 0, %s33
    %s36 = sadd.s32 1, %s18
    %s37 = scalar_select %p34, %s36, %s18
    %p38 = scmp.ge.s32.totalorder %s37, 2
    %s39 = scalar_select %p38, 0, %s37
    %s40 = sadd.s32 1, %s17
    %s41 = scalar_select %p38, %s40, %s17
    %p42 = scmp.ge.s32.totalorder %s41, 1
    %s43 = scalar_select %p42, 0, %s41
    %s44 = ssub.s32 %s17, %s43
    %s45 = ssub.s32 %s18, %s39
    %s46 = sor.u32 %s44, %s45
    %s47 = ssub.s32 %s20, %s31
    %s48 = sor.u32 %s46, %s47
    %p49 = scmp.eq.s32.totalorder %s48, 0
    %s51 = sadd.s32 %s50, 1
    %s52 = scalar_select %p49, %s50, %s51
    %p55 = pneg %p49
    %p56 = scmp.eq.s32.totalorder %s10, 1
    %p57 = por %p55, %p56
    %p58 = scmp.ne.s32.totalorder %s50, %s53
    %p59 = scmp.eq.s32.totalorder %s10, 0
    %p60 = por %p58, %p59
    %p61 = scmp.ne.s32.totalorder %s50, %s53
    %p62 = scmp.eq.s32.totalorder %s15, 1
    %p63 = por %p61, %p62
    %p64 = scmp.ne.s32.totalorder %s53, %s54
    %p65 = scmp.eq.s32.totalorder %s15, 0
    %p66 = por %p64, %p65
    %p67 = scmp.ne.s32.totalorder %s53, %s54
    %p68 = scmp.eq.s32.totalorder %s16, 1
    %p69 = por %p67, %p68
    %p71 = scmp.ne.s32.totalorder %s54, %s70
    %p72 = scmp.eq.s32.totalorder %s16, 0
    %p73 = por %p71, %p72
    %s74 = ssub.s32 %s17, %s43
    %s75 = ssub.s32 %s20, %s31
    %s76 = sor.u32 %s74, %s75
    %s77 = ssub.s32 %s19, %s35
    %s78 = sor.u32 %s76, %s77
    %p79 = scmp.eq.s32.totalorder %s78, 0
    %s81 = sadd.s32 %s80, 1
    %s82 = scalar_select %p79, %s80, %s81
    %p85 = pneg %p79
    %p86 = scmp.eq.s32.totalorder %s10, 1
    %p87 = por %p85, %p86
    %p88 = scmp.ne.s32.totalorder %s80, %s83
    %p89 = scmp.eq.s32.totalorder %s10, 0
    %p90 = por %p88, %p89
    %p91 = scmp.ne.s32.totalorder %s80, %s83
    %p92 = scmp.eq.s32.totalorder %s15, 1
    %p93 = por %p91, %p92
    %p94 = scmp.ne.s32.totalorder %s83, %s84
    %p95 = scmp.eq.s32.totalorder %s15, 0
    %p96 = por %p94, %p95
    %p97 = scmp.ne.s32.totalorder %s83, %s84
    %p98 = scmp.eq.s32.totalorder %s16, 1
    %p99 = por %p97, %p98
    %p101 = scmp.ne.s32.totalorder %s84, %s100
    %p102 = scmp.eq.s32.totalorder %s16, 0
    %p103 = por %p101, %p102
    %s104 = ssub.s32 %s17, %s43
    %s105 = ssub.s32 %s19, %s35
    %s106 = sor.u32 %s104, %s105
    %p107 = scmp.eq.s32.totalorder %s106, 0
    %s109 = sadd.s32 %s108, 1
    %s110 = scalar_select %p107, %s108, %s109
    %p113 = pneg %p107
    %p114 = scmp.eq.s32.totalorder %s10, 1
    %p115 = por %p113, %p114
    %p116 = scmp.ne.s32.totalorder %s108, %s111
    %p117 = scmp.eq.s32.totalorder %s10, 0
    %p118 = por %p116, %p117
    %p119 = scmp.ne.s32.totalorder %s108, %s111
    %p120 = scmp.eq.s32.totalorder %s15, 1
    %p121 = por %p119, %p120
    %p122 = scmp.ne.s32.totalorder %s111, %s112
    %p123 = scmp.eq.s32.totalorder %s15, 0
    %p124 = por %p122, %p123
    %p125 = scmp.ne.s32.totalorder %s111, %s112
    %p126 = scmp.eq.s32.totalorder %s16, 1
    %p127 = por %p125, %p126
    %p129 = scmp.ne.s32.totalorder %s112, %s128
    %p130 = scmp.eq.s32.totalorder %s16, 0
    %p131 = por %p129, %p130
    %s132 = ssub.s32 %s17, %s43
    %s133 = ssub.s32 %s18, %s39
    %s134 = sor.u32 %s132, %s133
    %s135 = ssub.s32 %s19, %s35
    %s136 = sor.u32 %s134, %s135
    %p137 = scmp.eq.s32.totalorder %s136, 0
    %s139 = sadd.s32 %s138, 1
    %s140 = scalar_select %p137, %s138, %s139
    %p143 = pneg %p137
    %p144 = scmp.eq.s32.totalorder %s10, 1
    %p145 = por %p143, %p144
    %p146 = scmp.ne.s32.totalorder %s138, %s141
    %p147 = scmp.eq.s32.totalorder %s10, 0
    %p148 = por %p146, %p147
    %p149 = scmp.ne.s32.totalorder %s138, %s141
    %p150 = scmp.eq.s32.totalorder %s15, 1
    %p151 = por %p149, %p150
    %p152 = scmp.ne.s32.totalorder %s141, %s142
    %p153 = scmp.eq.s32.totalorder %s15, 0
    %p154 = por %p152, %p153
    %p155 = scmp.ne.s32.totalorder %s141, %s142
    %p156 = scmp.eq.s32.totalorder %s16, 1
    %p157 = por %p155, %p156
    %p159 = scmp.ne.s32.totalorder %s142, %s158
    %p160 = scmp.eq.s32.totalorder %s16, 0
    %p161 = por %p159, %p160
    %s162 = ssub.s32 %s17, %s43
    %s163 = ssub.s32 %s18, %s39
    %s164 = sor.u32 %s162, %s163
    %s165 = ssub.s32 %s19, %s35
    %s166 = sor.u32 %s164, %s165
    %p167 = scmp.eq.s32.totalorder %s166, 0
    %s169 = sadd.s32 %s168, 1
    %s170 = scalar_select %p167, %s168, %s169
    %p173 = pneg %p167
    %p174 = scmp.eq.s32.totalorder %s10, 1
    %p175 = por %p173, %p174
    %p176 = scmp.ne.s32.totalorder %s168, %s171
    %p177 = scmp.eq.s32.totalorder %s10, 0
    %p178 = por %p176, %p177
    %p179 = scmp.ne.s32.totalorder %s168, %s171
    %p180 = scmp.eq.s32.totalorder %s15, 1
    %p181 = por %p179, %p180
    %p182 = scmp.ne.s32.totalorder %s171, %s172
    %p183 = scmp.eq.s32.totalorder %s15, 0
    %p184 = por %p182, %p183
    %p185 = scmp.ne.s32.totalorder %s171, %s172
    %p186 = scmp.eq.s32.totalorder %s16, 1
    %p187 = por %p185, %p186
    %p189 = scmp.ne.s32.totalorder %s172, %s188
    %p190 = scmp.eq.s32.totalorder %s16, 0
    %p191 = por %p189, %p190
    %p192 = scmp.le.s32.totalorder 1, %s10
    %p193 = scmp.lt.s32.totalorder %s10, 3
    %p194 = pnand %p192, %p193
    %p195 = pneg %p194
    // Predicated region
    $region9: #{upblock_forward.17} parent=5 // pred_check
      _
    $region10: #{upblock_forward.17} parent=5 // pred_check_branch
      %197 = sbr.rel (%p194) target = $region12
    $region11: #{upblock_forward.17} parent=5 // pred_region
      %s198 = ssub.s32 %s10, 1
      // Predicated region
      $region13: #{upblock_forward.17} parent=11 // pred_check
        %p199 = pneg %p96
      $region14: #{upblock_forward.17} parent=11 // pred_check_branch
        %201 = sbr.rel (%p199) target = $region16
      $region15: #{upblock_forward.17} parent=11 // pred_region
        %s202 = smul.u32 2, %s24
        %p203 = scmp.lt.s32.totalorder %s21, 0
        %s204 = scalar_select %p203, %s21, 0
        %p205 = scmp.lt.s32.totalorder %s202, 1
        %s206 = scalar_select %p205, %s202, 1
        %p207 = scmp.lt.s32.totalorder %s23, 0
        %s208 = scalar_select %p207, %s23, 0
        %s209 = sadd.s32 %s208, %s206
        %s210 = smul.addr %s204, 2
        %s211 = sadd.s32 %s209, %s210
        %s212 = smul.addr %s211, 4
        %s213 = scalar_lea.vmem %s1, %s212
        %s214 = smul.u32 2, %s24
      $region16: #{upblock_forward.17} parent=11 // pred_fallthru
        _
      // Predicated region
      $region17: #{upblock_forward.17} parent=11 // pred_check
        %p215 = pneg %p124
      $region18: #{upblock_forward.17} parent=11 // pred_check_branch
        %217 = sbr.rel (%p215) target = $region20
      $region19: #{upblock_forward.17} parent=11 // pred_region
        %p218 = scmp.lt.s32.totalorder %s21, 0
        %s219 = scalar_select %p218, %s21, 0
        %p220 = scmp.lt.s32.totalorder %s23, 0
        %s221 = scalar_select %p220, %s23, 0
        %s222 = sadd.s32 %s221, %s219
        %s223 = scalar_lea.vmem %s2, %s222
      $region20: #{upblock_forward.17} parent=11 // pred_fallthru
        _
    $region12: #{upblock_forward.17} parent=5 // pred_fallthru
      _
    %p224 = scmp.lt.s32.totalorder %s10, 2
    // Predicated region
    $region21: #{upblock_forward.17} parent=5 // pred_check
      %p225 = pneg %p224
    $region22: #{upblock_forward.17} parent=5 // pred_check_branch
      %227 = sbr.rel (%p225) target = $region24
    $region23: #{upblock_forward.17} parent=5 // pred_region
      // Predicated region
      $region25: #{upblock_forward.17} parent=23 // pred_check
        %p228 = pneg %p60
      $region26: #{upblock_forward.17} parent=23 // pred_check_branch
        %230 = sbr.rel (%p228) target = $region28
      $region27: #{upblock_forward.17} parent=23 // pred_region
        %s231 = smul.u32 32, %s18
        %p232 = scmp.lt.s32.totalorder %s17, 0
        %s233 = scalar_select %p232, %s17, 0
        %p234 = scmp.lt.s32.totalorder %s231, 63
        %s235 = scalar_select %p234, %s231, 63
        %p236 = scmp.lt.s32.totalorder %s20, 0
        %s237 = scalar_select %p236, %s20, 0
        %s238 = sadd.s32 %s237, %s235
        %s239 = smul.addr %s233, 64
        %s240 = sadd.s32 %s238, %s239
        %s241 = smul.addr %s240, 4
        %s242 = scalar_lea.vmem %s0, %s241
        %s243 = smul.u32 32, %s18
      $region28: #{upblock_forward.17} parent=23 // pred_fallthru
        _
      // Predicated region
      $region29: #{upblock_forward.17} parent=23 // pred_check
        %p244 = pneg %p148
      $region30: #{upblock_forward.17} parent=23 // pred_check_branch
        %246 = sbr.rel (%p244) target = $region32
      $region31: #{upblock_forward.17} parent=23 // pred_region
        %s247 = smul.u32 32, %s18
        %p248 = scmp.lt.s32.totalorder %s17, 0
        %s249 = scalar_select %p248, %s17, 0
        %p250 = scmp.lt.s32.totalorder %s247, 63
        %s251 = scalar_select %p250, %s247, 63
        %p252 = scmp.lt.s32.totalorder %s19, 0
        %s253 = scalar_select %p252, %s19, 0
        %s254 = sadd.s32 %s253, %s251
        %s255 = smul.addr %s249, 64
        %s256 = sadd.s32 %s254, %s255
        %s257 = smul.addr %s256, 8
        %s258 = scalar_lea.vmem %s3, %s257
        %s259 = smul.u32 32, %s18
      $region32: #{upblock_forward.17} parent=23 // pred_fallthru
        _
    $region24: #{upblock_forward.17} parent=5 // pred_fallthru
      _
    %p260 = scmp.le.s32.totalorder 1, %s10
    %p261 = scmp.lt.s32.totalorder %s10, 3
    %p262 = pnand %p260, %p261
    %p263 = pneg %p262
    // Predicated region
    $region33: #{upblock_forward.17} parent=5 // pred_check
      _
    $region34: #{upblock_forward.17} parent=5 // pred_check_branch
      %265 = sbr.rel (%p262) target = $region36
    $region35: #{upblock_forward.17} parent=5 // pred_region
      %s266 = ssub.s32 %s10, 1
      %s267 = smul.u32 32, %s22
      %p268 = scmp.lt.s32.totalorder %s21, 0
      %s269 = scalar_select %p268, %s21, 0
      %p270 = scmp.lt.s32.totalorder %s267, 63
      %s271 = scalar_select %p270, %s267, 63
      %p272 = scmp.lt.s32.totalorder %s24, 0
      %s273 = scalar_select %p272, %s24, 0
      %s274 = sadd.s32 %s273, %s271
      %s275 = smul.addr %s269, 64
      %s276 = sadd.s32 %s274, %s275
      %s277 = smul.addr %s276, 4
      %s278 = scalar_lea.vmem %s0, %s277
      %p279 = pneg %p66
      %p280 = pneg %p63
      %s281 = smul.u32 2, %s24
      %p282 = scmp.lt.s32.totalorder %s21, 0
      %s283 = scalar_select %p282, %s21, 0
      %p284 = scmp.lt.s32.totalorder %s281, 1
      %s285 = scalar_select %p284, %s281, 1
      %p286 = scmp.lt.s32.totalorder %s23, 0
      %s287 = scalar_select %p286, %s23, 0
      %s288 = sadd.s32 %s287, %s285
      %s289 = smul.addr %s283, 2
      %s290 = sadd.s32 %s288, %s289
      %s291 = smul.addr %s290, 4
      %s292 = scalar_lea.vmem %s1, %s291
      %p293 = pneg %p96
      %p294 = pneg %p93
      %p295 = scmp.lt.s32.totalorder %s21, 0
      %s296 = scalar_select %p295, %s21, 0
      %p297 = scmp.lt.s32.totalorder %s23, 0
      %s298 = scalar_select %p297, %s23, 0
      %s299 = sadd.s32 %s298, %s296
      %s300 = scalar_lea.vmem %s2, %s299
      %p301 = pneg %p124
      %p302 = pneg %p121
      %s303 = smul.u32 32, %s22
      %p304 = scmp.lt.s32.totalorder %s21, 0
      %s305 = scalar_select %p304, %s21, 0
      %p306 = scmp.lt.s32.totalorder %s303, 63
      %s307 = scalar_select %p306, %s303, 63
      %p308 = scmp.lt.s32.totalorder %s23, 0
      %s309 = scalar_select %p308, %s23, 0
      %s310 = sadd.s32 %s309, %s307
      %s311 = smul.addr %s305, 64
      %s312 = sadd.s32 %s310, %s311
      %s313 = smul.addr %s312, 8
      %s314 = scalar_lea.vmem %s3, %s313
      %p315 = pneg %p154
      %p316 = pneg %p151
      %p317 = pneg %p184
      %p318 = pneg %p181
      %s319 = smul.u32 32, %s22
      %p320 = scmp.lt.s32.totalorder %s21, 0
      %s321 = scalar_select %p320, %s21, 0
      %p322 = scmp.lt.s32.totalorder %s319, 63
      %s323 = scalar_select %p322, %s319, 63
      %p324 = scmp.lt.s32.totalorder %s23, 0
      %s325 = scalar_select %p324, %s23, 0
      %s326 = sadd.s32 %s325, %s323
      %s327 = smul.addr %s321, 64
      %s328 = sadd.s32 %s326, %s327
      %s329 = smul.addr %s328, 8
      %s330 = scalar_lea.vmem %s4, %s329
      %s331 = smul.u32 32, %s22
      %p332 = scmp.lt.s32.totalorder %s21, 0
      %s333 = scalar_select %p332, %s21, 0
      %p334 = scmp.lt.s32.totalorder %s331, 63
      %s335 = scalar_select %p334, %s331, 63
      %p336 = scmp.lt.s32.totalorder %s24, 0
      %s337 = scalar_select %p336, %s24, 0
      %s338 = sadd.s32 %s337, %s335
      %s339 = smul.addr %s333, 64
      %s340 = sadd.s32 %s338, %s339
      %s341 = smul.addr %s340, 4
      %s342 = scalar_lea.vmem %s0, %s341
      %s343 = smul.u32 32, %s22
      %s344 = smul.u32 2, %s24
      %p345 = scmp.lt.s32.totalorder %s21, 0
      %s346 = scalar_select %p345, %s21, 0
      %p347 = scmp.lt.s32.totalorder %s344, 1
      %s348 = scalar_select %p347, %s344, 1
      %p349 = scmp.lt.s32.totalorder %s23, 0
      %s350 = scalar_select %p349, %s23, 0
      %s351 = sadd.s32 %s350, %s348
      %s352 = smul.addr %s346, 2
      %s353 = sadd.s32 %s351, %s352
      %s354 = smul.addr %s353, 4
      %s355 = scalar_lea.vmem %s1, %s354
      %s356 = smul.u32 2, %s24
      %p357 = scmp.lt.s32.totalorder %s21, 0
      %s358 = scalar_select %p357, %s21, 0
      %p359 = scmp.lt.s32.totalorder %s23, 0
      %s360 = scalar_select %p359, %s23, 0
      %s361 = sadd.s32 %s360, %s358
      %s362 = scalar_lea.vmem %s2, %s361
      %s363 = smul.u32 32, %s22
      %p364 = scmp.lt.s32.totalorder %s21, 0
      %s365 = scalar_select %p364, %s21, 0
      %p366 = scmp.lt.s32.totalorder %s363, 63
      %s367 = scalar_select %p366, %s363, 63
      %p368 = scmp.lt.s32.totalorder %s23, 0
      %s369 = scalar_select %p368, %s23, 0
      %s370 = sadd.s32 %s369, %s367
      %s371 = smul.addr %s365, 64
      %s372 = sadd.s32 %s370, %s371
      %s373 = smul.addr %s372, 8
      %s374 = scalar_lea.vmem %s3, %s373
      %s375 = smul.u32 32, %s22
      %s376 = smul.u32 32, %s22
      %p377 = scmp.lt.s32.totalorder %s21, 0
      %s378 = scalar_select %p377, %s21, 0
      %p379 = scmp.lt.s32.totalorder %s376, 63
      %s380 = scalar_select %p379, %s376, 63
      %p381 = scmp.lt.s32.totalorder %s23, 0
      %s382 = scalar_select %p381, %s23, 0
      %s383 = sadd.s32 %s382, %s380
      %s384 = smul.addr %s378, 64
      %s385 = sadd.s32 %s383, %s384
      %s386 = smul.addr %s385, 8
      %s387 = scalar_lea.vmem %s4, %s386
      %s388 = smul.u32 32, %s22
      %p390 = scmp.eq.s32.totalorder %s24, 0
      // Predicated region
      $region37: #{upblock_forward.17} parent=35 // pred_check
        %p391 = pneg %p390
      $region38: #{upblock_forward.17} parent=35 // pred_check_branch
        %393 = sbr.rel (%p391) target = $region40
      $region39: #{upblock_forward.17} parent=35 // pred_region
        %vm394 = vcmask 130048
        %395 = vst.msk [vmem:[#allocation2] sm:$0xff] %vm394, 0.0
        %396 = vst.msk [vmem:[#allocation2 + $0x8] sm:$0xff] %vm394, 0.0
        %397 = vst.msk [vmem:[#allocation2 + $0x10] sm:$0xff] %vm394, 0.0
        %398 = vst.msk [vmem:[#allocation2 + $0x18] sm:$0xff] %vm394, 0.0
        %399 = vst.msk [vmem:[#allocation2 + $0x20] sm:$0xff] %vm394, 0.0
        %400 = vst.msk [vmem:[#allocation2 + $0x28] sm:$0xff] %vm394, 0.0
        %401 = vst.msk [vmem:[#allocation2 + $0x30] sm:$0xff] %vm394, 0.0
        %402 = vst.msk [vmem:[#allocation2 + $0x38] sm:$0xff] %vm394, 0.0
        %403 = vst.msk [vmem:[#allocation2 + $0x40] sm:$0xff] %vm394, 0.0
        %404 = vst.msk [vmem:[#allocation2 + $0x48] sm:$0xff] %vm394, 0.0
        %405 = vst.msk [vmem:[#allocation2 + $0x50] sm:$0xff] %vm394, 0.0
        %406 = vst.msk [vmem:[#allocation2 + $0x58] sm:$0xff] %vm394, 0.0
        %407 = vst.msk [vmem:[#allocation2 + $0x60] sm:$0xff] %vm394, 0.0
        %408 = vst.msk [vmem:[#allocation2 + $0x68] sm:$0xff] %vm394, 0.0
        %409 = vst.msk [vmem:[#allocation2 + $0x70] sm:$0xff] %vm394, 0.0
        %410 = vst.msk [vmem:[#allocation2 + $0x78] sm:$0xff] %vm394, 0.0
        %411 = vst.msk [vmem:[#allocation2 + $0x80] sm:$0xff] %vm394, 0.0
        %412 = vst.msk [vmem:[#allocation2 + $0x88] sm:$0xff] %vm394, 0.0
        %413 = vst.msk [vmem:[#allocation2 + $0x90] sm:$0xff] %vm394, 0.0
        %414 = vst.msk [vmem:[#allocation2 + $0x98] sm:$0xff] %vm394, 0.0
        %415 = vst.msk [vmem:[#allocation2 + $0xa0] sm:$0xff] %vm394, 0.0
        %416 = vst.msk [vmem:[#allocation2 + $0xa8] sm:$0xff] %vm394, 0.0
        %417 = vst.msk [vmem:[#allocation2 + $0xb0] sm:$0xff] %vm394, 0.0
        %418 = vst.msk [vmem:[#allocation2 + $0xb8] sm:$0xff] %vm394, 0.0
        %419 = vst.msk [vmem:[#allocation2 + $0xc0] sm:$0xff] %vm394, 0.0
        %420 = vst.msk [vmem:[#allocation2 + $0xc8] sm:$0xff] %vm394, 0.0
        %421 = vst.msk [vmem:[#allocation2 + $0xd0] sm:$0xff] %vm394, 0.0
        %422 = vst.msk [vmem:[#allocation2 + $0xd8] sm:$0xff] %vm394, 0.0
        %423 = vst.msk [vmem:[#allocation2 + $0xe0] sm:$0xff] %vm394, 0.0
        %424 = vst.msk [vmem:[#allocation2 + $0xe8] sm:$0xff] %vm394, 0.0
        %425 = vst.msk [vmem:[#allocation2 + $0xf0] sm:$0xff] %vm394, 0.0
        %426 = vst.msk [vmem:[#allocation2 + $0xf8] sm:$0xff] %vm394, 0.0
      $region40: #{upblock_forward.17} parent=35 // pred_fallthru
        _
      %v427 = vld [vmem:[%s342] sm:$0xf]
      %v428 = vld [vmem:[%s342 + $0x4] sm:$0xf]
      %v429 = vld [vmem:[%s342 + $0x8] sm:$0xf]
      %v430 = vld [vmem:[%s342 + $0xc] sm:$0xf]
      %v431 = vld [vmem:[%s342 + $0x10] sm:$0xf]
      %v432 = vld [vmem:[%s342 + $0x14] sm:$0xf]
      %v433 = vld [vmem:[%s342 + $0x18] sm:$0xf]
      %v434 = vld [vmem:[%s342 + $0x1c] sm:$0xf]
      %v435 = vld [vmem:[%s342 + $0x20] sm:$0xf]
      %v436 = vld [vmem:[%s342 + $0x24] sm:$0xf]
      %v437 = vld [vmem:[%s342 + $0x28] sm:$0xf]
      %v438 = vld [vmem:[%s342 + $0x2c] sm:$0xf]
      %v439 = vld [vmem:[%s342 + $0x30] sm:$0xf]
      %v440 = vld [vmem:[%s342 + $0x34] sm:$0xf]
      %v441 = vld [vmem:[%s342 + $0x38] sm:$0xf]
      %v442 = vld [vmem:[%s342 + $0x3c] sm:$0xf]
      %v443 = vld [vmem:[%s342 + $0x40] sm:$0xf]
      %v444 = vld [vmem:[%s342 + $0x44] sm:$0xf]
      %v445 = vld [vmem:[%s342 + $0x48] sm:$0xf]
      %v446 = vld [vmem:[%s342 + $0x4c] sm:$0xf]
      %v447 = vld [vmem:[%s342 + $0x50] sm:$0xf]
      %v448 = vld [vmem:[%s342 + $0x54] sm:$0xf]
      %v449 = vld [vmem:[%s342 + $0x58] sm:$0xf]
      %v450 = vld [vmem:[%s342 + $0x5c] sm:$0xf]
      %v451 = vld [vmem:[%s342 + $0x60] sm:$0xf]
      %v452 = vld [vmem:[%s342 + $0x64] sm:$0xf]
      %v453 = vld [vmem:[%s342 + $0x68] sm:$0xf]
      %v454 = vld [vmem:[%s342 + $0x6c] sm:$0xf]
      %v455 = vld [vmem:[%s342 + $0x70] sm:$0xf]
      %v456 = vld [vmem:[%s342 + $0x74] sm:$0xf]
      %v457 = vld [vmem:[%s342 + $0x78] sm:$0xf]
      %v458 = vld [vmem:[%s342 + $0x7c] sm:$0xf]
      %v459 = vld [vmem:[#allocation2] sm:$0xff]
      %v460 = vld [vmem:[#allocation2 + $0x8] sm:$0xff]
      %v461 = vld [vmem:[#allocation2 + $0x10] sm:$0xff]
      %v462 = vld [vmem:[#allocation2 + $0x18] sm:$0xff]
      %v463 = vld [vmem:[#allocation2 + $0x20] sm:$0xff]
      %v464 = vld [vmem:[#allocation2 + $0x28] sm:$0xff]
      %v465 = vld [vmem:[#allocation2 + $0x30] sm:$0xff]
      %v466 = vld [vmem:[#allocation2 + $0x38] sm:$0xff]
      %v467 = vld [vmem:[#allocation2 + $0x40] sm:$0xff]
      %v468 = vld [vmem:[#allocation2 + $0x48] sm:$0xff]
      %v469 = vld [vmem:[#allocation2 + $0x50] sm:$0xff]
      %v470 = vld [vmem:[#allocation2 + $0x58] sm:$0xff]
      %v471 = vld [vmem:[#allocation2 + $0x60] sm:$0xff]
      %v472 = vld [vmem:[#allocation2 + $0x68] sm:$0xff]
      %v473 = vld [vmem:[#allocation2 + $0x70] sm:$0xff]
      %v474 = vld [vmem:[#allocation2 + $0x78] sm:$0xff]
      %v475 = vld [vmem:[#allocation2 + $0x80] sm:$0xff]
      %v476 = vld [vmem:[#allocation2 + $0x88] sm:$0xff]
      %v477 = vld [vmem:[#allocation2 + $0x90] sm:$0xff]
      %v478 = vld [vmem:[#allocation2 + $0x98] sm:$0xff]
      %v479 = vld [vmem:[#allocation2 + $0xa0] sm:$0xff]
      %v480 = vld [vmem:[#allocation2 + $0xa8] sm:$0xff]
      %v481 = vld [vmem:[#allocation2 + $0xb0] sm:$0xff]
      %v482 = vld [vmem:[#allocation2 + $0xb8] sm:$0xff]
      %v483 = vld [vmem:[#allocation2 + $0xc0] sm:$0xff]
      %v484 = vld [vmem:[#allocation2 + $0xc8] sm:$0xff]
      %v485 = vld [vmem:[#allocation2 + $0xd0] sm:$0xff]
      %v486 = vld [vmem:[#allocation2 + $0xd8] sm:$0xff]
      %v487 = vld [vmem:[#allocation2 + $0xe0] sm:$0xff]
      %v488 = vld [vmem:[#allocation2 + $0xe8] sm:$0xff]
      %v489 = vld [vmem:[#allocation2 + $0xf0] sm:$0xff]
      %v490 = vld [vmem:[#allocation2 + $0xf8] sm:$0xff]
      %v491 = vld [vmem:[%s355] sm:$0xf]
      %v492 = vld [vmem:[%s355 + $0x4] sm:$0xf]
      %v525 = vunpack.c.l.b16 %v427
      %v526 = vunpack.c.l.b16 %v428
      %v527 = vunpack.c.l.b16 %v429
      %v528 = vunpack.c.l.b16 %v430
      %v529 = vunpack.c.l.b16 %v431
      %v530 = vunpack.c.l.b16 %v432
      %v531 = vunpack.c.l.b16 %v433
      %v532 = vunpack.c.l.b16 %v434
      %v533 = vunpack.c.l.b16 %v435
      %v534 = vunpack.c.l.b16 %v436
      %v535 = vunpack.c.l.b16 %v437
      %v536 = vunpack.c.l.b16 %v438
      %v537 = vunpack.c.l.b16 %v439
      %v538 = vunpack.c.l.b16 %v440
      %v539 = vunpack.c.l.b16 %v441
      %v540 = vunpack.c.l.b16 %v442
      %v541 = vunpack.c.l.b16 %v443
      %v542 = vunpack.c.l.b16 %v444
      %v543 = vunpack.c.l.b16 %v445
      %v544 = vunpack.c.l.b16 %v446
      %v545 = vunpack.c.l.b16 %v447
      %v546 = vunpack.c.l.b16 %v448
      %v547 = vunpack.c.l.b16 %v449
      %v548 = vunpack.c.l.b16 %v450
      %v549 = vunpack.c.l.b16 %v451
      %v550 = vunpack.c.l.b16 %v452
      %v551 = vunpack.c.l.b16 %v453
      %v552 = vunpack.c.l.b16 %v454
      %v553 = vunpack.c.l.b16 %v455
      %v554 = vunpack.c.l.b16 %v456
      %v555 = vunpack.c.l.b16 %v457
      %v556 = vunpack.c.l.b16 %v458
      %v557 = vpack.c.b16 %v526, %v525
      %v558 = vpack.c.b16 %v528, %v527
      %v559 = vpack.c.b16 %v530, %v529
      %v560 = vpack.c.b16 %v532, %v531
      %v561 = vpack.c.b16 %v534, %v533
      %v562 = vpack.c.b16 %v536, %v535
      %v563 = vpack.c.b16 %v538, %v537
      %v564 = vpack.c.b16 %v540, %v539
      %v565 = vpack.c.b16 %v542, %v541
      %v566 = vpack.c.b16 %v544, %v543
      %v567 = vpack.c.b16 %v546, %v545
      %v568 = vpack.c.b16 %v548, %v547
      %v569 = vpack.c.b16 %v550, %v549
      %v570 = vpack.c.b16 %v552, %v551
      %v571 = vpack.c.b16 %v554, %v553
      %v572 = vpack.c.b16 %v556, %v555
      %v575 = vunpack.c.l.b16 %v491
      %v576 = vunpack.c.l.b16 %v492
      %v577 = vpack.c.b16 %v576, %v575
      %vm579 = vcmask 130048
      %v581 = vsel %vm579, %v557, 0
      %v584 = vsel %vm579, %v558, 0
      %v587 = vsel %vm579, %v559, 0
      %v590 = vsel %vm579, %v560, 0
      %v593 = vsel %vm579, %v561, 0
      %v596 = vsel %vm579, %v562, 0
      %v599 = vsel %vm579, %v563, 0
      %v602 = vsel %vm579, %v564, 0
      %v605 = vsel %vm579, %v565, 0
      %v608 = vsel %vm579, %v566, 0
      %v611 = vsel %vm579, %v567, 0
      %v614 = vsel %vm579, %v568, 0
      %v617 = vsel %vm579, %v569, 0
      %v620 = vsel %vm579, %v570, 0
      %v623 = vsel %vm579, %v571, 0
      %v626 = vsel %vm579, %v572, 0
      %628 = vmatprep.subr.bf16.mxu0 0
      %629 = vmatpush1.bf16.msra.mxu0 %v577
      %630 = vmatprep.subr.bf16.mxu0 0
      %631 = vmatpush1.bf16.msra.mxu0 0
      %632 = vmatprep.subr.bf16.mxu0 0
      %633 = vmatpush1.bf16.msra.mxu0 0
      %634 = vmatprep.subr.bf16.mxu0 0
      %635 = vmatpush1.bf16.msra.mxu0 0
      %636 = vmatprep.subr.bf16.mxu0 0
      %637 = vmatpush1.bf16.msra.mxu0 0
      %638 = vmatprep.subr.bf16.mxu0 0
      %639 = vmatpush1.bf16.msra.mxu0 0
      %640 = vmatprep.subr.bf16.mxu0 0
      %641 = vmatpush1.bf16.msra.mxu0 0
      %642 = vmatprep.subr.bf16.mxu0 0
      %643 = vmatpush1.bf16.msra.mxu0 0
      %644 = vmatprep.subr.bf16.mxu0 0
      %645 = vmatpush1.bf16.msra.mxu0 0
      %646 = vmatprep.subr.bf16.mxu0 0
      %647 = vmatpush1.bf16.msra.mxu0 0
      %648 = vmatprep.subr.bf16.mxu0 0
      %649 = vmatpush1.bf16.msra.mxu0 0
      %650 = vmatprep.subr.bf16.mxu0 0
      %651 = vmatpush1.bf16.msra.mxu0 0
      %652 = vmatprep.subr.bf16.mxu0 0
      %653 = vmatpush1.bf16.msra.mxu0 0
      %654 = vmatprep.subr.bf16.mxu0 0
      %655 = vmatpush1.bf16.msra.mxu0 0
      %656 = vmatprep.subr.bf16.mxu0 0
      %657 = vmatpush1.bf16.msra.mxu0 0
      %658 = vmatprep.subr.bf16.mxu0 0
      %659 = vmatpush1.bf16.msra.mxu0 0
      %660 = vmatprep.mubr.bf16.mxu0 0
      %661 = vmatmul.mubr.bf16.gmra.mrb[0].mxu0 %v581
      %v662 = vpop.f32.mrb[0].mxu0
      %v663 = vadd.f32 0.0, %v662
      %v664 = vpop.f32.mrb[0].mxu0
      %v665 = vpop.f32.mrb[0].mxu0
      %v666 = vadd.f32 0.0, %v665
      %v667 = vpop.f32.mrb[0].mxu0
      %668 = vmatprep.mubr.bf16.mxu0 0
      %669 = vmatmul.mubr.bf16.gmra.mrb[0].mxu0 %v584
      %v670 = vpop.f32.mrb[0].mxu0
      %v671 = vadd.f32 0.0, %v670
      %v672 = vpop.f32.mrb[0].mxu0
      %v673 = vpop.f32.mrb[0].mxu0
      %v674 = vadd.f32 0.0, %v673
      %v675 = vpop.f32.mrb[0].mxu0
      %676 = vmatprep.mubr.bf16.mxu0 0
      %677 = vmatmul.mubr.bf16.gmra.mrb[0].mxu0 %v587
      %v678 = vpop.f32.mrb[0].mxu0
      %v679 = vadd.f32 0.0, %v678
      %v680 = vpop.f32.mrb[0].mxu0
      %v681 = vpop.f32.mrb[0].mxu0
      %v682 = vadd.f32 0.0, %v681
      %v683 = vpop.f32.mrb[0].mxu0
      %684 = vmatprep.mubr.bf16.mxu0 0
      %685 = vmatmul.mubr.bf16.gmra.mrb[0].mxu0 %v590
      %v686 = vpop.f32.mrb[0].mxu0
      %v687 = vadd.f32 0.0, %v686
      %v688 = vpop.f32.mrb[0].mxu0
      %v689 = vpop.f32.mrb[0].mxu0
      %v690 = vadd.f32 0.0, %v689
      %v691 = vpop.f32.mrb[0].mxu0
      %692 = vmatprep.mubr.bf16.mxu0 0
      %693 = vmatmul.mubr.bf16.gmra.mrb[0].mxu0 %v593
      %v694 = vpop.f32.mrb[0].mxu0
      %v695 = vadd.f32 0.0, %v694
      %v696 = vpop.f32.mrb[0].mxu0
      %v697 = vpop.f32.mrb[0].mxu0
      %v698 = vadd.f32 0.0, %v697
      %v699 = vpop.f32.mrb[0].mxu0
      %700 = vmatprep.mubr.bf16.mxu0 0
      %701 = vmatmul.mubr.bf16.gmra.mrb[0].mxu0 %v596
      %v702 = vpop.f32.mrb[0].mxu0
      %v703 = vadd.f32 0.0, %v702
      %v704 = vpop.f32.mrb[0].mxu0
      %v705 = vpop.f32.mrb[0].mxu0
      %v706 = vadd.f32 0.0, %v705
      %v707 = vpop.f32.mrb[0].mxu0
      %708 = vmatprep.mubr.bf16.mxu0 0
      %709 = vmatmul.mubr.bf16.gmra.mrb[0].mxu0 %v599
      %v710 = vpop.f32.mrb[0].mxu0
      %v711 = vadd.f32 0.0, %v710
      %v712 = vpop.f32.mrb[0].mxu0
      %v713 = vpop.f32.mrb[0].mxu0
      %v714 = vadd.f32 0.0, %v713
      %v715 = vpop.f32.mrb[0].mxu0
      %716 = vmatprep.mubr.bf16.mxu0 0
      %717 = vmatmul.mubr.bf16.gmra.mrb[0].mxu0 %v602
      %v718 = vpop.f32.mrb[0].mxu0
      %v719 = vadd.f32 0.0, %v718
      %v720 = vpop.f32.mrb[0].mxu0
      %v721 = vpop.f32.mrb[0].mxu0
      %v722 = vadd.f32 0.0, %v721
      %v723 = vpop.f32.mrb[0].mxu0
      %724 = vmatprep.mubr.bf16.mxu0 0
      %725 = vmatmul.mubr.bf16.gmra.mrb[0].mxu0 %v605
      %v726 = vpop.f32.mrb[0].mxu0
      %v727 = vadd.f32 0.0, %v726
      %v728 = vpop.f32.mrb[0].mxu0
      %v729 = vpop.f32.mrb[0].mxu0
      %v730 = vadd.f32 0.0, %v729
      %v731 = vpop.f32.mrb[0].mxu0
      %732 = vmatprep.mubr.bf16.mxu0 0
      %733 = vmatmul.mubr.bf16.gmra.mrb[0].mxu0 %v608
      %v734 = vpop.f32.mrb[0].mxu0
      %v735 = vadd.f32 0.0, %v734
      %v736 = vpop.f32.mrb[0].mxu0
      %v737 = vpop.f32.mrb[0].mxu0
      %v738 = vadd.f32 0.0, %v737
      %v739 = vpop.f32.mrb[0].mxu0
      %740 = vmatprep.mubr.bf16.mxu0 0
      %741 = vmatmul.mubr.bf16.gmra.mrb[0].mxu0 %v611
      %v742 = vpop.f32.mrb[0].mxu0
      %v743 = vadd.f32 0.0, %v742
      %v744 = vpop.f32.mrb[0].mxu0
      %v745 = vpop.f32.mrb[0].mxu0
      %v746 = vadd.f32 0.0, %v745
      %v747 = vpop.f32.mrb[0].mxu0
      %748 = vmatprep.mubr.bf16.mxu0 0
      %749 = vmatmul.mubr.bf16.gmra.mrb[0].mxu0 %v614
      %v750 = vpop.f32.mrb[0].mxu0
      %v751 = vadd.f32 0.0, %v750
      %v752 = vpop.f32.mrb[0].mxu0
      %v753 = vpop.f32.mrb[0].mxu0
      %v754 = vadd.f32 0.0, %v753
      %v755 = vpop.f32.mrb[0].mxu0
      %756 = vmatprep.mubr.bf16.mxu0 0
      %757 = vmatmul.mubr.bf16.gmra.mrb[0].mxu0 %v617
      %v758 = vpop.f32.mrb[0].mxu0
      %v759 = vadd.f32 0.0, %v758
      %v760 = vpop.f32.mrb[0].mxu0
      %v761 = vpop.f32.mrb[0].mxu0
      %v762 = vadd.f32 0.0, %v761
      %v763 = vpop.f32.mrb[0].mxu0
      %764 = vmatprep.mubr.bf16.mxu0 0
      %765 = vmatmul.mubr.bf16.gmra.mrb[0].mxu0 %v620
      %v766 = vpop.f32.mrb[0].mxu0
      %v767 = vadd.f32 0.0, %v766
      %v768 = vpop.f32.mrb[0].mxu0
      %v769 = vpop.f32.mrb[0].mxu0
      %v770 = vadd.f32 0.0, %v769
      %v771 = vpop.f32.mrb[0].mxu0
      %772 = vmatprep.mubr.bf16.mxu0 0
      %773 = vmatmul.mubr.bf16.gmra.mrb[0].mxu0 %v623
      %v774 = vpop.f32.mrb[0].mxu0
      %v775 = vadd.f32 0.0, %v774
      %v776 = vpop.f32.mrb[0].mxu0
      %v777 = vpop.f32.mrb[0].mxu0
      %v778 = vadd.f32 0.0, %v777
      %v779 = vpop.f32.mrb[0].mxu0
      %780 = vmatprep.mubr.bf16.mxu0 0
      %781 = vmatmul.mubr.bf16.gmra.mrb[0].mxu0 %v626
      %v782 = vpop.f32.mrb[0].mxu0
      %v783 = vadd.f32 0.0, %v782
      %v784 = vpop.f32.mrb[0].mxu0
      %v785 = vpop.f32.mrb[0].mxu0
      %v786 = vadd.f32 0.0, %v785
      %v787 = vpop.f32.mrb[0].mxu0
      %788 = vdwg.mxu0
      %v789 = vadd.f32 %v459, %v663
      %v790 = vadd.f32 %v460, %v666
      %v791 = vadd.f32 %v461, %v671
      %v792 = vadd.f32 %v462, %v674
      %v793 = vadd.f32 %v463, %v679
      %v794 = vadd.f32 %v464, %v682
      %v795 = vadd.f32 %v465, %v687
      %v796 = vadd.f32 %v466, %v690
      %v797 = vadd.f32 %v467, %v695
      %v798 = vadd.f32 %v468, %v698
      %v799 = vadd.f32 %v469, %v703
      %v800 = vadd.f32 %v470, %v706
      %v801 = vadd.f32 %v471, %v711
      %v802 = vadd.f32 %v472, %v714
      %v803 = vadd.f32 %v473, %v719
      %v804 = vadd.f32 %v474, %v722
      %v805 = vadd.f32 %v475, %v727
      %v806 = vadd.f32 %v476, %v730
      %v807 = vadd.f32 %v477, %v735
      %v808 = vadd.f32 %v478, %v738
      %v809 = vadd.f32 %v479, %v743
      %v810 = vadd.f32 %v480, %v746
      %v811 = vadd.f32 %v481, %v751
      %v812 = vadd.f32 %v482, %v754
      %v813 = vadd.f32 %v483, %v759
      %v814 = vadd.f32 %v484, %v762
      %v815 = vadd.f32 %v485, %v767
      %v816 = vadd.f32 %v486, %v770
      %v817 = vadd.f32 %v487, %v775
      %v818 = vadd.f32 %v488, %v778
      %v819 = vadd.f32 %v489, %v783
      %v820 = vadd.f32 %v490, %v786
      %821 = vst.msk [vmem:[#allocation2] sm:$0xff] %vm579, %v789
      %822 = vst.msk [vmem:[#allocation2 + $0x8] sm:$0xff] %vm579, %v790
      %823 = vst.msk [vmem:[#allocation2 + $0x10] sm:$0xff] %vm579, %v791
      %824 = vst.msk [vmem:[#allocation2 + $0x18] sm:$0xff] %vm579, %v792
      %825 = vst.msk [vmem:[#allocation2 + $0x20] sm:$0xff] %vm579, %v793
      %826 = vst.msk [vmem:[#allocation2 + $0x28] sm:$0xff] %vm579, %v794
      %827 = vst.msk [vmem:[#allocation2 + $0x30] sm:$0xff] %vm579, %v795
      %828 = vst.msk [vmem:[#allocation2 + $0x38] sm:$0xff] %vm579, %v796
      %829 = vst.msk [vmem:[#allocation2 + $0x40] sm:$0xff] %vm579, %v797
      %830 = vst.msk [vmem:[#allocation2 + $0x48] sm:$0xff] %vm579, %v798
      %831 = vst.msk [vmem:[#allocation2 + $0x50] sm:$0xff] %vm579, %v799
      %832 = vst.msk [vmem:[#allocation2 + $0x58] sm:$0xff] %vm579, %v800
      %833 = vst.msk [vmem:[#allocation2 + $0x60] sm:$0xff] %vm579, %v801
      %834 = vst.msk [vmem:[#allocation2 + $0x68] sm:$0xff] %vm579, %v802
      %835 = vst.msk [vmem:[#allocation2 + $0x70] sm:$0xff] %vm579, %v803
      %836 = vst.msk [vmem:[#allocation2 + $0x78] sm:$0xff] %vm579, %v804
      %837 = vst.msk [vmem:[#allocation2 + $0x80] sm:$0xff] %vm579, %v805
      %838 = vst.msk [vmem:[#allocation2 + $0x88] sm:$0xff] %vm579, %v806
      %839 = vst.msk [vmem:[#allocation2 + $0x90] sm:$0xff] %vm579, %v807
      %840 = vst.msk [vmem:[#allocation2 + $0x98] sm:$0xff] %vm579, %v808
      %841 = vst.msk [vmem:[#allocation2 + $0xa0] sm:$0xff] %vm579, %v809
      %842 = vst.msk [vmem:[#allocation2 + $0xa8] sm:$0xff] %vm579, %v810
      %843 = vst.msk [vmem:[#allocation2 + $0xb0] sm:$0xff] %vm579, %v811
      %844 = vst.msk [vmem:[#allocation2 + $0xb8] sm:$0xff] %vm579, %v812
      %845 = vst.msk [vmem:[#allocation2 + $0xc0] sm:$0xff] %vm579, %v813
      %846 = vst.msk [vmem:[#allocation2 + $0xc8] sm:$0xff] %vm579, %v814
      %847 = vst.msk [vmem:[#allocation2 + $0xd0] sm:$0xff] %vm579, %v815
      %848 = vst.msk [vmem:[#allocation2 + $0xd8] sm:$0xff] %vm579, %v816
      %849 = vst.msk [vmem:[#allocation2 + $0xe0] sm:$0xff] %vm579, %v817
      %850 = vst.msk [vmem:[#allocation2 + $0xe8] sm:$0xff] %vm579, %v818
      %851 = vst.msk [vmem:[#allocation2 + $0xf0] sm:$0xff] %vm579, %v819
      %852 = vst.msk [vmem:[#allocation2 + $0xf8] sm:$0xff] %vm579, %v820
      // Predicated region
      $region41: #{upblock_forward.17} parent=35 // pred_check
        %p853 = pneg %p390
      $region42: #{upblock_forward.17} parent=35 // pred_check_branch
        %855 = sbr.rel (%p853) target = $region44
      $region43: #{upblock_forward.17} parent=35 // pred_region
        %v856 = vld [vmem:[#allocation2] sm:$0xff]
        %v857 = vld [vmem:[#allocation2 + $0x8] sm:$0xff]
        %v858 = vld [vmem:[#allocation2 + $0x10] sm:$0xff]
        %v859 = vld [vmem:[#allocation2 + $0x18] sm:$0xff]
        %v860 = vld [vmem:[#allocation2 + $0x20] sm:$0xff]
        %v861 = vld [vmem:[#allocation2 + $0x28] sm:$0xff]
        %v862 = vld [vmem:[#allocation2 + $0x30] sm:$0xff]
        %v863 = vld [vmem:[#allocation2 + $0x38] sm:$0xff]
        %v864 = vld [vmem:[#allocation2 + $0x40] sm:$0xff]
        %v865 = vld [vmem:[#allocation2 + $0x48] sm:$0xff]
        %v866 = vld [vmem:[#allocation2 + $0x50] sm:$0xff]
        %v867 = vld [vmem:[#allocation2 + $0x58] sm:$0xff]
        %v868 = vld [vmem:[#allocation2 + $0x60] sm:$0xff]
        %v869 = vld [vmem:[#allocation2 + $0x68] sm:$0xff]
        %v870 = vld [vmem:[#allocation2 + $0x70] sm:$0xff]
        %v871 = vld [vmem:[#allocation2 + $0x78] sm:$0xff]
        %v872 = vld [vmem:[#allocation2 + $0x80] sm:$0xff]
        %v873 = vld [vmem:[#allocation2 + $0x88] sm:$0xff]
        %v874 = vld [vmem:[#allocation2 + $0x90] sm:$0xff]
        %v875 = vld [vmem:[#allocation2 + $0x98] sm:$0xff]
        %v876 = vld [vmem:[#allocation2 + $0xa0] sm:$0xff]
        %v877 = vld [vmem:[#allocation2 + $0xa8] sm:$0xff]
        %v878 = vld [vmem:[#allocation2 + $0xb0] sm:$0xff]
        %v879 = vld [vmem:[#allocation2 + $0xb8] sm:$0xff]
        %v880 = vld [vmem:[#allocation2 + $0xc0] sm:$0xff]
        %v881 = vld [vmem:[#allocation2 + $0xc8] sm:$0xff]
        %v882 = vld [vmem:[#allocation2 + $0xd0] sm:$0xff]
        %v883 = vld [vmem:[#allocation2 + $0xd8] sm:$0xff]
        %v884 = vld [vmem:[#allocation2 + $0xe0] sm:$0xff]
        %v885 = vld [vmem:[#allocation2 + $0xe8] sm:$0xff]
        %v886 = vld [vmem:[#allocation2 + $0xf0] sm:$0xff]
        %v887 = vld [vmem:[#allocation2 + $0xf8] sm:$0xff]
        %v888 = vld [vmem:[%s362] sm:$0x1]
        %v890 = vlaneseq
        %v891 = vshrl.u32 %v890, 7
        %v892 = vsub.s32 0, %v891
        %v893 = vrot.slane %v888, %v892
        %v895 = vadd.f32 %v856, %v893
        %v896 = vadd.f32 %v857, %v893
        %v897 = vadd.f32 %v858, %v893
        %v898 = vadd.f32 %v859, %v893
        %v899 = vadd.f32 %v860, %v893
        %v900 = vadd.f32 %v861, %v893
        %v901 = vadd.f32 %v862, %v893
        %v902 = vadd.f32 %v863, %v893
        %v903 = vadd.f32 %v864, %v893
        %v904 = vadd.f32 %v865, %v893
        %v905 = vadd.f32 %v866, %v893
        %v906 = vadd.f32 %v867, %v893
        %v907 = vadd.f32 %v868, %v893
        %v908 = vadd.f32 %v869, %v893
        %v909 = vadd.f32 %v870, %v893
        %v910 = vadd.f32 %v871, %v893
        %v911 = vadd.f32 %v872, %v893
        %v912 = vadd.f32 %v873, %v893
        %v913 = vadd.f32 %v874, %v893
        %v914 = vadd.f32 %v875, %v893
        %v915 = vadd.f32 %v876, %v893
        %v916 = vadd.f32 %v877, %v893
        %v917 = vadd.f32 %v878, %v893
        %v918 = vadd.f32 %v879, %v893
        %v919 = vadd.f32 %v880, %v893
        %v920 = vadd.f32 %v881, %v893
        %v921 = vadd.f32 %v882, %v893
        %v922 = vadd.f32 %v883, %v893
        %v923 = vadd.f32 %v884, %v893
        %v924 = vadd.f32 %v885, %v893
        %v925 = vadd.f32 %v886, %v893
        %v926 = vadd.f32 %v887, %v893
        %v927 = vld [vmem:[%s374] sm:$0xff]
        %v928 = vld [vmem:[%s374 + $0x8] sm:$0xff]
        %v929 = vld [vmem:[%s374 + $0x10] sm:$0xff]
        %v930 = vld [vmem:[%s374 + $0x18] sm:$0xff]
        %v931 = vld [vmem:[%s374 + $0x20] sm:$0xff]
        %v932 = vld [vmem:[%s374 + $0x28] sm:$0xff]
        %v933 = vld [vmem:[%s374 + $0x30] sm:$0xff]
        %v934 = vld [vmem:[%s374 + $0x38] sm:$0xff]
        %v935 = vld [vmem:[%s374 + $0x40] sm:$0xff]
        %v936 = vld [vmem:[%s374 + $0x48] sm:$0xff]
        %v937 = vld [vmem:[%s374 + $0x50] sm:$0xff]
        %v938 = vld [vmem:[%s374 + $0x58] sm:$0xff]
        %v939 = vld [vmem:[%s374 + $0x60] sm:$0xff]
        %v940 = vld [vmem:[%s374 + $0x68] sm:$0xff]
        %v941 = vld [vmem:[%s374 + $0x70] sm:$0xff]
        %v942 = vld [vmem:[%s374 + $0x78] sm:$0xff]
        %v943 = vld [vmem:[%s374 + $0x80] sm:$0xff]
        %v944 = vld [vmem:[%s374 + $0x88] sm:$0xff]
        %v945 = vld [vmem:[%s374 + $0x90] sm:$0xff]
        %v946 = vld [vmem:[%s374 + $0x98] sm:$0xff]
        %v947 = vld [vmem:[%s374 + $0xa0] sm:$0xff]
        %v948 = vld [vmem:[%s374 + $0xa8] sm:$0xff]
        %v949 = vld [vmem:[%s374 + $0xb0] sm:$0xff]
        %v950 = vld [vmem:[%s374 + $0xb8] sm:$0xff]
        %v951 = vld [vmem:[%s374 + $0xc0] sm:$0xff]
        %v952 = vld [vmem:[%s374 + $0xc8] sm:$0xff]
        %v953 = vld [vmem:[%s374 + $0xd0] sm:$0xff]
        %v954 = vld [vmem:[%s374 + $0xd8] sm:$0xff]
        %v955 = vld [vmem:[%s374 + $0xe0] sm:$0xff]
        %v956 = vld [vmem:[%s374 + $0xe8] sm:$0xff]
        %v957 = vld [vmem:[%s374 + $0xf0] sm:$0xff]
        %v958 = vld [vmem:[%s374 + $0xf8] sm:$0xff]
        %v959 = vadd.f32 %v895, %v927
        %v960 = vadd.f32 %v896, %v928
        %v961 = vadd.f32 %v897, %v929
        %v962 = vadd.f32 %v898, %v930
        %v963 = vadd.f32 %v899, %v931
        %v964 = vadd.f32 %v900, %v932
        %v965 = vadd.f32 %v901, %v933
        %v966 = vadd.f32 %v902, %v934
        %v967 = vadd.f32 %v903, %v935
        %v968 = vadd.f32 %v904, %v936
        %v969 = vadd.f32 %v905, %v937
        %v970 = vadd.f32 %v906, %v938
        %v971 = vadd.f32 %v907, %v939
        %v972 = vadd.f32 %v908, %v940
        %v973 = vadd.f32 %v909, %v941
        %v974 = vadd.f32 %v910, %v942
        %v975 = vadd.f32 %v911, %v943
        %v976 = vadd.f32 %v912, %v944
        %v977 = vadd.f32 %v913, %v945
        %v978 = vadd.f32 %v914, %v946
        %v979 = vadd.f32 %v915, %v947
        %v980 = vadd.f32 %v916, %v948
        %v981 = vadd.f32 %v917, %v949
        %v982 = vadd.f32 %v918, %v950
        %v983 = vadd.f32 %v919, %v951
        %v984 = vadd.f32 %v920, %v952
        %v985 = vadd.f32 %v921, %v953
        %v986 = vadd.f32 %v922, %v954
        %v987 = vadd.f32 %v923, %v955
        %v988 = vadd.f32 %v924, %v956
        %v989 = vadd.f32 %v925, %v957
        %v990 = vadd.f32 %v926, %v958
        %991 = vst.msk [vmem:[%s387] sm:$0xff] %vm579, %v959
        %992 = vst.msk [vmem:[%s387 + $0x8] sm:$0xff] %vm579, %v960
        %993 = vst.msk [vmem:[%s387 + $0x10] sm:$0xff] %vm579, %v961
        %994 = vst.msk [vmem:[%s387 + $0x18] sm:$0xff] %vm579, %v962
        %995 = vst.msk [vmem:[%s387 + $0x20] sm:$0xff] %vm579, %v963
        %996 = vst.msk [vmem:[%s387 + $0x28] sm:$0xff] %vm579, %v964
        %997 = vst.msk [vmem:[%s387 + $0x30] sm:$0xff] %vm579, %v965
        %998 = vst.msk [vmem:[%s387 + $0x38] sm:$0xff] %vm579, %v966
        %999 = vst.msk [vmem:[%s387 + $0x40] sm:$0xff] %vm579, %v967
        %1000 = vst.msk [vmem:[%s387 + $0x48] sm:$0xff] %vm579, %v968
        %1001 = vst.msk [vmem:[%s387 + $0x50] sm:$0xff] %vm579, %v969
        %1002 = vst.msk [vmem:[%s387 + $0x58] sm:$0xff] %vm579, %v970
        %1003 = vst.msk [vmem:[%s387 + $0x60] sm:$0xff] %vm579, %v971
        %1004 = vst.msk [vmem:[%s387 + $0x68] sm:$0xff] %vm579, %v972
        %1005 = vst.msk [vmem:[%s387 + $0x70] sm:$0xff] %vm579, %v973
        %1006 = vst.msk [vmem:[%s387 + $0x78] sm:$0xff] %vm579, %v974
        %1007 = vst.msk [vmem:[%s387 + $0x80] sm:$0xff] %vm579, %v975
        %1008 = vst.msk [vmem:[%s387 + $0x88] sm:$0xff] %vm579, %v976
        %1009 = vst.msk [vmem:[%s387 + $0x90] sm:$0xff] %vm579, %v977
        %1010 = vst.msk [vmem:[%s387 + $0x98] sm:$0xff] %vm579, %v978
        %1011 = vst.msk [vmem:[%s387 + $0xa0] sm:$0xff] %vm579, %v979
        %1012 = vst.msk [vmem:[%s387 + $0xa8] sm:$0xff] %vm579, %v980
        %1013 = vst.msk [vmem:[%s387 + $0xb0] sm:$0xff] %vm579, %v981
        %1014 = vst.msk [vmem:[%s387 + $0xb8] sm:$0xff] %vm579, %v982
        %1015 = vst.msk [vmem:[%s387 + $0xc0] sm:$0xff] %vm579, %v983
        %1016 = vst.msk [vmem:[%s387 + $0xc8] sm:$0xff] %vm579, %v984
        %1017 = vst.msk [vmem:[%s387 + $0xd0] sm:$0xff] %vm579, %v985
        %1018 = vst.msk [vmem:[%s387 + $0xd8] sm:$0xff] %vm579, %v986
        %1019 = vst.msk [vmem:[%s387 + $0xe0] sm:$0xff] %vm579, %v987
        %1020 = vst.msk [vmem:[%s387 + $0xe8] sm:$0xff] %vm579, %v988
        %1021 = vst.msk [vmem:[%s387 + $0xf0] sm:$0xff] %vm579, %v989
        %1022 = vst.msk [vmem:[%s387 + $0xf8] sm:$0xff] %vm579, %v990
      $region44: #{upblock_forward.17} parent=35 // pred_fallthru
        _
      %s1023 = smul.u32 32, %s22
      %p1024 = scmp.lt.s32.totalorder %s21, 0
      %s1025 = scalar_select %p1024, %s21, 0
      %p1026 = scmp.lt.s32.totalorder %s1023, 63
      %s1027 = scalar_select %p1026, %s1023, 63
      %p1028 = scmp.lt.s32.totalorder %s23, 0
      %s1029 = scalar_select %p1028, %s23, 0
      %s1030 = sadd.s32 %s1029, %s1027
      %s1031 = smul.addr %s1025, 64
      %s1032 = sadd.s32 %s1030, %s1031
      %s1033 = smul.addr %s1032, 8
      %s1034 = scalar_lea.vmem %s4, %s1033
      // Predicated region
      $region45: #{upblock_forward.17} parent=35 // pred_check
        %p1035 = pneg %p181
      $region46: #{upblock_forward.17} parent=35 // pred_check_branch
        %1037 = sbr.rel (%p1035) target = $region48
      $region47: #{upblock_forward.17} parent=35 // pred_region
        %s1038 = smul.u32 32, %s22
      $region48: #{upblock_forward.17} parent=35 // pred_fallthru
        _
    $region36: #{upblock_forward.17} parent=5 // pred_fallthru
      _
    %p1039 = scmp.le.s32.totalorder 2, %s10
    // Predicated region
    $region49: #{upblock_forward.17} parent=5 // pred_check
      %p1040 = pneg %p1039
    $region50: #{upblock_forward.17} parent=5 // pred_check_branch
      %1042 = sbr.rel (%p1040) target = $region52
    $region51: #{upblock_forward.17} parent=5 // pred_region
      %s1043 = ssub.s32 %s10, 2
      // Predicated region
      $region53: #{upblock_forward.17} parent=51 // pred_check
        %p1044 = pneg %p187
      $region54: #{upblock_forward.17} parent=51 // pred_check_branch
        %1046 = sbr.rel (%p1044) target = $region56
      $region55: #{upblock_forward.17} parent=51 // pred_region
        %s1047 = smul.u32 32, %s26
        %p1048 = scmp.lt.s32.totalorder %s25, 0
        %s1049 = scalar_select %p1048, %s25, 0
        %p1050 = scmp.lt.s32.totalorder %s1047, 63
        %s1051 = scalar_select %p1050, %s1047, 63
        %p1052 = scmp.lt.s32.totalorder %s27, 0
        %s1053 = scalar_select %p1052, %s27, 0
        %s1054 = sadd.s32 %s1053, %s1051
        %s1055 = smul.addr %s1049, 64
        %s1056 = sadd.s32 %s1054, %s1055
        %s1057 = smul.addr %s1056, 8
        %s1058 = scalar_lea.vmem %s4, %s1057
      $region56: #{upblock_forward.17} parent=51 // pred_fallthru
        _
    $region52: #{upblock_forward.17} parent=5 // pred_fallthru
      _
  $region6: #{upblock_forward.17} parent=0 // loop_footer
    %s14 = sadd.s32 1, %s10
  $region7: #{upblock_forward.17} parent=0 // loop_footer_branch
    %9 = sbr.rel target = $region3
  $region8: #{upblock_forward.17} parent=0 // loop_exit
    _

// kernel: upblock_forward.19
$region0: #{upblock_forward.19}
  #allocation0 [shape = 'u32[]', space=smem, size = 0x4, offset = 0x4, fixed_abs, tag = 'smem constant byte address 0x4 - core index']
  #allocation1 [shape = 'u32[144,128]{1,0:T(1,128)}', space=vmem, size = 0x12000, scoped, tag = 'internal scratch']
  #allocation2 [shape = 'f32[256,48]{1,0:T(8,128)}', space=vmem, size = 0x20000, scoped, tag = 'scratch operand']
  %s0 = inlined_call_operand.vmem [shape: bf16[1,512,16], index: 0, kind: input, shape index: {}]
  %s1 = inlined_call_operand.vmem [shape: bf16[1,16,48], index: 1, kind: input, shape index: {}]
  %s2 = inlined_call_operand.vmem [shape: f32[1,1,48], index: 2, kind: input, shape index: {}]
  %s3 = inlined_call_operand.vmem [shape: bf16[1,512,48], index: 3, kind: output, shape index: {}]
  %s4 = sld [smem:[#allocation0]]
  $region53: #{upblock_forward.19} parent=0
    _
  %s6 = ssub.s32 1, %s4
  %s7 = scalar_select 0, %s6, %s4
  loop: start=0, step=1, limit=4
  $region2: #{upblock_forward.19} parent=0 // loop_pre_header
    _
  $region3: #{upblock_forward.19} parent=0 // loop_header
    %s9 = sphi 0, %s13
    %p10 = scmp.ge.s32.totalorder %s9, 4
    %s16 = sphi 0, %s42
    %s17 = sphi 0, %s38
    %s18 = sphi 0, %s34
    %s19 = sphi 0, %s30
    %s20 = sphi 0, %s16
    %s21 = sphi 0, %s17
    %s22 = sphi 0, %s18
    %s23 = sphi 0, %s19
    %s24 = sphi 0, %s20
    %s25 = sphi 0, %s21
    %s26 = sphi 0, %s22
    %s27 = sphi 0, %s23
    %s49 = sphi 0, %s51
    %s52 = sphi 0, %s49
    %s53 = sphi 0, %s52
    %s69 = sphi 0, %s53
    %s79 = sphi 0, %s81
    %s82 = sphi 0, %s79
    %s83 = sphi 0, %s82
    %s99 = sphi 0, %s83
    %s107 = sphi 0, %s109
    %s110 = sphi 0, %s107
    %s111 = sphi 0, %s110
    %s127 = sphi 0, %s111
    %s137 = sphi 0, %s139
    %s140 = sphi 0, %s137
    %s141 = sphi 0, %s140
    %s157 = sphi 0, %s141
  $region4: #{upblock_forward.19} parent=0 // loop_header_branch
    %12 = sbr.rel (%p10) target = $region8
  $region5: #{upblock_forward.19} parent=0 // loop_body
    %s14 = ssub.s32 %s9, 1
    %s15 = ssub.s32 %s9, 2
    %s28 = sadd.s32 1, %s19
    %p29 = scmp.ge.s32.totalorder %s28, 1
    %s30 = scalar_select %p29, 0, %s28
    %s31 = sadd.s32 1, %s18
    %s32 = scalar_select %p29, %s31, %s18
    %p33 = scmp.ge.s32.totalorder %s32, 1
    %s34 = scalar_select %p33, 0, %s32
    %s35 = sadd.s32 1, %s17
    %s36 = scalar_select %p33, %s35, %s17
    %p37 = scmp.ge.s32.totalorder %s36, 2
    %s38 = scalar_select %p37, 0, %s36
    %s39 = sadd.s32 1, %s16
    %s40 = scalar_select %p37, %s39, %s16
    %p41 = scmp.ge.s32.totalorder %s40, 1
    %s42 = scalar_select %p41, 0, %s40
    %s43 = ssub.s32 %s16, %s42
    %s44 = ssub.s32 %s17, %s38
    %s45 = sor.u32 %s43, %s44
    %s46 = ssub.s32 %s19, %s30
    %s47 = sor.u32 %s45, %s46
    %p48 = scmp.eq.s32.totalorder %s47, 0
    %s50 = sadd.s32 %s49, 1
    %s51 = scalar_select %p48, %s49, %s50
    %p54 = pneg %p48
    %p55 = scmp.eq.s32.totalorder %s9, 1
    %p56 = por %p54, %p55
    %p57 = scmp.ne.s32.totalorder %s49, %s52
    %p58 = scmp.eq.s32.totalorder %s9, 0
    %p59 = por %p57, %p58
    %p60 = scmp.ne.s32.totalorder %s49, %s52
    %p61 = scmp.eq.s32.totalorder %s14, 1
    %p62 = por %p60, %p61
    %p63 = scmp.ne.s32.totalorder %s52, %s53
    %p64 = scmp.eq.s32.totalorder %s14, 0
    %p65 = por %p63, %p64
    %p66 = scmp.ne.s32.totalorder %s52, %s53
    %p67 = scmp.eq.s32.totalorder %s15, 1
    %p68 = por %p66, %p67
    %p70 = scmp.ne.s32.totalorder %s53, %s69
    %p71 = scmp.eq.s32.totalorder %s15, 0
    %p72 = por %p70, %p71
    %s73 = ssub.s32 %s16, %s42
    %s74 = ssub.s32 %s19, %s30
    %s75 = sor.u32 %s73, %s74
    %s76 = ssub.s32 %s18, %s34
    %s77 = sor.u32 %s75, %s76
    %p78 = scmp.eq.s32.totalorder %s77, 0
    %s80 = sadd.s32 %s79, 1
    %s81 = scalar_select %p78, %s79, %s80
    %p84 = pneg %p78
    %p85 = scmp.eq.s32.totalorder %s9, 1
    %p86 = por %p84, %p85
    %p87 = scmp.ne.s32.totalorder %s79, %s82
    %p88 = scmp.eq.s32.totalorder %s9, 0
    %p89 = por %p87, %p88
    %p90 = scmp.ne.s32.totalorder %s79, %s82
    %p91 = scmp.eq.s32.totalorder %s14, 1
    %p92 = por %p90, %p91
    %p93 = scmp.ne.s32.totalorder %s82, %s83
    %p94 = scmp.eq.s32.totalorder %s14, 0
    %p95 = por %p93, %p94
    %p96 = scmp.ne.s32.totalorder %s82, %s83
    %p97 = scmp.eq.s32.totalorder %s15, 1
    %p98 = por %p96, %p97
    %p100 = scmp.ne.s32.totalorder %s83, %s99
    %p101 = scmp.eq.s32.totalorder %s15, 0
    %p102 = por %p100, %p101
    %s103 = ssub.s32 %s16, %s42
    %s104 = ssub.s32 %s18, %s34
    %s105 = sor.u32 %s103, %s104
    %p106 = scmp.eq.s32.totalorder %s105, 0
    %s108 = sadd.s32 %s107, 1
    %s109 = scalar_select %p106, %s107, %s108
    %p112 = pneg %p106
    %p113 = scmp.eq.s32.totalorder %s9, 1
    %p114 = por %p112, %p113
    %p115 = scmp.ne.s32.totalorder %s107, %s110
    %p116 = scmp.eq.s32.totalorder %s9, 0
    %p117 = por %p115, %p116
    %p118 = scmp.ne.s32.totalorder %s107, %s110
    %p119 = scmp.eq.s32.totalorder %s14, 1
    %p120 = por %p118, %p119
    %p121 = scmp.ne.s32.totalorder %s110, %s111
    %p122 = scmp.eq.s32.totalorder %s14, 0
    %p123 = por %p121, %p122
    %p124 = scmp.ne.s32.totalorder %s110, %s111
    %p125 = scmp.eq.s32.totalorder %s15, 1
    %p126 = por %p124, %p125
    %p128 = scmp.ne.s32.totalorder %s111, %s127
    %p129 = scmp.eq.s32.totalorder %s15, 0
    %p130 = por %p128, %p129
    %s131 = ssub.s32 %s16, %s42
    %s132 = ssub.s32 %s17, %s38
    %s133 = sor.u32 %s131, %s132
    %s134 = ssub.s32 %s18, %s34
    %s135 = sor.u32 %s133, %s134
    %p136 = scmp.eq.s32.totalorder %s135, 0
    %s138 = sadd.s32 %s137, 1
    %s139 = scalar_select %p136, %s137, %s138
    %p142 = pneg %p136
    %p143 = scmp.eq.s32.totalorder %s9, 1
    %p144 = por %p142, %p143
    %p145 = scmp.ne.s32.totalorder %s137, %s140
    %p146 = scmp.eq.s32.totalorder %s9, 0
    %p147 = por %p145, %p146
    %p148 = scmp.ne.s32.totalorder %s137, %s140
    %p149 = scmp.eq.s32.totalorder %s14, 1
    %p150 = por %p148, %p149
    %p151 = scmp.ne.s32.totalorder %s140, %s141
    %p152 = scmp.eq.s32.totalorder %s14, 0
    %p153 = por %p151, %p152
    %p154 = scmp.ne.s32.totalorder %s140, %s141
    %p155 = scmp.eq.s32.totalorder %s15, 1
    %p156 = por %p154, %p155
    %p158 = scmp.ne.s32.totalorder %s141, %s157
    %p159 = scmp.eq.s32.totalorder %s15, 0
    %p160 = por %p158, %p159
    %p161 = scmp.le.s32.totalorder 1, %s9
    %p162 = scmp.lt.s32.totalorder %s9, 3
    %p163 = pnand %p161, %p162
    %p164 = pneg %p163
    // Predicated region
    $region9: #{upblock_forward.19} parent=5 // pred_check
      _
    $region10: #{upblock_forward.19} parent=5 // pred_check_branch
      %166 = sbr.rel (%p163) target = $region12
    $region11: #{upblock_forward.19} parent=5 // pred_region
      %s167 = ssub.s32 %s9, 1
      // Predicated region
      $region13: #{upblock_forward.19} parent=11 // pred_check
        %p168 = pneg %p95
      $region14: #{upblock_forward.19} parent=11 // pred_check_branch
        %170 = sbr.rel (%p168) target = $region16
      $region15: #{upblock_forward.19} parent=11 // pred_region
        %s171 = smul.u32 2, %s23
        %p172 = scmp.lt.s32.totalorder %s20, 0
        %s173 = scalar_select %p172, %s20, 0
        %p174 = scmp.lt.s32.totalorder %s171, 1
        %s175 = scalar_select %p174, %s171, 1
        %p176 = scmp.lt.s32.totalorder %s22, 0
        %s177 = scalar_select %p176, %s22, 0
        %s178 = sadd.s32 %s177, %s175
        %s179 = smul.addr %s173, 2
        %s180 = sadd.s32 %s178, %s179
        %s181 = smul.addr %s180, 4
        %s182 = scalar_lea.vmem %s1, %s181
        %s183 = smul.u32 2, %s23
      $region16: #{upblock_forward.19} parent=11 // pred_fallthru
        _
      // Predicated region
      $region17: #{upblock_forward.19} parent=11 // pred_check
        %p184 = pneg %p123
      $region18: #{upblock_forward.19} parent=11 // pred_check_branch
        %186 = sbr.rel (%p184) target = $region20
      $region19: #{upblock_forward.19} parent=11 // pred_region
        %p187 = scmp.lt.s32.totalorder %s20, 0
        %s188 = scalar_select %p187, %s20, 0
        %p189 = scmp.lt.s32.totalorder %s22, 0
        %s190 = scalar_select %p189, %s22, 0
        %s191 = sadd.s32 %s190, %s188
        %s192 = scalar_lea.vmem %s2, %s191
      $region20: #{upblock_forward.19} parent=11 // pred_fallthru
        _
    $region12: #{upblock_forward.19} parent=5 // pred_fallthru
      _
    %p193 = scmp.lt.s32.totalorder %s9, 2
    // Predicated region
    $region21: #{upblock_forward.19} parent=5 // pred_check
      %p194 = pneg %p193
    $region22: #{upblock_forward.19} parent=5 // pred_check_branch
      %196 = sbr.rel (%p194) target = $region24
    $region23: #{upblock_forward.19} parent=5 // pred_region
      // Predicated region
      $region25: #{upblock_forward.19} parent=23 // pred_check
        %p197 = pneg %p59
      $region26: #{upblock_forward.19} parent=23 // pred_check_branch
        %199 = sbr.rel (%p197) target = $region28
      $region27: #{upblock_forward.19} parent=23 // pred_region
        %s200 = smul.u32 32, %s17
        %p201 = scmp.lt.s32.totalorder %s16, 0
        %s202 = scalar_select %p201, %s16, 0
        %p203 = scmp.lt.s32.totalorder %s200, 63
        %s204 = scalar_select %p203, %s200, 63
        %p205 = scmp.lt.s32.totalorder %s19, 0
        %s206 = scalar_select %p205, %s19, 0
        %s207 = sadd.s32 %s206, %s204
        %s208 = smul.addr %s202, 64
        %s209 = sadd.s32 %s207, %s208
        %s210 = smul.addr %s209, 4
        %s211 = scalar_lea.vmem %s0, %s210
        %s212 = smul.u32 32, %s17
      $region28: #{upblock_forward.19} parent=23 // pred_fallthru
        _
    $region24: #{upblock_forward.19} parent=5 // pred_fallthru
      _
    %p213 = scmp.le.s32.totalorder 1, %s9
    %p214 = scmp.lt.s32.totalorder %s9, 3
    %p215 = pnand %p213, %p214
    %p216 = pneg %p215
    // Predicated region
    $region29: #{upblock_forward.19} parent=5 // pred_check
      _
    $region30: #{upblock_forward.19} parent=5 // pred_check_branch
      %218 = sbr.rel (%p215) target = $region32
    $region31: #{upblock_forward.19} parent=5 // pred_region
      %s219 = ssub.s32 %s9, 1
      %s220 = smul.u32 32, %s21
      %p221 = scmp.lt.s32.totalorder %s20, 0
      %s222 = scalar_select %p221, %s20, 0
      %p223 = scmp.lt.s32.totalorder %s220, 63
      %s224 = scalar_select %p223, %s220, 63
      %p225 = scmp.lt.s32.totalorder %s23, 0
      %s226 = scalar_select %p225, %s23, 0
      %s227 = sadd.s32 %s226, %s224
      %s228 = smul.addr %s222, 64
      %s229 = sadd.s32 %s227, %s228
      %s230 = smul.addr %s229, 4
      %s231 = scalar_lea.vmem %s0, %s230
      %p232 = pneg %p65
      %p233 = pneg %p62
      %s234 = smul.u32 2, %s23
      %p235 = scmp.lt.s32.totalorder %s20, 0
      %s236 = scalar_select %p235, %s20, 0
      %p237 = scmp.lt.s32.totalorder %s234, 1
      %s238 = scalar_select %p237, %s234, 1
      %p239 = scmp.lt.s32.totalorder %s22, 0
      %s240 = scalar_select %p239, %s22, 0
      %s241 = sadd.s32 %s240, %s238
      %s242 = smul.addr %s236, 2
      %s243 = sadd.s32 %s241, %s242
      %s244 = smul.addr %s243, 4
      %s245 = scalar_lea.vmem %s1, %s244
      %p246 = pneg %p95
      %p247 = pneg %p92
      %p248 = scmp.lt.s32.totalorder %s20, 0
      %s249 = scalar_select %p248, %s20, 0
      %p250 = scmp.lt.s32.totalorder %s22, 0
      %s251 = scalar_select %p250, %s22, 0
      %s252 = sadd.s32 %s251, %s249
      %s253 = scalar_lea.vmem %s2, %s252
      %p254 = pneg %p123
      %p255 = pneg %p120
      %p256 = pneg %p153
      %p257 = pneg %p150
      %s258 = smul.u32 32, %s21
      %p259 = scmp.lt.s32.totalorder %s20, 0
      %s260 = scalar_select %p259, %s20, 0
      %p261 = scmp.lt.s32.totalorder %s258, 63
      %s262 = scalar_select %p261, %s258, 63
      %p263 = scmp.lt.s32.totalorder %s22, 0
      %s264 = scalar_select %p263, %s22, 0
      %s265 = sadd.s32 %s264, %s262
      %s266 = smul.addr %s260, 64
      %s267 = sadd.s32 %s265, %s266
      %s268 = smul.addr %s267, 4
      %s269 = scalar_lea.vmem %s3, %s268
      %s270 = smul.u32 32, %s21
      %p271 = scmp.lt.s32.totalorder %s20, 0
      %s272 = scalar_select %p271, %s20, 0
      %p273 = scmp.lt.s32.totalorder %s270, 63
      %s274 = scalar_select %p273, %s270, 63
      %p275 = scmp.lt.s32.totalorder %s23, 0
      %s276 = scalar_select %p275, %s23, 0
      %s277 = sadd.s32 %s276, %s274
      %s278 = smul.addr %s272, 64
      %s279 = sadd.s32 %s277, %s278
      %s280 = smul.addr %s279, 4
      %s281 = scalar_lea.vmem %s0, %s280
      %s282 = smul.u32 32, %s21
      %s283 = smul.u32 2, %s23
      %p284 = scmp.lt.s32.totalorder %s20, 0
      %s285 = scalar_select %p284, %s20, 0
      %p286 = scmp.lt.s32.totalorder %s283, 1
      %s287 = scalar_select %p286, %s283, 1
      %p288 = scmp.lt.s32.totalorder %s22, 0
      %s289 = scalar_select %p288, %s22, 0
      %s290 = sadd.s32 %s289, %s287
      %s291 = smul.addr %s285, 2
      %s292 = sadd.s32 %s290, %s291
      %s293 = smul.addr %s292, 4
      %s294 = scalar_lea.vmem %s1, %s293
      %s295 = smul.u32 2, %s23
      %p296 = scmp.lt.s32.totalorder %s20, 0
      %s297 = scalar_select %p296, %s20, 0
      %p298 = scmp.lt.s32.totalorder %s22, 0
      %s299 = scalar_select %p298, %s22, 0
      %s300 = sadd.s32 %s299, %s297
      %s301 = scalar_lea.vmem %s2, %s300
      %s302 = smul.u32 32, %s21
      %p303 = scmp.lt.s32.totalorder %s20, 0
      %s304 = scalar_select %p303, %s20, 0
      %p305 = scmp.lt.s32.totalorder %s302, 63
      %s306 = scalar_select %p305, %s302, 63
      %p307 = scmp.lt.s32.totalorder %s22, 0
      %s308 = scalar_select %p307, %s22, 0
      %s309 = sadd.s32 %s308, %s306
      %s310 = smul.addr %s304, 64
      %s311 = sadd.s32 %s309, %s310
      %s312 = smul.addr %s311, 4
      %s313 = scalar_lea.vmem %s3, %s312
      %s314 = smul.u32 32, %s21
      %p316 = scmp.eq.s32.totalorder %s23, 0
      // Predicated region
      $region33: #{upblock_forward.19} parent=31 // pred_check
        %p317 = pneg %p316
      $region34: #{upblock_forward.19} parent=31 // pred_check_branch
        %319 = sbr.rel (%p317) target = $region36
      $region35: #{upblock_forward.19} parent=31 // pred_region
        %vm320 = vcmask 392192
        %321 = vst.msk [vmem:[#allocation2] sm:$0xff] %vm320, 0.0
        %322 = vst.msk [vmem:[#allocation2 + $0x8] sm:$0xff] %vm320, 0.0
        %323 = vst.msk [vmem:[#allocation2 + $0x10] sm:$0xff] %vm320, 0.0
        %324 = vst.msk [vmem:[#allocation2 + $0x18] sm:$0xff] %vm320, 0.0
        %325 = vst.msk [vmem:[#allocation2 + $0x20] sm:$0xff] %vm320, 0.0
        %326 = vst.msk [vmem:[#allocation2 + $0x28] sm:$0xff] %vm320, 0.0
        %327 = vst.msk [vmem:[#allocation2 + $0x30] sm:$0xff] %vm320, 0.0
        %328 = vst.msk [vmem:[#allocation2 + $0x38] sm:$0xff] %vm320, 0.0
        %329 = vst.msk [vmem:[#allocation2 + $0x40] sm:$0xff] %vm320, 0.0
        %330 = vst.msk [vmem:[#allocation2 + $0x48] sm:$0xff] %vm320, 0.0
        %331 = vst.msk [vmem:[#allocation2 + $0x50] sm:$0xff] %vm320, 0.0
        %332 = vst.msk [vmem:[#allocation2 + $0x58] sm:$0xff] %vm320, 0.0
        %333 = vst.msk [vmem:[#allocation2 + $0x60] sm:$0xff] %vm320, 0.0
        %334 = vst.msk [vmem:[#allocation2 + $0x68] sm:$0xff] %vm320, 0.0
        %335 = vst.msk [vmem:[#allocation2 + $0x70] sm:$0xff] %vm320, 0.0
        %336 = vst.msk [vmem:[#allocation2 + $0x78] sm:$0xff] %vm320, 0.0
        %337 = vst.msk [vmem:[#allocation2 + $0x80] sm:$0xff] %vm320, 0.0
        %338 = vst.msk [vmem:[#allocation2 + $0x88] sm:$0xff] %vm320, 0.0
        %339 = vst.msk [vmem:[#allocation2 + $0x90] sm:$0xff] %vm320, 0.0
        %340 = vst.msk [vmem:[#allocation2 + $0x98] sm:$0xff] %vm320, 0.0
        %341 = vst.msk [vmem:[#allocation2 + $0xa0] sm:$0xff] %vm320, 0.0
        %342 = vst.msk [vmem:[#allocation2 + $0xa8] sm:$0xff] %vm320, 0.0
        %343 = vst.msk [vmem:[#allocation2 + $0xb0] sm:$0xff] %vm320, 0.0
        %344 = vst.msk [vmem:[#allocation2 + $0xb8] sm:$0xff] %vm320, 0.0
        %345 = vst.msk [vmem:[#allocation2 + $0xc0] sm:$0xff] %vm320, 0.0
        %346 = vst.msk [vmem:[#allocation2 + $0xc8] sm:$0xff] %vm320, 0.0
        %347 = vst.msk [vmem:[#allocation2 + $0xd0] sm:$0xff] %vm320, 0.0
        %348 = vst.msk [vmem:[#allocation2 + $0xd8] sm:$0xff] %vm320, 0.0
        %349 = vst.msk [vmem:[#allocation2 + $0xe0] sm:$0xff] %vm320, 0.0
        %350 = vst.msk [vmem:[#allocation2 + $0xe8] sm:$0xff] %vm320, 0.0
        %351 = vst.msk [vmem:[#allocation2 + $0xf0] sm:$0xff] %vm320, 0.0
        %352 = vst.msk [vmem:[#allocation2 + $0xf8] sm:$0xff] %vm320, 0.0
      $region36: #{upblock_forward.19} parent=31 // pred_fallthru
        _
      %v353 = vld [vmem:[%s281] sm:$0xf]
      %v354 = vld [vmem:[%s281 + $0x4] sm:$0xf]
      %v355 = vld [vmem:[%s281 + $0x8] sm:$0xf]
      %v356 = vld [vmem:[%s281 + $0xc] sm:$0xf]
      %v357 = vld [vmem:[%s281 + $0x10] sm:$0xf]
      %v358 = vld [vmem:[%s281 + $0x14] sm:$0xf]
      %v359 = vld [vmem:[%s281 + $0x18] sm:$0xf]
      %v360 = vld [vmem:[%s281 + $0x1c] sm:$0xf]
      %v361 = vld [vmem:[%s281 + $0x20] sm:$0xf]
      %v362 = vld [vmem:[%s281 + $0x24] sm:$0xf]
      %v363 = vld [vmem:[%s281 + $0x28] sm:$0xf]
      %v364 = vld [vmem:[%s281 + $0x2c] sm:$0xf]
      %v365 = vld [vmem:[%s281 + $0x30] sm:$0xf]
      %v366 = vld [vmem:[%s281 + $0x34] sm:$0xf]
      %v367 = vld [vmem:[%s281 + $0x38] sm:$0xf]
      %v368 = vld [vmem:[%s281 + $0x3c] sm:$0xf]
      %v369 = vld [vmem:[%s281 + $0x40] sm:$0xf]
      %v370 = vld [vmem:[%s281 + $0x44] sm:$0xf]
      %v371 = vld [vmem:[%s281 + $0x48] sm:$0xf]
      %v372 = vld [vmem:[%s281 + $0x4c] sm:$0xf]
      %v373 = vld [vmem:[%s281 + $0x50] sm:$0xf]
      %v374 = vld [vmem:[%s281 + $0x54] sm:$0xf]
      %v375 = vld [vmem:[%s281 + $0x58] sm:$0xf]
      %v376 = vld [vmem:[%s281 + $0x5c] sm:$0xf]
      %v377 = vld [vmem:[%s281 + $0x60] sm:$0xf]
      %v378 = vld [vmem:[%s281 + $0x64] sm:$0xf]
      %v379 = vld [vmem:[%s281 + $0x68] sm:$0xf]
      %v380 = vld [vmem:[%s281 + $0x6c] sm:$0xf]
      %v381 = vld [vmem:[%s281 + $0x70] sm:$0xf]
      %v382 = vld [vmem:[%s281 + $0x74] sm:$0xf]
      %v383 = vld [vmem:[%s281 + $0x78] sm:$0xf]
      %v384 = vld [vmem:[%s281 + $0x7c] sm:$0xf]
      %v385 = vld [vmem:[#allocation2] sm:$0xff]
      %v386 = vld [vmem:[#allocation2 + $0x8] sm:$0xff]
      %v387 = vld [vmem:[#allocation2 + $0x10] sm:$0xff]
      %v388 = vld [vmem:[#allocation2 + $0x18] sm:$0xff]
      %v389 = vld [vmem:[#allocation2 + $0x20] sm:$0xff]
      %v390 = vld [vmem:[#allocation2 + $0x28] sm:$0xff]
      %v391 = vld [vmem:[#allocation2 + $0x30] sm:$0xff]
      %v392 = vld [vmem:[#allocation2 + $0x38] sm:$0xff]
      %v393 = vld [vmem:[#allocation2 + $0x40] sm:$0xff]
      %v394 = vld [vmem:[#allocation2 + $0x48] sm:$0xff]
      %v395 = vld [vmem:[#allocation2 + $0x50] sm:$0xff]
      %v396 = vld [vmem:[#allocation2 + $0x58] sm:$0xff]
      %v397 = vld [vmem:[#allocation2 + $0x60] sm:$0xff]
      %v398 = vld [vmem:[#allocation2 + $0x68] sm:$0xff]
      %v399 = vld [vmem:[#allocation2 + $0x70] sm:$0xff]
      %v400 = vld [vmem:[#allocation2 + $0x78] sm:$0xff]
      %v401 = vld [vmem:[#allocation2 + $0x80] sm:$0xff]
      %v402 = vld [vmem:[#allocation2 + $0x88] sm:$0xff]
      %v403 = vld [vmem:[#allocation2 + $0x90] sm:$0xff]
      %v404 = vld [vmem:[#allocation2 + $0x98] sm:$0xff]
      %v405 = vld [vmem:[#allocation2 + $0xa0] sm:$0xff]
      %v406 = vld [vmem:[#allocation2 + $0xa8] sm:$0xff]
      %v407 = vld [vmem:[#allocation2 + $0xb0] sm:$0xff]
      %v408 = vld [vmem:[#allocation2 + $0xb8] sm:$0xff]
      %v409 = vld [vmem:[#allocation2 + $0xc0] sm:$0xff]
      %v410 = vld [vmem:[#allocation2 + $0xc8] sm:$0xff]
      %v411 = vld [vmem:[#allocation2 + $0xd0] sm:$0xff]
      %v412 = vld [vmem:[#allocation2 + $0xd8] sm:$0xff]
      %v413 = vld [vmem:[#allocation2 + $0xe0] sm:$0xff]
      %v414 = vld [vmem:[#allocation2 + $0xe8] sm:$0xff]
      %v415 = vld [vmem:[#allocation2 + $0xf0] sm:$0xff]
      %v416 = vld [vmem:[#allocation2 + $0xf8] sm:$0xff]
      %v417 = vld [vmem:[%s294] sm:$0xf]
      %v418 = vld [vmem:[%s294 + $0x4] sm:$0xf]
      %v451 = vunpack.c.l.b16 %v353
      %v452 = vunpack.c.l.b16 %v354
      %v453 = vunpack.c.l.b16 %v355
      %v454 = vunpack.c.l.b16 %v356
      %v455 = vunpack.c.l.b16 %v357
      %v456 = vunpack.c.l.b16 %v358
      %v457 = vunpack.c.l.b16 %v359
      %v458 = vunpack.c.l.b16 %v360
      %v459 = vunpack.c.l.b16 %v361
      %v460 = vunpack.c.l.b16 %v362
      %v461 = vunpack.c.l.b16 %v363
      %v462 = vunpack.c.l.b16 %v364
      %v463 = vunpack.c.l.b16 %v365
      %v464 = vunpack.c.l.b16 %v366
      %v465 = vunpack.c.l.b16 %v367
      %v466 = vunpack.c.l.b16 %v368
      %v467 = vunpack.c.l.b16 %v369
      %v468 = vunpack.c.l.b16 %v370
      %v469 = vunpack.c.l.b16 %v371
      %v470 = vunpack.c.l.b16 %v372
      %v471 = vunpack.c.l.b16 %v373
      %v472 = vunpack.c.l.b16 %v374
      %v473 = vunpack.c.l.b16 %v375
      %v474 = vunpack.c.l.b16 %v376
      %v475 = vunpack.c.l.b16 %v377
      %v476 = vunpack.c.l.b16 %v378
      %v477 = vunpack.c.l.b16 %v379
      %v478 = vunpack.c.l.b16 %v380
      %v479 = vunpack.c.l.b16 %v381
      %v480 = vunpack.c.l.b16 %v382
      %v481 = vunpack.c.l.b16 %v383
      %v482 = vunpack.c.l.b16 %v384
      %v483 = vpack.c.b16 %v452, %v451
      %v484 = vpack.c.b16 %v454, %v453
      %v485 = vpack.c.b16 %v456, %v455
      %v486 = vpack.c.b16 %v458, %v457
      %v487 = vpack.c.b16 %v460, %v459
      %v488 = vpack.c.b16 %v462, %v461
      %v489 = vpack.c.b16 %v464, %v463
      %v490 = vpack.c.b16 %v466, %v465
      %v491 = vpack.c.b16 %v468, %v467
      %v492 = vpack.c.b16 %v470, %v469
      %v493 = vpack.c.b16 %v472, %v471
      %v494 = vpack.c.b16 %v474, %v473
      %v495 = vpack.c.b16 %v476, %v475
      %v496 = vpack.c.b16 %v478, %v477
      %v497 = vpack.c.b16 %v480, %v479
      %v498 = vpack.c.b16 %v482, %v481
      %v501 = vunpack.c.l.b16 %v417
      %v502 = vunpack.c.l.b16 %v418
      %v503 = vpack.c.b16 %v502, %v501
      %vm505 = vcmask 130048
      %v507 = vsel %vm505, %v483, 0
      %v510 = vsel %vm505, %v484, 0
      %v513 = vsel %vm505, %v485, 0
      %v516 = vsel %vm505, %v486, 0
      %v519 = vsel %vm505, %v487, 0
      %v522 = vsel %vm505, %v488, 0
      %v525 = vsel %vm505, %v489, 0
      %v528 = vsel %vm505, %v490, 0
      %v531 = vsel %vm505, %v491, 0
      %v534 = vsel %vm505, %v492, 0
      %v537 = vsel %vm505, %v493, 0
      %v540 = vsel %vm505, %v494, 0
      %v543 = vsel %vm505, %v495, 0
      %v546 = vsel %vm505, %v496, 0
      %v549 = vsel %vm505, %v497, 0
      %v552 = vsel %vm505, %v498, 0
      %554 = vmatprep.subr.bf16.mxu0 0
      %555 = vmatpush1.bf16.msra.mxu0 %v503
      %556 = vmatprep.subr.bf16.mxu0 0
      %557 = vmatpush1.bf16.msra.mxu0 0
      %558 = vmatprep.subr.bf16.mxu0 0
      %559 = vmatpush1.bf16.msra.mxu0 0
      %560 = vmatprep.subr.bf16.mxu0 0
      %561 = vmatpush1.bf16.msra.mxu0 0
      %562 = vmatprep.subr.bf16.mxu0 0
      %563 = vmatpush1.bf16.msra.mxu0 0
      %564 = vmatprep.subr.bf16.mxu0 0
      %565 = vmatpush1.bf16.msra.mxu0 0
      %566 = vmatprep.subr.bf16.mxu0 0
      %567 = vmatpush1.bf16.msra.mxu0 0
      %568 = vmatprep.subr.bf16.mxu0 0
      %569 = vmatpush1.bf16.msra.mxu0 0
      %570 = vmatprep.subr.bf16.mxu0 0
      %571 = vmatpush1.bf16.msra.mxu0 0
      %572 = vmatprep.subr.bf16.mxu0 0
      %573 = vmatpush1.bf16.msra.mxu0 0
      %574 = vmatprep.subr.bf16.mxu0 0
      %575 = vmatpush1.bf16.msra.mxu0 0
      %576 = vmatprep.subr.bf16.mxu0 0
      %577 = vmatpush1.bf16.msra.mxu0 0
      %578 = vmatprep.subr.bf16.mxu0 0
      %579 = vmatpush1.bf16.msra.mxu0 0
      %580 = vmatprep.subr.bf16.mxu0 0
      %581 = vmatpush1.bf16.msra.mxu0 0
      %582 = vmatprep.subr.bf16.mxu0 0
      %583 = vmatpush1.bf16.msra.mxu0 0
      %584 = vmatprep.subr.bf16.mxu0 0
      %585 = vmatpush1.bf16.msra.mxu0 0
      %586 = vmatprep.mubr.bf16.mxu0 0
      %587 = vmatmul.mubr.bf16.gmra.mrb[0].mxu0 %v507
      %v588 = vpop.f32.mrb[0].mxu0
      %v589 = vadd.f32 0.0, %v588
      %v590 = vpop.f32.mrb[0].mxu0
      %v591 = vpop.f32.mrb[0].mxu0
      %v592 = vadd.f32 0.0, %v591
      %v593 = vpop.f32.mrb[0].mxu0
      %594 = vmatprep.mubr.bf16.mxu0 0
      %595 = vmatmul.mubr.bf16.gmra.mrb[0].mxu0 %v510
      %v596 = vpop.f32.mrb[0].mxu0
      %v597 = vadd.f32 0.0, %v596
      %v598 = vpop.f32.mrb[0].mxu0
      %v599 = vpop.f32.mrb[0].mxu0
      %v600 = vadd.f32 0.0, %v599
      %v601 = vpop.f32.mrb[0].mxu0
      %602 = vmatprep.mubr.bf16.mxu0 0
      %603 = vmatmul.mubr.bf16.gmra.mrb[0].mxu0 %v513
      %v604 = vpop.f32.mrb[0].mxu0
      %v605 = vadd.f32 0.0, %v604
      %v606 = vpop.f32.mrb[0].mxu0
      %v607 = vpop.f32.mrb[0].mxu0
      %v608 = vadd.f32 0.0, %v607
      %v609 = vpop.f32.mrb[0].mxu0
      %610 = vmatprep.mubr.bf16.mxu0 0
      %611 = vmatmul.mubr.bf16.gmra.mrb[0].mxu0 %v516
      %v612 = vpop.f32.mrb[0].mxu0
      %v613 = vadd.f32 0.0, %v612
      %v614 = vpop.f32.mrb[0].mxu0
      %v615 = vpop.f32.mrb[0].mxu0
      %v616 = vadd.f32 0.0, %v615
      %v617 = vpop.f32.mrb[0].mxu0
      %618 = vmatprep.mubr.bf16.mxu0 0
      %619 = vmatmul.mubr.bf16.gmra.mrb[0].mxu0 %v519
      %v620 = vpop.f32.mrb[0].mxu0
      %v621 = vadd.f32 0.0, %v620
      %v622 = vpop.f32.mrb[0].mxu0
      %v623 = vpop.f32.mrb[0].mxu0
      %v624 = vadd.f32 0.0, %v623
      %v625 = vpop.f32.mrb[0].mxu0
      %626 = vmatprep.mubr.bf16.mxu0 0
      %627 = vmatmul.mubr.bf16.gmra.mrb[0].mxu0 %v522
      %v628 = vpop.f32.mrb[0].mxu0
      %v629 = vadd.f32 0.0, %v628
      %v630 = vpop.f32.mrb[0].mxu0
      %v631 = vpop.f32.mrb[0].mxu0
      %v632 = vadd.f32 0.0, %v631
      %v633 = vpop.f32.mrb[0].mxu0
      %634 = vmatprep.mubr.bf16.mxu0 0
      %635 = vmatmul.mubr.bf16.gmra.mrb[0].mxu0 %v525
      %v636 = vpop.f32.mrb[0].mxu0
      %v637 = vadd.f32 0.0, %v636
      %v638 = vpop.f32.mrb[0].mxu0
      %v639 = vpop.f32.mrb[0].mxu0
      %v640 = vadd.f32 0.0, %v639
      %v641 = vpop.f32.mrb[0].mxu0
      %642 = vmatprep.mubr.bf16.mxu0 0
      %643 = vmatmul.mubr.bf16.gmra.mrb[0].mxu0 %v528
      %v644 = vpop.f32.mrb[0].mxu0
      %v645 = vadd.f32 0.0, %v644
      %v646 = vpop.f32.mrb[0].mxu0
      %v647 = vpop.f32.mrb[0].mxu0
      %v648 = vadd.f32 0.0, %v647
      %v649 = vpop.f32.mrb[0].mxu0
      %650 = vmatprep.mubr.bf16.mxu0 0
      %651 = vmatmul.mubr.bf16.gmra.mrb[0].mxu0 %v531
      %v652 = vpop.f32.mrb[0].mxu0
      %v653 = vadd.f32 0.0, %v652
      %v654 = vpop.f32.mrb[0].mxu0
      %v655 = vpop.f32.mrb[0].mxu0
      %v656 = vadd.f32 0.0, %v655
      %v657 = vpop.f32.mrb[0].mxu0
      %658 = vmatprep.mubr.bf16.mxu0 0
      %659 = vmatmul.mubr.bf16.gmra.mrb[0].mxu0 %v534
      %v660 = vpop.f32.mrb[0].mxu0
      %v661 = vadd.f32 0.0, %v660
      %v662 = vpop.f32.mrb[0].mxu0
      %v663 = vpop.f32.mrb[0].mxu0
      %v664 = vadd.f32 0.0, %v663
      %v665 = vpop.f32.mrb[0].mxu0
      %666 = vmatprep.mubr.bf16.mxu0 0
      %667 = vmatmul.mubr.bf16.gmra.mrb[0].mxu0 %v537
      %v668 = vpop.f32.mrb[0].mxu0
      %v669 = vadd.f32 0.0, %v668
      %v670 = vpop.f32.mrb[0].mxu0
      %v671 = vpop.f32.mrb[0].mxu0
      %v672 = vadd.f32 0.0, %v671
      %v673 = vpop.f32.mrb[0].mxu0
      %674 = vmatprep.mubr.bf16.mxu0 0
      %675 = vmatmul.mubr.bf16.gmra.mrb[0].mxu0 %v540
      %v676 = vpop.f32.mrb[0].mxu0
      %v677 = vadd.f32 0.0, %v676
      %v678 = vpop.f32.mrb[0].mxu0
      %v679 = vpop.f32.mrb[0].mxu0
      %v680 = vadd.f32 0.0, %v679
      %v681 = vpop.f32.mrb[0].mxu0
      %682 = vmatprep.mubr.bf16.mxu0 0
      %683 = vmatmul.mubr.bf16.gmra.mrb[0].mxu0 %v543
      %v684 = vpop.f32.mrb[0].mxu0
      %v685 = vadd.f32 0.0, %v684
      %v686 = vpop.f32.mrb[0].mxu0
      %v687 = vpop.f32.mrb[0].mxu0
      %v688 = vadd.f32 0.0, %v687
      %v689 = vpop.f32.mrb[0].mxu0
      %690 = vmatprep.mubr.bf16.mxu0 0
      %691 = vmatmul.mubr.bf16.gmra.mrb[0].mxu0 %v546
      %v692 = vpop.f32.mrb[0].mxu0
      %v693 = vadd.f32 0.0, %v692
      %v694 = vpop.f32.mrb[0].mxu0
      %v695 = vpop.f32.mrb[0].mxu0
      %v696 = vadd.f32 0.0, %v695
      %v697 = vpop.f32.mrb[0].mxu0
      %698 = vmatprep.mubr.bf16.mxu0 0
      %699 = vmatmul.mubr.bf16.gmra.mrb[0].mxu0 %v549
      %v700 = vpop.f32.mrb[0].mxu0
      %v701 = vadd.f32 0.0, %v700
      %v702 = vpop.f32.mrb[0].mxu0
      %v703 = vpop.f32.mrb[0].mxu0
      %v704 = vadd.f32 0.0, %v703
      %v705 = vpop.f32.mrb[0].mxu0
      %706 = vmatprep.mubr.bf16.mxu0 0
      %707 = vmatmul.mubr.bf16.gmra.mrb[0].mxu0 %v552
      %v708 = vpop.f32.mrb[0].mxu0
      %v709 = vadd.f32 0.0, %v708
      %v710 = vpop.f32.mrb[0].mxu0
      %v711 = vpop.f32.mrb[0].mxu0
      %v712 = vadd.f32 0.0, %v711
      %v713 = vpop.f32.mrb[0].mxu0
      %714 = vdwg.mxu0
      %v715 = vadd.f32 %v385, %v589
      %v716 = vadd.f32 %v386, %v592
      %v717 = vadd.f32 %v387, %v597
      %v718 = vadd.f32 %v388, %v600
      %v719 = vadd.f32 %v389, %v605
      %v720 = vadd.f32 %v390, %v608
      %v721 = vadd.f32 %v391, %v613
      %v722 = vadd.f32 %v392, %v616
      %v723 = vadd.f32 %v393, %v621
      %v724 = vadd.f32 %v394, %v624
      %v725 = vadd.f32 %v395, %v629
      %v726 = vadd.f32 %v396, %v632
      %v727 = vadd.f32 %v397, %v637
      %v728 = vadd.f32 %v398, %v640
      %v729 = vadd.f32 %v399, %v645
      %v730 = vadd.f32 %v400, %v648
      %v731 = vadd.f32 %v401, %v653
      %v732 = vadd.f32 %v402, %v656
      %v733 = vadd.f32 %v403, %v661
      %v734 = vadd.f32 %v404, %v664
      %v735 = vadd.f32 %v405, %v669
      %v736 = vadd.f32 %v406, %v672
      %v737 = vadd.f32 %v407, %v677
      %v738 = vadd.f32 %v408, %v680
      %v739 = vadd.f32 %v409, %v685
      %v740 = vadd.f32 %v410, %v688
      %v741 = vadd.f32 %v411, %v693
      %v742 = vadd.f32 %v412, %v696
      %v743 = vadd.f32 %v413, %v701
      %v744 = vadd.f32 %v414, %v704
      %v745 = vadd.f32 %v415, %v709
      %v746 = vadd.f32 %v416, %v712
      %vm747 = vcmask 392192
      %748 = vst.msk [vmem:[#allocation2] sm:$0xff] %vm747, %v715
      %749 = vst.msk [vmem:[#allocation2 + $0x8] sm:$0xff] %vm747, %v716
      %750 = vst.msk [vmem:[#allocation2 + $0x10] sm:$0xff] %vm747, %v717
      %751 = vst.msk [vmem:[#allocation2 + $0x18] sm:$0xff] %vm747, %v718
      %752 = vst.msk [vmem:[#allocation2 + $0x20] sm:$0xff] %vm747, %v719
      %753 = vst.msk [vmem:[#allocation2 + $0x28] sm:$0xff] %vm747, %v720
      %754 = vst.msk [vmem:[#allocation2 + $0x30] sm:$0xff] %vm747, %v721
      %755 = vst.msk [vmem:[#allocation2 + $0x38] sm:$0xff] %vm747, %v722
      %756 = vst.msk [vmem:[#allocation2 + $0x40] sm:$0xff] %vm747, %v723
      %757 = vst.msk [vmem:[#allocation2 + $0x48] sm:$0xff] %vm747, %v724
      %758 = vst.msk [vmem:[#allocation2 + $0x50] sm:$0xff] %vm747, %v725
      %759 = vst.msk [vmem:[#allocation2 + $0x58] sm:$0xff] %vm747, %v726
      %760 = vst.msk [vmem:[#allocation2 + $0x60] sm:$0xff] %vm747, %v727
      %761 = vst.msk [vmem:[#allocation2 + $0x68] sm:$0xff] %vm747, %v728
      %762 = vst.msk [vmem:[#allocation2 + $0x70] sm:$0xff] %vm747, %v729
      %763 = vst.msk [vmem:[#allocation2 + $0x78] sm:$0xff] %vm747, %v730
      %764 = vst.msk [vmem:[#allocation2 + $0x80] sm:$0xff] %vm747, %v731
      %765 = vst.msk [vmem:[#allocation2 + $0x88] sm:$0xff] %vm747, %v732
      %766 = vst.msk [vmem:[#allocation2 + $0x90] sm:$0xff] %vm747, %v733
      %767 = vst.msk [vmem:[#allocation2 + $0x98] sm:$0xff] %vm747, %v734
      %768 = vst.msk [vmem:[#allocation2 + $0xa0] sm:$0xff] %vm747, %v735
      %769 = vst.msk [vmem:[#allocation2 + $0xa8] sm:$0xff] %vm747, %v736
      %770 = vst.msk [vmem:[#allocation2 + $0xb0] sm:$0xff] %vm747, %v737
      %771 = vst.msk [vmem:[#allocation2 + $0xb8] sm:$0xff] %vm747, %v738
      %772 = vst.msk [vmem:[#allocation2 + $0xc0] sm:$0xff] %vm747, %v739
      %773 = vst.msk [vmem:[#allocation2 + $0xc8] sm:$0xff] %vm747, %v740
      %774 = vst.msk [vmem:[#allocation2 + $0xd0] sm:$0xff] %vm747, %v741
      %775 = vst.msk [vmem:[#allocation2 + $0xd8] sm:$0xff] %vm747, %v742
      %776 = vst.msk [vmem:[#allocation2 + $0xe0] sm:$0xff] %vm747, %v743
      %777 = vst.msk [vmem:[#allocation2 + $0xe8] sm:$0xff] %vm747, %v744
      %778 = vst.msk [vmem:[#allocation2 + $0xf0] sm:$0xff] %vm747, %v745
      %779 = vst.msk [vmem:[#allocation2 + $0xf8] sm:$0xff] %vm747, %v746
      // Predicated region
      $region37: #{upblock_forward.19} parent=31 // pred_check
        %p780 = pneg %p316
      $region38: #{upblock_forward.19} parent=31 // pred_check_branch
        %782 = sbr.rel (%p780) target = $region40
      $region39: #{upblock_forward.19} parent=31 // pred_region
        %v783 = vld [vmem:[#allocation2] sm:$0xff]
        %v784 = vld [vmem:[#allocation2 + $0x8] sm:$0xff]
        %v785 = vld [vmem:[#allocation2 + $0x10] sm:$0xff]
        %v786 = vld [vmem:[#allocation2 + $0x18] sm:$0xff]
        %v787 = vld [vmem:[#allocation2 + $0x20] sm:$0xff]
        %v788 = vld [vmem:[#allocation2 + $0x28] sm:$0xff]
        %v789 = vld [vmem:[#allocation2 + $0x30] sm:$0xff]
        %v790 = vld [vmem:[#allocation2 + $0x38] sm:$0xff]
        %v791 = vld [vmem:[#allocation2 + $0x40] sm:$0xff]
        %v792 = vld [vmem:[#allocation2 + $0x48] sm:$0xff]
        %v793 = vld [vmem:[#allocation2 + $0x50] sm:$0xff]
        %v794 = vld [vmem:[#allocation2 + $0x58] sm:$0xff]
        %v795 = vld [vmem:[#allocation2 + $0x60] sm:$0xff]
        %v796 = vld [vmem:[#allocation2 + $0x68] sm:$0xff]
        %v797 = vld [vmem:[#allocation2 + $0x70] sm:$0xff]
        %v798 = vld [vmem:[#allocation2 + $0x78] sm:$0xff]
        %v799 = vld [vmem:[#allocation2 + $0x80] sm:$0xff]
        %v800 = vld [vmem:[#allocation2 + $0x88] sm:$0xff]
        %v801 = vld [vmem:[#allocation2 + $0x90] sm:$0xff]
        %v802 = vld [vmem:[#allocation2 + $0x98] sm:$0xff]
        %v803 = vld [vmem:[#allocation2 + $0xa0] sm:$0xff]
        %v804 = vld [vmem:[#allocation2 + $0xa8] sm:$0xff]
        %v805 = vld [vmem:[#allocation2 + $0xb0] sm:$0xff]
        %v806 = vld [vmem:[#allocation2 + $0xb8] sm:$0xff]
        %v807 = vld [vmem:[#allocation2 + $0xc0] sm:$0xff]
        %v808 = vld [vmem:[#allocation2 + $0xc8] sm:$0xff]
        %v809 = vld [vmem:[#allocation2 + $0xd0] sm:$0xff]
        %v810 = vld [vmem:[#allocation2 + $0xd8] sm:$0xff]
        %v811 = vld [vmem:[#allocation2 + $0xe0] sm:$0xff]
        %v812 = vld [vmem:[#allocation2 + $0xe8] sm:$0xff]
        %v813 = vld [vmem:[#allocation2 + $0xf0] sm:$0xff]
        %v814 = vld [vmem:[#allocation2 + $0xf8] sm:$0xff]
        %v815 = vld [vmem:[%s301] sm:$0x1]
        %v817 = vlaneseq
        %v818 = vshrl.u32 %v817, 7
        %v819 = vsub.s32 0, %v818
        %v820 = vrot.slane %v815, %v819
        %v822 = vadd.f32 %v783, %v820
        %v823 = vadd.f32 %v784, %v820
        %v824 = vadd.f32 %v785, %v820
        %v825 = vadd.f32 %v786, %v820
        %v826 = vadd.f32 %v787, %v820
        %v827 = vadd.f32 %v788, %v820
        %v828 = vadd.f32 %v789, %v820
        %v829 = vadd.f32 %v790, %v820
        %v830 = vadd.f32 %v791, %v820
        %v831 = vadd.f32 %v792, %v820
        %v832 = vadd.f32 %v793, %v820
        %v833 = vadd.f32 %v794, %v820
        %v834 = vadd.f32 %v795, %v820
        %v835 = vadd.f32 %v796, %v820
        %v836 = vadd.f32 %v797, %v820
        %v837 = vadd.f32 %v798, %v820
        %v838 = vadd.f32 %v799, %v820
        %v839 = vadd.f32 %v800, %v820
        %v840 = vadd.f32 %v801, %v820
        %v841 = vadd.f32 %v802, %v820
        %v842 = vadd.f32 %v803, %v820
        %v843 = vadd.f32 %v804, %v820
        %v844 = vadd.f32 %v805, %v820
        %v845 = vadd.f32 %v806, %v820
        %v846 = vadd.f32 %v807, %v820
        %v847 = vadd.f32 %v808, %v820
        %v848 = vadd.f32 %v809, %v820
        %v849 = vadd.f32 %v810, %v820
        %v850 = vadd.f32 %v811, %v820
        %v851 = vadd.f32 %v812, %v820
        %v852 = vadd.f32 %v813, %v820
        %v853 = vadd.f32 %v814, %v820
        %v854 = vpack.c.bf16 %v823, %v822
        %v855 = vpack.c.bf16 %v825, %v824
        %v856 = vpack.c.bf16 %v827, %v826
        %v857 = vpack.c.bf16 %v829, %v828
        %v858 = vpack.c.bf16 %v831, %v830
        %v859 = vpack.c.bf16 %v833, %v832
        %v860 = vpack.c.bf16 %v835, %v834
        %v861 = vpack.c.bf16 %v837, %v836
        %v862 = vpack.c.bf16 %v839, %v838
        %v863 = vpack.c.bf16 %v841, %v840
        %v864 = vpack.c.bf16 %v843, %v842
        %v865 = vpack.c.bf16 %v845, %v844
        %v866 = vpack.c.bf16 %v847, %v846
        %v867 = vpack.c.bf16 %v849, %v848
        %v868 = vpack.c.bf16 %v851, %v850
        %v869 = vpack.c.bf16 %v853, %v852
        %v886 = vunpack.c.l.b16 %v854
        %v887 = vunpack.c.h.b16 %v854
        %v888 = vunpack.c.l.b16 %v855
        %v889 = vunpack.c.h.b16 %v855
        %v890 = vunpack.c.l.b16 %v856
        %v891 = vunpack.c.h.b16 %v856
        %v892 = vunpack.c.l.b16 %v857
        %v893 = vunpack.c.h.b16 %v857
        %v894 = vunpack.c.l.b16 %v858
        %v895 = vunpack.c.h.b16 %v858
        %v896 = vunpack.c.l.b16 %v859
        %v897 = vunpack.c.h.b16 %v859
        %v898 = vunpack.c.l.b16 %v860
        %v899 = vunpack.c.h.b16 %v860
        %v900 = vunpack.c.l.b16 %v861
        %v901 = vunpack.c.h.b16 %v861
        %v902 = vunpack.c.l.b16 %v862
        %v903 = vunpack.c.h.b16 %v862
        %v904 = vunpack.c.l.b16 %v863
        %v905 = vunpack.c.h.b16 %v863
        %v906 = vunpack.c.l.b16 %v864
        %v907 = vunpack.c.h.b16 %v864
        %v908 = vunpack.c.l.b16 %v865
        %v909 = vunpack.c.h.b16 %v865
        %v910 = vunpack.c.l.b16 %v866
        %v911 = vunpack.c.h.b16 %v866
        %v912 = vunpack.c.l.b16 %v867
        %v913 = vunpack.c.h.b16 %v867
        %v914 = vunpack.c.l.b16 %v868
        %v915 = vunpack.c.h.b16 %v868
        %v916 = vunpack.c.l.b16 %v869
        %v917 = vunpack.c.h.b16 %v869
        %v918 = vpack.c.b16 %v886, %v886
        %v919 = vpack.c.b16 %v887, %v887
        %v920 = vpack.c.b16 %v888, %v888
        %v921 = vpack.c.b16 %v889, %v889
        %v922 = vpack.c.b16 %v890, %v890
        %v923 = vpack.c.b16 %v891, %v891
        %v924 = vpack.c.b16 %v892, %v892
        %v925 = vpack.c.b16 %v893, %v893
        %v926 = vpack.c.b16 %v894, %v894
        %v927 = vpack.c.b16 %v895, %v895
        %v928 = vpack.c.b16 %v896, %v896
        %v929 = vpack.c.b16 %v897, %v897
        %v930 = vpack.c.b16 %v898, %v898
        %v931 = vpack.c.b16 %v899, %v899
        %v932 = vpack.c.b16 %v900, %v900
        %v933 = vpack.c.b16 %v901, %v901
        %v934 = vpack.c.b16 %v902, %v902
        %v935 = vpack.c.b16 %v903, %v903
        %v936 = vpack.c.b16 %v904, %v904
        %v937 = vpack.c.b16 %v905, %v905
        %v938 = vpack.c.b16 %v906, %v906
        %v939 = vpack.c.b16 %v907, %v907
        %v940 = vpack.c.b16 %v908, %v908
        %v941 = vpack.c.b16 %v909, %v909
        %v942 = vpack.c.b16 %v910, %v910
        %v943 = vpack.c.b16 %v911, %v911
        %v944 = vpack.c.b16 %v912, %v912
        %v945 = vpack.c.b16 %v913, %v913
        %v946 = vpack.c.b16 %v914, %v914
        %v947 = vpack.c.b16 %v915, %v915
        %v948 = vpack.c.b16 %v916, %v916
        %v949 = vpack.c.b16 %v917, %v917
        %vm982 = vcmask 388096
        %983 = vst.msk [vmem:[%s313] sm:$0xf] %vm982, %v918
        %984 = vst.msk [vmem:[%s313 + $0x4] sm:$0xf] %vm982, %v919
        %985 = vst.msk [vmem:[%s313 + $0x8] sm:$0xf] %vm982, %v920
        %986 = vst.msk [vmem:[%s313 + $0xc] sm:$0xf] %vm982, %v921
        %987 = vst.msk [vmem:[%s313 + $0x10] sm:$0xf] %vm982, %v922
        %988 = vst.msk [vmem:[%s313 + $0x14] sm:$0xf] %vm982, %v923
        %989 = vst.msk [vmem:[%s313 + $0x18] sm:$0xf] %vm982, %v924
        %990 = vst.msk [vmem:[%s313 + $0x1c] sm:$0xf] %vm982, %v925
        %991 = vst.msk [vmem:[%s313 + $0x20] sm:$0xf] %vm982, %v926
        %992 = vst.msk [vmem:[%s313 + $0x24] sm:$0xf] %vm982, %v927
        %993 = vst.msk [vmem:[%s313 + $0x28] sm:$0xf] %vm982, %v928
        %994 = vst.msk [vmem:[%s313 + $0x2c] sm:$0xf] %vm982, %v929
        %995 = vst.msk [vmem:[%s313 + $0x30] sm:$0xf] %vm982, %v930
        %996 = vst.msk [vmem:[%s313 + $0x34] sm:$0xf] %vm982, %v931
        %997 = vst.msk [vmem:[%s313 + $0x38] sm:$0xf] %vm982, %v932
        %998 = vst.msk [vmem:[%s313 + $0x3c] sm:$0xf] %vm982, %v933
        %999 = vst.msk [vmem:[%s313 + $0x40] sm:$0xf] %vm982, %v934
        %1000 = vst.msk [vmem:[%s313 + $0x44] sm:$0xf] %vm982, %v935
        %1001 = vst.msk [vmem:[%s313 + $0x48] sm:$0xf] %vm982, %v936
        %1002 = vst.msk [vmem:[%s313 + $0x4c] sm:$0xf] %vm982, %v937
        %1003 = vst.msk [vmem:[%s313 + $0x50] sm:$0xf] %vm982, %v938
        %1004 = vst.msk [vmem:[%s313 + $0x54] sm:$0xf] %vm982, %v939
        %1005 = vst.msk [vmem:[%s313 + $0x58] sm:$0xf] %vm982, %v940
        %1006 = vst.msk [vmem:[%s313 + $0x5c] sm:$0xf] %vm982, %v941
        %1007 = vst.msk [vmem:[%s313 + $0x60] sm:$0xf] %vm982, %v942
        %1008 = vst.msk [vmem:[%s313 + $0x64] sm:$0xf] %vm982, %v943
        %1009 = vst.msk [vmem:[%s313 + $0x68] sm:$0xf] %vm982, %v944
        %1010 = vst.msk [vmem:[%s313 + $0x6c] sm:$0xf] %vm982, %v945
        %1011 = vst.msk [vmem:[%s313 + $0x70] sm:$0xf] %vm982, %v946
        %1012 = vst.msk [vmem:[%s313 + $0x74] sm:$0xf] %vm982, %v947
        %1013 = vst.msk [vmem:[%s313 + $0x78] sm:$0xf] %vm982, %v948
        %1014 = vst.msk [vmem:[%s313 + $0x7c] sm:$0xf] %vm982, %v949
      $region40: #{upblock_forward.19} parent=31 // pred_fallthru
        _
      %s1015 = smul.u32 32, %s21
      %p1016 = scmp.lt.s32.totalorder %s20, 0
      %s1017 = scalar_select %p1016, %s20, 0
      %p1018 = scmp.lt.s32.totalorder %s1015, 63
      %s1019 = scalar_select %p1018, %s1015, 63
      %p1020 = scmp.lt.s32.totalorder %s22, 0
      %s1021 = scalar_select %p1020, %s22, 0
      %s1022 = sadd.s32 %s1021, %s1019
      %s1023 = smul.addr %s1017, 64
      %s1024 = sadd.s32 %s1022, %s1023
      %s1025 = smul.addr %s1024, 4
      %s1026 = scalar_lea.vmem %s3, %s1025
      // Predicated region
      $region41: #{upblock_forward.19} parent=31 // pred_check
        %p1027 = pneg %p150
      $region42: #{upblock_forward.19} parent=31 // pred_check_branch
        %1029 = sbr.rel (%p1027) target = $region44
      $region43: #{upblock_forward.19} parent=31 // pred_region
        %s1030 = smul.u32 32, %s21
      $region44: #{upblock_forward.19} parent=31 // pred_fallthru
        _
    $region32: #{upblock_forward.19} parent=5 // pred_fallthru
      _
    %p1031 = scmp.le.s32.totalorder 2, %s9
    // Predicated region
    $region45: #{upblock_forward.19} parent=5 // pred_check
      %p1032 = pneg %p1031
    $region46: #{upblock_forward.19} parent=5 // pred_check_branch
      %1034 = sbr.rel (%p1032) target = $region48
    $region47: #{upblock_forward.19} parent=5 // pred_region
      %s1035 = ssub.s32 %s9, 2
      // Predicated region
      $region49: #{upblock_forward.19} parent=47 // pred_check
        %p1036 = pneg %p156
      $region50: #{upblock_forward.19} parent=47 // pred_check_branch
        %1038 = sbr.rel (%p1036) target = $region52
      $region51: #{upblock_forward.19} parent=47 // pred_region
        %s1039 = smul.u32 32, %s25
        %p1040 = scmp.lt.s32.totalorder %s24, 0
        %s1041 = scalar_select %p1040, %s24, 0
        %p1042 = scmp.lt.s32.totalorder %s1039, 63
        %s1043 = scalar_select %p1042, %s1039, 63
        %p1044 = scmp.lt.s32.totalorder %s26, 0
        %s1045 = scalar_select %p1044, %s26, 0
        %s1046 = sadd.s32 %s1045, %s1043
        %s1047 = smul.addr %s1041, 64
        %s1048 = sadd.s32 %s1046, %s1047
        %s1049 = smul.addr %s1048, 4
        %s1050 = scalar_lea.vmem %s3, %s1049
      $region52: #{upblock_forward.19} parent=47 // pred_fallthru
        _
    $region48: #{upblock_forward.19} parent=5 // pred_fallthru
      _
  $region6: #{upblock_forward.19} parent=0 // loop_footer
    %s13 = sadd.s32 1, %s9
  $region7: #{upblock_forward.19} parent=0 // loop_footer_branch
    %8 = sbr.rel target = $region3
  $region8: #{upblock_forward.19} parent=0 // loop_exit
    _

// kernel: squeeze.11
$region0: #{squeeze.11}
  %s0 = inlined_call_operand.vmem [shape: bf16[1,512,48], index: 0, kind: input, shape index: {}]
  %s1 = inlined_call_operand.vmem [shape: bf16[2,256,3,4,4], index: 1, kind: output, shape index: {}]
  $region1: #{squeeze.11} parent=0
    #allocation0 [shape = 'u8[393216]{0}', space=vmem, size = 0x60000, scoped, tag = 'scoped mem for output reshape']
    #allocation1 [shape = 'u8[98304]{0}', space=vmem, size = 0x18000, scoped, tag = 'scoped mem for input reshape']
    %s3 = smul.u32 4, 2
    %s4 = sshllo.u32 0, %s3
    %s5 = smul.addr 4, 23
    %s6 = scalar_lea.vmem %s0, %s5
    %s7 = sshrl.u32 %s4, 1
    %s8 = sor.u32 %s4, %s7
    %s9 = sand.u32 %s8, 85
    %s10 = sshrl.u32 %s9, 1
    %s11 = sor.u32 %s9, %s10
    %s12 = sand.u32 51, %s11
    %s13 = sshrl.u32 %s12, 2
    %s14 = sor.u32 %s12, %s13
    %s15 = sand.u32 15, %s14
    %v16 = vld [vmem:[%s6] sm:%s15]
    %v17 = vunpack.c.l.bf16 %v16
    %v18 = vunpack.c.h.bf16 %v16
    %s19 = scalar_lea.vmem [#allocation1], 184
    %20 = vst [vmem:[%s19] sm:%s4] %v17
    %s21 = smul.addr 4, 22
    %s22 = scalar_lea.vmem %s0, %s21
    %s23 = sshrl.u32 %s4, 1
    %s24 = sor.u32 %s4, %s23
    %s25 = sand.u32 %s24, 85
    %s26 = sshrl.u32 %s25, 1
    %s27 = sor.u32 %s25, %s26
    %s28 = sand.u32 51, %s27
    %s29 = sshrl.u32 %s28, 2
    %s30 = sor.u32 %s28, %s29
    %s31 = sand.u32 15, %s30
    %v32 = vld [vmem:[%s22] sm:%s31]
    %v33 = vunpack.c.l.bf16 %v32
    %v34 = vunpack.c.h.bf16 %v32
    %s35 = scalar_lea.vmem [#allocation1], 176
    %36 = vst [vmem:[%s35] sm:%s4] %v33
    %s37 = smul.addr 4, 21
    %s38 = scalar_lea.vmem %s0, %s37
    %s39 = sshrl.u32 %s4, 1
    %s40 = sor.u32 %s4, %s39
    %s41 = sand.u32 %s40, 85
    %s42 = sshrl.u32 %s41, 1
    %s43 = sor.u32 %s41, %s42
    %s44 = sand.u32 51, %s43
    %s45 = sshrl.u32 %s44, 2
    %s46 = sor.u32 %s44, %s45
    %s47 = sand.u32 15, %s46
    %v48 = vld [vmem:[%s38] sm:%s47]
    %v49 = vunpack.c.l.bf16 %v48
    %v50 = vunpack.c.h.bf16 %v48
    %s51 = scalar_lea.vmem [#allocation1], 168
    %52 = vst [vmem:[%s51] sm:%s4] %v49
    %s53 = smul.addr 4, 20
    %s54 = scalar_lea.vmem %s0, %s53
    %s55 = sshrl.u32 %s4, 1
    %s56 = sor.u32 %s4, %s55
    %s57 = sand.u32 %s56, 85
    %s58 = sshrl.u32 %s57, 1
    %s59 = sor.u32 %s57, %s58
    %s60 = sand.u32 51, %s59
    %s61 = sshrl.u32 %s60, 2
    %s62 = sor.u32 %s60, %s61
    %s63 = sand.u32 15, %s62
    %v64 = vld [vmem:[%s54] sm:%s63]
    %v65 = vunpack.c.l.bf16 %v64
    %v66 = vunpack.c.h.bf16 %v64
    %s67 = scalar_lea.vmem [#allocation1], 160
    %68 = vst [vmem:[%s67] sm:%s4] %v65
    %s69 = smul.addr 4, 19
    %s70 = scalar_lea.vmem %s0, %s69
    %s71 = sshrl.u32 %s4, 1
    %s72 = sor.u32 %s4, %s71
    %s73 = sand.u32 %s72, 85
    %s74 = sshrl.u32 %s73, 1
    %s75 = sor.u32 %s73, %s74
    %s76 = sand.u32 51, %s75
    %s77 = sshrl.u32 %s76, 2
    %s78 = sor.u32 %s76, %s77
    %s79 = sand.u32 15, %s78
    %v80 = vld [vmem:[%s70] sm:%s79]
    %v81 = vunpack.c.l.bf16 %v80
    %v82 = vunpack.c.h.bf16 %v80
    %s83 = scalar_lea.vmem [#allocation1], 152
    %84 = vst [vmem:[%s83] sm:%s4] %v81
    %s85 = smul.addr 4, 18
    %s86 = scalar_lea.vmem %s0, %s85
    %s87 = sshrl.u32 %s4, 1
    %s88 = sor.u32 %s4, %s87
    %s89 = sand.u32 %s88, 85
    %s90 = sshrl.u32 %s89, 1
    %s91 = sor.u32 %s89, %s90
    %s92 = sand.u32 51, %s91
    %s93 = sshrl.u32 %s92, 2
    %s94 = sor.u32 %s92, %s93
    %s95 = sand.u32 15, %s94
    %v96 = vld [vmem:[%s86] sm:%s95]
    %v97 = vunpack.c.l.bf16 %v96
    %v98 = vunpack.c.h.bf16 %v96
    %s99 = scalar_lea.vmem [#allocation1], 144
    %100 = vst [vmem:[%s99] sm:%s4] %v97
    %s101 = smul.addr 4, 17
    %s102 = scalar_lea.vmem %s0, %s101
    %s103 = sshrl.u32 %s4, 1
    %s104 = sor.u32 %s4, %s103
    %s105 = sand.u32 %s104, 85
    %s106 = sshrl.u32 %s105, 1
    %s107 = sor.u32 %s105, %s106
    %s108 = sand.u32 51, %s107
    %s109 = sshrl.u32 %s108, 2
    %s110 = sor.u32 %s108, %s109
    %s111 = sand.u32 15, %s110
    %v112 = vld [vmem:[%s102] sm:%s111]
    %v113 = vunpack.c.l.bf16 %v112
    %v114 = vunpack.c.h.bf16 %v112
    %s115 = scalar_lea.vmem [#allocation1], 136
    %116 = vst [vmem:[%s115] sm:%s4] %v113
    %s117 = smul.addr 4, 16
    %s118 = scalar_lea.vmem %s0, %s117
    %s119 = sshrl.u32 %s4, 1
    %s120 = sor.u32 %s4, %s119
    %s121 = sand.u32 %s120, 85
    %s122 = sshrl.u32 %s121, 1
    %s123 = sor.u32 %s121, %s122
    %s124 = sand.u32 51, %s123
    %s125 = sshrl.u32 %s124, 2
    %s126 = sor.u32 %s124, %s125
    %s127 = sand.u32 15, %s126
    %v128 = vld [vmem:[%s118] sm:%s127]
    %v129 = vunpack.c.l.bf16 %v128
    %v130 = vunpack.c.h.bf16 %v128
    %s131 = scalar_lea.vmem [#allocation1], 128
    %132 = vst [vmem:[%s131] sm:%s4] %v129
    %s133 = smul.addr 4, 15
    %s134 = scalar_lea.vmem %s0, %s133
    %s135 = sshrl.u32 %s4, 1
    %s136 = sor.u32 %s4, %s135
    %s137 = sand.u32 %s136, 85
    %s138 = sshrl.u32 %s137, 1
    %s139 = sor.u32 %s137, %s138
    %s140 = sand.u32 51, %s139
    %s141 = sshrl.u32 %s140, 2
    %s142 = sor.u32 %s140, %s141
    %s143 = sand.u32 15, %s142
    %v144 = vld [vmem:[%s134] sm:%s143]
    %v145 = vunpack.c.l.bf16 %v144
    %v146 = vunpack.c.h.bf16 %v144
    %s147 = scalar_lea.vmem [#allocation1], 120
    %148 = vst [vmem:[%s147] sm:%s4] %v145
    %s149 = smul.addr 4, 14
    %s150 = scalar_lea.vmem %s0, %s149
    %s151 = sshrl.u32 %s4, 1
    %s152 = sor.u32 %s4, %s151
    %s153 = sand.u32 %s152, 85
    %s154 = sshrl.u32 %s153, 1
    %s155 = sor.u32 %s153, %s154
    %s156 = sand.u32 51, %s155
    %s157 = sshrl.u32 %s156, 2
    %s158 = sor.u32 %s156, %s157
    %s159 = sand.u32 15, %s158
    %v160 = vld [vmem:[%s150] sm:%s159]
    %v161 = vunpack.c.l.bf16 %v160
    %v162 = vunpack.c.h.bf16 %v160
    %s163 = scalar_lea.vmem [#allocation1], 112
    %164 = vst [vmem:[%s163] sm:%s4] %v161
    %s165 = smul.addr 4, 13
    %s166 = scalar_lea.vmem %s0, %s165
    %s167 = sshrl.u32 %s4, 1
    %s168 = sor.u32 %s4, %s167
    %s169 = sand.u32 %s168, 85
    %s170 = sshrl.u32 %s169, 1
    %s171 = sor.u32 %s169, %s170
    %s172 = sand.u32 51, %s171
    %s173 = sshrl.u32 %s172, 2
    %s174 = sor.u32 %s172, %s173
    %s175 = sand.u32 15, %s174
    %v176 = vld [vmem:[%s166] sm:%s175]
    %v177 = vunpack.c.l.bf16 %v176
    %v178 = vunpack.c.h.bf16 %v176
    %s179 = scalar_lea.vmem [#allocation1], 104
    %180 = vst [vmem:[%s179] sm:%s4] %v177
    %s181 = smul.addr 4, 12
    %s182 = scalar_lea.vmem %s0, %s181
    %s183 = sshrl.u32 %s4, 1
    %s184 = sor.u32 %s4, %s183
    %s185 = sand.u32 %s184, 85
    %s186 = sshrl.u32 %s185, 1
    %s187 = sor.u32 %s185, %s186
    %s188 = sand.u32 51, %s187
    %s189 = sshrl.u32 %s188, 2
    %s190 = sor.u32 %s188, %s189
    %s191 = sand.u32 15, %s190
    %v192 = vld [vmem:[%s182] sm:%s191]
    %v193 = vunpack.c.l.bf16 %v192
    %v194 = vunpack.c.h.bf16 %v192
    %s195 = scalar_lea.vmem [#allocation1], 96
    %196 = vst [vmem:[%s195] sm:%s4] %v193
    %s197 = smul.addr 4, 11
    %s198 = scalar_lea.vmem %s0, %s197
    %s199 = sshrl.u32 %s4, 1
    %s200 = sor.u32 %s4, %s199
    %s201 = sand.u32 %s200, 85
    %s202 = sshrl.u32 %s201, 1
    %s203 = sor.u32 %s201, %s202
    %s204 = sand.u32 51, %s203
    %s205 = sshrl.u32 %s204, 2
    %s206 = sor.u32 %s204, %s205
    %s207 = sand.u32 15, %s206
    %v208 = vld [vmem:[%s198] sm:%s207]
    %v209 = vunpack.c.l.bf16 %v208
    %v210 = vunpack.c.h.bf16 %v208
    %s211 = scalar_lea.vmem [#allocation1], 88
    %212 = vst [vmem:[%s211] sm:%s4] %v209
    %s213 = smul.addr 4, 10
    %s214 = scalar_lea.vmem %s0, %s213
    %s215 = sshrl.u32 %s4, 1
    %s216 = sor.u32 %s4, %s215
    %s217 = sand.u32 %s216, 85
    %s218 = sshrl.u32 %s217, 1
    %s219 = sor.u32 %s217, %s218
    %s220 = sand.u32 51, %s219
    %s221 = sshrl.u32 %s220, 2
    %s222 = sor.u32 %s220, %s221
    %s223 = sand.u32 15, %s222
    %v224 = vld [vmem:[%s214] sm:%s223]
    %v225 = vunpack.c.l.bf16 %v224
    %v226 = vunpack.c.h.bf16 %v224
    %s227 = scalar_lea.vmem [#allocation1], 80
    %228 = vst [vmem:[%s227] sm:%s4] %v225
    %s229 = smul.addr 4, 9
    %s230 = scalar_lea.vmem %s0, %s229
    %s231 = sshrl.u32 %s4, 1
    %s232 = sor.u32 %s4, %s231
    %s233 = sand.u32 %s232, 85
    %s234 = sshrl.u32 %s233, 1
    %s235 = sor.u32 %s233, %s234
    %s236 = sand.u32 51, %s235
    %s237 = sshrl.u32 %s236, 2
    %s238 = sor.u32 %s236, %s237
    %s239 = sand.u32 15, %s238
    %v240 = vld [vmem:[%s230] sm:%s239]
    %v241 = vunpack.c.l.bf16 %v240
    %v242 = vunpack.c.h.bf16 %v240
    %s243 = scalar_lea.vmem [#allocation1], 72
    %244 = vst [vmem:[%s243] sm:%s4] %v241
    %s245 = smul.addr 4, 8
    %s246 = scalar_lea.vmem %s0, %s245
    %s247 = sshrl.u32 %s4, 1
    %s248 = sor.u32 %s4, %s247
    %s249 = sand.u32 %s248, 85
    %s250 = sshrl.u32 %s249, 1
    %s251 = sor.u32 %s249, %s250
    %s252 = sand.u32 51, %s251
    %s253 = sshrl.u32 %s252, 2
    %s254 = sor.u32 %s252, %s253
    %s255 = sand.u32 15, %s254
    %v256 = vld [vmem:[%s246] sm:%s255]
    %v257 = vunpack.c.l.bf16 %v256
    %v258 = vunpack.c.h.bf16 %v256
    %s259 = scalar_lea.vmem [#allocation1], 64
    %260 = vst [vmem:[%s259] sm:%s4] %v257
    %s261 = smul.addr 4, 7
    %s262 = scalar_lea.vmem %s0, %s261
    %s263 = sshrl.u32 %s4, 1
    %s264 = sor.u32 %s4, %s263
    %s265 = sand.u32 %s264, 85
    %s266 = sshrl.u32 %s265, 1
    %s267 = sor.u32 %s265, %s266
    %s268 = sand.u32 51, %s267
    %s269 = sshrl.u32 %s268, 2
    %s270 = sor.u32 %s268, %s269
    %s271 = sand.u32 15, %s270
    %v272 = vld [vmem:[%s262] sm:%s271]
    %v273 = vunpack.c.l.bf16 %v272
    %v274 = vunpack.c.h.bf16 %v272
    %s275 = scalar_lea.vmem [#allocation1], 56
    %276 = vst [vmem:[%s275] sm:%s4] %v273
    %s277 = smul.addr 4, 6
    %s278 = scalar_lea.vmem %s0, %s277
    %s279 = sshrl.u32 %s4, 1
    %s280 = sor.u32 %s4, %s279
    %s281 = sand.u32 %s280, 85
    %s282 = sshrl.u32 %s281, 1
    %s283 = sor.u32 %s281, %s282
    %s284 = sand.u32 51, %s283
    %s285 = sshrl.u32 %s284, 2
    %s286 = sor.u32 %s284, %s285
    %s287 = sand.u32 15, %s286
    %v288 = vld [vmem:[%s278] sm:%s287]
    %v289 = vunpack.c.l.bf16 %v288
    %v290 = vunpack.c.h.bf16 %v288
    %s291 = scalar_lea.vmem [#allocation1], 48
    %292 = vst [vmem:[%s291] sm:%s4] %v289
    %s293 = smul.addr 4, 5
    %s294 = scalar_lea.vmem %s0, %s293
    %s295 = sshrl.u32 %s4, 1
    %s296 = sor.u32 %s4, %s295
    %s297 = sand.u32 %s296, 85
    %s298 = sshrl.u32 %s297, 1
    %s299 = sor.u32 %s297, %s298
    %s300 = sand.u32 51, %s299
    %s301 = sshrl.u32 %s300, 2
    %s302 = sor.u32 %s300, %s301
    %s303 = sand.u32 15, %s302
    %v304 = vld [vmem:[%s294] sm:%s303]
    %v305 = vunpack.c.l.bf16 %v304
    %v306 = vunpack.c.h.bf16 %v304
    %s307 = scalar_lea.vmem [#allocation1], 40
    %308 = vst [vmem:[%s307] sm:%s4] %v305
    %s309 = smul.addr 4, 4
    %s310 = scalar_lea.vmem %s0, %s309
    %s311 = sshrl.u32 %s4, 1
    %s312 = sor.u32 %s4, %s311
    %s313 = sand.u32 %s312, 85
    %s314 = sshrl.u32 %s313, 1
    %s315 = sor.u32 %s313, %s314
    %s316 = sand.u32 51, %s315
    %s317 = sshrl.u32 %s316, 2
    %s318 = sor.u32 %s316, %s317
    %s319 = sand.u32 15, %s318
    %v320 = vld [vmem:[%s310] sm:%s319]
    %v321 = vunpack.c.l.bf16 %v320
    %v322 = vunpack.c.h.bf16 %v320
    %s323 = scalar_lea.vmem [#allocation1], 32
    %324 = vst [vmem:[%s323] sm:%s4] %v321
    %s325 = smul.addr 4, 3
    %s326 = scalar_lea.vmem %s0, %s325
    %s327 = sshrl.u32 %s4, 1
    %s328 = sor.u32 %s4, %s327
    %s329 = sand.u32 %s328, 85
    %s330 = sshrl.u32 %s329, 1
    %s331 = sor.u32 %s329, %s330
    %s332 = sand.u32 51, %s331
    %s333 = sshrl.u32 %s332, 2
    %s334 = sor.u32 %s332, %s333
    %s335 = sand.u32 15, %s334
    %v336 = vld [vmem:[%s326] sm:%s335]
    %v337 = vunpack.c.l.bf16 %v336
    %v338 = vunpack.c.h.bf16 %v336
    %s339 = scalar_lea.vmem [#allocation1], 24
    %340 = vst [vmem:[%s339] sm:%s4] %v337
    %s341 = smul.addr 4, 2
    %s342 = scalar_lea.vmem %s0, %s341
    %s343 = sshrl.u32 %s4, 1
    %s344 = sor.u32 %s4, %s343
    %s345 = sand.u32 %s344, 85
    %s346 = sshrl.u32 %s345, 1
    %s347 = sor.u32 %s345, %s346
    %s348 = sand.u32 51, %s347
    %s349 = sshrl.u32 %s348, 2
    %s350 = sor.u32 %s348, %s349
    %s351 = sand.u32 15, %s350
    %v352 = vld [vmem:[%s342] sm:%s351]
    %v353 = vunpack.c.l.bf16 %v352
    %v354 = vunpack.c.h.bf16 %v352
    %s355 = scalar_lea.vmem [#allocation1], 16
    %356 = vst [vmem:[%s355] sm:%s4] %v353
    %s357 = scalar_lea.vmem %s0, 4
    %s358 = sshrl.u32 %s4, 1
    %s359 = sor.u32 %s4, %s358
    %s360 = sand.u32 %s359, 85
    %s361 = sshrl.u32 %s360, 1
    %s362 = sor.u32 %s360, %s361
    %s363 = sand.u32 51, %s362
    %s364 = sshrl.u32 %s363, 2
    %s365 = sor.u32 %s363, %s364
    %s366 = sand.u32 15, %s365
    %v367 = vld [vmem:[%s357] sm:%s366]
    %v368 = vunpack.c.l.bf16 %v367
    %v369 = vunpack.c.h.bf16 %v367
    %s370 = scalar_lea.vmem [#allocation1], 8
    %371 = vst [vmem:[%s370] sm:%s4] %v368
    %s372 = sshrl.u32 %s4, 1
    %s373 = sor.u32 %s4, %s372
    %s374 = sand.u32 %s373, 85
    %s375 = sshrl.u32 %s374, 1
    %s376 = sor.u32 %s374, %s375
    %s377 = sand.u32 51, %s376
    %s378 = sshrl.u32 %s377, 2
    %s379 = sor.u32 %s377, %s378
    %s380 = sand.u32 15, %s379
    %v381 = vld [vmem:[%s0] sm:%s380]
    %v382 = vunpack.c.l.bf16 %v381
    %v383 = vunpack.c.h.bf16 %v381
    %384 = vst [vmem:[#allocation1] sm:%s4] %v382
    %v385 = vld [vmem:[#allocation1] sm:$0xff]
    %386 = vst [vmem:[#allocation0] ss:$16 sm:$0x3] %v385
    %387 = vst [vmem:[#allocation0] ss:$16 sm:$0xc] %v385
    %388 = vst [vmem:[#allocation0] ss:$16 sm:$0x30] %v385
    %389 = vst [vmem:[#allocation0] ss:$16 sm:$0xc0] %v385
    %s390 = scalar_lea.vmem [#allocation1], 8
    %v391 = vld [vmem:[%s390] sm:$0xff]
    %s392 = scalar_lea.vmem [#allocation0], 8
    %393 = vst [vmem:[%s392] ss:$16 sm:$0x3] %v391
    %s394 = scalar_lea.vmem [#allocation0], 8
    %395 = vst [vmem:[%s394] ss:$16 sm:$0xc] %v391
    %s396 = scalar_lea.vmem [#allocation0], 8
    %397 = vst [vmem:[%s396] ss:$16 sm:$0x30] %v391
    %s398 = scalar_lea.vmem [#allocation0], 8
    %399 = vst [vmem:[%s398] ss:$16 sm:$0xc0] %v391
    %s400 = scalar_lea.vmem [#allocation1], 16
    %v401 = vld [vmem:[%s400] sm:$0xff]
    %s402 = scalar_lea.vmem [#allocation0], 1
    %403 = vst [vmem:[%s402] ss:$16 sm:$0x3] %v401
    %s404 = scalar_lea.vmem [#allocation0], 1
    %405 = vst [vmem:[%s404] ss:$16 sm:$0xc] %v401
    %s406 = scalar_lea.vmem [#allocation0], 1
    %407 = vst [vmem:[%s406] ss:$16 sm:$0x30] %v401
    %s408 = scalar_lea.vmem [#allocation0], 1
    %409 = vst [vmem:[%s408] ss:$16 sm:$0xc0] %v401
    %s410 = scalar_lea.vmem [#allocation1], 24
    %v411 = vld [vmem:[%s410] sm:$0xff]
    %s412 = scalar_lea.vmem [#allocation0], 9
    %413 = vst [vmem:[%s412] ss:$16 sm:$0x3] %v411
    %s414 = scalar_lea.vmem [#allocation0], 9
    %415 = vst [vmem:[%s414] ss:$16 sm:$0xc] %v411
    %s416 = scalar_lea.vmem [#allocation0], 9
    %417 = vst [vmem:[%s416] ss:$16 sm:$0x30] %v411
    %s418 = scalar_lea.vmem [#allocation0], 9
    %419 = vst [vmem:[%s418] ss:$16 sm:$0xc0] %v411
    %s420 = scalar_lea.vmem [#allocation1], 32
    %v421 = vld [vmem:[%s420] sm:$0xff]
    %s422 = scalar_lea.vmem [#allocation0], 128
    %423 = vst [vmem:[%s422] ss:$16 sm:$0x3] %v421
    %s424 = scalar_lea.vmem [#allocation0], 128
    %425 = vst [vmem:[%s424] ss:$16 sm:$0xc] %v421
    %s426 = scalar_lea.vmem [#allocation0], 128
    %427 = vst [vmem:[%s426] ss:$16 sm:$0x30] %v421
    %s428 = scalar_lea.vmem [#allocation0], 128
    %429 = vst [vmem:[%s428] ss:$16 sm:$0xc0] %v421
    %s430 = scalar_lea.vmem [#allocation1], 40
    %v431 = vld [vmem:[%s430] sm:$0xff]
    %s432 = scalar_lea.vmem [#allocation0], 136
    %433 = vst [vmem:[%s432] ss:$16 sm:$0x3] %v431
    %s434 = scalar_lea.vmem [#allocation0], 136
    %435 = vst [vmem:[%s434] ss:$16 sm:$0xc] %v431
    %s436 = scalar_lea.vmem [#allocation0], 136
    %437 = vst [vmem:[%s436] ss:$16 sm:$0x30] %v431
    %s438 = scalar_lea.vmem [#allocation0], 136
    %439 = vst [vmem:[%s438] ss:$16 sm:$0xc0] %v431
    %s440 = scalar_lea.vmem [#allocation1], 48
    %v441 = vld [vmem:[%s440] sm:$0xff]
    %s442 = scalar_lea.vmem [#allocation0], 129
    %443 = vst [vmem:[%s442] ss:$16 sm:$0x3] %v441
    %s444 = scalar_lea.vmem [#allocation0], 129
    %445 = vst [vmem:[%s444] ss:$16 sm:$0xc] %v441
    %s446 = scalar_lea.vmem [#allocation0], 129
    %447 = vst [vmem:[%s446] ss:$16 sm:$0x30] %v441
    %s448 = scalar_lea.vmem [#allocation0], 129
    %449 = vst [vmem:[%s448] ss:$16 sm:$0xc0] %v441
    %s450 = scalar_lea.vmem [#allocation1], 56
    %v451 = vld [vmem:[%s450] sm:$0xff]
    %s452 = scalar_lea.vmem [#allocation0], 137
    %453 = vst [vmem:[%s452] ss:$16 sm:$0x3] %v451
    %s454 = scalar_lea.vmem [#allocation0], 137
    %455 = vst [vmem:[%s454] ss:$16 sm:$0xc] %v451
    %s456 = scalar_lea.vmem [#allocation0], 137
    %457 = vst [vmem:[%s456] ss:$16 sm:$0x30] %v451
    %s458 = scalar_lea.vmem [#allocation0], 137
    %459 = vst [vmem:[%s458] ss:$16 sm:$0xc0] %v451
    %s460 = scalar_lea.vmem [#allocation1], 64
    %v461 = vld [vmem:[%s460] sm:$0xff]
    %s462 = scalar_lea.vmem [#allocation0], 256
    %463 = vst [vmem:[%s462] ss:$16 sm:$0x3] %v461
    %s464 = scalar_lea.vmem [#allocation0], 256
    %465 = vst [vmem:[%s464] ss:$16 sm:$0xc] %v461
    %s466 = scalar_lea.vmem [#allocation0], 256
    %467 = vst [vmem:[%s466] ss:$16 sm:$0x30] %v461
    %s468 = scalar_lea.vmem [#allocation0], 256
    %469 = vst [vmem:[%s468] ss:$16 sm:$0xc0] %v461
    %s470 = scalar_lea.vmem [#allocation1], 72
    %v471 = vld [vmem:[%s470] sm:$0xff]
    %s472 = scalar_lea.vmem [#allocation0], 264
    %473 = vst [vmem:[%s472] ss:$16 sm:$0x3] %v471
    %s474 = scalar_lea.vmem [#allocation0], 264
    %475 = vst [vmem:[%s474] ss:$16 sm:$0xc] %v471
    %s476 = scalar_lea.vmem [#allocation0], 264
    %477 = vst [vmem:[%s476] ss:$16 sm:$0x30] %v471
    %s478 = scalar_lea.vmem [#allocation0], 264
    %479 = vst [vmem:[%s478] ss:$16 sm:$0xc0] %v471
    %s480 = scalar_lea.vmem [#allocation1], 80
    %v481 = vld [vmem:[%s480] sm:$0xff]
    %s482 = scalar_lea.vmem [#allocation0], 257
    %483 = vst [vmem:[%s482] ss:$16 sm:$0x3] %v481
    %s484 = scalar_lea.vmem [#allocation0], 257
    %485 = vst [vmem:[%s484] ss:$16 sm:$0xc] %v481
    %s486 = scalar_lea.vmem [#allocation0], 257
    %487 = vst [vmem:[%s486] ss:$16 sm:$0x30] %v481
    %s488 = scalar_lea.vmem [#allocation0], 257
    %489 = vst [vmem:[%s488] ss:$16 sm:$0xc0] %v481
    %s490 = scalar_lea.vmem [#allocation1], 88
    %v491 = vld [vmem:[%s490] sm:$0xff]
    %s492 = scalar_lea.vmem [#allocation0], 265
    %493 = vst [vmem:[%s492] ss:$16 sm:$0x3] %v491
    %s494 = scalar_lea.vmem [#allocation0], 265
    %495 = vst [vmem:[%s494] ss:$16 sm:$0xc] %v491
    %s496 = scalar_lea.vmem [#allocation0], 265
    %497 = vst [vmem:[%s496] ss:$16 sm:$0x30] %v491
    %s498 = scalar_lea.vmem [#allocation0], 265
    %499 = vst [vmem:[%s498] ss:$16 sm:$0xc0] %v491
    %s500 = scalar_lea.vmem [#allocation1], 96
    %v501 = vld [vmem:[%s500] sm:$0xff]
    %s502 = scalar_lea.vmem [#allocation0], 384
    %503 = vst [vmem:[%s502] ss:$16 sm:$0x3] %v501
    %s504 = scalar_lea.vmem [#allocation0], 384
    %505 = vst [vmem:[%s504] ss:$16 sm:$0xc] %v501
    %s506 = scalar_lea.vmem [#allocation0], 384
    %507 = vst [vmem:[%s506] ss:$16 sm:$0x30] %v501
    %s508 = scalar_lea.vmem [#allocation0], 384
    %509 = vst [vmem:[%s508] ss:$16 sm:$0xc0] %v501
    %s510 = scalar_lea.vmem [#allocation1], 104
    %v511 = vld [vmem:[%s510] sm:$0xff]
    %s512 = scalar_lea.vmem [#allocation0], 392
    %513 = vst [vmem:[%s512] ss:$16 sm:$0x3] %v511
    %s514 = scalar_lea.vmem [#allocation0], 392
    %515 = vst [vmem:[%s514] ss:$16 sm:$0xc] %v511
    %s516 = scalar_lea.vmem [#allocation0], 392
    %517 = vst [vmem:[%s516] ss:$16 sm:$0x30] %v511
    %s518 = scalar_lea.vmem [#allocation0], 392
    %519 = vst [vmem:[%s518] ss:$16 sm:$0xc0] %v511
    %s520 = scalar_lea.vmem [#allocation1], 112
    %v521 = vld [vmem:[%s520] sm:$0xff]
    %s522 = scalar_lea.vmem [#allocation0], 385
    %523 = vst [vmem:[%s522] ss:$16 sm:$0x3] %v521
    %s524 = scalar_lea.vmem [#allocation0], 385
    %525 = vst [vmem:[%s524] ss:$16 sm:$0xc] %v521
    %s526 = scalar_lea.vmem [#allocation0], 385
    %527 = vst [vmem:[%s526] ss:$16 sm:$0x30] %v521
    %s528 = scalar_lea.vmem [#allocation0], 385
    %529 = vst [vmem:[%s528] ss:$16 sm:$0xc0] %v521
    %s530 = scalar_lea.vmem [#allocation1], 120
    %v531 = vld [vmem:[%s530] sm:$0xff]
    %s532 = scalar_lea.vmem [#allocation0], 393
    %533 = vst [vmem:[%s532] ss:$16 sm:$0x3] %v531
    %s534 = scalar_lea.vmem [#allocation0], 393
    %535 = vst [vmem:[%s534] ss:$16 sm:$0xc] %v531
    %s536 = scalar_lea.vmem [#allocation0], 393
    %537 = vst [vmem:[%s536] ss:$16 sm:$0x30] %v531
    %s538 = scalar_lea.vmem [#allocation0], 393
    %539 = vst [vmem:[%s538] ss:$16 sm:$0xc0] %v531
    %s540 = scalar_lea.vmem [#allocation1], 128
    %v541 = vld [vmem:[%s540] sm:$0xff]
    %s542 = scalar_lea.vmem [#allocation0], 512
    %543 = vst [vmem:[%s542] ss:$16 sm:$0x3] %v541
    %s544 = scalar_lea.vmem [#allocation0], 512
    %545 = vst [vmem:[%s544] ss:$16 sm:$0xc] %v541
    %s546 = scalar_lea.vmem [#allocation0], 512
    %547 = vst [vmem:[%s546] ss:$16 sm:$0x30] %v541
    %s548 = scalar_lea.vmem [#allocation0], 512
    %549 = vst [vmem:[%s548] ss:$16 sm:$0xc0] %v541
    %s550 = scalar_lea.vmem [#allocation1], 136
    %v551 = vld [vmem:[%s550] sm:$0xff]
    %s552 = scalar_lea.vmem [#allocation0], 520
    %553 = vst [vmem:[%s552] ss:$16 sm:$0x3] %v551
    %s554 = scalar_lea.vmem [#allocation0], 520
    %555 = vst [vmem:[%s554] ss:$16 sm:$0xc] %v551
    %s556 = scalar_lea.vmem [#allocation0], 520
    %557 = vst [vmem:[%s556] ss:$16 sm:$0x30] %v551
    %s558 = scalar_lea.vmem [#allocation0], 520
    %559 = vst [vmem:[%s558] ss:$16 sm:$0xc0] %v551
    %s560 = scalar_lea.vmem [#allocation1], 144
    %v561 = vld [vmem:[%s560] sm:$0xff]
    %s562 = scalar_lea.vmem [#allocation0], 513
    %563 = vst [vmem:[%s562] ss:$16 sm:$0x3] %v561
    %s564 = scalar_lea.vmem [#allocation0], 513
    %565 = vst [vmem:[%s564] ss:$16 sm:$0xc] %v561
    %s566 = scalar_lea.vmem [#allocation0], 513
    %567 = vst [vmem:[%s566] ss:$16 sm:$0x30] %v561
    %s568 = scalar_lea.vmem [#allocation0], 513
    %569 = vst [vmem:[%s568] ss:$16 sm:$0xc0] %v561
    %s570 = scalar_lea.vmem [#allocation1], 152
    %v571 = vld [vmem:[%s570] sm:$0xff]
    %s572 = scalar_lea.vmem [#allocation0], 521
    %573 = vst [vmem:[%s572] ss:$16 sm:$0x3] %v571
    %s574 = scalar_lea.vmem [#allocation0], 521
    %575 = vst [vmem:[%s574] ss:$16 sm:$0xc] %v571
    %s576 = scalar_lea.vmem [#allocation0], 521
    %577 = vst [vmem:[%s576] ss:$16 sm:$0x30] %v571
    %s578 = scalar_lea.vmem [#allocation0], 521
    %579 = vst [vmem:[%s578] ss:$16 sm:$0xc0] %v571
    %s580 = scalar_lea.vmem [#allocation1], 160
    %v581 = vld [vmem:[%s580] sm:$0xff]
    %s582 = scalar_lea.vmem [#allocation0], 640
    %583 = vst [vmem:[%s582] ss:$16 sm:$0x3] %v581
    %s584 = scalar_lea.vmem [#allocation0], 640
    %585 = vst [vmem:[%s584] ss:$16 sm:$0xc] %v581
    %s586 = scalar_lea.vmem [#allocation0], 640
    %587 = vst [vmem:[%s586] ss:$16 sm:$0x30] %v581
    %s588 = scalar_lea.vmem [#allocation0], 640
    %589 = vst [vmem:[%s588] ss:$16 sm:$0xc0] %v581
    %s590 = scalar_lea.vmem [#allocation1], 168
    %v591 = vld [vmem:[%s590] sm:$0xff]
    %s592 = scalar_lea.vmem [#allocation0], 648
    %593 = vst [vmem:[%s592] ss:$16 sm:$0x3] %v591
    %s594 = scalar_lea.vmem [#allocation0], 648
    %595 = vst [vmem:[%s594] ss:$16 sm:$0xc] %v591
    %s596 = scalar_lea.vmem [#allocation0], 648
    %597 = vst [vmem:[%s596] ss:$16 sm:$0x30] %v591
    %s598 = scalar_lea.vmem [#allocation0], 648
    %599 = vst [vmem:[%s598] ss:$16 sm:$0xc0] %v591
    %s600 = scalar_lea.vmem [#allocation1], 176
    %v601 = vld [vmem:[%s600] sm:$0xff]
    %s602 = scalar_lea.vmem [#allocation0], 641
    %603 = vst [vmem:[%s602] ss:$16 sm:$0x3] %v601
    %s604 = scalar_lea.vmem [#allocation0], 641
    %605 = vst [vmem:[%s604] ss:$16 sm:$0xc] %v601
    %s606 = scalar_lea.vmem [#allocation0], 641
    %607 = vst [vmem:[%s606] ss:$16 sm:$0x30] %v601
    %s608 = scalar_lea.vmem [#allocation0], 641
    %609 = vst [vmem:[%s608] ss:$16 sm:$0xc0] %v601
    %s610 = scalar_lea.vmem [#allocation1], 184
    %v611 = vld [vmem:[%s610] sm:$0xff]
    %s612 = scalar_lea.vmem [#allocation0], 649
    %613 = vst [vmem:[%s612] ss:$16 sm:$0x3] %v611
    %s614 = scalar_lea.vmem [#allocation0], 649
    %615 = vst [vmem:[%s614] ss:$16 sm:$0xc] %v611
    %s616 = scalar_lea.vmem [#allocation0], 649
    %617 = vst [vmem:[%s616] ss:$16 sm:$0x30] %v611
    %s618 = scalar_lea.vmem [#allocation0], 649
    %619 = vst [vmem:[%s618] ss:$16 sm:$0xc0] %v611
    %s621 = smul.u32 1, 2
    %s622 = sshllo.u32 0, %s621
    %s623 = sshrl.u32 %s621, 1
    %v624 = vld [vmem:[#allocation0] sm:%s622]
    %v625 = vpack.c.bf16 0.0, %v624
    %s626 = sshllo.u32 0, %s623
    %627 = vst [vmem:[%s1] sm:%s626] %v625
    %s628 = scalar_lea.vmem [#allocation0], 8
    %v629 = vld [vmem:[%s628] sm:%s622]
    %v630 = vpack.c.bf16 0.0, %v629
    %s631 = sshllo.u32 0, %s623
    %s632 = scalar_lea.vmem %s1, 1
    %633 = vst [vmem:[%s632] sm:%s631] %v630
    %s634 = scalar_lea.vmem [#allocation0], 16
    %v635 = vld [vmem:[%s634] sm:%s622]
    %v636 = vpack.c.bf16 0.0, %v635
    %s637 = sshllo.u32 0, %s623
    %s638 = smul.addr 1, 2
    %s639 = scalar_lea.vmem %s1, %s638
    %640 = vst [vmem:[%s639] sm:%s637] %v636
    %s641 = scalar_lea.vmem [#allocation0], 24
    %v642 = vld [vmem:[%s641] sm:%s622]
    %v643 = vpack.c.bf16 0.0, %v642
    %s644 = sshllo.u32 0, %s623
    %s645 = smul.addr 1, 3
    %s646 = scalar_lea.vmem %s1, %s645
    %647 = vst [vmem:[%s646] sm:%s644] %v643
    %s648 = scalar_lea.vmem [#allocation0], 32
    %v649 = vld [vmem:[%s648] sm:%s622]
    %v650 = vpack.c.bf16 0.0, %v649
    %s651 = sshllo.u32 0, %s623
    %s652 = smul.addr 1, 4
    %s653 = scalar_lea.vmem %s1, %s652
    %654 = vst [vmem:[%s653] sm:%s651] %v650
    %s655 = scalar_lea.vmem [#allocation0], 40
    %v656 = vld [vmem:[%s655] sm:%s622]
    %v657 = vpack.c.bf16 0.0, %v656
    %s658 = sshllo.u32 0, %s623
    %s659 = smul.addr 1, 5
    %s660 = scalar_lea.vmem %s1, %s659
    %661 = vst [vmem:[%s660] sm:%s658] %v657
    %s662 = scalar_lea.vmem [#allocation0], 48
    %v663 = vld [vmem:[%s662] sm:%s622]
    %v664 = vpack.c.bf16 0.0, %v663
    %s665 = sshllo.u32 0, %s623
    %s666 = smul.addr 1, 6
    %s667 = scalar_lea.vmem %s1, %s666
    %668 = vst [vmem:[%s667] sm:%s665] %v664
    %s669 = scalar_lea.vmem [#allocation0], 56
    %v670 = vld [vmem:[%s669] sm:%s622]
    %v671 = vpack.c.bf16 0.0, %v670
    %s672 = sshllo.u32 0, %s623
    %s673 = smul.addr 1, 7
    %s674 = scalar_lea.vmem %s1, %s673
    %675 = vst [vmem:[%s674] sm:%s672] %v671
    %s676 = scalar_lea.vmem [#allocation0], 64
    %v677 = vld [vmem:[%s676] sm:%s622]
    %v678 = vpack.c.bf16 0.0, %v677
    %s679 = sshllo.u32 0, %s623
    %s680 = smul.addr 1, 8
    %s681 = scalar_lea.vmem %s1, %s680
    %682 = vst [vmem:[%s681] sm:%s679] %v678
    %s683 = scalar_lea.vmem [#allocation0], 72
    %v684 = vld [vmem:[%s683] sm:%s622]
    %v685 = vpack.c.bf16 0.0, %v684
    %s686 = sshllo.u32 0, %s623
    %s687 = smul.addr 1, 9
    %s688 = scalar_lea.vmem %s1, %s687
    %689 = vst [vmem:[%s688] sm:%s686] %v685
    %s690 = scalar_lea.vmem [#allocation0], 80
    %v691 = vld [vmem:[%s690] sm:%s622]
    %v692 = vpack.c.bf16 0.0, %v691
    %s693 = sshllo.u32 0, %s623
    %s694 = smul.addr 1, 10
    %s695 = scalar_lea.vmem %s1, %s694
    %696 = vst [vmem:[%s695] sm:%s693] %v692
    %s697 = scalar_lea.vmem [#allocation0], 88
    %v698 = vld [vmem:[%s697] sm:%s622]
    %v699 = vpack.c.bf16 0.0, %v698
    %s700 = sshllo.u32 0, %s623
    %s701 = smul.addr 1, 11
    %s702 = scalar_lea.vmem %s1, %s701
    %703 = vst [vmem:[%s702] sm:%s700] %v699
    %s704 = scalar_lea.vmem [#allocation0], 96
    %v705 = vld [vmem:[%s704] sm:%s622]
    %v706 = vpack.c.bf16 0.0, %v705
    %s707 = sshllo.u32 0, %s623
    %s708 = smul.addr 1, 12
    %s709 = scalar_lea.vmem %s1, %s708
    %710 = vst [vmem:[%s709] sm:%s707] %v706
    %s711 = scalar_lea.vmem [#allocation0], 104
    %v712 = vld [vmem:[%s711] sm:%s622]
    %v713 = vpack.c.bf16 0.0, %v712
    %s714 = sshllo.u32 0, %s623
    %s715 = smul.addr 1, 13
    %s716 = scalar_lea.vmem %s1, %s715
    %717 = vst [vmem:[%s716] sm:%s714] %v713
    %s718 = scalar_lea.vmem [#allocation0], 112
    %v719 = vld [vmem:[%s718] sm:%s622]
    %v720 = vpack.c.bf16 0.0, %v719
    %s721 = sshllo.u32 0, %s623
    %s722 = smul.addr 1, 14
    %s723 = scalar_lea.vmem %s1, %s722
    %724 = vst [vmem:[%s723] sm:%s721] %v720
    %s725 = scalar_lea.vmem [#allocation0], 120
    %v726 = vld [vmem:[%s725] sm:%s622]
    %v727 = vpack.c.bf16 0.0, %v726
    %s728 = sshllo.u32 0, %s623
    %s729 = smul.addr 1, 15
    %s730 = scalar_lea.vmem %s1, %s729
    %731 = vst [vmem:[%s730] sm:%s728] %v727
    %s732 = scalar_lea.vmem [#allocation0], 128
    %v733 = vld [vmem:[%s732] sm:%s622]
    %v734 = vpack.c.bf16 0.0, %v733
    %s735 = sshllo.u32 0, %s623
    %s736 = smul.addr 1, 16
    %s737 = scalar_lea.vmem %s1, %s736
    %738 = vst [vmem:[%s737] sm:%s735] %v734
    %s739 = scalar_lea.vmem [#allocation0], 136
    %v740 = vld [vmem:[%s739] sm:%s622]
    %v741 = vpack.c.bf16 0.0, %v740
    %s742 = sshllo.u32 0, %s623
    %s743 = smul.addr 1, 17
    %s744 = scalar_lea.vmem %s1, %s743
    %745 = vst [vmem:[%s744] sm:%s742] %v741
    %s746 = scalar_lea.vmem [#allocation0], 144
    %v747 = vld [vmem:[%s746] sm:%s622]
    %v748 = vpack.c.bf16 0.0, %v747
    %s749 = sshllo.u32 0, %s623
    %s750 = smul.addr 1, 18
    %s751 = scalar_lea.vmem %s1, %s750
    %752 = vst [vmem:[%s751] sm:%s749] %v748
    %s753 = scalar_lea.vmem [#allocation0], 152
    %v754 = vld [vmem:[%s753] sm:%s622]
    %v755 = vpack.c.bf16 0.0, %v754
    %s756 = sshllo.u32 0, %s623
    %s757 = smul.addr 1, 19
    %s758 = scalar_lea.vmem %s1, %s757
    %759 = vst [vmem:[%s758] sm:%s756] %v755
    %s760 = scalar_lea.vmem [#allocation0], 160
    %v761 = vld [vmem:[%s760] sm:%s622]
    %v762 = vpack.c.bf16 0.0, %v761
    %s763 = sshllo.u32 0, %s623
    %s764 = smul.addr 1, 20
    %s765 = scalar_lea.vmem %s1, %s764
    %766 = vst [vmem:[%s765] sm:%s763] %v762
    %s767 = scalar_lea.vmem [#allocation0], 168
    %v768 = vld [vmem:[%s767] sm:%s622]
    %v769 = vpack.c.bf16 0.0, %v768
    %s770 = sshllo.u32 0, %s623
    %s771 = smul.addr 1, 21
    %s772 = scalar_lea.vmem %s1, %s771
    %773 = vst [vmem:[%s772] sm:%s770] %v769
    %s774 = scalar_lea.vmem [#allocation0], 176
    %v775 = vld [vmem:[%s774] sm:%s622]
    %v776 = vpack.c.bf16 0.0, %v775
    %s777 = sshllo.u32 0, %s623
    %s778 = smul.addr 1, 22
    %s779 = scalar_lea.vmem %s1, %s778
    %780 = vst [vmem:[%s779] sm:%s777] %v776
    %s781 = scalar_lea.vmem [#allocation0], 184
    %v782 = vld [vmem:[%s781] sm:%s622]
    %v783 = vpack.c.bf16 0.0, %v782
    %s784 = sshllo.u32 0, %s623
    %s785 = smul.addr 1, 23
    %s786 = scalar_lea.vmem %s1, %s785
    %787 = vst [vmem:[%s786] sm:%s784] %v783
    %s788 = scalar_lea.vmem [#allocation0], 192
    %v789 = vld [vmem:[%s788] sm:%s622]
    %v790 = vpack.c.bf16 0.0, %v789
    %s791 = sshllo.u32 0, %s623
    %s792 = smul.addr 1, 24
    %s793 = scalar_lea.vmem %s1, %s792
    %794 = vst [vmem:[%s793] sm:%s791] %v790
    %s795 = scalar_lea.vmem [#allocation0], 200
    %v796 = vld [vmem:[%s795] sm:%s622]
    %v797 = vpack.c.bf16 0.0, %v796
    %s798 = sshllo.u32 0, %s623
    %s799 = smul.addr 1, 25
    %s800 = scalar_lea.vmem %s1, %s799
    %801 = vst [vmem:[%s800] sm:%s798] %v797
    %s802 = scalar_lea.vmem [#allocation0], 208
    %v803 = vld [vmem:[%s802] sm:%s622]
    %v804 = vpack.c.bf16 0.0, %v803
    %s805 = sshllo.u32 0, %s623
    %s806 = smul.addr 1, 26
    %s807 = scalar_lea.vmem %s1, %s806
    %808 = vst [vmem:[%s807] sm:%s805] %v804
    %s809 = scalar_lea.vmem [#allocation0], 216
    %v810 = vld [vmem:[%s809] sm:%s622]
    %v811 = vpack.c.bf16 0.0, %v810
    %s812 = sshllo.u32 0, %s623
    %s813 = smul.addr 1, 27
    %s814 = scalar_lea.vmem %s1, %s813
    %815 = vst [vmem:[%s814] sm:%s812] %v811
    %s816 = scalar_lea.vmem [#allocation0], 224
    %v817 = vld [vmem:[%s816] sm:%s622]
    %v818 = vpack.c.bf16 0.0, %v817
    %s819 = sshllo.u32 0, %s623
    %s820 = smul.addr 1, 28
    %s821 = scalar_lea.vmem %s1, %s820
    %822 = vst [vmem:[%s821] sm:%s819] %v818
    %s823 = scalar_lea.vmem [#allocation0], 232
    %v824 = vld [vmem:[%s823] sm:%s622]
    %v825 = vpack.c.bf16 0.0, %v824
    %s826 = sshllo.u32 0, %s623
    %s827 = smul.addr 1, 29
    %s828 = scalar_lea.vmem %s1, %s827
    %829 = vst [vmem:[%s828] sm:%s826] %v825
    %s830 = scalar_lea.vmem [#allocation0], 240
    %v831 = vld [vmem:[%s830] sm:%s622]
    %v832 = vpack.c.bf16 0.0, %v831
    %s833 = sshllo.u32 0, %s623
    %s834 = smul.addr 1, 30
    %s835 = scalar_lea.vmem %s1, %s834
    %836 = vst [vmem:[%s835] sm:%s833] %v832
    %s837 = scalar_lea.vmem [#allocation0], 248
    %v838 = vld [vmem:[%s837] sm:%s622]
    %v839 = vpack.c.bf16 0.0, %v838
    %s840 = sshllo.u32 0, %s623
    %s841 = smul.addr 1, 31
    %s842 = scalar_lea.vmem %s1, %s841
    %843 = vst [vmem:[%s842] sm:%s840] %v839
    %s844 = scalar_lea.vmem [#allocation0], 256
    %v845 = vld [vmem:[%s844] sm:%s622]
    %v846 = vpack.c.bf16 0.0, %v845
    %s847 = sshllo.u32 0, %s623
    %s848 = smul.addr 1, 32
    %s849 = scalar_lea.vmem %s1, %s848
    %850 = vst [vmem:[%s849] sm:%s847] %v846
    %s851 = scalar_lea.vmem [#allocation0], 264
    %v852 = vld [vmem:[%s851] sm:%s622]
    %v853 = vpack.c.bf16 0.0, %v852
    %s854 = sshllo.u32 0, %s623
    %s855 = smul.addr 1, 33
    %s856 = scalar_lea.vmem %s1, %s855
    %857 = vst [vmem:[%s856] sm:%s854] %v853
    %s858 = scalar_lea.vmem [#allocation0], 272
    %v859 = vld [vmem:[%s858] sm:%s622]
    %v860 = vpack.c.bf16 0.0, %v859
    %s861 = sshllo.u32 0, %s623
    %s862 = smul.addr 1, 34
    %s863 = scalar_lea.vmem %s1, %s862
    %864 = vst [vmem:[%s863] sm:%s861] %v860
    %s865 = scalar_lea.vmem [#allocation0], 280
    %v866 = vld [vmem:[%s865] sm:%s622]
    %v867 = vpack.c.bf16 0.0, %v866
    %s868 = sshllo.u32 0, %s623
    %s869 = smul.addr 1, 35
    %s870 = scalar_lea.vmem %s1, %s869
    %871 = vst [vmem:[%s870] sm:%s868] %v867
    %s872 = scalar_lea.vmem [#allocation0], 288
    %v873 = vld [vmem:[%s872] sm:%s622]
    %v874 = vpack.c.bf16 0.0, %v873
    %s875 = sshllo.u32 0, %s623
    %s876 = smul.addr 1, 36
    %s877 = scalar_lea.vmem %s1, %s876
    %878 = vst [vmem:[%s877] sm:%s875] %v874
    %s879 = scalar_lea.vmem [#allocation0], 296
    %v880 = vld [vmem:[%s879] sm:%s622]
    %v881 = vpack.c.bf16 0.0, %v880
    %s882 = sshllo.u32 0, %s623
    %s883 = smul.addr 1, 37
    %s884 = scalar_lea.vmem %s1, %s883
    %885 = vst [vmem:[%s884] sm:%s882] %v881
    %s886 = scalar_lea.vmem [#allocation0], 304
    %v887 = vld [vmem:[%s886] sm:%s622]
    %v888 = vpack.c.bf16 0.0, %v887
    %s889 = sshllo.u32 0, %s623
    %s890 = smul.addr 1, 38
    %s891 = scalar_lea.vmem %s1, %s890
    %892 = vst [vmem:[%s891] sm:%s889] %v888
    %s893 = scalar_lea.vmem [#allocation0], 312
    %v894 = vld [vmem:[%s893] sm:%s622]
    %v895 = vpack.c.bf16 0.0, %v894
    %s896 = sshllo.u32 0, %s623
    %s897 = smul.addr 1, 39
    %s898 = scalar_lea.vmem %s1, %s897
    %899 = vst [vmem:[%s898] sm:%s896] %v895
    %s900 = scalar_lea.vmem [#allocation0], 320
    %v901 = vld [vmem:[%s900] sm:%s622]
    %v902 = vpack.c.bf16 0.0, %v901
    %s903 = sshllo.u32 0, %s623
    %s904 = smul.addr 1, 40
    %s905 = scalar_lea.vmem %s1, %s904
    %906 = vst [vmem:[%s905] sm:%s903] %v902
    %s907 = scalar_lea.vmem [#allocation0], 328
    %v908 = vld [vmem:[%s907] sm:%s622]
    %v909 = vpack.c.bf16 0.0, %v908
    %s910 = sshllo.u32 0, %s623
    %s911 = smul.addr 1, 41
    %s912 = scalar_lea.vmem %s1, %s911
    %913 = vst [vmem:[%s912] sm:%s910] %v909
    %s914 = scalar_lea.vmem [#allocation0], 336
    %v915 = vld [vmem:[%s914] sm:%s622]
    %v916 = vpack.c.bf16 0.0, %v915
    %s917 = sshllo.u32 0, %s623
    %s918 = smul.addr 1, 42
    %s919 = scalar_lea.vmem %s1, %s918
    %920 = vst [vmem:[%s919] sm:%s917] %v916
    %s921 = scalar_lea.vmem [#allocation0], 344
    %v922 = vld [vmem:[%s921] sm:%s622]
    %v923 = vpack.c.bf16 0.0, %v922
    %s924 = sshllo.u32 0, %s623
    %s925 = smul.addr 1, 43
    %s926 = scalar_lea.vmem %s1, %s925
    %927 = vst [vmem:[%s926] sm:%s924] %v923
    %s928 = scalar_lea.vmem [#allocation0], 352
    %v929 = vld [vmem:[%s928] sm:%s622]
    %v930 = vpack.c.bf16 0.0, %v929
    %s931 = sshllo.u32 0, %s623
    %s932 = smul.addr 1, 44
    %s933 = scalar_lea.vmem %s1, %s932
    %934 = vst [vmem:[%s933] sm:%s931] %v930
    %s935 = scalar_lea.vmem [#allocation0], 360
    %v936 = vld [vmem:[%s935] sm:%s622]
    %v937 = vpack.c.bf16 0.0, %v936
    %s938 = sshllo.u32 0, %s623
    %s939 = smul.addr 1, 45
    %s940 = scalar_lea.vmem %s1, %s939
    %941 = vst [vmem:[%s940] sm:%s938] %v937
    %s942 = scalar_lea.vmem [#allocation0], 368
    %v943 = vld [vmem:[%s942] sm:%s622]
    %v944 = vpack.c.bf16 0.0, %v943
    %s945 = sshllo.u32 0, %s623
    %s946 = smul.addr 1, 46
    %s947 = scalar_lea.vmem %s1, %s946
    %948 = vst [vmem:[%s947] sm:%s945] %v944
    %s949 = scalar_lea.vmem [#allocation0], 376
    %v950 = vld [vmem:[%s949] sm:%s622]
    %v951 = vpack.c.bf16 0.0, %v950
    %s952 = sshllo.u32 0, %s623
    %s953 = smul.addr 1, 47
    %s954 = scalar_lea.vmem %s1, %s953
    %955 = vst [vmem:[%s954] sm:%s952] %v951
    %s956 = scalar_lea.vmem [#allocation0], 384
    %v957 = vld [vmem:[%s956] sm:%s622]
    %v958 = vpack.c.bf16 0.0, %v957
    %s959 = sshllo.u32 0, %s623
    %s960 = smul.addr 1, 48
    %s961 = scalar_lea.vmem %s1, %s960
    %962 = vst [vmem:[%s961] sm:%s959] %v958
    %s963 = scalar_lea.vmem [#allocation0], 392
    %v964 = vld [vmem:[%s963] sm:%s622]
    %v965 = vpack.c.bf16 0.0, %v964
    %s966 = sshllo.u32 0, %s623
    %s967 = smul.addr 1, 49
    %s968 = scalar_lea.vmem %s1, %s967
    %969 = vst [vmem:[%s968] sm:%s966] %v965
    %s970 = scalar_lea.vmem [#allocation0], 400
    %v971 = vld [vmem:[%s970] sm:%s622]
    %v972 = vpack.c.bf16 0.0, %v971
    %s973 = sshllo.u32 0, %s623
    %s974 = smul.addr 1, 50
    %s975 = scalar_lea.vmem %s1, %s974
    %976 = vst [vmem:[%s975] sm:%s973] %v972
    %s977 = scalar_lea.vmem [#allocation0], 408
    %v978 = vld [vmem:[%s977] sm:%s622]
    %v979 = vpack.c.bf16 0.0, %v978
    %s980 = sshllo.u32 0, %s623
    %s981 = smul.addr 1, 51
    %s982 = scalar_lea.vmem %s1, %s981
    %983 = vst [vmem:[%s982] sm:%s980] %v979
    %s984 = scalar_lea.vmem [#allocation0], 416
    %v985 = vld [vmem:[%s984] sm:%s622]
    %v986 = vpack.c.bf16 0.0, %v985
    %s987 = sshllo.u32 0, %s623
    %s988 = smul.addr 1, 52
    %s989 = scalar_lea.vmem %s1, %s988
    %990 = vst [vmem:[%s989] sm:%s987] %v986
    %s991 = scalar_lea.vmem [#allocation0], 424
    %v992 = vld [vmem:[%s991] sm:%s622]
    %v993 = vpack.c.bf16 0.0, %v992
    %s994 = sshllo.u32 0, %s623
    %s995 = smul.addr 1, 53
    %s996 = scalar_lea.vmem %s1, %s995
    %997 = vst [vmem:[%s996] sm:%s994] %v993
    %s998 = scalar_lea.vmem [#allocation0], 432
    %v999 = vld [vmem:[%s998] sm:%s622]
    %v1000 = vpack.c.bf16 0.0, %v999
    %s1001 = sshllo.u32 0, %s623
    %s1002 = smul.addr 1, 54
    %s1003 = scalar_lea.vmem %s1, %s1002
    %1004 = vst [vmem:[%s1003] sm:%s1001] %v1000
    %s1005 = scalar_lea.vmem [#allocation0], 440
    %v1006 = vld [vmem:[%s1005] sm:%s622]
    %v1007 = vpack.c.bf16 0.0, %v1006
    %s1008 = sshllo.u32 0, %s623
    %s1009 = smul.addr 1, 55
    %s1010 = scalar_lea.vmem %s1, %s1009
    %1011 = vst [vmem:[%s1010] sm:%s1008] %v1007
    %s1012 = scalar_lea.vmem [#allocation0], 448
    %v1013 = vld [vmem:[%s1012] sm:%s622]
    %v1014 = vpack.c.bf16 0.0, %v1013
    %s1015 = sshllo.u32 0, %s623
    %s1016 = smul.addr 1, 56
    %s1017 = scalar_lea.vmem %s1, %s1016
    %1018 = vst [vmem:[%s1017] sm:%s1015] %v1014
    %s1019 = scalar_lea.vmem [#allocation0], 456
    %v1020 = vld [vmem:[%s1019] sm:%s622]
    %v1021 = vpack.c.bf16 0.0, %v1020
    %s1022 = sshllo.u32 0, %s623
    %s1023 = smul.addr 1, 57
    %s1024 = scalar_lea.vmem %s1, %s1023
    %1025 = vst [vmem:[%s1024] sm:%s1022] %v1021
    %s1026 = scalar_lea.vmem [#allocation0], 464
    %v1027 = vld [vmem:[%s1026] sm:%s622]
    %v1028 = vpack.c.bf16 0.0, %v1027
    %s1029 = sshllo.u32 0, %s623
    %s1030 = smul.addr 1, 58
    %s1031 = scalar_lea.vmem %s1, %s1030
    %1032 = vst [vmem:[%s1031] sm:%s1029] %v1028
    %s1033 = scalar_lea.vmem [#allocation0], 472
    %v1034 = vld [vmem:[%s1033] sm:%s622]
    %v1035 = vpack.c.bf16 0.0, %v1034
    %s1036 = sshllo.u32 0, %s623
    %s1037 = smul.addr 1, 59
    %s1038 = scalar_lea.vmem %s1, %s1037
    %1039 = vst [vmem:[%s1038] sm:%s1036] %v1035
    %s1040 = scalar_lea.vmem [#allocation0], 480
    %v1041 = vld [vmem:[%s1040] sm:%s622]
    %v1042 = vpack.c.bf16 0.0, %v1041
    %s1043 = sshllo.u32 0, %s623
    %s1044 = smul.addr 1, 60
    %s1045 = scalar_lea.vmem %s1, %s1044
    %1046 = vst [vmem:[%s1045] sm:%s1043] %v1042
    %s1047 = scalar_lea.vmem [#allocation0], 488
    %v1048 = vld [vmem:[%s1047] sm:%s622]
    %v1049 = vpack.c.bf16 0.0, %v1048
    %s1050 = sshllo.u32 0, %s623
    %s1051 = smul.addr 1, 61
    %s1052 = scalar_lea.vmem %s1, %s1051
    %1053 = vst [vmem:[%s1052] sm:%s1050] %v1049
    %s1054 = scalar_lea.vmem [#allocation0], 496
    %v1055 = vld [vmem:[%s1054] sm:%s622]
    %v1056 = vpack.c.bf16 0.0, %v1055
    %s1057 = sshllo.u32 0, %s623
    %s1058 = smul.addr 1, 62
    %s1059 = scalar_lea.vmem %s1, %s1058
    %1060 = vst [vmem:[%s1059] sm:%s1057] %v1056
    %s1061 = scalar_lea.vmem [#allocation0], 504
    %v1062 = vld [vmem:[%s1061] sm:%s622]
    %v1063 = vpack.c.bf16 0.0, %v1062
    %s1064 = sshllo.u32 0, %s623
    %s1065 = smul.addr 1, 63
    %s1066 = scalar_lea.vmem %s1, %s1065
    %1067 = vst [vmem:[%s1066] sm:%s1064] %v1063
    %s1068 = scalar_lea.vmem [#allocation0], 512
    %v1069 = vld [vmem:[%s1068] sm:%s622]
    %v1070 = vpack.c.bf16 0.0, %v1069
    %s1071 = sshllo.u32 0, %s623
    %s1072 = smul.addr 1, 64
    %s1073 = scalar_lea.vmem %s1, %s1072
    %1074 = vst [vmem:[%s1073] sm:%s1071] %v1070
    %s1075 = scalar_lea.vmem [#allocation0], 520
    %v1076 = vld [vmem:[%s1075] sm:%s622]
    %v1077 = vpack.c.bf16 0.0, %v1076
    %s1078 = sshllo.u32 0, %s623
    %s1079 = smul.addr 1, 65
    %s1080 = scalar_lea.vmem %s1, %s1079
    %1081 = vst [vmem:[%s1080] sm:%s1078] %v1077
    %s1082 = scalar_lea.vmem [#allocation0], 528
    %v1083 = vld [vmem:[%s1082] sm:%s622]
    %v1084 = vpack.c.bf16 0.0, %v1083
    %s1085 = sshllo.u32 0, %s623
    %s1086 = smul.addr 1, 66
    %s1087 = scalar_lea.vmem %s1, %s1086
    %1088 = vst [vmem:[%s1087] sm:%s1085] %v1084
    %s1089 = scalar_lea.vmem [#allocation0], 536
    %v1090 = vld [vmem:[%s1089] sm:%s622]
    %v1091 = vpack.c.bf16 0.0, %v1090
    %s1092 = sshllo.u32 0, %s623
    %s1093 = smul.addr 1, 67
    %s1094 = scalar_lea.vmem %s1, %s1093
    %1095 = vst [vmem:[%s1094] sm:%s1092] %v1091
    %s1096 = scalar_lea.vmem [#allocation0], 544
    %v1097 = vld [vmem:[%s1096] sm:%s622]
    %v1098 = vpack.c.bf16 0.0, %v1097
    %s1099 = sshllo.u32 0, %s623
    %s1100 = smul.addr 1, 68
    %s1101 = scalar_lea.vmem %s1, %s1100
    %1102 = vst [vmem:[%s1101] sm:%s1099] %v1098
    %s1103 = scalar_lea.vmem [#allocation0], 552
    %v1104 = vld [vmem:[%s1103] sm:%s622]
    %v1105 = vpack.c.bf16 0.0, %v1104
    %s1106 = sshllo.u32 0, %s623
    %s1107 = smul.addr 1, 69
    %s1108 = scalar_lea.vmem %s1, %s1107
    %1109 = vst [vmem:[%s1108] sm:%s1106] %v1105
    %s1110 = scalar_lea.vmem [#allocation0], 560
    %v1111 = vld [vmem:[%s1110] sm:%s622]
    %v1112 = vpack.c.bf16 0.0, %v1111
    %s1113 = sshllo.u32 0, %s623
    %s1114 = smul.addr 1, 70
    %s1115 = scalar_lea.vmem %s1, %s1114
    %1116 = vst [vmem:[%s1115] sm:%s1113] %v1112
    %s1117 = scalar_lea.vmem [#allocation0], 568
    %v1118 = vld [vmem:[%s1117] sm:%s622]
    %v1119 = vpack.c.bf16 0.0, %v1118
    %s1120 = sshllo.u32 0, %s623
    %s1121 = smul.addr 1, 71
    %s1122 = scalar_lea.vmem %s1, %s1121
    %1123 = vst [vmem:[%s1122] sm:%s1120] %v1119
    %s1124 = scalar_lea.vmem [#allocation0], 576
    %v1125 = vld [vmem:[%s1124] sm:%s622]
    %v1126 = vpack.c.bf16 0.0, %v1125
    %s1127 = sshllo.u32 0, %s623
    %s1128 = smul.addr 1, 72
    %s1129 = scalar_lea.vmem %s1, %s1128
    %1130 = vst [vmem:[%s1129] sm:%s1127] %v1126
    %s1131 = scalar_lea.vmem [#allocation0], 584
    %v1132 = vld [vmem:[%s1131] sm:%s622]
    %v1133 = vpack.c.bf16 0.0, %v1132
    %s1134 = sshllo.u32 0, %s623
    %s1135 = smul.addr 1, 73
    %s1136 = scalar_lea.vmem %s1, %s1135
    %1137 = vst [vmem:[%s1136] sm:%s1134] %v1133
    %s1138 = scalar_lea.vmem [#allocation0], 592
    %v1139 = vld [vmem:[%s1138] sm:%s622]
    %v1140 = vpack.c.bf16 0.0, %v1139
    %s1141 = sshllo.u32 0, %s623
    %s1142 = smul.addr 1, 74
    %s1143 = scalar_lea.vmem %s1, %s1142
    %1144 = vst [vmem:[%s1143] sm:%s1141] %v1140
    %s1145 = scalar_lea.vmem [#allocation0], 600
    %v1146 = vld [vmem:[%s1145] sm:%s622]
    %v1147 = vpack.c.bf16 0.0, %v1146
    %s1148 = sshllo.u32 0, %s623
    %s1149 = smul.addr 1, 75
    %s1150 = scalar_lea.vmem %s1, %s1149
    %1151 = vst [vmem:[%s1150] sm:%s1148] %v1147
    %s1152 = scalar_lea.vmem [#allocation0], 608
    %v1153 = vld [vmem:[%s1152] sm:%s622]
    %v1154 = vpack.c.bf16 0.0, %v1153
    %s1155 = sshllo.u32 0, %s623
    %s1156 = smul.addr 1, 76
    %s1157 = scalar_lea.vmem %s1, %s1156
    %1158 = vst [vmem:[%s1157] sm:%s1155] %v1154
    %s1159 = scalar_lea.vmem [#allocation0], 616
    %v1160 = vld [vmem:[%s1159] sm:%s622]
    %v1161 = vpack.c.bf16 0.0, %v1160
    %s1162 = sshllo.u32 0, %s623
    %s1163 = smul.addr 1, 77
    %s1164 = scalar_lea.vmem %s1, %s1163
    %1165 = vst [vmem:[%s1164] sm:%s1162] %v1161
    %s1166 = scalar_lea.vmem [#allocation0], 624
    %v1167 = vld [vmem:[%s1166] sm:%s622]
    %v1168 = vpack.c.bf16 0.0, %v1167
    %s1169 = sshllo.u32 0, %s623
    %s1170 = smul.addr 1, 78
    %s1171 = scalar_lea.vmem %s1, %s1170
    %1172 = vst [vmem:[%s1171] sm:%s1169] %v1168
    %s1173 = scalar_lea.vmem [#allocation0], 632
    %v1174 = vld [vmem:[%s1173] sm:%s622]
    %v1175 = vpack.c.bf16 0.0, %v1174
    %s1176 = sshllo.u32 0, %s623
    %s1177 = smul.addr 1, 79
    %s1178 = scalar_lea.vmem %s1, %s1177
    %1179 = vst [vmem:[%s1178] sm:%s1176] %v1175
    %s1180 = scalar_lea.vmem [#allocation0], 640
    %v1181 = vld [vmem:[%s1180] sm:%s622]
    %v1182 = vpack.c.bf16 0.0, %v1181
    %s1183 = sshllo.u32 0, %s623
    %s1184 = smul.addr 1, 80
    %s1185 = scalar_lea.vmem %s1, %s1184
    %1186 = vst [vmem:[%s1185] sm:%s1183] %v1182
    %s1187 = scalar_lea.vmem [#allocation0], 648
    %v1188 = vld [vmem:[%s1187] sm:%s622]
    %v1189 = vpack.c.bf16 0.0, %v1188
    %s1190 = sshllo.u32 0, %s623
    %s1191 = smul.addr 1, 81
    %s1192 = scalar_lea.vmem %s1, %s1191
    %1193 = vst [vmem:[%s1192] sm:%s1190] %v1189
    %s1194 = scalar_lea.vmem [#allocation0], 656
    %v1195 = vld [vmem:[%s1194] sm:%s622]
    %v1196 = vpack.c.bf16 0.0, %v1195
    %s1197 = sshllo.u32 0, %s623
    %s1198 = smul.addr 1, 82
    %s1199 = scalar_lea.vmem %s1, %s1198
    %1200 = vst [vmem:[%s1199] sm:%s1197] %v1196
    %s1201 = scalar_lea.vmem [#allocation0], 664
    %v1202 = vld [vmem:[%s1201] sm:%s622]
    %v1203 = vpack.c.bf16 0.0, %v1202
    %s1204 = sshllo.u32 0, %s623
    %s1205 = smul.addr 1, 83
    %s1206 = scalar_lea.vmem %s1, %s1205
    %1207 = vst [vmem:[%s1206] sm:%s1204] %v1203
    %s1208 = scalar_lea.vmem [#allocation0], 672
    %v1209 = vld [vmem:[%s1208] sm:%s622]
    %v1210 = vpack.c.bf16 0.0, %v1209
    %s1211 = sshllo.u32 0, %s623
    %s1212 = smul.addr 1, 84
    %s1213 = scalar_lea.vmem %s1, %s1212
    %1214 = vst [vmem:[%s1213] sm:%s1211] %v1210
    %s1215 = scalar_lea.vmem [#allocation0], 680
    %v1216 = vld [vmem:[%s1215] sm:%s622]
    %v1217 = vpack.c.bf16 0.0, %v1216
    %s1218 = sshllo.u32 0, %s623
    %s1219 = smul.addr 1, 85
    %s1220 = scalar_lea.vmem %s1, %s1219
    %1221 = vst [vmem:[%s1220] sm:%s1218] %v1217
    %s1222 = scalar_lea.vmem [#allocation0], 688
    %v1223 = vld [vmem:[%s1222] sm:%s622]
    %v1224 = vpack.c.bf16 0.0, %v1223
    %s1225 = sshllo.u32 0, %s623
    %s1226 = smul.addr 1, 86
    %s1227 = scalar_lea.vmem %s1, %s1226
    %1228 = vst [vmem:[%s1227] sm:%s1225] %v1224
    %s1229 = scalar_lea.vmem [#allocation0], 696
    %v1230 = vld [vmem:[%s1229] sm:%s622]
    %v1231 = vpack.c.bf16 0.0, %v1230
    %s1232 = sshllo.u32 0, %s623
    %s1233 = smul.addr 1, 87
    %s1234 = scalar_lea.vmem %s1, %s1233
    %1235 = vst [vmem:[%s1234] sm:%s1232] %v1231
    %s1236 = scalar_lea.vmem [#allocation0], 704
    %v1237 = vld [vmem:[%s1236] sm:%s622]
    %v1238 = vpack.c.bf16 0.0, %v1237
    %s1239 = sshllo.u32 0, %s623
    %s1240 = smul.addr 1, 88
    %s1241 = scalar_lea.vmem %s1, %s1240
    %1242 = vst [vmem:[%s1241] sm:%s1239] %v1238
    %s1243 = scalar_lea.vmem [#allocation0], 712
    %v1244 = vld [vmem:[%s1243] sm:%s622]
    %v1245 = vpack.c.bf16 0.0, %v1244
    %s1246 = sshllo.u32 0, %s623
    %s1247 = smul.addr 1, 89
    %s1248 = scalar_lea.vmem %s1, %s1247
    %1249 = vst [vmem:[%s1248] sm:%s1246] %v1245
    %s1250 = scalar_lea.vmem [#allocation0], 720
    %v1251 = vld [vmem:[%s1250] sm:%s622]
    %v1252 = vpack.c.bf16 0.0, %v1251
    %s1253 = sshllo.u32 0, %s623
    %s1254 = smul.addr 1, 90
    %s1255 = scalar_lea.vmem %s1, %s1254
    %1256 = vst [vmem:[%s1255] sm:%s1253] %v1252
    %s1257 = scalar_lea.vmem [#allocation0], 728
    %v1258 = vld [vmem:[%s1257] sm:%s622]
    %v1259 = vpack.c.bf16 0.0, %v1258
    %s1260 = sshllo.u32 0, %s623
    %s1261 = smul.addr 1, 91
    %s1262 = scalar_lea.vmem %s1, %s1261
    %1263 = vst [vmem:[%s1262] sm:%s1260] %v1259
    %s1264 = scalar_lea.vmem [#allocation0], 736
    %v1265 = vld [vmem:[%s1264] sm:%s622]
    %v1266 = vpack.c.bf16 0.0, %v1265
    %s1267 = sshllo.u32 0, %s623
    %s1268 = smul.addr 1, 92
    %s1269 = scalar_lea.vmem %s1, %s1268
    %1270 = vst [vmem:[%s1269] sm:%s1267] %v1266
    %s1271 = scalar_lea.vmem [#allocation0], 744
    %v1272 = vld [vmem:[%s1271] sm:%s622]
    %v1273 = vpack.c.bf16 0.0, %v1272
    %s1274 = sshllo.u32 0, %s623
    %s1275 = smul.addr 1, 93
    %s1276 = scalar_lea.vmem %s1, %s1275
    %1277 = vst [vmem:[%s1276] sm:%s1274] %v1273
    %s1278 = scalar_lea.vmem [#allocation0], 752
    %v1279 = vld [vmem:[%s1278] sm:%s622]
    %v1280 = vpack.c.bf16 0.0, %v1279
    %s1281 = sshllo.u32 0, %s623
    %s1282 = smul.addr 1, 94
    %s1283 = scalar_lea.vmem %s1, %s1282
    %1284 = vst [vmem:[%s1283] sm:%s1281] %v1280
    %s1285 = scalar_lea.vmem [#allocation0], 760
    %v1286 = vld [vmem:[%s1285] sm:%s622]
    %v1287 = vpack.c.bf16 0.0, %v1286
    %s1288 = sshllo.u32 0, %s623
    %s1289 = smul.addr 1, 95
    %s1290 = scalar_lea.vmem %s1, %s1289
    %1291 = vst [vmem:[%s1290] sm:%s1288] %v1287

// kernel: upblock_forward.20
$region0: #{upblock_forward.20}
  #allocation0 [shape = 'u32[]', space=smem, size = 0x4, offset = 0x4, fixed_abs, tag = 'smem constant byte address 0x4 - core index']
  #allocation1 [shape = 'u32[144,128]{1,0:T(1,128)}', space=vmem, size = 0x12000, scoped, tag = 'internal scratch']
  %s0 = inlined_call_operand.vmem [shape: bf16[8,256,4], index: 0, kind: input, shape index: {}]
  %s1 = inlined_call_operand.vmem [shape: bf16[8,256,4], index: 1, kind: input, shape index: {}]
  %s2 = inlined_call_operand.vmem [shape: bf16[8,256,4], index: 2, kind: input, shape index: {}]
  %s3 = inlined_call_operand.vmem [shape: f32[8,256,4], index: 3, kind: output, shape index: {}]
  %s4 = sld [smem:[#allocation0]]
  $region45: #{upblock_forward.20} parent=0
    _
  %s6 = ssub.s32 1, %s4
  %s7 = scalar_select 0, %s6, %s4
  loop: start=0, step=1, limit=10
  $region2: #{upblock_forward.20} parent=0 // loop_pre_header
    _
  $region3: #{upblock_forward.20} parent=0 // loop_header
    %s9 = sphi 0, %s13
    %p10 = scmp.ge.s32.totalorder %s9, 10
    %s19 = sphi 0, %s21
    %s22 = sphi 0, %s19
    %s23 = sphi 0, %s22
    %s39 = sphi 0, %s23
    %s45 = sphi 0, %s47
    %s48 = sphi 0, %s45
    %s49 = sphi 0, %s48
    %s65 = sphi 0, %s49
    %s71 = sphi 0, %s73
    %s74 = sphi 0, %s71
    %s75 = sphi 0, %s74
    %s91 = sphi 0, %s75
    %s97 = sphi 0, %s99
    %s100 = sphi 0, %s97
    %s101 = sphi 0, %s100
    %s117 = sphi 0, %s101
  $region4: #{upblock_forward.20} parent=0 // loop_header_branch
    %12 = sbr.rel (%p10) target = $region8
  $region5: #{upblock_forward.20} parent=0 // loop_body
    %s14 = ssub.s32 %s9, 1
    %s15 = ssub.s32 %s9, 2
    %s16 = sadd.s32 %s9, 1
    %s17 = ssub.s32 %s9, %s16
    %p18 = scmp.eq.s32.totalorder %s17, 0
    %s20 = sadd.s32 %s19, 1
    %s21 = scalar_select %p18, %s19, %s20
    %p24 = pneg %p18
    %p25 = scmp.eq.s32.totalorder %s9, 7
    %p26 = por %p24, %p25
    %p27 = scmp.ne.s32.totalorder %s19, %s22
    %p28 = scmp.eq.s32.totalorder %s9, 0
    %p29 = por %p27, %p28
    %p30 = scmp.ne.s32.totalorder %s19, %s22
    %p31 = scmp.eq.s32.totalorder %s14, 7
    %p32 = por %p30, %p31
    %p33 = scmp.ne.s32.totalorder %s22, %s23
    %p34 = scmp.eq.s32.totalorder %s14, 0
    %p35 = por %p33, %p34
    %p36 = scmp.ne.s32.totalorder %s22, %s23
    %p37 = scmp.eq.s32.totalorder %s15, 7
    %p38 = por %p36, %p37
    %p40 = scmp.ne.s32.totalorder %s23, %s39
    %p41 = scmp.eq.s32.totalorder %s15, 0
    %p42 = por %p40, %p41
    %s43 = ssub.s32 %s9, %s16
    %p44 = scmp.eq.s32.totalorder %s43, 0
    %s46 = sadd.s32 %s45, 1
    %s47 = scalar_select %p44, %s45, %s46
    %p50 = pneg %p44
    %p51 = scmp.eq.s32.totalorder %s9, 7
    %p52 = por %p50, %p51
    %p53 = scmp.ne.s32.totalorder %s45, %s48
    %p54 = scmp.eq.s32.totalorder %s9, 0
    %p55 = por %p53, %p54
    %p56 = scmp.ne.s32.totalorder %s45, %s48
    %p57 = scmp.eq.s32.totalorder %s14, 7
    %p58 = por %p56, %p57
    %p59 = scmp.ne.s32.totalorder %s48, %s49
    %p60 = scmp.eq.s32.totalorder %s14, 0
    %p61 = por %p59, %p60
    %p62 = scmp.ne.s32.totalorder %s48, %s49
    %p63 = scmp.eq.s32.totalorder %s15, 7
    %p64 = por %p62, %p63
    %p66 = scmp.ne.s32.totalorder %s49, %s65
    %p67 = scmp.eq.s32.totalorder %s15, 0
    %p68 = por %p66, %p67
    %s69 = ssub.s32 %s9, %s16
    %p70 = scmp.eq.s32.totalorder %s69, 0
    %s72 = sadd.s32 %s71, 1
    %s73 = scalar_select %p70, %s71, %s72
    %p76 = pneg %p70
    %p77 = scmp.eq.s32.totalorder %s9, 7
    %p78 = por %p76, %p77
    %p79 = scmp.ne.s32.totalorder %s71, %s74
    %p80 = scmp.eq.s32.totalorder %s9, 0
    %p81 = por %p79, %p80
    %p82 = scmp.ne.s32.totalorder %s71, %s74
    %p83 = scmp.eq.s32.totalorder %s14, 7
    %p84 = por %p82, %p83
    %p85 = scmp.ne.s32.totalorder %s74, %s75
    %p86 = scmp.eq.s32.totalorder %s14, 0
    %p87 = por %p85, %p86
    %p88 = scmp.ne.s32.totalorder %s74, %s75
    %p89 = scmp.eq.s32.totalorder %s15, 7
    %p90 = por %p88, %p89
    %p92 = scmp.ne.s32.totalorder %s75, %s91
    %p93 = scmp.eq.s32.totalorder %s15, 0
    %p94 = por %p92, %p93
    %s95 = ssub.s32 %s9, %s16
    %p96 = scmp.eq.s32.totalorder %s95, 0
    %s98 = sadd.s32 %s97, 1
    %s99 = scalar_select %p96, %s97, %s98
    %p102 = pneg %p96
    %p103 = scmp.eq.s32.totalorder %s9, 7
    %p104 = por %p102, %p103
    %p105 = scmp.ne.s32.totalorder %s97, %s100
    %p106 = scmp.eq.s32.totalorder %s9, 0
    %p107 = por %p105, %p106
    %p108 = scmp.ne.s32.totalorder %s97, %s100
    %p109 = scmp.eq.s32.totalorder %s14, 7
    %p110 = por %p108, %p109
    %p111 = scmp.ne.s32.totalorder %s100, %s101
    %p112 = scmp.eq.s32.totalorder %s14, 0
    %p113 = por %p111, %p112
    %p114 = scmp.ne.s32.totalorder %s100, %s101
    %p115 = scmp.eq.s32.totalorder %s15, 7
    %p116 = por %p114, %p115
    %p118 = scmp.ne.s32.totalorder %s101, %s117
    %p119 = scmp.eq.s32.totalorder %s15, 0
    %p120 = por %p118, %p119
    %p121 = scmp.le.s32.totalorder 1, %s9
    %p122 = scmp.lt.s32.totalorder %s9, 9
    %p123 = pnand %p121, %p122
    %p124 = pneg %p123
    // Predicated region
    $region9: #{upblock_forward.20} parent=5 // pred_check
      _
    $region10: #{upblock_forward.20} parent=5 // pred_check_branch
      %126 = sbr.rel (%p123) target = $region12
    $region11: #{upblock_forward.20} parent=5 // pred_region
      %s127 = ssub.s32 %s9, 1
    $region12: #{upblock_forward.20} parent=5 // pred_fallthru
      _
    %p128 = scmp.lt.s32.totalorder %s9, 8
    // Predicated region
    $region13: #{upblock_forward.20} parent=5 // pred_check
      %p129 = pneg %p128
    $region14: #{upblock_forward.20} parent=5 // pred_check_branch
      %131 = sbr.rel (%p129) target = $region16
    $region15: #{upblock_forward.20} parent=5 // pred_region
      // Predicated region
      $region17: #{upblock_forward.20} parent=15 // pred_check
        %p132 = pneg %p29
      $region18: #{upblock_forward.20} parent=15 // pred_check_branch
        %134 = sbr.rel (%p132) target = $region20
      $region19: #{upblock_forward.20} parent=15 // pred_region
        %p135 = scmp.lt.s32.totalorder %s9, 7
        %s136 = scalar_select %p135, %s9, 7
        %s137 = smul.addr %s136, 32
        %s138 = smul.addr %s137, 4
        %s139 = scalar_lea.vmem %s0, %s138
      $region20: #{upblock_forward.20} parent=15 // pred_fallthru
        _
      // Predicated region
      $region21: #{upblock_forward.20} parent=15 // pred_check
        %p140 = pneg %p55
      $region22: #{upblock_forward.20} parent=15 // pred_check_branch
        %142 = sbr.rel (%p140) target = $region24
      $region23: #{upblock_forward.20} parent=15 // pred_region
        %p143 = scmp.lt.s32.totalorder %s9, 7
        %s144 = scalar_select %p143, %s9, 7
        %s145 = smul.addr %s144, 32
        %s146 = smul.addr %s145, 4
        %s147 = scalar_lea.vmem %s1, %s146
      $region24: #{upblock_forward.20} parent=15 // pred_fallthru
        _
      // Predicated region
      $region25: #{upblock_forward.20} parent=15 // pred_check
        %p148 = pneg %p81
      $region26: #{upblock_forward.20} parent=15 // pred_check_branch
        %150 = sbr.rel (%p148) target = $region28
      $region27: #{upblock_forward.20} parent=15 // pred_region
        %p151 = scmp.lt.s32.totalorder %s9, 7
        %s152 = scalar_select %p151, %s9, 7
        %s153 = smul.addr %s152, 32
        %s154 = smul.addr %s153, 4
        %s155 = scalar_lea.vmem %s2, %s154
      $region28: #{upblock_forward.20} parent=15 // pred_fallthru
        _
    $region16: #{upblock_forward.20} parent=5 // pred_fallthru
      _
    %p156 = scmp.le.s32.totalorder 1, %s9
    %p157 = scmp.lt.s32.totalorder %s9, 9
    %p158 = pnand %p156, %p157
    %p159 = pneg %p158
    // Predicated region
    $region29: #{upblock_forward.20} parent=5 // pred_check
      _
    $region30: #{upblock_forward.20} parent=5 // pred_check_branch
      %161 = sbr.rel (%p158) target = $region32
    $region31: #{upblock_forward.20} parent=5 // pred_region
      %s162 = ssub.s32 %s9, 1
      %p163 = scmp.lt.s32.totalorder %s14, 7
      %s164 = scalar_select %p163, %s14, 7
      %s165 = smul.addr %s164, 32
      %s166 = smul.addr %s165, 4
      %s167 = scalar_lea.vmem %s0, %s166
      %p168 = pneg %p35
      %p169 = pneg %p32
      %p170 = scmp.lt.s32.totalorder %s14, 7
      %s171 = scalar_select %p170, %s14, 7
      %s172 = smul.addr %s171, 32
      %s173 = smul.addr %s172, 4
      %s174 = scalar_lea.vmem %s1, %s173
      %p175 = pneg %p61
      %p176 = pneg %p58
      %p177 = scmp.lt.s32.totalorder %s14, 7
      %s178 = scalar_select %p177, %s14, 7
      %s179 = smul.addr %s178, 32
      %s180 = smul.addr %s179, 4
      %s181 = scalar_lea.vmem %s2, %s180
      %p182 = pneg %p87
      %p183 = pneg %p84
      %p184 = pneg %p113
      %p185 = pneg %p110
      %p186 = scmp.lt.s32.totalorder %s14, 7
      %s187 = scalar_select %p186, %s14, 7
      %s188 = smul.addr %s187, 32
      %s189 = smul.addr %s188, 8
      %s190 = scalar_lea.vmem %s3, %s189
      %p191 = scmp.lt.s32.totalorder %s14, 7
      %s192 = scalar_select %p191, %s14, 7
      %s193 = smul.addr %s192, 32
      %s194 = smul.addr %s193, 4
      %s195 = scalar_lea.vmem %s0, %s194
      %p196 = scmp.lt.s32.totalorder %s14, 7
      %s197 = scalar_select %p196, %s14, 7
      %s198 = smul.addr %s197, 32
      %s199 = smul.addr %s198, 4
      %s200 = scalar_lea.vmem %s1, %s199
      %p201 = scmp.lt.s32.totalorder %s14, 7
      %s202 = scalar_select %p201, %s14, 7
      %s203 = smul.addr %s202, 32
      %s204 = smul.addr %s203, 4
      %s205 = scalar_lea.vmem %s2, %s204
      %p206 = scmp.lt.s32.totalorder %s14, 7
      %s207 = scalar_select %p206, %s14, 7
      %s208 = smul.addr %s207, 32
      %s209 = smul.addr %s208, 8
      %s210 = scalar_lea.vmem %s3, %s209
      %v212 = vld [vmem:[%s195] sm:$0xf]
      %v213 = vld [vmem:[%s195 + $0x4] sm:$0xf]
      %v214 = vld [vmem:[%s195 + $0x8] sm:$0xf]
      %v215 = vld [vmem:[%s195 + $0xc] sm:$0xf]
      %v216 = vld [vmem:[%s195 + $0x10] sm:$0xf]
      %v217 = vld [vmem:[%s195 + $0x14] sm:$0xf]
      %v218 = vld [vmem:[%s195 + $0x18] sm:$0xf]
      %v219 = vld [vmem:[%s195 + $0x1c] sm:$0xf]
      %v220 = vld [vmem:[%s195 + $0x20] sm:$0xf]
      %v221 = vld [vmem:[%s195 + $0x24] sm:$0xf]
      %v222 = vld [vmem:[%s195 + $0x28] sm:$0xf]
      %v223 = vld [vmem:[%s195 + $0x2c] sm:$0xf]
      %v224 = vld [vmem:[%s195 + $0x30] sm:$0xf]
      %v225 = vld [vmem:[%s195 + $0x34] sm:$0xf]
      %v226 = vld [vmem:[%s195 + $0x38] sm:$0xf]
      %v227 = vld [vmem:[%s195 + $0x3c] sm:$0xf]
      %v228 = vld [vmem:[%s195 + $0x40] sm:$0xf]
      %v229 = vld [vmem:[%s195 + $0x44] sm:$0xf]
      %v230 = vld [vmem:[%s195 + $0x48] sm:$0xf]
      %v231 = vld [vmem:[%s195 + $0x4c] sm:$0xf]
      %v232 = vld [vmem:[%s195 + $0x50] sm:$0xf]
      %v233 = vld [vmem:[%s195 + $0x54] sm:$0xf]
      %v234 = vld [vmem:[%s195 + $0x58] sm:$0xf]
      %v235 = vld [vmem:[%s195 + $0x5c] sm:$0xf]
      %v236 = vld [vmem:[%s195 + $0x60] sm:$0xf]
      %v237 = vld [vmem:[%s195 + $0x64] sm:$0xf]
      %v238 = vld [vmem:[%s195 + $0x68] sm:$0xf]
      %v239 = vld [vmem:[%s195 + $0x6c] sm:$0xf]
      %v240 = vld [vmem:[%s195 + $0x70] sm:$0xf]
      %v241 = vld [vmem:[%s195 + $0x74] sm:$0xf]
      %v242 = vld [vmem:[%s195 + $0x78] sm:$0xf]
      %v243 = vld [vmem:[%s195 + $0x7c] sm:$0xf]
      %v244 = vunpack.c.l.bf16 %v212
      %v245 = vunpack.c.l.bf16 %v213
      %v246 = vunpack.c.l.bf16 %v214
      %v247 = vunpack.c.l.bf16 %v215
      %v248 = vunpack.c.l.bf16 %v216
      %v249 = vunpack.c.l.bf16 %v217
      %v250 = vunpack.c.l.bf16 %v218
      %v251 = vunpack.c.l.bf16 %v219
      %v252 = vunpack.c.l.bf16 %v220
      %v253 = vunpack.c.l.bf16 %v221
      %v254 = vunpack.c.l.bf16 %v222
      %v255 = vunpack.c.l.bf16 %v223
      %v256 = vunpack.c.l.bf16 %v224
      %v257 = vunpack.c.l.bf16 %v225
      %v258 = vunpack.c.l.bf16 %v226
      %v259 = vunpack.c.l.bf16 %v227
      %v260 = vunpack.c.l.bf16 %v228
      %v261 = vunpack.c.l.bf16 %v229
      %v262 = vunpack.c.l.bf16 %v230
      %v263 = vunpack.c.l.bf16 %v231
      %v264 = vunpack.c.l.bf16 %v232
      %v265 = vunpack.c.l.bf16 %v233
      %v266 = vunpack.c.l.bf16 %v234
      %v267 = vunpack.c.l.bf16 %v235
      %v268 = vunpack.c.l.bf16 %v236
      %v269 = vunpack.c.l.bf16 %v237
      %v270 = vunpack.c.l.bf16 %v238
      %v271 = vunpack.c.l.bf16 %v239
      %v272 = vunpack.c.l.bf16 %v240
      %v273 = vunpack.c.l.bf16 %v241
      %v274 = vunpack.c.l.bf16 %v242
      %v275 = vunpack.c.l.bf16 %v243
      %v276 = vmul.f32 %v244, 0.5
      %v277 = vmul.f32 %v245, 0.5
      %v278 = vmul.f32 %v246, 0.5
      %v279 = vmul.f32 %v247, 0.5
      %v280 = vmul.f32 %v248, 0.5
      %v281 = vmul.f32 %v249, 0.5
      %v282 = vmul.f32 %v250, 0.5
      %v283 = vmul.f32 %v251, 0.5
      %v284 = vmul.f32 %v252, 0.5
      %v285 = vmul.f32 %v253, 0.5
      %v286 = vmul.f32 %v254, 0.5
      %v287 = vmul.f32 %v255, 0.5
      %v288 = vmul.f32 %v256, 0.5
      %v289 = vmul.f32 %v257, 0.5
      %v290 = vmul.f32 %v258, 0.5
      %v291 = vmul.f32 %v259, 0.5
      %v292 = vmul.f32 %v260, 0.5
      %v293 = vmul.f32 %v261, 0.5
      %v294 = vmul.f32 %v262, 0.5
      %v295 = vmul.f32 %v263, 0.5
      %v296 = vmul.f32 %v264, 0.5
      %v297 = vmul.f32 %v265, 0.5
      %v298 = vmul.f32 %v266, 0.5
      %v299 = vmul.f32 %v267, 0.5
      %v300 = vmul.f32 %v268, 0.5
      %v301 = vmul.f32 %v269, 0.5
      %v302 = vmul.f32 %v270, 0.5
      %v303 = vmul.f32 %v271, 0.5
      %v304 = vmul.f32 %v272, 0.5
      %v305 = vmul.f32 %v273, 0.5
      %v306 = vmul.f32 %v274, 0.5
      %v307 = vmul.f32 %v275, 0.5
      %v308 = vpack.c.bf16 %v277, %v276
      %v309 = vpack.c.bf16 %v279, %v278
      %v310 = vpack.c.bf16 %v281, %v280
      %v311 = vpack.c.bf16 %v283, %v282
      %v312 = vpack.c.bf16 %v285, %v284
      %v313 = vpack.c.bf16 %v287, %v286
      %v314 = vpack.c.bf16 %v289, %v288
      %v315 = vpack.c.bf16 %v291, %v290
      %v316 = vpack.c.bf16 %v293, %v292
      %v317 = vpack.c.bf16 %v295, %v294
      %v318 = vpack.c.bf16 %v297, %v296
      %v319 = vpack.c.bf16 %v299, %v298
      %v320 = vpack.c.bf16 %v301, %v300
      %v321 = vpack.c.bf16 %v303, %v302
      %v322 = vpack.c.bf16 %v305, %v304
      %v323 = vpack.c.bf16 %v307, %v306
      %v324 = vld [vmem:[%s200] sm:$0xf]
      %v325 = vld [vmem:[%s200 + $0x4] sm:$0xf]
      %v326 = vld [vmem:[%s200 + $0x8] sm:$0xf]
      %v327 = vld [vmem:[%s200 + $0xc] sm:$0xf]
      %v328 = vld [vmem:[%s200 + $0x10] sm:$0xf]
      %v329 = vld [vmem:[%s200 + $0x14] sm:$0xf]
      %v330 = vld [vmem:[%s200 + $0x18] sm:$0xf]
      %v331 = vld [vmem:[%s200 + $0x1c] sm:$0xf]
      %v332 = vld [vmem:[%s200 + $0x20] sm:$0xf]
      %v333 = vld [vmem:[%s200 + $0x24] sm:$0xf]
      %v334 = vld [vmem:[%s200 + $0x28] sm:$0xf]
      %v335 = vld [vmem:[%s200 + $0x2c] sm:$0xf]
      %v336 = vld [vmem:[%s200 + $0x30] sm:$0xf]
      %v337 = vld [vmem:[%s200 + $0x34] sm:$0xf]
      %v338 = vld [vmem:[%s200 + $0x38] sm:$0xf]
      %v339 = vld [vmem:[%s200 + $0x3c] sm:$0xf]
      %v340 = vld [vmem:[%s200 + $0x40] sm:$0xf]
      %v341 = vld [vmem:[%s200 + $0x44] sm:$0xf]
      %v342 = vld [vmem:[%s200 + $0x48] sm:$0xf]
      %v343 = vld [vmem:[%s200 + $0x4c] sm:$0xf]
      %v344 = vld [vmem:[%s200 + $0x50] sm:$0xf]
      %v345 = vld [vmem:[%s200 + $0x54] sm:$0xf]
      %v346 = vld [vmem:[%s200 + $0x58] sm:$0xf]
      %v347 = vld [vmem:[%s200 + $0x5c] sm:$0xf]
      %v348 = vld [vmem:[%s200 + $0x60] sm:$0xf]
      %v349 = vld [vmem:[%s200 + $0x64] sm:$0xf]
      %v350 = vld [vmem:[%s200 + $0x68] sm:$0xf]
      %v351 = vld [vmem:[%s200 + $0x6c] sm:$0xf]
      %v352 = vld [vmem:[%s200 + $0x70] sm:$0xf]
      %v353 = vld [vmem:[%s200 + $0x74] sm:$0xf]
      %v354 = vld [vmem:[%s200 + $0x78] sm:$0xf]
      %v355 = vld [vmem:[%s200 + $0x7c] sm:$0xf]
      %v356 = vld [vmem:[%s205] sm:$0xf]
      %v357 = vld [vmem:[%s205 + $0x4] sm:$0xf]
      %v358 = vld [vmem:[%s205 + $0x8] sm:$0xf]
      %v359 = vld [vmem:[%s205 + $0xc] sm:$0xf]
      %v360 = vld [vmem:[%s205 + $0x10] sm:$0xf]
      %v361 = vld [vmem:[%s205 + $0x14] sm:$0xf]
      %v362 = vld [vmem:[%s205 + $0x18] sm:$0xf]
      %v363 = vld [vmem:[%s205 + $0x1c] sm:$0xf]
      %v364 = vld [vmem:[%s205 + $0x20] sm:$0xf]
      %v365 = vld [vmem:[%s205 + $0x24] sm:$0xf]
      %v366 = vld [vmem:[%s205 + $0x28] sm:$0xf]
      %v367 = vld [vmem:[%s205 + $0x2c] sm:$0xf]
      %v368 = vld [vmem:[%s205 + $0x30] sm:$0xf]
      %v369 = vld [vmem:[%s205 + $0x34] sm:$0xf]
      %v370 = vld [vmem:[%s205 + $0x38] sm:$0xf]
      %v371 = vld [vmem:[%s205 + $0x3c] sm:$0xf]
      %v372 = vld [vmem:[%s205 + $0x40] sm:$0xf]
      %v373 = vld [vmem:[%s205 + $0x44] sm:$0xf]
      %v374 = vld [vmem:[%s205 + $0x48] sm:$0xf]
      %v375 = vld [vmem:[%s205 + $0x4c] sm:$0xf]
      %v376 = vld [vmem:[%s205 + $0x50] sm:$0xf]
      %v377 = vld [vmem:[%s205 + $0x54] sm:$0xf]
      %v378 = vld [vmem:[%s205 + $0x58] sm:$0xf]
      %v379 = vld [vmem:[%s205 + $0x5c] sm:$0xf]
      %v380 = vld [vmem:[%s205 + $0x60] sm:$0xf]
      %v381 = vld [vmem:[%s205 + $0x64] sm:$0xf]
      %v382 = vld [vmem:[%s205 + $0x68] sm:$0xf]
      %v383 = vld [vmem:[%s205 + $0x6c] sm:$0xf]
      %v384 = vld [vmem:[%s205 + $0x70] sm:$0xf]
      %v385 = vld [vmem:[%s205 + $0x74] sm:$0xf]
      %v386 = vld [vmem:[%s205 + $0x78] sm:$0xf]
      %v387 = vld [vmem:[%s205 + $0x7c] sm:$0xf]
      %v420 = vunpack.c.l.b16 %v324
      %v421 = vunpack.c.l.b16 %v325
      %v422 = vunpack.c.l.b16 %v326
      %v423 = vunpack.c.l.b16 %v327
      %v424 = vunpack.c.l.b16 %v328
      %v425 = vunpack.c.l.b16 %v329
      %v426 = vunpack.c.l.b16 %v330
      %v427 = vunpack.c.l.b16 %v331
      %v428 = vunpack.c.l.b16 %v332
      %v429 = vunpack.c.l.b16 %v333
      %v430 = vunpack.c.l.b16 %v334
      %v431 = vunpack.c.l.b16 %v335
      %v432 = vunpack.c.l.b16 %v336
      %v433 = vunpack.c.l.b16 %v337
      %v434 = vunpack.c.l.b16 %v338
      %v435 = vunpack.c.l.b16 %v339
      %v436 = vunpack.c.l.b16 %v340
      %v437 = vunpack.c.l.b16 %v341
      %v438 = vunpack.c.l.b16 %v342
      %v439 = vunpack.c.l.b16 %v343
      %v440 = vunpack.c.l.b16 %v344
      %v441 = vunpack.c.l.b16 %v345
      %v442 = vunpack.c.l.b16 %v346
      %v443 = vunpack.c.l.b16 %v347
      %v444 = vunpack.c.l.b16 %v348
      %v445 = vunpack.c.l.b16 %v349
      %v446 = vunpack.c.l.b16 %v350
      %v447 = vunpack.c.l.b16 %v351
      %v448 = vunpack.c.l.b16 %v352
      %v449 = vunpack.c.l.b16 %v353
      %v450 = vunpack.c.l.b16 %v354
      %v451 = vunpack.c.l.b16 %v355
      %v452 = vpack.c.b16 %v421, %v420
      %v453 = vpack.c.b16 %v423, %v422
      %v454 = vpack.c.b16 %v425, %v424
      %v455 = vpack.c.b16 %v427, %v426
      %v456 = vpack.c.b16 %v429, %v428
      %v457 = vpack.c.b16 %v431, %v430
      %v458 = vpack.c.b16 %v433, %v432
      %v459 = vpack.c.b16 %v435, %v434
      %v460 = vpack.c.b16 %v437, %v436
      %v461 = vpack.c.b16 %v439, %v438
      %v462 = vpack.c.b16 %v441, %v440
      %v463 = vpack.c.b16 %v443, %v442
      %v464 = vpack.c.b16 %v445, %v444
      %v465 = vpack.c.b16 %v447, %v446
      %v466 = vpack.c.b16 %v449, %v448
      %v467 = vpack.c.b16 %v451, %v450
      %vm468 = vcmask 31744
      %v470 = vsel %vm468, %v308, 0
      %v473 = vsel %vm468, %v309, 0
      %v476 = vsel %vm468, %v310, 0
      %v479 = vsel %vm468, %v311, 0
      %v482 = vsel %vm468, %v312, 0
      %v485 = vsel %vm468, %v313, 0
      %v488 = vsel %vm468, %v314, 0
      %v491 = vsel %vm468, %v315, 0
      %v494 = vsel %vm468, %v316, 0
      %v497 = vsel %vm468, %v317, 0
      %v500 = vsel %vm468, %v318, 0
      %v503 = vsel %vm468, %v319, 0
      %v506 = vsel %vm468, %v320, 0
      %v509 = vsel %vm468, %v321, 0
      %v512 = vsel %vm468, %v322, 0
      %v515 = vsel %vm468, %v323, 0
      %v518 = vsel %vm468, %v452, 0
      %v521 = vsel %vm468, %v453, 0
      %v524 = vsel %vm468, %v454, 0
      %v527 = vsel %vm468, %v455, 0
      %v530 = vsel %vm468, %v456, 0
      %v533 = vsel %vm468, %v457, 0
      %v536 = vsel %vm468, %v458, 0
      %v539 = vsel %vm468, %v459, 0
      %v542 = vsel %vm468, %v460, 0
      %v545 = vsel %vm468, %v461, 0
      %v548 = vsel %vm468, %v462, 0
      %v551 = vsel %vm468, %v463, 0
      %v554 = vsel %vm468, %v464, 0
      %v557 = vsel %vm468, %v465, 0
      %v560 = vsel %vm468, %v466, 0
      %v563 = vsel %vm468, %v467, 0
      %565 = vmatprep.subr.bf16.mxu0 0
      %566 = vmatpush1.bf16.xpose.msra.mxu0 %v518
      %567 = vmatprep.subr.bf16.mxu0 0
      %568 = vmatpush1.bf16.xpose.msra.mxu0 %v521
      %569 = vmatprep.subr.bf16.mxu0 0
      %570 = vmatpush1.bf16.xpose.msra.mxu0 %v524
      %571 = vmatprep.subr.bf16.mxu0 0
      %572 = vmatpush1.bf16.xpose.msra.mxu0 %v527
      %573 = vmatprep.subr.bf16.mxu0 0
      %574 = vmatpush1.bf16.xpose.msra.mxu0 %v530
      %575 = vmatprep.subr.bf16.mxu0 0
      %576 = vmatpush1.bf16.xpose.msra.mxu0 %v533
      %577 = vmatprep.subr.bf16.mxu0 0
      %578 = vmatpush1.bf16.xpose.msra.mxu0 %v536
      %579 = vmatprep.subr.bf16.mxu0 0
      %580 = vmatpush1.bf16.xpose.msra.mxu0 %v539
      %581 = vmatprep.subr.bf16.mxu0 0
      %582 = vmatpush1.bf16.xpose.msra.mxu0 %v542
      %583 = vmatprep.subr.bf16.mxu0 0
      %584 = vmatpush1.bf16.xpose.msra.mxu0 %v545
      %585 = vmatprep.subr.bf16.mxu0 0
      %586 = vmatpush1.bf16.xpose.msra.mxu0 %v548
      %587 = vmatprep.subr.bf16.mxu0 0
      %588 = vmatpush1.bf16.xpose.msra.mxu0 %v551
      %589 = vmatprep.subr.bf16.mxu0 0
      %590 = vmatpush1.bf16.xpose.msra.mxu0 %v554
      %591 = vmatprep.subr.bf16.mxu0 0
      %592 = vmatpush1.bf16.xpose.msra.mxu0 %v557
      %593 = vmatprep.subr.bf16.mxu0 0
      %594 = vmatpush1.bf16.xpose.msra.mxu0 %v560
      %595 = vmatprep.subr.bf16.mxu0 0
      %596 = vmatpush1.bf16.xpose.msra.mxu0 %v563
      %597 = vmatprep.mubr.bf16.mxu0 0
      %598 = vmatmul.mubr.bf16.gmra.mrb[0].mxu0 %v470
      %v599 = vpop.f32.mrb[0].mxu0
      %v600 = vadd.f32 0.0, %v599
      %v601 = vpop.f32.mrb[0].mxu0
      %v602 = vadd.f32 0.0, %v601
      %v603 = vpop.f32.mrb[0].mxu0
      %v604 = vadd.f32 0.0, %v603
      %v605 = vpop.f32.mrb[0].mxu0
      %v606 = vadd.f32 0.0, %v605
      %607 = vmatprep.mubr.bf16.mxu0 0
      %608 = vmatmul.mubr.bf16.gmra.mrb[0].mxu0 %v473
      %v609 = vpop.f32.mrb[0].mxu0
      %v610 = vadd.f32 0.0, %v609
      %v611 = vpop.f32.mrb[0].mxu0
      %v612 = vadd.f32 0.0, %v611
      %v613 = vpop.f32.mrb[0].mxu0
      %v614 = vadd.f32 0.0, %v613
      %v615 = vpop.f32.mrb[0].mxu0
      %v616 = vadd.f32 0.0, %v615
      %617 = vmatprep.mubr.bf16.mxu0 0
      %618 = vmatmul.mubr.bf16.gmra.mrb[0].mxu0 %v476
      %v619 = vpop.f32.mrb[0].mxu0
      %v620 = vadd.f32 0.0, %v619
      %v621 = vpop.f32.mrb[0].mxu0
      %v622 = vadd.f32 0.0, %v621
      %v623 = vpop.f32.mrb[0].mxu0
      %v624 = vadd.f32 0.0, %v623
      %v625 = vpop.f32.mrb[0].mxu0
      %v626 = vadd.f32 0.0, %v625
      %627 = vmatprep.mubr.bf16.mxu0 0
      %628 = vmatmul.mubr.bf16.gmra.mrb[0].mxu0 %v479
      %v629 = vpop.f32.mrb[0].mxu0
      %v630 = vadd.f32 0.0, %v629
      %v631 = vpop.f32.mrb[0].mxu0
      %v632 = vadd.f32 0.0, %v631
      %v633 = vpop.f32.mrb[0].mxu0
      %v634 = vadd.f32 0.0, %v633
      %v635 = vpop.f32.mrb[0].mxu0
      %v636 = vadd.f32 0.0, %v635
      %637 = vmatprep.mubr.bf16.mxu0 0
      %638 = vmatmul.mubr.bf16.gmra.mrb[0].mxu0 %v482
      %v639 = vpop.f32.mrb[0].mxu0
      %v640 = vadd.f32 0.0, %v639
      %v641 = vpop.f32.mrb[0].mxu0
      %v642 = vadd.f32 0.0, %v641
      %v643 = vpop.f32.mrb[0].mxu0
      %v644 = vadd.f32 0.0, %v643
      %v645 = vpop.f32.mrb[0].mxu0
      %v646 = vadd.f32 0.0, %v645
      %647 = vmatprep.mubr.bf16.mxu0 0
      %648 = vmatmul.mubr.bf16.gmra.mrb[0].mxu0 %v485
      %v649 = vpop.f32.mrb[0].mxu0
      %v650 = vadd.f32 0.0, %v649
      %v651 = vpop.f32.mrb[0].mxu0
      %v652 = vadd.f32 0.0, %v651
      %v653 = vpop.f32.mrb[0].mxu0
      %v654 = vadd.f32 0.0, %v653
      %v655 = vpop.f32.mrb[0].mxu0
      %v656 = vadd.f32 0.0, %v655
      %657 = vmatprep.mubr.bf16.mxu0 0
      %658 = vmatmul.mubr.bf16.gmra.mrb[0].mxu0 %v488
      %v659 = vpop.f32.mrb[0].mxu0
      %v660 = vadd.f32 0.0, %v659
      %v661 = vpop.f32.mrb[0].mxu0
      %v662 = vadd.f32 0.0, %v661
      %v663 = vpop.f32.mrb[0].mxu0
      %v664 = vadd.f32 0.0, %v663
      %v665 = vpop.f32.mrb[0].mxu0
      %v666 = vadd.f32 0.0, %v665
      %667 = vmatprep.mubr.bf16.mxu0 0
      %668 = vmatmul.mubr.bf16.gmra.mrb[0].mxu0 %v491
      %v669 = vpop.f32.mrb[0].mxu0
      %v670 = vadd.f32 0.0, %v669
      %v671 = vpop.f32.mrb[0].mxu0
      %v672 = vadd.f32 0.0, %v671
      %v673 = vpop.f32.mrb[0].mxu0
      %v674 = vadd.f32 0.0, %v673
      %v675 = vpop.f32.mrb[0].mxu0
      %v676 = vadd.f32 0.0, %v675
      %677 = vmatprep.mubr.bf16.mxu0 0
      %678 = vmatmul.mubr.bf16.gmra.mrb[0].mxu0 %v494
      %v679 = vpop.f32.mrb[0].mxu0
      %v680 = vadd.f32 0.0, %v679
      %v681 = vpop.f32.mrb[0].mxu0
      %v682 = vadd.f32 0.0, %v681
      %v683 = vpop.f32.mrb[0].mxu0
      %v684 = vadd.f32 0.0, %v683
      %v685 = vpop.f32.mrb[0].mxu0
      %v686 = vadd.f32 0.0, %v685
      %687 = vmatprep.mubr.bf16.mxu0 0
      %688 = vmatmul.mubr.bf16.gmra.mrb[0].mxu0 %v497
      %v689 = vpop.f32.mrb[0].mxu0
      %v690 = vadd.f32 0.0, %v689
      %v691 = vpop.f32.mrb[0].mxu0
      %v692 = vadd.f32 0.0, %v691
      %v693 = vpop.f32.mrb[0].mxu0
      %v694 = vadd.f32 0.0, %v693
      %v695 = vpop.f32.mrb[0].mxu0
      %v696 = vadd.f32 0.0, %v695
      %697 = vmatprep.mubr.bf16.mxu0 0
      %698 = vmatmul.mubr.bf16.gmra.mrb[0].mxu0 %v500
      %v699 = vpop.f32.mrb[0].mxu0
      %v700 = vadd.f32 0.0, %v699
      %v701 = vpop.f32.mrb[0].mxu0
      %v702 = vadd.f32 0.0, %v701
      %v703 = vpop.f32.mrb[0].mxu0
      %v704 = vadd.f32 0.0, %v703
      %v705 = vpop.f32.mrb[0].mxu0
      %v706 = vadd.f32 0.0, %v705
      %707 = vmatprep.mubr.bf16.mxu0 0
      %708 = vmatmul.mubr.bf16.gmra.mrb[0].mxu0 %v503
      %v709 = vpop.f32.mrb[0].mxu0
      %v710 = vadd.f32 0.0, %v709
      %v711 = vpop.f32.mrb[0].mxu0
      %v712 = vadd.f32 0.0, %v711
      %v713 = vpop.f32.mrb[0].mxu0
      %v714 = vadd.f32 0.0, %v713
      %v715 = vpop.f32.mrb[0].mxu0
      %v716 = vadd.f32 0.0, %v715
      %717 = vmatprep.mubr.bf16.mxu0 0
      %718 = vmatmul.mubr.bf16.gmra.mrb[0].mxu0 %v506
      %v719 = vpop.f32.mrb[0].mxu0
      %v720 = vadd.f32 0.0, %v719
      %v721 = vpop.f32.mrb[0].mxu0
      %v722 = vadd.f32 0.0, %v721
      %v723 = vpop.f32.mrb[0].mxu0
      %v724 = vadd.f32 0.0, %v723
      %v725 = vpop.f32.mrb[0].mxu0
      %v726 = vadd.f32 0.0, %v725
      %727 = vmatprep.mubr.bf16.mxu0 0
      %728 = vmatmul.mubr.bf16.gmra.mrb[0].mxu0 %v509
      %v729 = vpop.f32.mrb[0].mxu0
      %v730 = vadd.f32 0.0, %v729
      %v731 = vpop.f32.mrb[0].mxu0
      %v732 = vadd.f32 0.0, %v731
      %v733 = vpop.f32.mrb[0].mxu0
      %v734 = vadd.f32 0.0, %v733
      %v735 = vpop.f32.mrb[0].mxu0
      %v736 = vadd.f32 0.0, %v735
      %737 = vmatprep.mubr.bf16.mxu0 0
      %738 = vmatmul.mubr.bf16.gmra.mrb[0].mxu0 %v512
      %v739 = vpop.f32.mrb[0].mxu0
      %v740 = vadd.f32 0.0, %v739
      %v741 = vpop.f32.mrb[0].mxu0
      %v742 = vadd.f32 0.0, %v741
      %v743 = vpop.f32.mrb[0].mxu0
      %v744 = vadd.f32 0.0, %v743
      %v745 = vpop.f32.mrb[0].mxu0
      %v746 = vadd.f32 0.0, %v745
      %747 = vmatprep.mubr.bf16.mxu0 0
      %748 = vmatmul.mubr.bf16.gmra.mrb[0].mxu0 %v515
      %v749 = vpop.f32.mrb[0].mxu0
      %v750 = vadd.f32 0.0, %v749
      %v751 = vpop.f32.mrb[0].mxu0
      %v752 = vadd.f32 0.0, %v751
      %v753 = vpop.f32.mrb[0].mxu0
      %v754 = vadd.f32 0.0, %v753
      %v755 = vpop.f32.mrb[0].mxu0
      %v756 = vadd.f32 0.0, %v755
      %757 = vdwg.mxu0
      %v758 = vmax.f32 %v600, %v602
      %759 = vmax.xlane.f32.xlu0 %v758
      %v760 = vpop.xlane.xlu0 %759
      %v761 = vmax.f32 %v604, %v606
      %762 = vmax.xlane.f32.xlu0 %v761
      %v763 = vpop.xlane.xlu0 %762
      %v764 = vmax.f32 %v610, %v612
      %765 = vmax.xlane.f32.xlu0 %v764
      %v766 = vpop.xlane.xlu0 %765
      %v767 = vmax.f32 %v614, %v616
      %768 = vmax.xlane.f32.xlu0 %v767
      %v769 = vpop.xlane.xlu0 %768
      %v770 = vmax.f32 %v620, %v622
      %771 = vmax.xlane.f32.xlu0 %v770
      %v772 = vpop.xlane.xlu0 %771
      %v773 = vmax.f32 %v624, %v626
      %774 = vmax.xlane.f32.xlu0 %v773
      %v775 = vpop.xlane.xlu0 %774
      %v776 = vmax.f32 %v630, %v632
      %777 = vmax.xlane.f32.xlu0 %v776
      %v778 = vpop.xlane.xlu0 %777
      %v779 = vmax.f32 %v634, %v636
      %780 = vmax.xlane.f32.xlu0 %v779
      %v781 = vpop.xlane.xlu0 %780
      %v782 = vmax.f32 %v640, %v642
      %783 = vmax.xlane.f32.xlu0 %v782
      %v784 = vpop.xlane.xlu0 %783
      %v785 = vmax.f32 %v644, %v646
      %786 = vmax.xlane.f32.xlu0 %v785
      %v787 = vpop.xlane.xlu0 %786
      %v788 = vmax.f32 %v650, %v652
      %789 = vmax.xlane.f32.xlu0 %v788
      %v790 = vpop.xlane.xlu0 %789
      %v791 = vmax.f32 %v654, %v656
      %792 = vmax.xlane.f32.xlu0 %v791
      %v793 = vpop.xlane.xlu0 %792
      %v794 = vmax.f32 %v660, %v662
      %795 = vmax.xlane.f32.xlu0 %v794
      %v796 = vpop.xlane.xlu0 %795
      %v797 = vmax.f32 %v664, %v666
      %798 = vmax.xlane.f32.xlu0 %v797
      %v799 = vpop.xlane.xlu0 %798
      %v800 = vmax.f32 %v670, %v672
      %801 = vmax.xlane.f32.xlu0 %v800
      %v802 = vpop.xlane.xlu0 %801
      %v803 = vmax.f32 %v674, %v676
      %804 = vmax.xlane.f32.xlu0 %v803
      %v805 = vpop.xlane.xlu0 %804
      %v806 = vmax.f32 %v680, %v682
      %807 = vmax.xlane.f32.xlu0 %v806
      %v808 = vpop.xlane.xlu0 %807
      %v809 = vmax.f32 %v684, %v686
      %810 = vmax.xlane.f32.xlu0 %v809
      %v811 = vpop.xlane.xlu0 %810
      %v812 = vmax.f32 %v690, %v692
      %813 = vmax.xlane.f32.xlu0 %v812
      %v814 = vpop.xlane.xlu0 %813
      %v815 = vmax.f32 %v694, %v696
      %816 = vmax.xlane.f32.xlu0 %v815
      %v817 = vpop.xlane.xlu0 %816
      %v818 = vmax.f32 %v700, %v702
      %819 = vmax.xlane.f32.xlu0 %v818
      %v820 = vpop.xlane.xlu0 %819
      %v821 = vmax.f32 %v704, %v706
      %822 = vmax.xlane.f32.xlu0 %v821
      %v823 = vpop.xlane.xlu0 %822
      %v824 = vmax.f32 %v710, %v712
      %825 = vmax.xlane.f32.xlu0 %v824
      %v826 = vpop.xlane.xlu0 %825
      %v827 = vmax.f32 %v714, %v716
      %828 = vmax.xlane.f32.xlu0 %v827
      %v829 = vpop.xlane.xlu0 %828
      %v830 = vmax.f32 %v720, %v722
      %831 = vmax.xlane.f32.xlu0 %v830
      %v832 = vpop.xlane.xlu0 %831
      %v833 = vmax.f32 %v724, %v726
      %834 = vmax.xlane.f32.xlu0 %v833
      %v835 = vpop.xlane.xlu0 %834
      %v836 = vmax.f32 %v730, %v732
      %837 = vmax.xlane.f32.xlu0 %v836
      %v838 = vpop.xlane.xlu0 %837
      %v839 = vmax.f32 %v734, %v736
      %840 = vmax.xlane.f32.xlu0 %v839
      %v841 = vpop.xlane.xlu0 %840
      %v842 = vmax.f32 %v740, %v742
      %843 = vmax.xlane.f32.xlu0 %v842
      %v844 = vpop.xlane.xlu0 %843
      %v845 = vmax.f32 %v744, %v746
      %846 = vmax.xlane.f32.xlu0 %v845
      %v847 = vpop.xlane.xlu0 %846
      %v848 = vmax.f32 %v750, %v752
      %849 = vmax.xlane.f32.xlu0 %v848
      %v850 = vpop.xlane.xlu0 %849
      %v851 = vmax.f32 %v754, %v756
      %852 = vmax.xlane.f32.xlu0 %v851
      %v853 = vpop.xlane.xlu0 %852
      %v854 = vsub.f32 %v600, %v760
      %v855 = vsub.f32 %v602, %v760
      %v856 = vsub.f32 %v604, %v763
      %v857 = vsub.f32 %v606, %v763
      %v858 = vsub.f32 %v610, %v766
      %v859 = vsub.f32 %v612, %v766
      %v860 = vsub.f32 %v614, %v769
      %v861 = vsub.f32 %v616, %v769
      %v862 = vsub.f32 %v620, %v772
      %v863 = vsub.f32 %v622, %v772
      %v864 = vsub.f32 %v624, %v775
      %v865 = vsub.f32 %v626, %v775
      %v866 = vsub.f32 %v630, %v778
      %v867 = vsub.f32 %v632, %v778
      %v868 = vsub.f32 %v634, %v781
      %v869 = vsub.f32 %v636, %v781
      %v870 = vsub.f32 %v640, %v784
      %v871 = vsub.f32 %v642, %v784
      %v872 = vsub.f32 %v644, %v787
      %v873 = vsub.f32 %v646, %v787
      %v874 = vsub.f32 %v650, %v790
      %v875 = vsub.f32 %v652, %v790
      %v876 = vsub.f32 %v654, %v793
      %v877 = vsub.f32 %v656, %v793
      %v878 = vsub.f32 %v660, %v796
      %v879 = vsub.f32 %v662, %v796
      %v880 = vsub.f32 %v664, %v799
      %v881 = vsub.f32 %v666, %v799
      %v882 = vsub.f32 %v670, %v802
      %v883 = vsub.f32 %v672, %v802
      %v884 = vsub.f32 %v674, %v805
      %v885 = vsub.f32 %v676, %v805
      %v886 = vsub.f32 %v680, %v808
      %v887 = vsub.f32 %v682, %v808
      %v888 = vsub.f32 %v684, %v811
      %v889 = vsub.f32 %v686, %v811
      %v890 = vsub.f32 %v690, %v814
      %v891 = vsub.f32 %v692, %v814
      %v892 = vsub.f32 %v694, %v817
      %v893 = vsub.f32 %v696, %v817
      %v894 = vsub.f32 %v700, %v820
      %v895 = vsub.f32 %v702, %v820
      %v896 = vsub.f32 %v704, %v823
      %v897 = vsub.f32 %v706, %v823
      %v898 = vsub.f32 %v710, %v826
      %v899 = vsub.f32 %v712, %v826
      %v900 = vsub.f32 %v714, %v829
      %v901 = vsub.f32 %v716, %v829
      %v902 = vsub.f32 %v720, %v832
      %v903 = vsub.f32 %v722, %v832
      %v904 = vsub.f32 %v724, %v835
      %v905 = vsub.f32 %v726, %v835
      %v906 = vsub.f32 %v730, %v838
      %v907 = vsub.f32 %v732, %v838
      %v908 = vsub.f32 %v734, %v841
      %v909 = vsub.f32 %v736, %v841
      %v910 = vsub.f32 %v740, %v844
      %v911 = vsub.f32 %v742, %v844
      %v912 = vsub.f32 %v744, %v847
      %v913 = vsub.f32 %v746, %v847
      %v914 = vsub.f32 %v750, %v850
      %v915 = vsub.f32 %v752, %v850
      %v916 = vsub.f32 %v754, %v853
      %v917 = vsub.f32 %v756, %v853
      %v918 = vmul.f32 %v854, 1.442695
      %v919 = vpow.pop %v918
      %v920 = vmul.f32 %v855, 1.442695
      %v921 = vpow.pop %v920
      %v922 = vmul.f32 %v856, 1.442695
      %v923 = vpow.pop %v922
      %v924 = vmul.f32 %v857, 1.442695
      %v925 = vpow.pop %v924
      %v926 = vmul.f32 %v858, 1.442695
      %v927 = vpow.pop %v926
      %v928 = vmul.f32 %v859, 1.442695
      %v929 = vpow.pop %v928
      %v930 = vmul.f32 %v860, 1.442695
      %v931 = vpow.pop %v930
      %v932 = vmul.f32 %v861, 1.442695
      %v933 = vpow.pop %v932
      %v934 = vmul.f32 %v862, 1.442695
      %v935 = vpow.pop %v934
      %v936 = vmul.f32 %v863, 1.442695
      %v937 = vpow.pop %v936
      %v938 = vmul.f32 %v864, 1.442695
      %v939 = vpow.pop %v938
      %v940 = vmul.f32 %v865, 1.442695
      %v941 = vpow.pop %v940
      %v942 = vmul.f32 %v866, 1.442695
      %v943 = vpow.pop %v942
      %v944 = vmul.f32 %v867, 1.442695
      %v945 = vpow.pop %v944
      %v946 = vmul.f32 %v868, 1.442695
      %v947 = vpow.pop %v946
      %v948 = vmul.f32 %v869, 1.442695
      %v949 = vpow.pop %v948
      %v950 = vmul.f32 %v870, 1.442695
      %v951 = vpow.pop %v950
      %v952 = vmul.f32 %v871, 1.442695
      %v953 = vpow.pop %v952
      %v954 = vmul.f32 %v872, 1.442695
      %v955 = vpow.pop %v954
      %v956 = vmul.f32 %v873, 1.442695
      %v957 = vpow.pop %v956
      %v958 = vmul.f32 %v874, 1.442695
      %v959 = vpow.pop %v958
      %v960 = vmul.f32 %v875, 1.442695
      %v961 = vpow.pop %v960
      %v962 = vmul.f32 %v876, 1.442695
      %v963 = vpow.pop %v962
      %v964 = vmul.f32 %v877, 1.442695
      %v965 = vpow.pop %v964
      %v966 = vmul.f32 %v878, 1.442695
      %v967 = vpow.pop %v966
      %v968 = vmul.f32 %v879, 1.442695
      %v969 = vpow.pop %v968
      %v970 = vmul.f32 %v880, 1.442695
      %v971 = vpow.pop %v970
      %v972 = vmul.f32 %v881, 1.442695
      %v973 = vpow.pop %v972
      %v974 = vmul.f32 %v882, 1.442695
      %v975 = vpow.pop %v974
      %v976 = vmul.f32 %v883, 1.442695
      %v977 = vpow.pop %v976
      %v978 = vmul.f32 %v884, 1.442695
      %v979 = vpow.pop %v978
      %v980 = vmul.f32 %v885, 1.442695
      %v981 = vpow.pop %v980
      %v982 = vmul.f32 %v886, 1.442695
      %v983 = vpow.pop %v982
      %v984 = vmul.f32 %v887, 1.442695
      %v985 = vpow.pop %v984
      %v986 = vmul.f32 %v888, 1.442695
      %v987 = vpow.pop %v986
      %v988 = vmul.f32 %v889, 1.442695
      %v989 = vpow.pop %v988
      %v990 = vmul.f32 %v890, 1.442695
      %v991 = vpow.pop %v990
      %v992 = vmul.f32 %v891, 1.442695
      %v993 = vpow.pop %v992
      %v994 = vmul.f32 %v892, 1.442695
      %v995 = vpow.pop %v994
      %v996 = vmul.f32 %v893, 1.442695
      %v997 = vpow.pop %v996
      %v998 = vmul.f32 %v894, 1.442695
      %v999 = vpow.pop %v998
      %v1000 = vmul.f32 %v895, 1.442695
      %v1001 = vpow.pop %v1000
      %v1002 = vmul.f32 %v896, 1.442695
      %v1003 = vpow.pop %v1002
      %v1004 = vmul.f32 %v897, 1.442695
      %v1005 = vpow.pop %v1004
      %v1006 = vmul.f32 %v898, 1.442695
      %v1007 = vpow.pop %v1006
      %v1008 = vmul.f32 %v899, 1.442695
      %v1009 = vpow.pop %v1008
      %v1010 = vmul.f32 %v900, 1.442695
      %v1011 = vpow.pop %v1010
      %v1012 = vmul.f32 %v901, 1.442695
      %v1013 = vpow.pop %v1012
      %v1014 = vmul.f32 %v902, 1.442695
      %v1015 = vpow.pop %v1014
      %v1016 = vmul.f32 %v903, 1.442695
      %v1017 = vpow.pop %v1016
      %v1018 = vmul.f32 %v904, 1.442695
      %v1019 = vpow.pop %v1018
      %v1020 = vmul.f32 %v905, 1.442695
      %v1021 = vpow.pop %v1020
      %v1022 = vmul.f32 %v906, 1.442695
      %v1023 = vpow.pop %v1022
      %v1024 = vmul.f32 %v907, 1.442695
      %v1025 = vpow.pop %v1024
      %v1026 = vmul.f32 %v908, 1.442695
      %v1027 = vpow.pop %v1026
      %v1028 = vmul.f32 %v909, 1.442695
      %v1029 = vpow.pop %v1028
      %v1030 = vmul.f32 %v910, 1.442695
      %v1031 = vpow.pop %v1030
      %v1032 = vmul.f32 %v911, 1.442695
      %v1033 = vpow.pop %v1032
      %v1034 = vmul.f32 %v912, 1.442695
      %v1035 = vpow.pop %v1034
      %v1036 = vmul.f32 %v913, 1.442695
      %v1037 = vpow.pop %v1036
      %v1038 = vmul.f32 %v914, 1.442695
      %v1039 = vpow.pop %v1038
      %v1040 = vmul.f32 %v915, 1.442695
      %v1041 = vpow.pop %v1040
      %v1042 = vmul.f32 %v916, 1.442695
      %v1043 = vpow.pop %v1042
      %v1044 = vmul.f32 %v917, 1.442695
      %v1045 = vpow.pop %v1044
      %v1046 = vadd.f32 %v919, %v921
      %1047 = vadd.xlane.f32.xlu0 %v1046
      %v1048 = vpop.xlane.xlu0 %1047
      %v1049 = vadd.f32 %v923, %v925
      %1050 = vadd.xlane.f32.xlu0 %v1049
      %v1051 = vpop.xlane.xlu0 %1050
      %v1052 = vadd.f32 %v927, %v929
      %1053 = vadd.xlane.f32.xlu0 %v1052
      %v1054 = vpop.xlane.xlu0 %1053
      %v1055 = vadd.f32 %v931, %v933
      %1056 = vadd.xlane.f32.xlu0 %v1055
      %v1057 = vpop.xlane.xlu0 %1056
      %v1058 = vadd.f32 %v935, %v937
      %1059 = vadd.xlane.f32.xlu0 %v1058
      %v1060 = vpop.xlane.xlu0 %1059
      %v1061 = vadd.f32 %v939, %v941
      %1062 = vadd.xlane.f32.xlu0 %v1061
      %v1063 = vpop.xlane.xlu0 %1062
      %v1064 = vadd.f32 %v943, %v945
      %1065 = vadd.xlane.f32.xlu0 %v1064
      %v1066 = vpop.xlane.xlu0 %1065
      %v1067 = vadd.f32 %v947, %v949
      %1068 = vadd.xlane.f32.xlu0 %v1067
      %v1069 = vpop.xlane.xlu0 %1068
      %v1070 = vadd.f32 %v951, %v953
      %1071 = vadd.xlane.f32.xlu0 %v1070
      %v1072 = vpop.xlane.xlu0 %1071
      %v1073 = vadd.f32 %v955, %v957
      %1074 = vadd.xlane.f32.xlu0 %v1073
      %v1075 = vpop.xlane.xlu0 %1074
      %v1076 = vadd.f32 %v959, %v961
      %1077 = vadd.xlane.f32.xlu0 %v1076
      %v1078 = vpop.xlane.xlu0 %1077
      %v1079 = vadd.f32 %v963, %v965
      %1080 = vadd.xlane.f32.xlu0 %v1079
      %v1081 = vpop.xlane.xlu0 %1080
      %v1082 = vadd.f32 %v967, %v969
      %1083 = vadd.xlane.f32.xlu0 %v1082
      %v1084 = vpop.xlane.xlu0 %1083
      %v1085 = vadd.f32 %v971, %v973
      %1086 = vadd.xlane.f32.xlu0 %v1085
      %v1087 = vpop.xlane.xlu0 %1086
      %v1088 = vadd.f32 %v975, %v977
      %1089 = vadd.xlane.f32.xlu0 %v1088
      %v1090 = vpop.xlane.xlu0 %1089
      %v1091 = vadd.f32 %v979, %v981
      %1092 = vadd.xlane.f32.xlu0 %v1091
      %v1093 = vpop.xlane.xlu0 %1092
      %v1094 = vadd.f32 %v983, %v985
      %1095 = vadd.xlane.f32.xlu0 %v1094
      %v1096 = vpop.xlane.xlu0 %1095
      %v1097 = vadd.f32 %v987, %v989
      %1098 = vadd.xlane.f32.xlu0 %v1097
      %v1099 = vpop.xlane.xlu0 %1098
      %v1100 = vadd.f32 %v991, %v993
      %1101 = vadd.xlane.f32.xlu0 %v1100
      %v1102 = vpop.xlane.xlu0 %1101
      %v1103 = vadd.f32 %v995, %v997
      %1104 = vadd.xlane.f32.xlu0 %v1103
      %v1105 = vpop.xlane.xlu0 %1104
      %v1106 = vadd.f32 %v999, %v1001
      %1107 = vadd.xlane.f32.xlu0 %v1106
      %v1108 = vpop.xlane.xlu0 %1107
      %v1109 = vadd.f32 %v1003, %v1005
      %1110 = vadd.xlane.f32.xlu0 %v1109
      %v1111 = vpop.xlane.xlu0 %1110
      %v1112 = vadd.f32 %v1007, %v1009
      %1113 = vadd.xlane.f32.xlu0 %v1112
      %v1114 = vpop.xlane.xlu0 %1113
      %v1115 = vadd.f32 %v1011, %v1013
      %1116 = vadd.xlane.f32.xlu0 %v1115
      %v1117 = vpop.xlane.xlu0 %1116
      %v1118 = vadd.f32 %v1015, %v1017
      %1119 = vadd.xlane.f32.xlu0 %v1118
      %v1120 = vpop.xlane.xlu0 %1119
      %v1121 = vadd.f32 %v1019, %v1021
      %1122 = vadd.xlane.f32.xlu0 %v1121
      %v1123 = vpop.xlane.xlu0 %1122
      %v1124 = vadd.f32 %v1023, %v1025
      %1125 = vadd.xlane.f32.xlu0 %v1124
      %v1126 = vpop.xlane.xlu0 %1125
      %v1127 = vadd.f32 %v1027, %v1029
      %1128 = vadd.xlane.f32.xlu0 %v1127
      %v1129 = vpop.xlane.xlu0 %1128
      %v1130 = vadd.f32 %v1031, %v1033
      %1131 = vadd.xlane.f32.xlu0 %v1130
      %v1132 = vpop.xlane.xlu0 %1131
      %v1133 = vadd.f32 %v1035, %v1037
      %1134 = vadd.xlane.f32.xlu0 %v1133
      %v1135 = vpop.xlane.xlu0 %1134
      %v1136 = vadd.f32 %v1039, %v1041
      %1137 = vadd.xlane.f32.xlu0 %v1136
      %v1138 = vpop.xlane.xlu0 %1137
      %v1139 = vadd.f32 %v1043, %v1045
      %1140 = vadd.xlane.f32.xlu0 %v1139
      %v1141 = vpop.xlane.xlu0 %1140
      %v1142 = vrcp.pop %v1048
      %v1143 = vrcp.pop %v1051
      %v1144 = vrcp.pop %v1054
      %v1145 = vrcp.pop %v1057
      %v1146 = vrcp.pop %v1060
      %v1147 = vrcp.pop %v1063
      %v1148 = vrcp.pop %v1066
      %v1149 = vrcp.pop %v1069
      %v1150 = vrcp.pop %v1072
      %v1151 = vrcp.pop %v1075
      %v1152 = vrcp.pop %v1078
      %v1153 = vrcp.pop %v1081
      %v1154 = vrcp.pop %v1084
      %v1155 = vrcp.pop %v1087
      %v1156 = vrcp.pop %v1090
      %v1157 = vrcp.pop %v1093
      %v1158 = vrcp.pop %v1096
      %v1159 = vrcp.pop %v1099
      %v1160 = vrcp.pop %v1102
      %v1161 = vrcp.pop %v1105
      %v1162 = vrcp.pop %v1108
      %v1163 = vrcp.pop %v1111
      %v1164 = vrcp.pop %v1114
      %v1165 = vrcp.pop %v1117
      %v1166 = vrcp.pop %v1120
      %v1167 = vrcp.pop %v1123
      %v1168 = vrcp.pop %v1126
      %v1169 = vrcp.pop %v1129
      %v1170 = vrcp.pop %v1132
      %v1171 = vrcp.pop %v1135
      %v1172 = vrcp.pop %v1138
      %v1173 = vrcp.pop %v1141
      %v1174 = vmul.f32 %v919, %v1142
      %v1175 = vmul.f32 %v921, %v1142
      %v1176 = vmul.f32 %v923, %v1143
      %v1177 = vmul.f32 %v925, %v1143
      %v1178 = vmul.f32 %v927, %v1144
      %v1179 = vmul.f32 %v929, %v1144
      %v1180 = vmul.f32 %v931, %v1145
      %v1181 = vmul.f32 %v933, %v1145
      %v1182 = vmul.f32 %v935, %v1146
      %v1183 = vmul.f32 %v937, %v1146
      %v1184 = vmul.f32 %v939, %v1147
      %v1185 = vmul.f32 %v941, %v1147
      %v1186 = vmul.f32 %v943, %v1148
      %v1187 = vmul.f32 %v945, %v1148
      %v1188 = vmul.f32 %v947, %v1149
      %v1189 = vmul.f32 %v949, %v1149
      %v1190 = vmul.f32 %v951, %v1150
      %v1191 = vmul.f32 %v953, %v1150
      %v1192 = vmul.f32 %v955, %v1151
      %v1193 = vmul.f32 %v957, %v1151
      %v1194 = vmul.f32 %v959, %v1152
      %v1195 = vmul.f32 %v961, %v1152
      %v1196 = vmul.f32 %v963, %v1153
      %v1197 = vmul.f32 %v965, %v1153
      %v1198 = vmul.f32 %v967, %v1154
      %v1199 = vmul.f32 %v969, %v1154
      %v1200 = vmul.f32 %v971, %v1155
      %v1201 = vmul.f32 %v973, %v1155
      %v1202 = vmul.f32 %v975, %v1156
      %v1203 = vmul.f32 %v977, %v1156
      %v1204 = vmul.f32 %v979, %v1157
      %v1205 = vmul.f32 %v981, %v1157
      %v1206 = vmul.f32 %v983, %v1158
      %v1207 = vmul.f32 %v985, %v1158
      %v1208 = vmul.f32 %v987, %v1159
      %v1209 = vmul.f32 %v989, %v1159
      %v1210 = vmul.f32 %v991, %v1160
      %v1211 = vmul.f32 %v993, %v1160
      %v1212 = vmul.f32 %v995, %v1161
      %v1213 = vmul.f32 %v997, %v1161
      %v1214 = vmul.f32 %v999, %v1162
      %v1215 = vmul.f32 %v1001, %v1162
      %v1216 = vmul.f32 %v1003, %v1163
      %v1217 = vmul.f32 %v1005, %v1163
      %v1218 = vmul.f32 %v1007, %v1164
      %v1219 = vmul.f32 %v1009, %v1164
      %v1220 = vmul.f32 %v1011, %v1165
      %v1221 = vmul.f32 %v1013, %v1165
      %v1222 = vmul.f32 %v1015, %v1166
      %v1223 = vmul.f32 %v1017, %v1166
      %v1224 = vmul.f32 %v1019, %v1167
      %v1225 = vmul.f32 %v1021, %v1167
      %v1226 = vmul.f32 %v1023, %v1168
      %v1227 = vmul.f32 %v1025, %v1168
      %v1228 = vmul.f32 %v1027, %v1169
      %v1229 = vmul.f32 %v1029, %v1169
      %v1230 = vmul.f32 %v1031, %v1170
      %v1231 = vmul.f32 %v1033, %v1170
      %v1232 = vmul.f32 %v1035, %v1171
      %v1233 = vmul.f32 %v1037, %v1171
      %v1234 = vmul.f32 %v1039, %v1172
      %v1235 = vmul.f32 %v1041, %v1172
      %v1236 = vmul.f32 %v1043, %v1173
      %v1237 = vmul.f32 %v1045, %v1173
      %v1238 = vpack.c.bf16 %v1176, %v1174
      %v1239 = vpack.c.bf16 %v1177, %v1175
      %v1240 = vpack.c.bf16 %v1180, %v1178
      %v1241 = vpack.c.bf16 %v1181, %v1179
      %v1242 = vpack.c.bf16 %v1184, %v1182
      %v1243 = vpack.c.bf16 %v1185, %v1183
      %v1244 = vpack.c.bf16 %v1188, %v1186
      %v1245 = vpack.c.bf16 %v1189, %v1187
      %v1246 = vpack.c.bf16 %v1192, %v1190
      %v1247 = vpack.c.bf16 %v1193, %v1191
      %v1248 = vpack.c.bf16 %v1196, %v1194
      %v1249 = vpack.c.bf16 %v1197, %v1195
      %v1250 = vpack.c.bf16 %v1200, %v1198
      %v1251 = vpack.c.bf16 %v1201, %v1199
      %v1252 = vpack.c.bf16 %v1204, %v1202
      %v1253 = vpack.c.bf16 %v1205, %v1203
      %v1254 = vpack.c.bf16 %v1208, %v1206
      %v1255 = vpack.c.bf16 %v1209, %v1207
      %v1256 = vpack.c.bf16 %v1212, %v1210
      %v1257 = vpack.c.bf16 %v1213, %v1211
      %v1258 = vpack.c.bf16 %v1216, %v1214
      %v1259 = vpack.c.bf16 %v1217, %v1215
      %v1260 = vpack.c.bf16 %v1220, %v1218
      %v1261 = vpack.c.bf16 %v1221, %v1219
      %v1262 = vpack.c.bf16 %v1224, %v1222
      %v1263 = vpack.c.bf16 %v1225, %v1223
      %v1264 = vpack.c.bf16 %v1228, %v1226
      %v1265 = vpack.c.bf16 %v1229, %v1227
      %v1266 = vpack.c.bf16 %v1232, %v1230
      %v1267 = vpack.c.bf16 %v1233, %v1231
      %v1268 = vpack.c.bf16 %v1236, %v1234
      %v1269 = vpack.c.bf16 %v1237, %v1235
      %v1302 = vunpack.c.l.b16 %v356
      %v1303 = vunpack.c.l.b16 %v357
      %v1304 = vunpack.c.l.b16 %v358
      %v1305 = vunpack.c.l.b16 %v359
      %v1306 = vunpack.c.l.b16 %v360
      %v1307 = vunpack.c.l.b16 %v361
      %v1308 = vunpack.c.l.b16 %v362
      %v1309 = vunpack.c.l.b16 %v363
      %v1310 = vunpack.c.l.b16 %v364
      %v1311 = vunpack.c.l.b16 %v365
      %v1312 = vunpack.c.l.b16 %v366
      %v1313 = vunpack.c.l.b16 %v367
      %v1314 = vunpack.c.l.b16 %v368
      %v1315 = vunpack.c.l.b16 %v369
      %v1316 = vunpack.c.l.b16 %v370
      %v1317 = vunpack.c.l.b16 %v371
      %v1318 = vunpack.c.l.b16 %v372
      %v1319 = vunpack.c.l.b16 %v373
      %v1320 = vunpack.c.l.b16 %v374
      %v1321 = vunpack.c.l.b16 %v375
      %v1322 = vunpack.c.l.b16 %v376
      %v1323 = vunpack.c.l.b16 %v377
      %v1324 = vunpack.c.l.b16 %v378
      %v1325 = vunpack.c.l.b16 %v379
      %v1326 = vunpack.c.l.b16 %v380
      %v1327 = vunpack.c.l.b16 %v381
      %v1328 = vunpack.c.l.b16 %v382
      %v1329 = vunpack.c.l.b16 %v383
      %v1330 = vunpack.c.l.b16 %v384
      %v1331 = vunpack.c.l.b16 %v385
      %v1332 = vunpack.c.l.b16 %v386
      %v1333 = vunpack.c.l.b16 %v387
      %v1334 = vpack.c.b16 %v1303, %v1302
      %v1335 = vpack.c.b16 %v1305, %v1304
      %v1336 = vpack.c.b16 %v1307, %v1306
      %v1337 = vpack.c.b16 %v1309, %v1308
      %v1338 = vpack.c.b16 %v1311, %v1310
      %v1339 = vpack.c.b16 %v1313, %v1312
      %v1340 = vpack.c.b16 %v1315, %v1314
      %v1341 = vpack.c.b16 %v1317, %v1316
      %v1342 = vpack.c.b16 %v1319, %v1318
      %v1343 = vpack.c.b16 %v1321, %v1320
      %v1344 = vpack.c.b16 %v1323, %v1322
      %v1345 = vpack.c.b16 %v1325, %v1324
      %v1346 = vpack.c.b16 %v1327, %v1326
      %v1347 = vpack.c.b16 %v1329, %v1328
      %v1348 = vpack.c.b16 %v1331, %v1330
      %v1349 = vpack.c.b16 %v1333, %v1332
      %1366 = vmatprep.subr.bf16.mxu0 0
      %1367 = vmatpush1.bf16.msra.mxu0 %v1334
      %1368 = vmatprep.subr.bf16.mxu0 0
      %1369 = vmatpush1.bf16.msra.mxu0 %v1335
      %1370 = vmatprep.subr.bf16.mxu0 0
      %1371 = vmatpush1.bf16.msra.mxu0 %v1336
      %1372 = vmatprep.subr.bf16.mxu0 0
      %1373 = vmatpush1.bf16.msra.mxu0 %v1337
      %1374 = vmatprep.subr.bf16.mxu0 0
      %1375 = vmatpush1.bf16.msra.mxu0 %v1338
      %1376 = vmatprep.subr.bf16.mxu0 0
      %1377 = vmatpush1.bf16.msra.mxu0 %v1339
      %1378 = vmatprep.subr.bf16.mxu0 0
      %1379 = vmatpush1.bf16.msra.mxu0 %v1340
      %1380 = vmatprep.subr.bf16.mxu0 0
      %1381 = vmatpush1.bf16.msra.mxu0 %v1341
      %1382 = vmatprep.subr.bf16.mxu0 0
      %1383 = vmatpush1.bf16.msra.mxu0 %v1342
      %1384 = vmatprep.subr.bf16.mxu0 0
      %1385 = vmatpush1.bf16.msra.mxu0 %v1343
      %1386 = vmatprep.subr.bf16.mxu0 0
      %1387 = vmatpush1.bf16.msra.mxu0 %v1344
      %1388 = vmatprep.subr.bf16.mxu0 0
      %1389 = vmatpush1.bf16.msra.mxu0 %v1345
      %1390 = vmatprep.subr.bf16.mxu0 0
      %1391 = vmatpush1.bf16.msra.mxu0 %v1346
      %1392 = vmatprep.subr.bf16.mxu0 0
      %1393 = vmatpush1.bf16.msra.mxu0 %v1347
      %1394 = vmatprep.subr.bf16.mxu0 0
      %1395 = vmatpush1.bf16.msra.mxu0 %v1348
      %1396 = vmatprep.subr.bf16.mxu0 0
      %1397 = vmatpush1.bf16.msra.mxu0 %v1349
      %1398 = vmatprep.mubr.bf16.mxu0 %v1239
      %1399 = vmatmul.mubr.bf16.gmra.mrb[0].mxu0 %v1238
      %v1400 = vpop.f32.mrb[0].mxu0
      %v1401 = vadd.f32 0.0, %v1400
      %v1402 = vpop.f32.mrb[0].mxu0
      %v1403 = vpop.f32.mrb[0].mxu0
      %v1404 = vadd.f32 0.0, %v1403
      %v1405 = vpop.f32.mrb[0].mxu0
      %1406 = vmatprep.mubr.bf16.mxu0 %v1241
      %1407 = vmatmul.mubr.bf16.gmra.mrb[0].mxu0 %v1240
      %v1408 = vpop.f32.mrb[0].mxu0
      %v1409 = vadd.f32 0.0, %v1408
      %v1410 = vpop.f32.mrb[0].mxu0
      %v1411 = vpop.f32.mrb[0].mxu0
      %v1412 = vadd.f32 0.0, %v1411
      %v1413 = vpop.f32.mrb[0].mxu0
      %1414 = vmatprep.mubr.bf16.mxu0 %v1243
      %1415 = vmatmul.mubr.bf16.gmra.mrb[0].mxu0 %v1242
      %v1416 = vpop.f32.mrb[0].mxu0
      %v1417 = vadd.f32 0.0, %v1416
      %v1418 = vpop.f32.mrb[0].mxu0
      %v1419 = vpop.f32.mrb[0].mxu0
      %v1420 = vadd.f32 0.0, %v1419
      %v1421 = vpop.f32.mrb[0].mxu0
      %1422 = vmatprep.mubr.bf16.mxu0 %v1245
      %1423 = vmatmul.mubr.bf16.gmra.mrb[0].mxu0 %v1244
      %v1424 = vpop.f32.mrb[0].mxu0
      %v1425 = vadd.f32 0.0, %v1424
      %v1426 = vpop.f32.mrb[0].mxu0
      %v1427 = vpop.f32.mrb[0].mxu0
      %v1428 = vadd.f32 0.0, %v1427
      %v1429 = vpop.f32.mrb[0].mxu0
      %1430 = vmatprep.mubr.bf16.mxu0 %v1247
      %1431 = vmatmul.mubr.bf16.gmra.mrb[0].mxu0 %v1246
      %v1432 = vpop.f32.mrb[0].mxu0
      %v1433 = vadd.f32 0.0, %v1432
      %v1434 = vpop.f32.mrb[0].mxu0
      %v1435 = vpop.f32.mrb[0].mxu0
      %v1436 = vadd.f32 0.0, %v1435
      %v1437 = vpop.f32.mrb[0].mxu0
      %1438 = vmatprep.mubr.bf16.mxu0 %v1249
      %1439 = vmatmul.mubr.bf16.gmra.mrb[0].mxu0 %v1248
      %v1440 = vpop.f32.mrb[0].mxu0
      %v1441 = vadd.f32 0.0, %v1440
      %v1442 = vpop.f32.mrb[0].mxu0
      %v1443 = vpop.f32.mrb[0].mxu0
      %v1444 = vadd.f32 0.0, %v1443
      %v1445 = vpop.f32.mrb[0].mxu0
      %1446 = vmatprep.mubr.bf16.mxu0 %v1251
      %1447 = vmatmul.mubr.bf16.gmra.mrb[0].mxu0 %v1250
      %v1448 = vpop.f32.mrb[0].mxu0
      %v1449 = vadd.f32 0.0, %v1448
      %v1450 = vpop.f32.mrb[0].mxu0
      %v1451 = vpop.f32.mrb[0].mxu0
      %v1452 = vadd.f32 0.0, %v1451
      %v1453 = vpop.f32.mrb[0].mxu0
      %1454 = vmatprep.mubr.bf16.mxu0 %v1253
      %1455 = vmatmul.mubr.bf16.gmra.mrb[0].mxu0 %v1252
      %v1456 = vpop.f32.mrb[0].mxu0
      %v1457 = vadd.f32 0.0, %v1456
      %v1458 = vpop.f32.mrb[0].mxu0
      %v1459 = vpop.f32.mrb[0].mxu0
      %v1460 = vadd.f32 0.0, %v1459
      %v1461 = vpop.f32.mrb[0].mxu0
      %1462 = vmatprep.mubr.bf16.mxu0 %v1255
      %1463 = vmatmul.mubr.bf16.gmra.mrb[0].mxu0 %v1254
      %v1464 = vpop.f32.mrb[0].mxu0
      %v1465 = vadd.f32 0.0, %v1464
      %v1466 = vpop.f32.mrb[0].mxu0
      %v1467 = vpop.f32.mrb[0].mxu0
      %v1468 = vadd.f32 0.0, %v1467
      %v1469 = vpop.f32.mrb[0].mxu0
      %1470 = vmatprep.mubr.bf16.mxu0 %v1257
      %1471 = vmatmul.mubr.bf16.gmra.mrb[0].mxu0 %v1256
      %v1472 = vpop.f32.mrb[0].mxu0
      %v1473 = vadd.f32 0.0, %v1472
      %v1474 = vpop.f32.mrb[0].mxu0
      %v1475 = vpop.f32.mrb[0].mxu0
      %v1476 = vadd.f32 0.0, %v1475
      %v1477 = vpop.f32.mrb[0].mxu0
      %1478 = vmatprep.mubr.bf16.mxu0 %v1259
      %1479 = vmatmul.mubr.bf16.gmra.mrb[0].mxu0 %v1258
      %v1480 = vpop.f32.mrb[0].mxu0
      %v1481 = vadd.f32 0.0, %v1480
      %v1482 = vpop.f32.mrb[0].mxu0
      %v1483 = vpop.f32.mrb[0].mxu0
      %v1484 = vadd.f32 0.0, %v1483
      %v1485 = vpop.f32.mrb[0].mxu0
      %1486 = vmatprep.mubr.bf16.mxu0 %v1261
      %1487 = vmatmul.mubr.bf16.gmra.mrb[0].mxu0 %v1260
      %v1488 = vpop.f32.mrb[0].mxu0
      %v1489 = vadd.f32 0.0, %v1488
      %v1490 = vpop.f32.mrb[0].mxu0
      %v1491 = vpop.f32.mrb[0].mxu0
      %v1492 = vadd.f32 0.0, %v1491
      %v1493 = vpop.f32.mrb[0].mxu0
      %1494 = vmatprep.mubr.bf16.mxu0 %v1263
      %1495 = vmatmul.mubr.bf16.gmra.mrb[0].mxu0 %v1262
      %v1496 = vpop.f32.mrb[0].mxu0
      %v1497 = vadd.f32 0.0, %v1496
      %v1498 = vpop.f32.mrb[0].mxu0
      %v1499 = vpop.f32.mrb[0].mxu0
      %v1500 = vadd.f32 0.0, %v1499
      %v1501 = vpop.f32.mrb[0].mxu0
      %1502 = vmatprep.mubr.bf16.mxu0 %v1265
      %1503 = vmatmul.mubr.bf16.gmra.mrb[0].mxu0 %v1264
      %v1504 = vpop.f32.mrb[0].mxu0
      %v1505 = vadd.f32 0.0, %v1504
      %v1506 = vpop.f32.mrb[0].mxu0
      %v1507 = vpop.f32.mrb[0].mxu0
      %v1508 = vadd.f32 0.0, %v1507
      %v1509 = vpop.f32.mrb[0].mxu0
      %1510 = vmatprep.mubr.bf16.mxu0 %v1267
      %1511 = vmatmul.mubr.bf16.gmra.mrb[0].mxu0 %v1266
      %v1512 = vpop.f32.mrb[0].mxu0
      %v1513 = vadd.f32 0.0, %v1512
      %v1514 = vpop.f32.mrb[0].mxu0
      %v1515 = vpop.f32.mrb[0].mxu0
      %v1516 = vadd.f32 0.0, %v1515
      %v1517 = vpop.f32.mrb[0].mxu0
      %1518 = vmatprep.mubr.bf16.mxu0 %v1269
      %1519 = vmatmul.mubr.bf16.gmra.mrb[0].mxu0 %v1268
      %v1520 = vpop.f32.mrb[0].mxu0
      %v1521 = vadd.f32 0.0, %v1520
      %v1522 = vpop.f32.mrb[0].mxu0
      %v1523 = vpop.f32.mrb[0].mxu0
      %v1524 = vadd.f32 0.0, %v1523
      %v1525 = vpop.f32.mrb[0].mxu0
      %1526 = vdwg.mxu0
      %1527 = vst.msk [vmem:[%s210] sm:$0xff] %vm468, %v1401
      %1528 = vst.msk [vmem:[%s210 + $0x8] sm:$0xff] %vm468, %v1404
      %1529 = vst.msk [vmem:[%s210 + $0x10] sm:$0xff] %vm468, %v1409
      %1530 = vst.msk [vmem:[%s210 + $0x18] sm:$0xff] %vm468, %v1412
      %1531 = vst.msk [vmem:[%s210 + $0x20] sm:$0xff] %vm468, %v1417
      %1532 = vst.msk [vmem:[%s210 + $0x28] sm:$0xff] %vm468, %v1420
      %1533 = vst.msk [vmem:[%s210 + $0x30] sm:$0xff] %vm468, %v1425
      %1534 = vst.msk [vmem:[%s210 + $0x38] sm:$0xff] %vm468, %v1428
      %1535 = vst.msk [vmem:[%s210 + $0x40] sm:$0xff] %vm468, %v1433
      %1536 = vst.msk [vmem:[%s210 + $0x48] sm:$0xff] %vm468, %v1436
      %1537 = vst.msk [vmem:[%s210 + $0x50] sm:$0xff] %vm468, %v1441
      %1538 = vst.msk [vmem:[%s210 + $0x58] sm:$0xff] %vm468, %v1444
      %1539 = vst.msk [vmem:[%s210 + $0x60] sm:$0xff] %vm468, %v1449
      %1540 = vst.msk [vmem:[%s210 + $0x68] sm:$0xff] %vm468, %v1452
      %1541 = vst.msk [vmem:[%s210 + $0x70] sm:$0xff] %vm468, %v1457
      %1542 = vst.msk [vmem:[%s210 + $0x78] sm:$0xff] %vm468, %v1460
      %1543 = vst.msk [vmem:[%s210 + $0x80] sm:$0xff] %vm468, %v1465
      %1544 = vst.msk [vmem:[%s210 + $0x88] sm:$0xff] %vm468, %v1468
      %1545 = vst.msk [vmem:[%s210 + $0x90] sm:$0xff] %vm468, %v1473
      %1546 = vst.msk [vmem:[%s210 + $0x98] sm:$0xff] %vm468, %v1476
      %1547 = vst.msk [vmem:[%s210 + $0xa0] sm:$0xff] %vm468, %v1481
      %1548 = vst.msk [vmem:[%s210 + $0xa8] sm:$0xff] %vm468, %v1484
      %1549 = vst.msk [vmem:[%s210 + $0xb0] sm:$0xff] %vm468, %v1489
      %1550 = vst.msk [vmem:[%s210 + $0xb8] sm:$0xff] %vm468, %v1492
      %1551 = vst.msk [vmem:[%s210 + $0xc0] sm:$0xff] %vm468, %v1497
      %1552 = vst.msk [vmem:[%s210 + $0xc8] sm:$0xff] %vm468, %v1500
      %1553 = vst.msk [vmem:[%s210 + $0xd0] sm:$0xff] %vm468, %v1505
      %1554 = vst.msk [vmem:[%s210 + $0xd8] sm:$0xff] %vm468, %v1508
      %1555 = vst.msk [vmem:[%s210 + $0xe0] sm:$0xff] %vm468, %v1513
      %1556 = vst.msk [vmem:[%s210 + $0xe8] sm:$0xff] %vm468, %v1516
      %1557 = vst.msk [vmem:[%s210 + $0xf0] sm:$0xff] %vm468, %v1521
      %1558 = vst.msk [vmem:[%s210 + $0xf8] sm:$0xff] %vm468, %v1524
      %p1559 = scmp.lt.s32.totalorder %s14, 7
      %s1560 = scalar_select %p1559, %s14, 7
      %s1561 = smul.addr %s1560, 32
      %s1562 = smul.addr %s1561, 8
      %s1563 = scalar_lea.vmem %s3, %s1562
      // Predicated region
      $region33: #{upblock_forward.20} parent=31 // pred_check
        %p1564 = pneg %p110
      $region34: #{upblock_forward.20} parent=31 // pred_check_branch
        %1566 = sbr.rel (%p1564) target = $region36
      $region35: #{upblock_forward.20} parent=31 // pred_region
        _
      $region36: #{upblock_forward.20} parent=31 // pred_fallthru
        _
    $region32: #{upblock_forward.20} parent=5 // pred_fallthru
      _
    %p1567 = scmp.le.s32.totalorder 2, %s9
    // Predicated region
    $region37: #{upblock_forward.20} parent=5 // pred_check
      %p1568 = pneg %p1567
    $region38: #{upblock_forward.20} parent=5 // pred_check_branch
      %1570 = sbr.rel (%p1568) target = $region40
    $region39: #{upblock_forward.20} parent=5 // pred_region
      %s1571 = ssub.s32 %s9, 2
      // Predicated region
      $region41: #{upblock_forward.20} parent=39 // pred_check
        %p1572 = pneg %p116
      $region42: #{upblock_forward.20} parent=39 // pred_check_branch
        %1574 = sbr.rel (%p1572) target = $region44
      $region43: #{upblock_forward.20} parent=39 // pred_region
        %p1575 = scmp.lt.s32.totalorder %s15, 7
        %s1576 = scalar_select %p1575, %s15, 7
        %s1577 = smul.addr %s1576, 32
        %s1578 = smul.addr %s1577, 8
        %s1579 = scalar_lea.vmem %s3, %s1578
      $region44: #{upblock_forward.20} parent=39 // pred_fallthru
        _
    $region40: #{upblock_forward.20} parent=5 // pred_fallthru
      _
  $region6: #{upblock_forward.20} parent=0 // loop_footer
    %s13 = sadd.s32 1, %s9
  $region7: #{upblock_forward.20} parent=0 // loop_footer_branch
    %8 = sbr.rel target = $region3
  $region8: #{upblock_forward.20} parent=0 // loop_exit
    _

</llo_original>
